<compile_context>
chip_gen: v6e
topology: v6e:2x2x1
jax: 0.10.0
libtpu: 0.0.40
codegen_flags: <defaults>
</compile_context>

<pallas_src>
import math

import jax
import jax.numpy as jnp
from jax.experimental import pallas as pl
from jax.experimental.pallas import tpu as pltpu

P_DROP = 0.1
_SCALE = 1.0 / (1.0 - P_DROP)
_THRESHOLD_31 = int(P_DROP * (1 << 31))  # keep iff hash31 >= p * 2^31


def _dropout_kernel(seed_ref, x_ref, o_ref):
    rows, cols = x_ref.shape
    i = pl.program_id(0)

    # Global element index for every element of this tile (counter-based RNG,
    # so every grid step is fully independent -> grid axis is "parallel").
    r = jax.lax.broadcasted_iota(jnp.int32, (rows, cols), 0)
    c = jax.lax.broadcasted_iota(jnp.int32, (rows, cols), 1)
    idx = (i * rows + r) * cols + c

    # Counter-based hash (lowbias32-style finalizer) of (index, seed) -> u32.
    h = idx.astype(jnp.uint32) + seed_ref[0].astype(jnp.uint32) * jnp.uint32(0x9E3779B9)
    h = h ^ (h >> jnp.uint32(16))
    h = h * jnp.uint32(0x21F0AAAD)
    h = h ^ (h >> jnp.uint32(15))
    h = h * jnp.uint32(0x735A2D97)
    h = h ^ (h >> jnp.uint32(15))

    # Map to [0, 2^31) and compare in the signed domain (portable everywhere).
    h31 = (h >> jnp.uint32(1)).astype(jnp.int32)
    keep = h31 >= jnp.int32(_THRESHOLD_31)

    o_ref[...] = jnp.where(keep, x_ref[...] * jnp.float32(_SCALE),
                           jnp.float32(0.0)).astype(o_ref.dtype)


def dropout_pallas(x, seed, *, target_tile_bytes=2 * 1024 * 1024):
    """Dropout(p=0.1), training mode, on an arbitrary-rank float array."""
    orig_shape = x.shape
    cols = int(orig_shape[-1])
    rows = int(math.prod(orig_shape[:-1])) if len(orig_shape) > 1 else 1
    x2d = x.reshape(rows, cols)

    itemsize = x.dtype.itemsize
    total_bytes = rows * cols * itemsize
    # Fewest grid steps whose tiles stay around target_tile_bytes: big,
    # lane-dense tiles for this mem-bound kernel; with in+out double buffering
    # (4 * tile ~ 8 MiB) we stay under the 16 MiB v5e scoped-VMEM default.
    n_steps = max(1, -(-total_bytes // target_tile_bytes))
    row_tile = -(-rows // n_steps)
    row_tile = max(8, ((row_tile + 7) // 8) * 8)  # sublane-align
    padded_rows = -(-rows // row_tile) * row_tile
    if padded_rows != rows:
        x2d = jnp.pad(x2d, ((0, padded_rows - rows), (0, 0)))

    grid = (padded_rows // row_tile,)

    out2d = pl.pallas_call(
        _dropout_kernel,
        out_shape=jax.ShapeDtypeStruct((padded_rows, cols), x.dtype),
        grid_spec=pltpu.PrefetchScalarGridSpec(
            num_scalar_prefetch=1,
            grid=grid,
            in_specs=[pl.BlockSpec((row_tile, cols), lambda i, seed: (i, 0))],
            out_specs=pl.BlockSpec((row_tile, cols), lambda i, seed: (i, 0)),
        ),
        compiler_params=pltpu.CompilerParams(
            dimension_semantics=("parallel",),  # stateless per-tile RNG -> safe
        ),
    )(seed, x2d)

    if padded_rows != rows:
        out2d = out2d[:rows]
    return out2d.reshape(orig_shape)


if __name__ == "__main__":
    # Module input is (1, 12, 384, 384); use a smaller but consistent shape
    # (same heads / lane width, shorter sequence) for the example run.
    key = jax.random.PRNGKey(0)
    x = jax.random.normal(key, (1, 12, 192, 384), dtype=jnp.float32)
    seed = jnp.array([0], dtype=jnp.int32)

    y = jax.block_until_ready(dropout_pallas(x, seed))

    assert y.shape == x.shape and y.dtype == x.dtype

    # Sanity checks: surviving elements are exactly x / (1 - p), the rest are
    # zero, and the dropped fraction is roughly p.
    mask = y != 0.0
    scaled = x * (1.0 / (1.0 - P_DROP))
    ok_vals = bool(jnp.allclose(jnp.where(mask, y, 0.0),
                                jnp.where(mask, scaled, 0.0),
                                rtol=1e-6, atol=1e-6))
    drop_frac = float(1.0 - jnp.mean(mask.astype(jnp.float32)))
    assert ok_vals, "kept values do not match x / (1 - p)"
    assert 0.05 < drop_frac < 0.15, f"drop fraction {drop_frac} not near p=0.1"

    print("KERNEL_OK")
</pallas_src>

<mosaic_0001>
module attributes {stable_mosaic.version = 11 : i64} {
  func.func @_dropout_kernel(%arg0: i32, %arg1: memref<1xi32, #tpu.memory_space<smem>>, %arg2: memref<1152x384xf32, #tpu.memory_space<vmem>>, %arg3: memref<1152x384xf32, #tpu.memory_space<vmem>>) attributes {dimension_semantics = [#tpu.dimension_semantics<parallel>], iteration_bounds = array<i64: 2>, scalar_prefetch = 1 : i64, scratch_operands = 0 : i64, tpu.core_type = #tpu.core_type<tc>, window_params = [{transform_indices = @transform_0, window_bounds = array<i64: 1152, 384>}, {transform_indices = @transform_1, window_bounds = array<i64: 1152, 384>}]} {
    %0 = tpu.iota {dimensions = array<i32: 0>} : vector<1152x384xi32>
    %1 = tpu.iota {dimensions = array<i32: 1>} : vector<1152x384xi32>
    %c1152_i32 = arith.constant 1152 : i32
    %2 = arith.muli %arg0, %c1152_i32 : i32
    %3 = vector.broadcast %2 : i32 to vector<1152x384xi32>
    %4 = arith.addi %3, %0 : vector<1152x384xi32>
    %c384_i32 = arith.constant 384 : i32
    %5 = vector.broadcast %c384_i32 : i32 to vector<1152x384xi32>
    %6 = arith.muli %4, %5 : vector<1152x384xi32>
    %7 = arith.addi %6, %1 : vector<1152x384xi32>
    %c0 = arith.constant 0 : index
    %8 = memref.load %arg1[%c0] : memref<1xi32, #tpu.memory_space<smem>>
    %c-1640531527_i32 = arith.constant -1640531527 : i32
    %9 = arith.muli %8, %c-1640531527_i32 : i32
    %10 = vector.broadcast %9 : i32 to vector<1152x384xi32>
    %11 = arith.addi %7, %10 : vector<1152x384xi32>
    %c16_i32 = arith.constant 16 : i32
    %12 = vector.broadcast %c16_i32 : i32 to vector<1152x384xi32>
    %13 = arith.shrui %11, %12 : vector<1152x384xi32>
    %14 = arith.xori %11, %13 : vector<1152x384xi32>
    %c569420461_i32 = arith.constant 569420461 : i32
    %15 = vector.broadcast %c569420461_i32 : i32 to vector<1152x384xi32>
    %16 = arith.muli %14, %15 : vector<1152x384xi32>
    %c15_i32 = arith.constant 15 : i32
    %17 = vector.broadcast %c15_i32 : i32 to vector<1152x384xi32>
    %18 = arith.shrui %16, %17 : vector<1152x384xi32>
    %19 = arith.xori %16, %18 : vector<1152x384xi32>
    %c1935289751_i32 = arith.constant 1935289751 : i32
    %20 = vector.broadcast %c1935289751_i32 : i32 to vector<1152x384xi32>
    %21 = arith.muli %19, %20 : vector<1152x384xi32>
    %c15_i32_0 = arith.constant 15 : i32
    %22 = vector.broadcast %c15_i32_0 : i32 to vector<1152x384xi32>
    %23 = arith.shrui %21, %22 : vector<1152x384xi32>
    %24 = arith.xori %21, %23 : vector<1152x384xi32>
    %c1_i32 = arith.constant 1 : i32
    %25 = vector.broadcast %c1_i32 : i32 to vector<1152x384xi32>
    %26 = arith.shrui %24, %25 : vector<1152x384xi32>
    %c214748364_i32 = arith.constant 214748364 : i32
    %27 = vector.broadcast %c214748364_i32 : i32 to vector<1152x384xi32>
    %28 = arith.cmpi sge, %26, %27 : vector<1152x384xi32>
    %c0_1 = arith.constant 0 : index
    %c0_2 = arith.constant 0 : index
    %29 = vector.load %arg2[%c0_1, %c0_2] : memref<1152x384xf32, #tpu.memory_space<vmem>>, vector<1152x384xf32>
    %cst = arith.constant 1.11111116 : f32
    %30 = vector.broadcast %cst : f32 to vector<1152x384xf32>
    %31 = arith.mulf %29, %30 : vector<1152x384xf32>
    %cst_3 = arith.constant 0.000000e+00 : f32
    %32 = vector.broadcast %cst_3 : f32 to vector<1152x384xf32>
    %33 = arith.select %28, %31, %32 : vector<1152x384xi1>, vector<1152x384xf32>
    %c0_4 = arith.constant 0 : index
    %c0_5 = arith.constant 0 : index
    %34 = vector.load %arg3[%c0_4, %c0_5] : memref<1152x384xf32, #tpu.memory_space<vmem>>, vector<1152x384xf32>
    tpu.vector_store %arg3[%c0_4, %c0_5], %33 {strides = array<i32>} : memref<1152x384xf32, #tpu.memory_space<vmem>>, vector<1152x384xf32>,
    return
  }
  func.func @transform_0(%arg0: i32, %arg1: memref<1xi32, #tpu.memory_space<smem>>) -> (i32, i32) {
    %c0_i32 = arith.constant 0 : i32
    %c0_i32_0 = arith.constant 0 : i32
    return %arg0, %c0_i32 : i32, i32
  }
  func.func @transform_1(%arg0: i32, %arg1: memref<1xi32, #tpu.memory_space<smem>>) -> (i32, i32) {
    %c0_i32 = arith.constant 0 : i32
    %c0_i32_0 = arith.constant 0 : i32
    return %arg0, %c0_i32 : i32, i32
  }
}

</mosaic_0001>

<llo_original>
// kernel: tpu_custom_call.1
$region0: #{tpu_custom_call.1}
  #allocation0 [shape = 'u32[]', space=smem, size = 0x4, offset = 0x4, fixed_abs, tag = 'smem constant byte address 0x4 - core index']
  #allocation1 [shape = 'u32[144,128]{1,0:T(1,128)}', space=vmem, size = 0x12000, scoped, tag = 'internal scratch']
  #allocation2 [shape = 's32[1]{0}', space=sflag, size = 0x4, scoped, tag = 'scoped memory for tpu_custom_call.1']
  #allocation3 [shape = 's32[1]{0:T(128)S(6)}', space=smem, size = 0x200, scoped, tag = 'prefetched SMEM operand 0']
  %s0 = inlined_call_operand.<no memory space> [shape: s32[1], index: 0, kind: input, shape index: {}]
  %s1 = inlined_call_operand.hbm [shape: f32[2304,384], index: 1, kind: input, shape index: {}]
  %s2 = inlined_call_operand.hbm [shape: f32[2304,384], index: 2, kind: output, shape index: {}]
  %s3 = sld [smem:[#allocation0]]
  $region41: #{tpu_custom_call.1} parent=0
    _
  %s5 = ssub.s32 1, %s3
  %s6 = scalar_select 0, %s5, %s3
  %7 = sst [smem:[#allocation3]] %s0
  $region1: #{tpu_custom_call.1} parent=0
    #allocation4 [shape = 'u8[3538944]{0}', space=vmem, size = 0x360000, scoped, tag = 'input window, operand 1']
    #allocation5 [shape = 's32[2]{0}', space=sflag, size = 0x8, scoped, tag = 'scoped memory for tpu_custom_call.1']
    #allocation6 [shape = 's32[2]{0}', space=sflag, size = 0x8, scoped, tag = 'scoped memory for tpu_custom_call.1']
    #allocation7 [shape = 'u8[3538944]{0}', space=vmem, size = 0x360000, scoped, tag = 'output window, operand 0']
    %8 = vsyncpa [#allocation5], 0
    %s9 = scalar_lea.sflag [#allocation5], 1
    %10 = vsyncpa %s9, 0
    %11 = vsyncpa [#allocation6], 0
    %s12 = scalar_lea.sflag [#allocation6], 1
    %13 = vsyncpa %s12, 0
    loop: start=0, step=1, limit=4
    $region2: #{tpu_custom_call.1} parent=1 // loop_pre_header
      _
    $region3: #{tpu_custom_call.1} parent=1 // loop_header
      %s15 = sphi 0, %s19
      %p16 = scmp.ge.s32.totalorder %s15, 4
      %s25 = sphi 0, %s27
      %s28 = sphi 0, %s25
      %s29 = sphi 0, %s28
      %s45 = sphi 0, %s29
      %s51 = sphi 0, %s53
      %s54 = sphi 0, %s51
      %s55 = sphi 0, %s54
      %s71 = sphi 0, %s55
    $region4: #{tpu_custom_call.1} parent=1 // loop_header_branch
      %18 = sbr.rel (%p16) target = $region8
    $region5: #{tpu_custom_call.1} parent=1 // loop_body
      %s20 = ssub.s32 %s15, 1
      %s21 = ssub.s32 %s15, 2
      %s22 = sadd.s32 %s15, 1
      %s23 = ssub.s32 %s15, %s22
      %p24 = scmp.eq.s32.totalorder %s23, 0
      %s26 = sadd.s32 %s25, 1
      %s27 = scalar_select %p24, %s25, %s26
      %p30 = pneg %p24
      %p31 = scmp.eq.s32.totalorder %s15, 1
      %p32 = por %p30, %p31
      %p33 = scmp.ne.s32.totalorder %s25, %s28
      %p34 = scmp.eq.s32.totalorder %s15, 0
      %p35 = por %p33, %p34
      %p36 = scmp.ne.s32.totalorder %s25, %s28
      %p37 = scmp.eq.s32.totalorder %s20, 1
      %p38 = por %p36, %p37
      %p39 = scmp.ne.s32.totalorder %s28, %s29
      %p40 = scmp.eq.s32.totalorder %s20, 0
      %p41 = por %p39, %p40
      %p42 = scmp.ne.s32.totalorder %s28, %s29
      %p43 = scmp.eq.s32.totalorder %s21, 1
      %p44 = por %p42, %p43
      %p46 = scmp.ne.s32.totalorder %s29, %s45
      %p47 = scmp.eq.s32.totalorder %s21, 0
      %p48 = por %p46, %p47
      %s49 = ssub.s32 %s15, %s22
      %p50 = scmp.eq.s32.totalorder %s49, 0
      %s52 = sadd.s32 %s51, 1
      %s53 = scalar_select %p50, %s51, %s52
      %p56 = pneg %p50
      %p57 = scmp.eq.s32.totalorder %s15, 1
      %p58 = por %p56, %p57
      %p59 = scmp.ne.s32.totalorder %s51, %s54
      %p60 = scmp.eq.s32.totalorder %s15, 0
      %p61 = por %p59, %p60
      %p62 = scmp.ne.s32.totalorder %s51, %s54
      %p63 = scmp.eq.s32.totalorder %s20, 1
      %p64 = por %p62, %p63
      %p65 = scmp.ne.s32.totalorder %s54, %s55
      %p66 = scmp.eq.s32.totalorder %s20, 0
      %p67 = por %p65, %p66
      %p68 = scmp.ne.s32.totalorder %s54, %s55
      %p69 = scmp.eq.s32.totalorder %s21, 1
      %p70 = por %p68, %p69
      %p72 = scmp.ne.s32.totalorder %s55, %s71
      %p73 = scmp.eq.s32.totalorder %s21, 0
      %p74 = por %p72, %p73
      %p75 = scmp.le.s32.totalorder 1, %s15
      %p76 = scmp.lt.s32.totalorder %s15, 3
      %p77 = pnand %p75, %p76
      %p78 = pneg %p77
      // Predicated region
      $region9: #{tpu_custom_call.1} parent=5 // pred_check
        _
      $region10: #{tpu_custom_call.1} parent=5 // pred_check_branch
        %80 = sbr.rel (%p77) target = $region12
      $region11: #{tpu_custom_call.1} parent=5 // pred_region
        %s81 = ssub.s32 %s15, 1
      $region12: #{tpu_custom_call.1} parent=5 // pred_fallthru
        _
      %p82 = scmp.lt.s32.totalorder %s15, 2
      // Predicated region
      $region13: #{tpu_custom_call.1} parent=5 // pred_check
        %p83 = pneg %p82
      $region14: #{tpu_custom_call.1} parent=5 // pred_check_branch
        %85 = sbr.rel (%p83) target = $region16
      $region15: #{tpu_custom_call.1} parent=5 // pred_region
        // Predicated region
        $region17: #{tpu_custom_call.1} parent=15 // pred_check
          %p86 = pneg %p35
        $region18: #{tpu_custom_call.1} parent=15 // pred_check_branch
          %88 = sbr.rel (%p86) target = $region20
        $region19: #{tpu_custom_call.1} parent=15 // pred_region
          %s89 = sand.u32 %s25, 1
          %s90 = scalar_lea.sflag [#allocation5], %s89
          %s91 = sand.u32 %s25, 1
          %s92 = smul.addr %s91, 3456
          %s93 = scalar_lea.vmem [#allocation4], %s92
          %s94 = smul.u32 144, %s15
          %s96 = ssub.s32 55296, 55296
          %97 = vsyncadd %s90, %s96
          %s98 = smul.addr %s94, 3
          %s99 = smul.addr %s98, 128
          %s100 = scalar_lea.hbm %s1, %s99
          %s101 = sshll.u32 %s93, 4
          %s102 = int_to_ptr.vmem [resolvable:$true] %s101
          %107 = dma.hbm_to_vmem [thread:$0]  %s100, 55296, %s102, %s90, 384, 384, 24
        $region20: #{tpu_custom_call.1} parent=15 // pred_fallthru
          _
      $region16: #{tpu_custom_call.1} parent=5 // pred_fallthru
        _
      %p108 = scmp.le.s32.totalorder 1, %s15
      %p109 = scmp.lt.s32.totalorder %s15, 3
      %p110 = pnand %p108, %p109
      %p111 = pneg %p110
      // Predicated region
      $region21: #{tpu_custom_call.1} parent=5 // pred_check
        _
      $region22: #{tpu_custom_call.1} parent=5 // pred_check_branch
        %113 = sbr.rel (%p110) target = $region24
      $region23: #{tpu_custom_call.1} parent=5 // pred_region
        %s114 = ssub.s32 %s15, 1
        %s115 = sand.u32 %s28, 1
        %s116 = scalar_lea.sflag [#allocation5], %s115
        %s117 = sand.u32 %s28, 1
        %s118 = smul.addr %s117, 3456
        %s119 = scalar_lea.vmem [#allocation4], %s118
        // Predicated region
        $region25: #{tpu_custom_call.1} parent=23 // pred_check
          %p120 = pneg %p41
        $region26: #{tpu_custom_call.1} parent=23 // pred_check_branch
          %122 = sbr.rel (%p120) target = $region28
        $region27: #{tpu_custom_call.1} parent=23 // pred_region
          %123 = dma.done %s116, 55296
        $region28: #{tpu_custom_call.1} parent=23 // pred_fallthru
          _
        %s124 = sand.u32 %s28, 1
        %s125 = scalar_lea.sflag [#allocation5], %s124
        %s126 = sand.u32 %s28, 1
        %s127 = smul.addr %s126, 3456
        %s128 = scalar_lea.vmem [#allocation4], %s127
        %p129 = pneg %p41
        %p130 = pneg %p38
        %p131 = pneg %p67
        %p132 = pneg %p64
        %s133 = sand.u32 %s54, 1
        %s134 = scalar_lea.sflag [#allocation6], %s133
        %s135 = sand.u32 %s54, 1
        %s136 = smul.addr %s135, 3456
        %s137 = scalar_lea.vmem [#allocation7], %s136
        %s138 = smul.u32 144, %s20
        %s139 = smul.u32 144, %s20
        %v140 = vlaneseq
        %v141 = vshrl.u32 %v140, 7
        %v142 = vadd.s32 %v141, 8
        %v143 = vadd.s32 %v141, 16
        %v144 = vadd.s32 %v141, 24
        %v145 = vadd.s32 %v141, 32
        %v146 = vadd.s32 %v141, 40
        %v147 = vadd.s32 %v141, 48
        %v148 = vadd.s32 %v141, 56
        %v149 = vadd.s32 %v141, 64
        %v150 = vadd.s32 %v141, 72
        %v151 = vadd.s32 %v141, 80
        %v152 = vadd.s32 %v141, 88
        %v153 = vadd.s32 %v141, 96
        %v154 = vadd.s32 %v141, 104
        %v155 = vadd.s32 %v141, 112
        %v156 = vadd.s32 %v141, 120
        %v157 = vadd.s32 %v141, 128
        %v158 = vadd.s32 %v141, 136
        %v159 = vadd.s32 %v141, 144
        %v160 = vadd.s32 %v141, 152
        %v161 = vadd.s32 %v141, 160
        %v162 = vadd.s32 %v141, 168
        %v163 = vadd.s32 %v141, 176
        %v164 = vadd.s32 %v141, 184
        %v165 = vadd.s32 %v141, 192
        %v166 = vadd.s32 %v141, 200
        %v167 = vadd.s32 %v141, 208
        %v168 = vadd.s32 %v141, 216
        %v169 = vadd.s32 %v141, 224
        %v170 = vadd.s32 %v141, 232
        %v171 = vadd.s32 %v141, 240
        %v172 = vadd.s32 %v141, 248
        %v173 = vadd.s32 %v141, 256
        %v174 = vadd.s32 %v141, 264
        %v175 = vadd.s32 %v141, 272
        %v176 = vadd.s32 %v141, 280
        %v177 = vadd.s32 %v141, 288
        %v178 = vadd.s32 %v141, 296
        %v179 = vadd.s32 %v141, 304
        %v180 = vadd.s32 %v141, 312
        %v181 = vadd.s32 %v141, 320
        %v182 = vadd.s32 %v141, 328
        %v183 = vadd.s32 %v141, 336
        %v184 = vadd.s32 %v141, 344
        %v185 = vadd.s32 %v141, 352
        %v186 = vadd.s32 %v141, 360
        %v187 = vadd.s32 %v141, 368
        %v188 = vadd.s32 %v141, 376
        %v189 = vadd.s32 %v141, 384
        %v190 = vadd.s32 %v141, 392
        %v191 = vadd.s32 %v141, 400
        %v192 = vadd.s32 %v141, 408
        %v193 = vadd.s32 %v141, 416
        %v194 = vadd.s32 %v141, 424
        %v195 = vadd.s32 %v141, 432
        %v196 = vadd.s32 %v141, 440
        %v197 = vadd.s32 %v141, 448
        %v198 = vadd.s32 %v141, 456
        %v199 = vadd.s32 %v141, 464
        %v200 = vadd.s32 %v141, 472
        %v201 = vadd.s32 %v141, 480
        %v202 = vadd.s32 %v141, 488
        %v203 = vadd.s32 %v141, 496
        %v204 = vadd.s32 %v141, 504
        %v205 = vadd.s32 %v141, 512
        %v206 = vadd.s32 %v141, 520
        %v207 = vadd.s32 %v141, 528
        %v208 = vadd.s32 %v141, 536
        %v209 = vadd.s32 %v141, 544
        %v210 = vadd.s32 %v141, 552
        %v211 = vadd.s32 %v141, 560
        %v212 = vadd.s32 %v141, 568
        %v213 = vadd.s32 %v141, 576
        %v214 = vadd.s32 %v141, 584
        %v215 = vadd.s32 %v141, 592
        %v216 = vadd.s32 %v141, 600
        %v217 = vadd.s32 %v141, 608
        %v218 = vadd.s32 %v141, 616
        %v219 = vadd.s32 %v141, 624
        %v220 = vadd.s32 %v141, 632
        %v221 = vadd.s32 %v141, 640
        %v222 = vadd.s32 %v141, 648
        %v223 = vadd.s32 %v141, 656
        %v224 = vadd.s32 %v141, 664
        %v225 = vadd.s32 %v141, 672
        %v226 = vadd.s32 %v141, 680
        %v227 = vadd.s32 %v141, 688
        %v228 = vadd.s32 %v141, 696
        %v229 = vadd.s32 %v141, 704
        %v230 = vadd.s32 %v141, 712
        %v231 = vadd.s32 %v141, 720
        %v232 = vadd.s32 %v141, 728
        %v233 = vadd.s32 %v141, 736
        %v234 = vadd.s32 %v141, 744
        %v235 = vadd.s32 %v141, 752
        %v236 = vadd.s32 %v141, 760
        %v237 = vadd.s32 %v141, 768
        %v238 = vadd.s32 %v141, 776
        %v239 = vadd.s32 %v141, 784
        %v240 = vadd.s32 %v141, 792
        %v241 = vadd.s32 %v141, 800
        %v242 = vadd.s32 %v141, 808
        %v243 = vadd.s32 %v141, 816
        %v244 = vadd.s32 %v141, 824
        %v245 = vadd.s32 %v141, 832
        %v246 = vadd.s32 %v141, 840
        %v247 = vadd.s32 %v141, 848
        %v248 = vadd.s32 %v141, 856
        %v249 = vadd.s32 %v141, 864
        %v250 = vadd.s32 %v141, 872
        %v251 = vadd.s32 %v141, 880
        %v252 = vadd.s32 %v141, 888
        %v253 = vadd.s32 %v141, 896
        %v254 = vadd.s32 %v141, 904
        %v255 = vadd.s32 %v141, 912
        %v256 = vadd.s32 %v141, 920
        %v257 = vadd.s32 %v141, 928
        %v258 = vadd.s32 %v141, 936
        %v259 = vadd.s32 %v141, 944
        %v260 = vadd.s32 %v141, 952
        %v261 = vadd.s32 %v141, 960
        %v262 = vadd.s32 %v141, 968
        %v263 = vadd.s32 %v141, 976
        %v264 = vadd.s32 %v141, 984
        %v265 = vadd.s32 %v141, 992
        %v266 = vadd.s32 %v141, 1000
        %v267 = vadd.s32 %v141, 1008
        %v268 = vadd.s32 %v141, 1016
        %v269 = vadd.s32 %v141, 1024
        %v270 = vadd.s32 %v141, 1032
        %v271 = vadd.s32 %v141, 1040
        %v272 = vadd.s32 %v141, 1048
        %v273 = vadd.s32 %v141, 1056
        %v274 = vadd.s32 %v141, 1064
        %v275 = vadd.s32 %v141, 1072
        %v276 = vadd.s32 %v141, 1080
        %v277 = vadd.s32 %v141, 1088
        %v278 = vadd.s32 %v141, 1096
        %v279 = vadd.s32 %v141, 1104
        %v280 = vadd.s32 %v141, 1112
        %v281 = vadd.s32 %v141, 1120
        %v282 = vadd.s32 %v141, 1128
        %v283 = vadd.s32 %v141, 1136
        %v284 = vadd.s32 %v141, 1144
        %v285 = vlaneseq
        %v286 = vand.u32 %v285, 127
        %v287 = vadd.s32 %v286, 128
        %v288 = vadd.s32 %v286, 256
        %s289 = smul.u32 %s20, 1152
        %v290 = vstv %s289
        %v291 = vadd.s32 %v290, %v141
        %v292 = vadd.s32 %v290, %v142
        %v293 = vadd.s32 %v290, %v143
        %v294 = vadd.s32 %v290, %v144
        %v295 = vadd.s32 %v290, %v145
        %v296 = vadd.s32 %v290, %v146
        %v297 = vadd.s32 %v290, %v147
        %v298 = vadd.s32 %v290, %v148
        %v299 = vadd.s32 %v290, %v149
        %v300 = vadd.s32 %v290, %v150
        %v301 = vadd.s32 %v290, %v151
        %v302 = vadd.s32 %v290, %v152
        %v303 = vadd.s32 %v290, %v153
        %v304 = vadd.s32 %v290, %v154
        %v305 = vadd.s32 %v290, %v155
        %v306 = vadd.s32 %v290, %v156
        %v307 = vadd.s32 %v290, %v157
        %v308 = vadd.s32 %v290, %v158
        %v309 = vadd.s32 %v290, %v159
        %v310 = vadd.s32 %v290, %v160
        %v311 = vadd.s32 %v290, %v161
        %v312 = vadd.s32 %v290, %v162
        %v313 = vadd.s32 %v290, %v163
        %v314 = vadd.s32 %v290, %v164
        %v315 = vadd.s32 %v290, %v165
        %v316 = vadd.s32 %v290, %v166
        %v317 = vadd.s32 %v290, %v167
        %v318 = vadd.s32 %v290, %v168
        %v319 = vadd.s32 %v290, %v169
        %v320 = vadd.s32 %v290, %v170
        %v321 = vadd.s32 %v290, %v171
        %v322 = vadd.s32 %v290, %v172
        %v323 = vadd.s32 %v290, %v173
        %v324 = vadd.s32 %v290, %v174
        %v325 = vadd.s32 %v290, %v175
        %v326 = vadd.s32 %v290, %v176
        %v327 = vadd.s32 %v290, %v177
        %v328 = vadd.s32 %v290, %v178
        %v329 = vadd.s32 %v290, %v179
        %v330 = vadd.s32 %v290, %v180
        %v331 = vadd.s32 %v290, %v181
        %v332 = vadd.s32 %v290, %v182
        %v333 = vadd.s32 %v290, %v183
        %v334 = vadd.s32 %v290, %v184
        %v335 = vadd.s32 %v290, %v185
        %v336 = vadd.s32 %v290, %v186
        %v337 = vadd.s32 %v290, %v187
        %v338 = vadd.s32 %v290, %v188
        %v339 = vadd.s32 %v290, %v189
        %v340 = vadd.s32 %v290, %v190
        %v341 = vadd.s32 %v290, %v191
        %v342 = vadd.s32 %v290, %v192
        %v343 = vadd.s32 %v290, %v193
        %v344 = vadd.s32 %v290, %v194
        %v345 = vadd.s32 %v290, %v195
        %v346 = vadd.s32 %v290, %v196
        %v347 = vadd.s32 %v290, %v197
        %v348 = vadd.s32 %v290, %v198
        %v349 = vadd.s32 %v290, %v199
        %v350 = vadd.s32 %v290, %v200
        %v351 = vadd.s32 %v290, %v201
        %v352 = vadd.s32 %v290, %v202
        %v353 = vadd.s32 %v290, %v203
        %v354 = vadd.s32 %v290, %v204
        %v355 = vadd.s32 %v290, %v205
        %v356 = vadd.s32 %v290, %v206
        %v357 = vadd.s32 %v290, %v207
        %v358 = vadd.s32 %v290, %v208
        %v359 = vadd.s32 %v290, %v209
        %v360 = vadd.s32 %v290, %v210
        %v361 = vadd.s32 %v290, %v211
        %v362 = vadd.s32 %v290, %v212
        %v363 = vadd.s32 %v290, %v213
        %v364 = vadd.s32 %v290, %v214
        %v365 = vadd.s32 %v290, %v215
        %v366 = vadd.s32 %v290, %v216
        %v367 = vadd.s32 %v290, %v217
        %v368 = vadd.s32 %v290, %v218
        %v369 = vadd.s32 %v290, %v219
        %v370 = vadd.s32 %v290, %v220
        %v371 = vadd.s32 %v290, %v221
        %v372 = vadd.s32 %v290, %v222
        %v373 = vadd.s32 %v290, %v223
        %v374 = vadd.s32 %v290, %v224
        %v375 = vadd.s32 %v290, %v225
        %v376 = vadd.s32 %v290, %v226
        %v377 = vadd.s32 %v290, %v227
        %v378 = vadd.s32 %v290, %v228
        %v379 = vadd.s32 %v290, %v229
        %v380 = vadd.s32 %v290, %v230
        %v381 = vadd.s32 %v290, %v231
        %v382 = vadd.s32 %v290, %v232
        %v383 = vadd.s32 %v290, %v233
        %v384 = vadd.s32 %v290, %v234
        %v385 = vadd.s32 %v290, %v235
        %v386 = vadd.s32 %v290, %v236
        %v387 = vadd.s32 %v290, %v237
        %v388 = vadd.s32 %v290, %v238
        %v389 = vadd.s32 %v290, %v239
        %v390 = vadd.s32 %v290, %v240
        %v391 = vadd.s32 %v290, %v241
        %v392 = vadd.s32 %v290, %v242
        %v393 = vadd.s32 %v290, %v243
        %v394 = vadd.s32 %v290, %v244
        %v395 = vadd.s32 %v290, %v245
        %v396 = vadd.s32 %v290, %v246
        %v397 = vadd.s32 %v290, %v247
        %v398 = vadd.s32 %v290, %v248
        %v399 = vadd.s32 %v290, %v249
        %v400 = vadd.s32 %v290, %v250
        %v401 = vadd.s32 %v290, %v251
        %v402 = vadd.s32 %v290, %v252
        %v403 = vadd.s32 %v290, %v253
        %v404 = vadd.s32 %v290, %v254
        %v405 = vadd.s32 %v290, %v255
        %v406 = vadd.s32 %v290, %v256
        %v407 = vadd.s32 %v290, %v257
        %v408 = vadd.s32 %v290, %v258
        %v409 = vadd.s32 %v290, %v259
        %v410 = vadd.s32 %v290, %v260
        %v411 = vadd.s32 %v290, %v261
        %v412 = vadd.s32 %v290, %v262
        %v413 = vadd.s32 %v290, %v263
        %v414 = vadd.s32 %v290, %v264
        %v415 = vadd.s32 %v290, %v265
        %v416 = vadd.s32 %v290, %v266
        %v417 = vadd.s32 %v290, %v267
        %v418 = vadd.s32 %v290, %v268
        %v419 = vadd.s32 %v290, %v269
        %v420 = vadd.s32 %v290, %v270
        %v421 = vadd.s32 %v290, %v271
        %v422 = vadd.s32 %v290, %v272
        %v423 = vadd.s32 %v290, %v273
        %v424 = vadd.s32 %v290, %v274
        %v425 = vadd.s32 %v290, %v275
        %v426 = vadd.s32 %v290, %v276
        %v427 = vadd.s32 %v290, %v277
        %v428 = vadd.s32 %v290, %v278
        %v429 = vadd.s32 %v290, %v279
        %v430 = vadd.s32 %v290, %v280
        %v431 = vadd.s32 %v290, %v281
        %v432 = vadd.s32 %v290, %v282
        %v433 = vadd.s32 %v290, %v283
        %v434 = vadd.s32 %v290, %v284
        %v435 = vmul.u32 %v291, 384
        %v436 = vmul.u32 %v292, 384
        %v437 = vmul.u32 %v293, 384
        %v438 = vmul.u32 %v294, 384
        %v439 = vmul.u32 %v295, 384
        %v440 = vmul.u32 %v296, 384
        %v441 = vmul.u32 %v297, 384
        %v442 = vmul.u32 %v298, 384
        %v443 = vmul.u32 %v299, 384
        %v444 = vmul.u32 %v300, 384
        %v445 = vmul.u32 %v301, 384
        %v446 = vmul.u32 %v302, 384
        %v447 = vmul.u32 %v303, 384
        %v448 = vmul.u32 %v304, 384
        %v449 = vmul.u32 %v305, 384
        %v450 = vmul.u32 %v306, 384
        %v451 = vmul.u32 %v307, 384
        %v452 = vmul.u32 %v308, 384
        %v453 = vmul.u32 %v309, 384
        %v454 = vmul.u32 %v310, 384
        %v455 = vmul.u32 %v311, 384
        %v456 = vmul.u32 %v312, 384
        %v457 = vmul.u32 %v313, 384
        %v458 = vmul.u32 %v314, 384
        %v459 = vmul.u32 %v315, 384
        %v460 = vmul.u32 %v316, 384
        %v461 = vmul.u32 %v317, 384
        %v462 = vmul.u32 %v318, 384
        %v463 = vmul.u32 %v319, 384
        %v464 = vmul.u32 %v320, 384
        %v465 = vmul.u32 %v321, 384
        %v466 = vmul.u32 %v322, 384
        %v467 = vmul.u32 %v323, 384
        %v468 = vmul.u32 %v324, 384
        %v469 = vmul.u32 %v325, 384
        %v470 = vmul.u32 %v326, 384
        %v471 = vmul.u32 %v327, 384
        %v472 = vmul.u32 %v328, 384
        %v473 = vmul.u32 %v329, 384
        %v474 = vmul.u32 %v330, 384
        %v475 = vmul.u32 %v331, 384
        %v476 = vmul.u32 %v332, 384
        %v477 = vmul.u32 %v333, 384
        %v478 = vmul.u32 %v334, 384
        %v479 = vmul.u32 %v335, 384
        %v480 = vmul.u32 %v336, 384
        %v481 = vmul.u32 %v337, 384
        %v482 = vmul.u32 %v338, 384
        %v483 = vmul.u32 %v339, 384
        %v484 = vmul.u32 %v340, 384
        %v485 = vmul.u32 %v341, 384
        %v486 = vmul.u32 %v342, 384
        %v487 = vmul.u32 %v343, 384
        %v488 = vmul.u32 %v344, 384
        %v489 = vmul.u32 %v345, 384
        %v490 = vmul.u32 %v346, 384
        %v491 = vmul.u32 %v347, 384
        %v492 = vmul.u32 %v348, 384
        %v493 = vmul.u32 %v349, 384
        %v494 = vmul.u32 %v350, 384
        %v495 = vmul.u32 %v351, 384
        %v496 = vmul.u32 %v352, 384
        %v497 = vmul.u32 %v353, 384
        %v498 = vmul.u32 %v354, 384
        %v499 = vmul.u32 %v355, 384
        %v500 = vmul.u32 %v356, 384
        %v501 = vmul.u32 %v357, 384
        %v502 = vmul.u32 %v358, 384
        %v503 = vmul.u32 %v359, 384
        %v504 = vmul.u32 %v360, 384
        %v505 = vmul.u32 %v361, 384
        %v506 = vmul.u32 %v362, 384
        %v507 = vmul.u32 %v363, 384
        %v508 = vmul.u32 %v364, 384
        %v509 = vmul.u32 %v365, 384
        %v510 = vmul.u32 %v366, 384
        %v511 = vmul.u32 %v367, 384
        %v512 = vmul.u32 %v368, 384
        %v513 = vmul.u32 %v369, 384
        %v514 = vmul.u32 %v370, 384
        %v515 = vmul.u32 %v371, 384
        %v516 = vmul.u32 %v372, 384
        %v517 = vmul.u32 %v373, 384
        %v518 = vmul.u32 %v374, 384
        %v519 = vmul.u32 %v375, 384
        %v520 = vmul.u32 %v376, 384
        %v521 = vmul.u32 %v377, 384
        %v522 = vmul.u32 %v378, 384
        %v523 = vmul.u32 %v379, 384
        %v524 = vmul.u32 %v380, 384
        %v525 = vmul.u32 %v381, 384
        %v526 = vmul.u32 %v382, 384
        %v527 = vmul.u32 %v383, 384
        %v528 = vmul.u32 %v384, 384
        %v529 = vmul.u32 %v385, 384
        %v530 = vmul.u32 %v386, 384
        %v531 = vmul.u32 %v387, 384
        %v532 = vmul.u32 %v388, 384
        %v533 = vmul.u32 %v389, 384
        %v534 = vmul.u32 %v390, 384
        %v535 = vmul.u32 %v391, 384
        %v536 = vmul.u32 %v392, 384
        %v537 = vmul.u32 %v393, 384
        %v538 = vmul.u32 %v394, 384
        %v539 = vmul.u32 %v395, 384
        %v540 = vmul.u32 %v396, 384
        %v541 = vmul.u32 %v397, 384
        %v542 = vmul.u32 %v398, 384
        %v543 = vmul.u32 %v399, 384
        %v544 = vmul.u32 %v400, 384
        %v545 = vmul.u32 %v401, 384
        %v546 = vmul.u32 %v402, 384
        %v547 = vmul.u32 %v403, 384
        %v548 = vmul.u32 %v404, 384
        %v549 = vmul.u32 %v405, 384
        %v550 = vmul.u32 %v406, 384
        %v551 = vmul.u32 %v407, 384
        %v552 = vmul.u32 %v408, 384
        %v553 = vmul.u32 %v409, 384
        %v554 = vmul.u32 %v410, 384
        %v555 = vmul.u32 %v411, 384
        %v556 = vmul.u32 %v412, 384
        %v557 = vmul.u32 %v413, 384
        %v558 = vmul.u32 %v414, 384
        %v559 = vmul.u32 %v415, 384
        %v560 = vmul.u32 %v416, 384
        %v561 = vmul.u32 %v417, 384
        %v562 = vmul.u32 %v418, 384
        %v563 = vmul.u32 %v419, 384
        %v564 = vmul.u32 %v420, 384
        %v565 = vmul.u32 %v421, 384
        %v566 = vmul.u32 %v422, 384
        %v567 = vmul.u32 %v423, 384
        %v568 = vmul.u32 %v424, 384
        %v569 = vmul.u32 %v425, 384
        %v570 = vmul.u32 %v426, 384
        %v571 = vmul.u32 %v427, 384
        %v572 = vmul.u32 %v428, 384
        %v573 = vmul.u32 %v429, 384
        %v574 = vmul.u32 %v430, 384
        %v575 = vmul.u32 %v431, 384
        %v576 = vmul.u32 %v432, 384
        %v577 = vmul.u32 %v433, 384
        %v578 = vmul.u32 %v434, 384
        %v579 = vadd.s32 %v435, %v286
        %v580 = vadd.s32 %v435, %v287
        %v581 = vadd.s32 %v435, %v288
        %v582 = vadd.s32 %v436, %v286
        %v583 = vadd.s32 %v436, %v287
        %v584 = vadd.s32 %v436, %v288
        %v585 = vadd.s32 %v437, %v286
        %v586 = vadd.s32 %v437, %v287
        %v587 = vadd.s32 %v437, %v288
        %v588 = vadd.s32 %v438, %v286
        %v589 = vadd.s32 %v438, %v287
        %v590 = vadd.s32 %v438, %v288
        %v591 = vadd.s32 %v439, %v286
        %v592 = vadd.s32 %v439, %v287
        %v593 = vadd.s32 %v439, %v288
        %v594 = vadd.s32 %v440, %v286
        %v595 = vadd.s32 %v440, %v287
        %v596 = vadd.s32 %v440, %v288
        %v597 = vadd.s32 %v441, %v286
        %v598 = vadd.s32 %v441, %v287
        %v599 = vadd.s32 %v441, %v288
        %v600 = vadd.s32 %v442, %v286
        %v601 = vadd.s32 %v442, %v287
        %v602 = vadd.s32 %v442, %v288
        %v603 = vadd.s32 %v443, %v286
        %v604 = vadd.s32 %v443, %v287
        %v605 = vadd.s32 %v443, %v288
        %v606 = vadd.s32 %v444, %v286
        %v607 = vadd.s32 %v444, %v287
        %v608 = vadd.s32 %v444, %v288
        %v609 = vadd.s32 %v445, %v286
        %v610 = vadd.s32 %v445, %v287
        %v611 = vadd.s32 %v445, %v288
        %v612 = vadd.s32 %v446, %v286
        %v613 = vadd.s32 %v446, %v287
        %v614 = vadd.s32 %v446, %v288
        %v615 = vadd.s32 %v447, %v286
        %v616 = vadd.s32 %v447, %v287
        %v617 = vadd.s32 %v447, %v288
        %v618 = vadd.s32 %v448, %v286
        %v619 = vadd.s32 %v448, %v287
        %v620 = vadd.s32 %v448, %v288
        %v621 = vadd.s32 %v449, %v286
        %v622 = vadd.s32 %v449, %v287
        %v623 = vadd.s32 %v449, %v288
        %v624 = vadd.s32 %v450, %v286
        %v625 = vadd.s32 %v450, %v287
        %v626 = vadd.s32 %v450, %v288
        %v627 = vadd.s32 %v451, %v286
        %v628 = vadd.s32 %v451, %v287
        %v629 = vadd.s32 %v451, %v288
        %v630 = vadd.s32 %v452, %v286
        %v631 = vadd.s32 %v452, %v287
        %v632 = vadd.s32 %v452, %v288
        %v633 = vadd.s32 %v453, %v286
        %v634 = vadd.s32 %v453, %v287
        %v635 = vadd.s32 %v453, %v288
        %v636 = vadd.s32 %v454, %v286
        %v637 = vadd.s32 %v454, %v287
        %v638 = vadd.s32 %v454, %v288
        %v639 = vadd.s32 %v455, %v286
        %v640 = vadd.s32 %v455, %v287
        %v641 = vadd.s32 %v455, %v288
        %v642 = vadd.s32 %v456, %v286
        %v643 = vadd.s32 %v456, %v287
        %v644 = vadd.s32 %v456, %v288
        %v645 = vadd.s32 %v457, %v286
        %v646 = vadd.s32 %v457, %v287
        %v647 = vadd.s32 %v457, %v288
        %v648 = vadd.s32 %v458, %v286
        %v649 = vadd.s32 %v458, %v287
        %v650 = vadd.s32 %v458, %v288
        %v651 = vadd.s32 %v459, %v286
        %v652 = vadd.s32 %v459, %v287
        %v653 = vadd.s32 %v459, %v288
        %v654 = vadd.s32 %v460, %v286
        %v655 = vadd.s32 %v460, %v287
        %v656 = vadd.s32 %v460, %v288
        %v657 = vadd.s32 %v461, %v286
        %v658 = vadd.s32 %v461, %v287
        %v659 = vadd.s32 %v461, %v288
        %v660 = vadd.s32 %v462, %v286
        %v661 = vadd.s32 %v462, %v287
        %v662 = vadd.s32 %v462, %v288
        %v663 = vadd.s32 %v463, %v286
        %v664 = vadd.s32 %v463, %v287
        %v665 = vadd.s32 %v463, %v288
        %v666 = vadd.s32 %v464, %v286
        %v667 = vadd.s32 %v464, %v287
        %v668 = vadd.s32 %v464, %v288
        %v669 = vadd.s32 %v465, %v286
        %v670 = vadd.s32 %v465, %v287
        %v671 = vadd.s32 %v465, %v288
        %v672 = vadd.s32 %v466, %v286
        %v673 = vadd.s32 %v466, %v287
        %v674 = vadd.s32 %v466, %v288
        %v675 = vadd.s32 %v467, %v286
        %v676 = vadd.s32 %v467, %v287
        %v677 = vadd.s32 %v467, %v288
        %v678 = vadd.s32 %v468, %v286
        %v679 = vadd.s32 %v468, %v287
        %v680 = vadd.s32 %v468, %v288
        %v681 = vadd.s32 %v469, %v286
        %v682 = vadd.s32 %v469, %v287
        %v683 = vadd.s32 %v469, %v288
        %v684 = vadd.s32 %v470, %v286
        %v685 = vadd.s32 %v470, %v287
        %v686 = vadd.s32 %v470, %v288
        %v687 = vadd.s32 %v471, %v286
        %v688 = vadd.s32 %v471, %v287
        %v689 = vadd.s32 %v471, %v288
        %v690 = vadd.s32 %v472, %v286
        %v691 = vadd.s32 %v472, %v287
        %v692 = vadd.s32 %v472, %v288
        %v693 = vadd.s32 %v473, %v286
        %v694 = vadd.s32 %v473, %v287
        %v695 = vadd.s32 %v473, %v288
        %v696 = vadd.s32 %v474, %v286
        %v697 = vadd.s32 %v474, %v287
        %v698 = vadd.s32 %v474, %v288
        %v699 = vadd.s32 %v475, %v286
        %v700 = vadd.s32 %v475, %v287
        %v701 = vadd.s32 %v475, %v288
        %v702 = vadd.s32 %v476, %v286
        %v703 = vadd.s32 %v476, %v287
        %v704 = vadd.s32 %v476, %v288
        %v705 = vadd.s32 %v477, %v286
        %v706 = vadd.s32 %v477, %v287
        %v707 = vadd.s32 %v477, %v288
        %v708 = vadd.s32 %v478, %v286
        %v709 = vadd.s32 %v478, %v287
        %v710 = vadd.s32 %v478, %v288
        %v711 = vadd.s32 %v479, %v286
        %v712 = vadd.s32 %v479, %v287
        %v713 = vadd.s32 %v479, %v288
        %v714 = vadd.s32 %v480, %v286
        %v715 = vadd.s32 %v480, %v287
        %v716 = vadd.s32 %v480, %v288
        %v717 = vadd.s32 %v481, %v286
        %v718 = vadd.s32 %v481, %v287
        %v719 = vadd.s32 %v481, %v288
        %v720 = vadd.s32 %v482, %v286
        %v721 = vadd.s32 %v482, %v287
        %v722 = vadd.s32 %v482, %v288
        %v723 = vadd.s32 %v483, %v286
        %v724 = vadd.s32 %v483, %v287
        %v725 = vadd.s32 %v483, %v288
        %v726 = vadd.s32 %v484, %v286
        %v727 = vadd.s32 %v484, %v287
        %v728 = vadd.s32 %v484, %v288
        %v729 = vadd.s32 %v485, %v286
        %v730 = vadd.s32 %v485, %v287
        %v731 = vadd.s32 %v485, %v288
        %v732 = vadd.s32 %v486, %v286
        %v733 = vadd.s32 %v486, %v287
        %v734 = vadd.s32 %v486, %v288
        %v735 = vadd.s32 %v487, %v286
        %v736 = vadd.s32 %v487, %v287
        %v737 = vadd.s32 %v487, %v288
        %v738 = vadd.s32 %v488, %v286
        %v739 = vadd.s32 %v488, %v287
        %v740 = vadd.s32 %v488, %v288
        %v741 = vadd.s32 %v489, %v286
        %v742 = vadd.s32 %v489, %v287
        %v743 = vadd.s32 %v489, %v288
        %v744 = vadd.s32 %v490, %v286
        %v745 = vadd.s32 %v490, %v287
        %v746 = vadd.s32 %v490, %v288
        %v747 = vadd.s32 %v491, %v286
        %v748 = vadd.s32 %v491, %v287
        %v749 = vadd.s32 %v491, %v288
        %v750 = vadd.s32 %v492, %v286
        %v751 = vadd.s32 %v492, %v287
        %v752 = vadd.s32 %v492, %v288
        %v753 = vadd.s32 %v493, %v286
        %v754 = vadd.s32 %v493, %v287
        %v755 = vadd.s32 %v493, %v288
        %v756 = vadd.s32 %v494, %v286
        %v757 = vadd.s32 %v494, %v287
        %v758 = vadd.s32 %v494, %v288
        %v759 = vadd.s32 %v495, %v286
        %v760 = vadd.s32 %v495, %v287
        %v761 = vadd.s32 %v495, %v288
        %v762 = vadd.s32 %v496, %v286
        %v763 = vadd.s32 %v496, %v287
        %v764 = vadd.s32 %v496, %v288
        %v765 = vadd.s32 %v497, %v286
        %v766 = vadd.s32 %v497, %v287
        %v767 = vadd.s32 %v497, %v288
        %v768 = vadd.s32 %v498, %v286
        %v769 = vadd.s32 %v498, %v287
        %v770 = vadd.s32 %v498, %v288
        %v771 = vadd.s32 %v499, %v286
        %v772 = vadd.s32 %v499, %v287
        %v773 = vadd.s32 %v499, %v288
        %v774 = vadd.s32 %v500, %v286
        %v775 = vadd.s32 %v500, %v287
        %v776 = vadd.s32 %v500, %v288
        %v777 = vadd.s32 %v501, %v286
        %v778 = vadd.s32 %v501, %v287
        %v779 = vadd.s32 %v501, %v288
        %v780 = vadd.s32 %v502, %v286
        %v781 = vadd.s32 %v502, %v287
        %v782 = vadd.s32 %v502, %v288
        %v783 = vadd.s32 %v503, %v286
        %v784 = vadd.s32 %v503, %v287
        %v785 = vadd.s32 %v503, %v288
        %v786 = vadd.s32 %v504, %v286
        %v787 = vadd.s32 %v504, %v287
        %v788 = vadd.s32 %v504, %v288
        %v789 = vadd.s32 %v505, %v286
        %v790 = vadd.s32 %v505, %v287
        %v791 = vadd.s32 %v505, %v288
        %v792 = vadd.s32 %v506, %v286
        %v793 = vadd.s32 %v506, %v287
        %v794 = vadd.s32 %v506, %v288
        %v795 = vadd.s32 %v507, %v286
        %v796 = vadd.s32 %v507, %v287
        %v797 = vadd.s32 %v507, %v288
        %v798 = vadd.s32 %v508, %v286
        %v799 = vadd.s32 %v508, %v287
        %v800 = vadd.s32 %v508, %v288
        %v801 = vadd.s32 %v509, %v286
        %v802 = vadd.s32 %v509, %v287
        %v803 = vadd.s32 %v509, %v288
        %v804 = vadd.s32 %v510, %v286
        %v805 = vadd.s32 %v510, %v287
        %v806 = vadd.s32 %v510, %v288
        %v807 = vadd.s32 %v511, %v286
        %v808 = vadd.s32 %v511, %v287
        %v809 = vadd.s32 %v511, %v288
        %v810 = vadd.s32 %v512, %v286
        %v811 = vadd.s32 %v512, %v287
        %v812 = vadd.s32 %v512, %v288
        %v813 = vadd.s32 %v513, %v286
        %v814 = vadd.s32 %v513, %v287
        %v815 = vadd.s32 %v513, %v288
        %v816 = vadd.s32 %v514, %v286
        %v817 = vadd.s32 %v514, %v287
        %v818 = vadd.s32 %v514, %v288
        %v819 = vadd.s32 %v515, %v286
        %v820 = vadd.s32 %v515, %v287
        %v821 = vadd.s32 %v515, %v288
        %v822 = vadd.s32 %v516, %v286
        %v823 = vadd.s32 %v516, %v287
        %v824 = vadd.s32 %v516, %v288
        %v825 = vadd.s32 %v517, %v286
        %v826 = vadd.s32 %v517, %v287
        %v827 = vadd.s32 %v517, %v288
        %v828 = vadd.s32 %v518, %v286
        %v829 = vadd.s32 %v518, %v287
        %v830 = vadd.s32 %v518, %v288
        %v831 = vadd.s32 %v519, %v286
        %v832 = vadd.s32 %v519, %v287
        %v833 = vadd.s32 %v519, %v288
        %v834 = vadd.s32 %v520, %v286
        %v835 = vadd.s32 %v520, %v287
        %v836 = vadd.s32 %v520, %v288
        %v837 = vadd.s32 %v521, %v286
        %v838 = vadd.s32 %v521, %v287
        %v839 = vadd.s32 %v521, %v288
        %v840 = vadd.s32 %v522, %v286
        %v841 = vadd.s32 %v522, %v287
        %v842 = vadd.s32 %v522, %v288
        %v843 = vadd.s32 %v523, %v286
        %v844 = vadd.s32 %v523, %v287
        %v845 = vadd.s32 %v523, %v288
        %v846 = vadd.s32 %v524, %v286
        %v847 = vadd.s32 %v524, %v287
        %v848 = vadd.s32 %v524, %v288
        %v849 = vadd.s32 %v525, %v286
        %v850 = vadd.s32 %v525, %v287
        %v851 = vadd.s32 %v525, %v288
        %v852 = vadd.s32 %v526, %v286
        %v853 = vadd.s32 %v526, %v287
        %v854 = vadd.s32 %v526, %v288
        %v855 = vadd.s32 %v527, %v286
        %v856 = vadd.s32 %v527, %v287
        %v857 = vadd.s32 %v527, %v288
        %v858 = vadd.s32 %v528, %v286
        %v859 = vadd.s32 %v528, %v287
        %v860 = vadd.s32 %v528, %v288
        %v861 = vadd.s32 %v529, %v286
        %v862 = vadd.s32 %v529, %v287
        %v863 = vadd.s32 %v529, %v288
        %v864 = vadd.s32 %v530, %v286
        %v865 = vadd.s32 %v530, %v287
        %v866 = vadd.s32 %v530, %v288
        %v867 = vadd.s32 %v531, %v286
        %v868 = vadd.s32 %v531, %v287
        %v869 = vadd.s32 %v531, %v288
        %v870 = vadd.s32 %v532, %v286
        %v871 = vadd.s32 %v532, %v287
        %v872 = vadd.s32 %v532, %v288
        %v873 = vadd.s32 %v533, %v286
        %v874 = vadd.s32 %v533, %v287
        %v875 = vadd.s32 %v533, %v288
        %v876 = vadd.s32 %v534, %v286
        %v877 = vadd.s32 %v534, %v287
        %v878 = vadd.s32 %v534, %v288
        %v879 = vadd.s32 %v535, %v286
        %v880 = vadd.s32 %v535, %v287
        %v881 = vadd.s32 %v535, %v288
        %v882 = vadd.s32 %v536, %v286
        %v883 = vadd.s32 %v536, %v287
        %v884 = vadd.s32 %v536, %v288
        %v885 = vadd.s32 %v537, %v286
        %v886 = vadd.s32 %v537, %v287
        %v887 = vadd.s32 %v537, %v288
        %v888 = vadd.s32 %v538, %v286
        %v889 = vadd.s32 %v538, %v287
        %v890 = vadd.s32 %v538, %v288
        %v891 = vadd.s32 %v539, %v286
        %v892 = vadd.s32 %v539, %v287
        %v893 = vadd.s32 %v539, %v288
        %v894 = vadd.s32 %v540, %v286
        %v895 = vadd.s32 %v540, %v287
        %v896 = vadd.s32 %v540, %v288
        %v897 = vadd.s32 %v541, %v286
        %v898 = vadd.s32 %v541, %v287
        %v899 = vadd.s32 %v541, %v288
        %v900 = vadd.s32 %v542, %v286
        %v901 = vadd.s32 %v542, %v287
        %v902 = vadd.s32 %v542, %v288
        %v903 = vadd.s32 %v543, %v286
        %v904 = vadd.s32 %v543, %v287
        %v905 = vadd.s32 %v543, %v288
        %v906 = vadd.s32 %v544, %v286
        %v907 = vadd.s32 %v544, %v287
        %v908 = vadd.s32 %v544, %v288
        %v909 = vadd.s32 %v545, %v286
        %v910 = vadd.s32 %v545, %v287
        %v911 = vadd.s32 %v545, %v288
        %v912 = vadd.s32 %v546, %v286
        %v913 = vadd.s32 %v546, %v287
        %v914 = vadd.s32 %v546, %v288
        %v915 = vadd.s32 %v547, %v286
        %v916 = vadd.s32 %v547, %v287
        %v917 = vadd.s32 %v547, %v288
        %v918 = vadd.s32 %v548, %v286
        %v919 = vadd.s32 %v548, %v287
        %v920 = vadd.s32 %v548, %v288
        %v921 = vadd.s32 %v549, %v286
        %v922 = vadd.s32 %v549, %v287
        %v923 = vadd.s32 %v549, %v288
        %v924 = vadd.s32 %v550, %v286
        %v925 = vadd.s32 %v550, %v287
        %v926 = vadd.s32 %v550, %v288
        %v927 = vadd.s32 %v551, %v286
        %v928 = vadd.s32 %v551, %v287
        %v929 = vadd.s32 %v551, %v288
        %v930 = vadd.s32 %v552, %v286
        %v931 = vadd.s32 %v552, %v287
        %v932 = vadd.s32 %v552, %v288
        %v933 = vadd.s32 %v553, %v286
        %v934 = vadd.s32 %v553, %v287
        %v935 = vadd.s32 %v553, %v288
        %v936 = vadd.s32 %v554, %v286
        %v937 = vadd.s32 %v554, %v287
        %v938 = vadd.s32 %v554, %v288
        %v939 = vadd.s32 %v555, %v286
        %v940 = vadd.s32 %v555, %v287
        %v941 = vadd.s32 %v555, %v288
        %v942 = vadd.s32 %v556, %v286
        %v943 = vadd.s32 %v556, %v287
        %v944 = vadd.s32 %v556, %v288
        %v945 = vadd.s32 %v557, %v286
        %v946 = vadd.s32 %v557, %v287
        %v947 = vadd.s32 %v557, %v288
        %v948 = vadd.s32 %v558, %v286
        %v949 = vadd.s32 %v558, %v287
        %v950 = vadd.s32 %v558, %v288
        %v951 = vadd.s32 %v559, %v286
        %v952 = vadd.s32 %v559, %v287
        %v953 = vadd.s32 %v559, %v288
        %v954 = vadd.s32 %v560, %v286
        %v955 = vadd.s32 %v560, %v287
        %v956 = vadd.s32 %v560, %v288
        %v957 = vadd.s32 %v561, %v286
        %v958 = vadd.s32 %v561, %v287
        %v959 = vadd.s32 %v561, %v288
        %v960 = vadd.s32 %v562, %v286
        %v961 = vadd.s32 %v562, %v287
        %v962 = vadd.s32 %v562, %v288
        %v963 = vadd.s32 %v563, %v286
        %v964 = vadd.s32 %v563, %v287
        %v965 = vadd.s32 %v563, %v288
        %v966 = vadd.s32 %v564, %v286
        %v967 = vadd.s32 %v564, %v287
        %v968 = vadd.s32 %v564, %v288
        %v969 = vadd.s32 %v565, %v286
        %v970 = vadd.s32 %v565, %v287
        %v971 = vadd.s32 %v565, %v288
        %v972 = vadd.s32 %v566, %v286
        %v973 = vadd.s32 %v566, %v287
        %v974 = vadd.s32 %v566, %v288
        %v975 = vadd.s32 %v567, %v286
        %v976 = vadd.s32 %v567, %v287
        %v977 = vadd.s32 %v567, %v288
        %v978 = vadd.s32 %v568, %v286
        %v979 = vadd.s32 %v568, %v287
        %v980 = vadd.s32 %v568, %v288
        %v981 = vadd.s32 %v569, %v286
        %v982 = vadd.s32 %v569, %v287
        %v983 = vadd.s32 %v569, %v288
        %v984 = vadd.s32 %v570, %v286
        %v985 = vadd.s32 %v570, %v287
        %v986 = vadd.s32 %v570, %v288
        %v987 = vadd.s32 %v571, %v286
        %v988 = vadd.s32 %v571, %v287
        %v989 = vadd.s32 %v571, %v288
        %v990 = vadd.s32 %v572, %v286
        %v991 = vadd.s32 %v572, %v287
        %v992 = vadd.s32 %v572, %v288
        %v993 = vadd.s32 %v573, %v286
        %v994 = vadd.s32 %v573, %v287
        %v995 = vadd.s32 %v573, %v288
        %v996 = vadd.s32 %v574, %v286
        %v997 = vadd.s32 %v574, %v287
        %v998 = vadd.s32 %v574, %v288
        %v999 = vadd.s32 %v575, %v286
        %v1000 = vadd.s32 %v575, %v287
        %v1001 = vadd.s32 %v575, %v288
        %v1002 = vadd.s32 %v576, %v286
        %v1003 = vadd.s32 %v576, %v287
        %v1004 = vadd.s32 %v576, %v288
        %v1005 = vadd.s32 %v577, %v286
        %v1006 = vadd.s32 %v577, %v287
        %v1007 = vadd.s32 %v577, %v288
        %v1008 = vadd.s32 %v578, %v286
        %v1009 = vadd.s32 %v578, %v287
        %v1010 = vadd.s32 %v578, %v288
        %s1011 = sld [smem:[#allocation3]]
        %s1012 = smul.u32 %s1011, 2654435769
        %v1013 = vstv %s1012
        %v1014 = vadd.s32 %v579, %v1013
        %v1015 = vadd.s32 %v580, %v1013
        %v1016 = vadd.s32 %v581, %v1013
        %v1017 = vadd.s32 %v582, %v1013
        %v1018 = vadd.s32 %v583, %v1013
        %v1019 = vadd.s32 %v584, %v1013
        %v1020 = vadd.s32 %v585, %v1013
        %v1021 = vadd.s32 %v586, %v1013
        %v1022 = vadd.s32 %v587, %v1013
        %v1023 = vadd.s32 %v588, %v1013
        %v1024 = vadd.s32 %v589, %v1013
        %v1025 = vadd.s32 %v590, %v1013
        %v1026 = vadd.s32 %v591, %v1013
        %v1027 = vadd.s32 %v592, %v1013
        %v1028 = vadd.s32 %v593, %v1013
        %v1029 = vadd.s32 %v594, %v1013
        %v1030 = vadd.s32 %v595, %v1013
        %v1031 = vadd.s32 %v596, %v1013
        %v1032 = vadd.s32 %v597, %v1013
        %v1033 = vadd.s32 %v598, %v1013
        %v1034 = vadd.s32 %v599, %v1013
        %v1035 = vadd.s32 %v600, %v1013
        %v1036 = vadd.s32 %v601, %v1013
        %v1037 = vadd.s32 %v602, %v1013
        %v1038 = vadd.s32 %v603, %v1013
        %v1039 = vadd.s32 %v604, %v1013
        %v1040 = vadd.s32 %v605, %v1013
        %v1041 = vadd.s32 %v606, %v1013
        %v1042 = vadd.s32 %v607, %v1013
        %v1043 = vadd.s32 %v608, %v1013
        %v1044 = vadd.s32 %v609, %v1013
        %v1045 = vadd.s32 %v610, %v1013
        %v1046 = vadd.s32 %v611, %v1013
        %v1047 = vadd.s32 %v612, %v1013
        %v1048 = vadd.s32 %v613, %v1013
        %v1049 = vadd.s32 %v614, %v1013
        %v1050 = vadd.s32 %v615, %v1013
        %v1051 = vadd.s32 %v616, %v1013
        %v1052 = vadd.s32 %v617, %v1013
        %v1053 = vadd.s32 %v618, %v1013
        %v1054 = vadd.s32 %v619, %v1013
        %v1055 = vadd.s32 %v620, %v1013
        %v1056 = vadd.s32 %v621, %v1013
        %v1057 = vadd.s32 %v622, %v1013
        %v1058 = vadd.s32 %v623, %v1013
        %v1059 = vadd.s32 %v624, %v1013
        %v1060 = vadd.s32 %v625, %v1013
        %v1061 = vadd.s32 %v626, %v1013
        %v1062 = vadd.s32 %v627, %v1013
        %v1063 = vadd.s32 %v628, %v1013
        %v1064 = vadd.s32 %v629, %v1013
        %v1065 = vadd.s32 %v630, %v1013
        %v1066 = vadd.s32 %v631, %v1013
        %v1067 = vadd.s32 %v632, %v1013
        %v1068 = vadd.s32 %v633, %v1013
        %v1069 = vadd.s32 %v634, %v1013
        %v1070 = vadd.s32 %v635, %v1013
        %v1071 = vadd.s32 %v636, %v1013
        %v1072 = vadd.s32 %v637, %v1013
        %v1073 = vadd.s32 %v638, %v1013
        %v1074 = vadd.s32 %v639, %v1013
        %v1075 = vadd.s32 %v640, %v1013
        %v1076 = vadd.s32 %v641, %v1013
        %v1077 = vadd.s32 %v642, %v1013
        %v1078 = vadd.s32 %v643, %v1013
        %v1079 = vadd.s32 %v644, %v1013
        %v1080 = vadd.s32 %v645, %v1013
        %v1081 = vadd.s32 %v646, %v1013
        %v1082 = vadd.s32 %v647, %v1013
        %v1083 = vadd.s32 %v648, %v1013
        %v1084 = vadd.s32 %v649, %v1013
        %v1085 = vadd.s32 %v650, %v1013
        %v1086 = vadd.s32 %v651, %v1013
        %v1087 = vadd.s32 %v652, %v1013
        %v1088 = vadd.s32 %v653, %v1013
        %v1089 = vadd.s32 %v654, %v1013
        %v1090 = vadd.s32 %v655, %v1013
        %v1091 = vadd.s32 %v656, %v1013
        %v1092 = vadd.s32 %v657, %v1013
        %v1093 = vadd.s32 %v658, %v1013
        %v1094 = vadd.s32 %v659, %v1013
        %v1095 = vadd.s32 %v660, %v1013
        %v1096 = vadd.s32 %v661, %v1013
        %v1097 = vadd.s32 %v662, %v1013
        %v1098 = vadd.s32 %v663, %v1013
        %v1099 = vadd.s32 %v664, %v1013
        %v1100 = vadd.s32 %v665, %v1013
        %v1101 = vadd.s32 %v666, %v1013
        %v1102 = vadd.s32 %v667, %v1013
        %v1103 = vadd.s32 %v668, %v1013
        %v1104 = vadd.s32 %v669, %v1013
        %v1105 = vadd.s32 %v670, %v1013
        %v1106 = vadd.s32 %v671, %v1013
        %v1107 = vadd.s32 %v672, %v1013
        %v1108 = vadd.s32 %v673, %v1013
        %v1109 = vadd.s32 %v674, %v1013
        %v1110 = vadd.s32 %v675, %v1013
        %v1111 = vadd.s32 %v676, %v1013
        %v1112 = vadd.s32 %v677, %v1013
        %v1113 = vadd.s32 %v678, %v1013
        %v1114 = vadd.s32 %v679, %v1013
        %v1115 = vadd.s32 %v680, %v1013
        %v1116 = vadd.s32 %v681, %v1013
        %v1117 = vadd.s32 %v682, %v1013
        %v1118 = vadd.s32 %v683, %v1013
        %v1119 = vadd.s32 %v684, %v1013
        %v1120 = vadd.s32 %v685, %v1013
        %v1121 = vadd.s32 %v686, %v1013
        %v1122 = vadd.s32 %v687, %v1013
        %v1123 = vadd.s32 %v688, %v1013
        %v1124 = vadd.s32 %v689, %v1013
        %v1125 = vadd.s32 %v690, %v1013
        %v1126 = vadd.s32 %v691, %v1013
        %v1127 = vadd.s32 %v692, %v1013
        %v1128 = vadd.s32 %v693, %v1013
        %v1129 = vadd.s32 %v694, %v1013
        %v1130 = vadd.s32 %v695, %v1013
        %v1131 = vadd.s32 %v696, %v1013
        %v1132 = vadd.s32 %v697, %v1013
        %v1133 = vadd.s32 %v698, %v1013
        %v1134 = vadd.s32 %v699, %v1013
        %v1135 = vadd.s32 %v700, %v1013
        %v1136 = vadd.s32 %v701, %v1013
        %v1137 = vadd.s32 %v702, %v1013
        %v1138 = vadd.s32 %v703, %v1013
        %v1139 = vadd.s32 %v704, %v1013
        %v1140 = vadd.s32 %v705, %v1013
        %v1141 = vadd.s32 %v706, %v1013
        %v1142 = vadd.s32 %v707, %v1013
        %v1143 = vadd.s32 %v708, %v1013
        %v1144 = vadd.s32 %v709, %v1013
        %v1145 = vadd.s32 %v710, %v1013
        %v1146 = vadd.s32 %v711, %v1013
        %v1147 = vadd.s32 %v712, %v1013
        %v1148 = vadd.s32 %v713, %v1013
        %v1149 = vadd.s32 %v714, %v1013
        %v1150 = vadd.s32 %v715, %v1013
        %v1151 = vadd.s32 %v716, %v1013
        %v1152 = vadd.s32 %v717, %v1013
        %v1153 = vadd.s32 %v718, %v1013
        %v1154 = vadd.s32 %v719, %v1013
        %v1155 = vadd.s32 %v720, %v1013
        %v1156 = vadd.s32 %v721, %v1013
        %v1157 = vadd.s32 %v722, %v1013
        %v1158 = vadd.s32 %v723, %v1013
        %v1159 = vadd.s32 %v724, %v1013
        %v1160 = vadd.s32 %v725, %v1013
        %v1161 = vadd.s32 %v726, %v1013
        %v1162 = vadd.s32 %v727, %v1013
        %v1163 = vadd.s32 %v728, %v1013
        %v1164 = vadd.s32 %v729, %v1013
        %v1165 = vadd.s32 %v730, %v1013
        %v1166 = vadd.s32 %v731, %v1013
        %v1167 = vadd.s32 %v732, %v1013
        %v1168 = vadd.s32 %v733, %v1013
        %v1169 = vadd.s32 %v734, %v1013
        %v1170 = vadd.s32 %v735, %v1013
        %v1171 = vadd.s32 %v736, %v1013
        %v1172 = vadd.s32 %v737, %v1013
        %v1173 = vadd.s32 %v738, %v1013
        %v1174 = vadd.s32 %v739, %v1013
        %v1175 = vadd.s32 %v740, %v1013
        %v1176 = vadd.s32 %v741, %v1013
        %v1177 = vadd.s32 %v742, %v1013
        %v1178 = vadd.s32 %v743, %v1013
        %v1179 = vadd.s32 %v744, %v1013
        %v1180 = vadd.s32 %v745, %v1013
        %v1181 = vadd.s32 %v746, %v1013
        %v1182 = vadd.s32 %v747, %v1013
        %v1183 = vadd.s32 %v748, %v1013
        %v1184 = vadd.s32 %v749, %v1013
        %v1185 = vadd.s32 %v750, %v1013
        %v1186 = vadd.s32 %v751, %v1013
        %v1187 = vadd.s32 %v752, %v1013
        %v1188 = vadd.s32 %v753, %v1013
        %v1189 = vadd.s32 %v754, %v1013
        %v1190 = vadd.s32 %v755, %v1013
        %v1191 = vadd.s32 %v756, %v1013
        %v1192 = vadd.s32 %v757, %v1013
        %v1193 = vadd.s32 %v758, %v1013
        %v1194 = vadd.s32 %v759, %v1013
        %v1195 = vadd.s32 %v760, %v1013
        %v1196 = vadd.s32 %v761, %v1013
        %v1197 = vadd.s32 %v762, %v1013
        %v1198 = vadd.s32 %v763, %v1013
        %v1199 = vadd.s32 %v764, %v1013
        %v1200 = vadd.s32 %v765, %v1013
        %v1201 = vadd.s32 %v766, %v1013
        %v1202 = vadd.s32 %v767, %v1013
        %v1203 = vadd.s32 %v768, %v1013
        %v1204 = vadd.s32 %v769, %v1013
        %v1205 = vadd.s32 %v770, %v1013
        %v1206 = vadd.s32 %v771, %v1013
        %v1207 = vadd.s32 %v772, %v1013
        %v1208 = vadd.s32 %v773, %v1013
        %v1209 = vadd.s32 %v774, %v1013
        %v1210 = vadd.s32 %v775, %v1013
        %v1211 = vadd.s32 %v776, %v1013
        %v1212 = vadd.s32 %v777, %v1013
        %v1213 = vadd.s32 %v778, %v1013
        %v1214 = vadd.s32 %v779, %v1013
        %v1215 = vadd.s32 %v780, %v1013
        %v1216 = vadd.s32 %v781, %v1013
        %v1217 = vadd.s32 %v782, %v1013
        %v1218 = vadd.s32 %v783, %v1013
        %v1219 = vadd.s32 %v784, %v1013
        %v1220 = vadd.s32 %v785, %v1013
        %v1221 = vadd.s32 %v786, %v1013
        %v1222 = vadd.s32 %v787, %v1013
        %v1223 = vadd.s32 %v788, %v1013
        %v1224 = vadd.s32 %v789, %v1013
        %v1225 = vadd.s32 %v790, %v1013
        %v1226 = vadd.s32 %v791, %v1013
        %v1227 = vadd.s32 %v792, %v1013
        %v1228 = vadd.s32 %v793, %v1013
        %v1229 = vadd.s32 %v794, %v1013
        %v1230 = vadd.s32 %v795, %v1013
        %v1231 = vadd.s32 %v796, %v1013
        %v1232 = vadd.s32 %v797, %v1013
        %v1233 = vadd.s32 %v798, %v1013
        %v1234 = vadd.s32 %v799, %v1013
        %v1235 = vadd.s32 %v800, %v1013
        %v1236 = vadd.s32 %v801, %v1013
        %v1237 = vadd.s32 %v802, %v1013
        %v1238 = vadd.s32 %v803, %v1013
        %v1239 = vadd.s32 %v804, %v1013
        %v1240 = vadd.s32 %v805, %v1013
        %v1241 = vadd.s32 %v806, %v1013
        %v1242 = vadd.s32 %v807, %v1013
        %v1243 = vadd.s32 %v808, %v1013
        %v1244 = vadd.s32 %v809, %v1013
        %v1245 = vadd.s32 %v810, %v1013
        %v1246 = vadd.s32 %v811, %v1013
        %v1247 = vadd.s32 %v812, %v1013
        %v1248 = vadd.s32 %v813, %v1013
        %v1249 = vadd.s32 %v814, %v1013
        %v1250 = vadd.s32 %v815, %v1013
        %v1251 = vadd.s32 %v816, %v1013
        %v1252 = vadd.s32 %v817, %v1013
        %v1253 = vadd.s32 %v818, %v1013
        %v1254 = vadd.s32 %v819, %v1013
        %v1255 = vadd.s32 %v820, %v1013
        %v1256 = vadd.s32 %v821, %v1013
        %v1257 = vadd.s32 %v822, %v1013
        %v1258 = vadd.s32 %v823, %v1013
        %v1259 = vadd.s32 %v824, %v1013
        %v1260 = vadd.s32 %v825, %v1013
        %v1261 = vadd.s32 %v826, %v1013
        %v1262 = vadd.s32 %v827, %v1013
        %v1263 = vadd.s32 %v828, %v1013
        %v1264 = vadd.s32 %v829, %v1013
        %v1265 = vadd.s32 %v830, %v1013
        %v1266 = vadd.s32 %v831, %v1013
        %v1267 = vadd.s32 %v832, %v1013
        %v1268 = vadd.s32 %v833, %v1013
        %v1269 = vadd.s32 %v834, %v1013
        %v1270 = vadd.s32 %v835, %v1013
        %v1271 = vadd.s32 %v836, %v1013
        %v1272 = vadd.s32 %v837, %v1013
        %v1273 = vadd.s32 %v838, %v1013
        %v1274 = vadd.s32 %v839, %v1013
        %v1275 = vadd.s32 %v840, %v1013
        %v1276 = vadd.s32 %v841, %v1013
        %v1277 = vadd.s32 %v842, %v1013
        %v1278 = vadd.s32 %v843, %v1013
        %v1279 = vadd.s32 %v844, %v1013
        %v1280 = vadd.s32 %v845, %v1013
        %v1281 = vadd.s32 %v846, %v1013
        %v1282 = vadd.s32 %v847, %v1013
        %v1283 = vadd.s32 %v848, %v1013
        %v1284 = vadd.s32 %v849, %v1013
        %v1285 = vadd.s32 %v850, %v1013
        %v1286 = vadd.s32 %v851, %v1013
        %v1287 = vadd.s32 %v852, %v1013
        %v1288 = vadd.s32 %v853, %v1013
        %v1289 = vadd.s32 %v854, %v1013
        %v1290 = vadd.s32 %v855, %v1013
        %v1291 = vadd.s32 %v856, %v1013
        %v1292 = vadd.s32 %v857, %v1013
        %v1293 = vadd.s32 %v858, %v1013
        %v1294 = vadd.s32 %v859, %v1013
        %v1295 = vadd.s32 %v860, %v1013
        %v1296 = vadd.s32 %v861, %v1013
        %v1297 = vadd.s32 %v862, %v1013
        %v1298 = vadd.s32 %v863, %v1013
        %v1299 = vadd.s32 %v864, %v1013
        %v1300 = vadd.s32 %v865, %v1013
        %v1301 = vadd.s32 %v866, %v1013
        %v1302 = vadd.s32 %v867, %v1013
        %v1303 = vadd.s32 %v868, %v1013
        %v1304 = vadd.s32 %v869, %v1013
        %v1305 = vadd.s32 %v870, %v1013
        %v1306 = vadd.s32 %v871, %v1013
        %v1307 = vadd.s32 %v872, %v1013
        %v1308 = vadd.s32 %v873, %v1013
        %v1309 = vadd.s32 %v874, %v1013
        %v1310 = vadd.s32 %v875, %v1013
        %v1311 = vadd.s32 %v876, %v1013
        %v1312 = vadd.s32 %v877, %v1013
        %v1313 = vadd.s32 %v878, %v1013
        %v1314 = vadd.s32 %v879, %v1013
        %v1315 = vadd.s32 %v880, %v1013
        %v1316 = vadd.s32 %v881, %v1013
        %v1317 = vadd.s32 %v882, %v1013
        %v1318 = vadd.s32 %v883, %v1013
        %v1319 = vadd.s32 %v884, %v1013
        %v1320 = vadd.s32 %v885, %v1013
        %v1321 = vadd.s32 %v886, %v1013
        %v1322 = vadd.s32 %v887, %v1013
        %v1323 = vadd.s32 %v888, %v1013
        %v1324 = vadd.s32 %v889, %v1013
        %v1325 = vadd.s32 %v890, %v1013
        %v1326 = vadd.s32 %v891, %v1013
        %v1327 = vadd.s32 %v892, %v1013
        %v1328 = vadd.s32 %v893, %v1013
        %v1329 = vadd.s32 %v894, %v1013
        %v1330 = vadd.s32 %v895, %v1013
        %v1331 = vadd.s32 %v896, %v1013
        %v1332 = vadd.s32 %v897, %v1013
        %v1333 = vadd.s32 %v898, %v1013
        %v1334 = vadd.s32 %v899, %v1013
        %v1335 = vadd.s32 %v900, %v1013
        %v1336 = vadd.s32 %v901, %v1013
        %v1337 = vadd.s32 %v902, %v1013
        %v1338 = vadd.s32 %v903, %v1013
        %v1339 = vadd.s32 %v904, %v1013
        %v1340 = vadd.s32 %v905, %v1013
        %v1341 = vadd.s32 %v906, %v1013
        %v1342 = vadd.s32 %v907, %v1013
        %v1343 = vadd.s32 %v908, %v1013
        %v1344 = vadd.s32 %v909, %v1013
        %v1345 = vadd.s32 %v910, %v1013
        %v1346 = vadd.s32 %v911, %v1013
        %v1347 = vadd.s32 %v912, %v1013
        %v1348 = vadd.s32 %v913, %v1013
        %v1349 = vadd.s32 %v914, %v1013
        %v1350 = vadd.s32 %v915, %v1013
        %v1351 = vadd.s32 %v916, %v1013
        %v1352 = vadd.s32 %v917, %v1013
        %v1353 = vadd.s32 %v918, %v1013
        %v1354 = vadd.s32 %v919, %v1013
        %v1355 = vadd.s32 %v920, %v1013
        %v1356 = vadd.s32 %v921, %v1013
        %v1357 = vadd.s32 %v922, %v1013
        %v1358 = vadd.s32 %v923, %v1013
        %v1359 = vadd.s32 %v924, %v1013
        %v1360 = vadd.s32 %v925, %v1013
        %v1361 = vadd.s32 %v926, %v1013
        %v1362 = vadd.s32 %v927, %v1013
        %v1363 = vadd.s32 %v928, %v1013
        %v1364 = vadd.s32 %v929, %v1013
        %v1365 = vadd.s32 %v930, %v1013
        %v1366 = vadd.s32 %v931, %v1013
        %v1367 = vadd.s32 %v932, %v1013
        %v1368 = vadd.s32 %v933, %v1013
        %v1369 = vadd.s32 %v934, %v1013
        %v1370 = vadd.s32 %v935, %v1013
        %v1371 = vadd.s32 %v936, %v1013
        %v1372 = vadd.s32 %v937, %v1013
        %v1373 = vadd.s32 %v938, %v1013
        %v1374 = vadd.s32 %v939, %v1013
        %v1375 = vadd.s32 %v940, %v1013
        %v1376 = vadd.s32 %v941, %v1013
        %v1377 = vadd.s32 %v942, %v1013
        %v1378 = vadd.s32 %v943, %v1013
        %v1379 = vadd.s32 %v944, %v1013
        %v1380 = vadd.s32 %v945, %v1013
        %v1381 = vadd.s32 %v946, %v1013
        %v1382 = vadd.s32 %v947, %v1013
        %v1383 = vadd.s32 %v948, %v1013
        %v1384 = vadd.s32 %v949, %v1013
        %v1385 = vadd.s32 %v950, %v1013
        %v1386 = vadd.s32 %v951, %v1013
        %v1387 = vadd.s32 %v952, %v1013
        %v1388 = vadd.s32 %v953, %v1013
        %v1389 = vadd.s32 %v954, %v1013
        %v1390 = vadd.s32 %v955, %v1013
        %v1391 = vadd.s32 %v956, %v1013
        %v1392 = vadd.s32 %v957, %v1013
        %v1393 = vadd.s32 %v958, %v1013
        %v1394 = vadd.s32 %v959, %v1013
        %v1395 = vadd.s32 %v960, %v1013
        %v1396 = vadd.s32 %v961, %v1013
        %v1397 = vadd.s32 %v962, %v1013
        %v1398 = vadd.s32 %v963, %v1013
        %v1399 = vadd.s32 %v964, %v1013
        %v1400 = vadd.s32 %v965, %v1013
        %v1401 = vadd.s32 %v966, %v1013
        %v1402 = vadd.s32 %v967, %v1013
        %v1403 = vadd.s32 %v968, %v1013
        %v1404 = vadd.s32 %v969, %v1013
        %v1405 = vadd.s32 %v970, %v1013
        %v1406 = vadd.s32 %v971, %v1013
        %v1407 = vadd.s32 %v972, %v1013
        %v1408 = vadd.s32 %v973, %v1013
        %v1409 = vadd.s32 %v974, %v1013
        %v1410 = vadd.s32 %v975, %v1013
        %v1411 = vadd.s32 %v976, %v1013
        %v1412 = vadd.s32 %v977, %v1013
        %v1413 = vadd.s32 %v978, %v1013
        %v1414 = vadd.s32 %v979, %v1013
        %v1415 = vadd.s32 %v980, %v1013
        %v1416 = vadd.s32 %v981, %v1013
        %v1417 = vadd.s32 %v982, %v1013
        %v1418 = vadd.s32 %v983, %v1013
        %v1419 = vadd.s32 %v984, %v1013
        %v1420 = vadd.s32 %v985, %v1013
        %v1421 = vadd.s32 %v986, %v1013
        %v1422 = vadd.s32 %v987, %v1013
        %v1423 = vadd.s32 %v988, %v1013
        %v1424 = vadd.s32 %v989, %v1013
        %v1425 = vadd.s32 %v990, %v1013
        %v1426 = vadd.s32 %v991, %v1013
        %v1427 = vadd.s32 %v992, %v1013
        %v1428 = vadd.s32 %v993, %v1013
        %v1429 = vadd.s32 %v994, %v1013
        %v1430 = vadd.s32 %v995, %v1013
        %v1431 = vadd.s32 %v996, %v1013
        %v1432 = vadd.s32 %v997, %v1013
        %v1433 = vadd.s32 %v998, %v1013
        %v1434 = vadd.s32 %v999, %v1013
        %v1435 = vadd.s32 %v1000, %v1013
        %v1436 = vadd.s32 %v1001, %v1013
        %v1437 = vadd.s32 %v1002, %v1013
        %v1438 = vadd.s32 %v1003, %v1013
        %v1439 = vadd.s32 %v1004, %v1013
        %v1440 = vadd.s32 %v1005, %v1013
        %v1441 = vadd.s32 %v1006, %v1013
        %v1442 = vadd.s32 %v1007, %v1013
        %v1443 = vadd.s32 %v1008, %v1013
        %v1444 = vadd.s32 %v1009, %v1013
        %v1445 = vadd.s32 %v1010, %v1013
        %v1446 = vshrl.u32 %v1014, 16
        %v1447 = vshrl.u32 %v1015, 16
        %v1448 = vshrl.u32 %v1016, 16
        %v1449 = vshrl.u32 %v1017, 16
        %v1450 = vshrl.u32 %v1018, 16
        %v1451 = vshrl.u32 %v1019, 16
        %v1452 = vshrl.u32 %v1020, 16
        %v1453 = vshrl.u32 %v1021, 16
        %v1454 = vshrl.u32 %v1022, 16
        %v1455 = vshrl.u32 %v1023, 16
        %v1456 = vshrl.u32 %v1024, 16
        %v1457 = vshrl.u32 %v1025, 16
        %v1458 = vshrl.u32 %v1026, 16
        %v1459 = vshrl.u32 %v1027, 16
        %v1460 = vshrl.u32 %v1028, 16
        %v1461 = vshrl.u32 %v1029, 16
        %v1462 = vshrl.u32 %v1030, 16
        %v1463 = vshrl.u32 %v1031, 16
        %v1464 = vshrl.u32 %v1032, 16
        %v1465 = vshrl.u32 %v1033, 16
        %v1466 = vshrl.u32 %v1034, 16
        %v1467 = vshrl.u32 %v1035, 16
        %v1468 = vshrl.u32 %v1036, 16
        %v1469 = vshrl.u32 %v1037, 16
        %v1470 = vshrl.u32 %v1038, 16
        %v1471 = vshrl.u32 %v1039, 16
        %v1472 = vshrl.u32 %v1040, 16
        %v1473 = vshrl.u32 %v1041, 16
        %v1474 = vshrl.u32 %v1042, 16
        %v1475 = vshrl.u32 %v1043, 16
        %v1476 = vshrl.u32 %v1044, 16
        %v1477 = vshrl.u32 %v1045, 16
        %v1478 = vshrl.u32 %v1046, 16
        %v1479 = vshrl.u32 %v1047, 16
        %v1480 = vshrl.u32 %v1048, 16
        %v1481 = vshrl.u32 %v1049, 16
        %v1482 = vshrl.u32 %v1050, 16
        %v1483 = vshrl.u32 %v1051, 16
        %v1484 = vshrl.u32 %v1052, 16
        %v1485 = vshrl.u32 %v1053, 16
        %v1486 = vshrl.u32 %v1054, 16
        %v1487 = vshrl.u32 %v1055, 16
        %v1488 = vshrl.u32 %v1056, 16
        %v1489 = vshrl.u32 %v1057, 16
        %v1490 = vshrl.u32 %v1058, 16
        %v1491 = vshrl.u32 %v1059, 16
        %v1492 = vshrl.u32 %v1060, 16
        %v1493 = vshrl.u32 %v1061, 16
        %v1494 = vshrl.u32 %v1062, 16
        %v1495 = vshrl.u32 %v1063, 16
        %v1496 = vshrl.u32 %v1064, 16
        %v1497 = vshrl.u32 %v1065, 16
        %v1498 = vshrl.u32 %v1066, 16
        %v1499 = vshrl.u32 %v1067, 16
        %v1500 = vshrl.u32 %v1068, 16
        %v1501 = vshrl.u32 %v1069, 16
        %v1502 = vshrl.u32 %v1070, 16
        %v1503 = vshrl.u32 %v1071, 16
        %v1504 = vshrl.u32 %v1072, 16
        %v1505 = vshrl.u32 %v1073, 16
        %v1506 = vshrl.u32 %v1074, 16
        %v1507 = vshrl.u32 %v1075, 16
        %v1508 = vshrl.u32 %v1076, 16
        %v1509 = vshrl.u32 %v1077, 16
        %v1510 = vshrl.u32 %v1078, 16
        %v1511 = vshrl.u32 %v1079, 16
        %v1512 = vshrl.u32 %v1080, 16
        %v1513 = vshrl.u32 %v1081, 16
        %v1514 = vshrl.u32 %v1082, 16
        %v1515 = vshrl.u32 %v1083, 16
        %v1516 = vshrl.u32 %v1084, 16
        %v1517 = vshrl.u32 %v1085, 16
        %v1518 = vshrl.u32 %v1086, 16
        %v1519 = vshrl.u32 %v1087, 16
        %v1520 = vshrl.u32 %v1088, 16
        %v1521 = vshrl.u32 %v1089, 16
        %v1522 = vshrl.u32 %v1090, 16
        %v1523 = vshrl.u32 %v1091, 16
        %v1524 = vshrl.u32 %v1092, 16
        %v1525 = vshrl.u32 %v1093, 16
        %v1526 = vshrl.u32 %v1094, 16
        %v1527 = vshrl.u32 %v1095, 16
        %v1528 = vshrl.u32 %v1096, 16
        %v1529 = vshrl.u32 %v1097, 16
        %v1530 = vshrl.u32 %v1098, 16
        %v1531 = vshrl.u32 %v1099, 16
        %v1532 = vshrl.u32 %v1100, 16
        %v1533 = vshrl.u32 %v1101, 16
        %v1534 = vshrl.u32 %v1102, 16
        %v1535 = vshrl.u32 %v1103, 16
        %v1536 = vshrl.u32 %v1104, 16
        %v1537 = vshrl.u32 %v1105, 16
        %v1538 = vshrl.u32 %v1106, 16
        %v1539 = vshrl.u32 %v1107, 16
        %v1540 = vshrl.u32 %v1108, 16
        %v1541 = vshrl.u32 %v1109, 16
        %v1542 = vshrl.u32 %v1110, 16
        %v1543 = vshrl.u32 %v1111, 16
        %v1544 = vshrl.u32 %v1112, 16
        %v1545 = vshrl.u32 %v1113, 16
        %v1546 = vshrl.u32 %v1114, 16
        %v1547 = vshrl.u32 %v1115, 16
        %v1548 = vshrl.u32 %v1116, 16
        %v1549 = vshrl.u32 %v1117, 16
        %v1550 = vshrl.u32 %v1118, 16
        %v1551 = vshrl.u32 %v1119, 16
        %v1552 = vshrl.u32 %v1120, 16
        %v1553 = vshrl.u32 %v1121, 16
        %v1554 = vshrl.u32 %v1122, 16
        %v1555 = vshrl.u32 %v1123, 16
        %v1556 = vshrl.u32 %v1124, 16
        %v1557 = vshrl.u32 %v1125, 16
        %v1558 = vshrl.u32 %v1126, 16
        %v1559 = vshrl.u32 %v1127, 16
        %v1560 = vshrl.u32 %v1128, 16
        %v1561 = vshrl.u32 %v1129, 16
        %v1562 = vshrl.u32 %v1130, 16
        %v1563 = vshrl.u32 %v1131, 16
        %v1564 = vshrl.u32 %v1132, 16
        %v1565 = vshrl.u32 %v1133, 16
        %v1566 = vshrl.u32 %v1134, 16
        %v1567 = vshrl.u32 %v1135, 16
        %v1568 = vshrl.u32 %v1136, 16
        %v1569 = vshrl.u32 %v1137, 16
        %v1570 = vshrl.u32 %v1138, 16
        %v1571 = vshrl.u32 %v1139, 16
        %v1572 = vshrl.u32 %v1140, 16
        %v1573 = vshrl.u32 %v1141, 16
        %v1574 = vshrl.u32 %v1142, 16
        %v1575 = vshrl.u32 %v1143, 16
        %v1576 = vshrl.u32 %v1144, 16
        %v1577 = vshrl.u32 %v1145, 16
        %v1578 = vshrl.u32 %v1146, 16
        %v1579 = vshrl.u32 %v1147, 16
        %v1580 = vshrl.u32 %v1148, 16
        %v1581 = vshrl.u32 %v1149, 16
        %v1582 = vshrl.u32 %v1150, 16
        %v1583 = vshrl.u32 %v1151, 16
        %v1584 = vshrl.u32 %v1152, 16
        %v1585 = vshrl.u32 %v1153, 16
        %v1586 = vshrl.u32 %v1154, 16
        %v1587 = vshrl.u32 %v1155, 16
        %v1588 = vshrl.u32 %v1156, 16
        %v1589 = vshrl.u32 %v1157, 16
        %v1590 = vshrl.u32 %v1158, 16
        %v1591 = vshrl.u32 %v1159, 16
        %v1592 = vshrl.u32 %v1160, 16
        %v1593 = vshrl.u32 %v1161, 16
        %v1594 = vshrl.u32 %v1162, 16
        %v1595 = vshrl.u32 %v1163, 16
        %v1596 = vshrl.u32 %v1164, 16
        %v1597 = vshrl.u32 %v1165, 16
        %v1598 = vshrl.u32 %v1166, 16
        %v1599 = vshrl.u32 %v1167, 16
        %v1600 = vshrl.u32 %v1168, 16
        %v1601 = vshrl.u32 %v1169, 16
        %v1602 = vshrl.u32 %v1170, 16
        %v1603 = vshrl.u32 %v1171, 16
        %v1604 = vshrl.u32 %v1172, 16
        %v1605 = vshrl.u32 %v1173, 16
        %v1606 = vshrl.u32 %v1174, 16
        %v1607 = vshrl.u32 %v1175, 16
        %v1608 = vshrl.u32 %v1176, 16
        %v1609 = vshrl.u32 %v1177, 16
        %v1610 = vshrl.u32 %v1178, 16
        %v1611 = vshrl.u32 %v1179, 16
        %v1612 = vshrl.u32 %v1180, 16
        %v1613 = vshrl.u32 %v1181, 16
        %v1614 = vshrl.u32 %v1182, 16
        %v1615 = vshrl.u32 %v1183, 16
        %v1616 = vshrl.u32 %v1184, 16
        %v1617 = vshrl.u32 %v1185, 16
        %v1618 = vshrl.u32 %v1186, 16
        %v1619 = vshrl.u32 %v1187, 16
        %v1620 = vshrl.u32 %v1188, 16
        %v1621 = vshrl.u32 %v1189, 16
        %v1622 = vshrl.u32 %v1190, 16
        %v1623 = vshrl.u32 %v1191, 16
        %v1624 = vshrl.u32 %v1192, 16
        %v1625 = vshrl.u32 %v1193, 16
        %v1626 = vshrl.u32 %v1194, 16
        %v1627 = vshrl.u32 %v1195, 16
        %v1628 = vshrl.u32 %v1196, 16
        %v1629 = vshrl.u32 %v1197, 16
        %v1630 = vshrl.u32 %v1198, 16
        %v1631 = vshrl.u32 %v1199, 16
        %v1632 = vshrl.u32 %v1200, 16
        %v1633 = vshrl.u32 %v1201, 16
        %v1634 = vshrl.u32 %v1202, 16
        %v1635 = vshrl.u32 %v1203, 16
        %v1636 = vshrl.u32 %v1204, 16
        %v1637 = vshrl.u32 %v1205, 16
        %v1638 = vshrl.u32 %v1206, 16
        %v1639 = vshrl.u32 %v1207, 16
        %v1640 = vshrl.u32 %v1208, 16
        %v1641 = vshrl.u32 %v1209, 16
        %v1642 = vshrl.u32 %v1210, 16
        %v1643 = vshrl.u32 %v1211, 16
        %v1644 = vshrl.u32 %v1212, 16
        %v1645 = vshrl.u32 %v1213, 16
        %v1646 = vshrl.u32 %v1214, 16
        %v1647 = vshrl.u32 %v1215, 16
        %v1648 = vshrl.u32 %v1216, 16
        %v1649 = vshrl.u32 %v1217, 16
        %v1650 = vshrl.u32 %v1218, 16
        %v1651 = vshrl.u32 %v1219, 16
        %v1652 = vshrl.u32 %v1220, 16
        %v1653 = vshrl.u32 %v1221, 16
        %v1654 = vshrl.u32 %v1222, 16
        %v1655 = vshrl.u32 %v1223, 16
        %v1656 = vshrl.u32 %v1224, 16
        %v1657 = vshrl.u32 %v1225, 16
        %v1658 = vshrl.u32 %v1226, 16
        %v1659 = vshrl.u32 %v1227, 16
        %v1660 = vshrl.u32 %v1228, 16
        %v1661 = vshrl.u32 %v1229, 16
        %v1662 = vshrl.u32 %v1230, 16
        %v1663 = vshrl.u32 %v1231, 16
        %v1664 = vshrl.u32 %v1232, 16
        %v1665 = vshrl.u32 %v1233, 16
        %v1666 = vshrl.u32 %v1234, 16
        %v1667 = vshrl.u32 %v1235, 16
        %v1668 = vshrl.u32 %v1236, 16
        %v1669 = vshrl.u32 %v1237, 16
        %v1670 = vshrl.u32 %v1238, 16
        %v1671 = vshrl.u32 %v1239, 16
        %v1672 = vshrl.u32 %v1240, 16
        %v1673 = vshrl.u32 %v1241, 16
        %v1674 = vshrl.u32 %v1242, 16
        %v1675 = vshrl.u32 %v1243, 16
        %v1676 = vshrl.u32 %v1244, 16
        %v1677 = vshrl.u32 %v1245, 16
        %v1678 = vshrl.u32 %v1246, 16
        %v1679 = vshrl.u32 %v1247, 16
        %v1680 = vshrl.u32 %v1248, 16
        %v1681 = vshrl.u32 %v1249, 16
        %v1682 = vshrl.u32 %v1250, 16
        %v1683 = vshrl.u32 %v1251, 16
        %v1684 = vshrl.u32 %v1252, 16
        %v1685 = vshrl.u32 %v1253, 16
        %v1686 = vshrl.u32 %v1254, 16
        %v1687 = vshrl.u32 %v1255, 16
        %v1688 = vshrl.u32 %v1256, 16
        %v1689 = vshrl.u32 %v1257, 16
        %v1690 = vshrl.u32 %v1258, 16
        %v1691 = vshrl.u32 %v1259, 16
        %v1692 = vshrl.u32 %v1260, 16
        %v1693 = vshrl.u32 %v1261, 16
        %v1694 = vshrl.u32 %v1262, 16
        %v1695 = vshrl.u32 %v1263, 16
        %v1696 = vshrl.u32 %v1264, 16
        %v1697 = vshrl.u32 %v1265, 16
        %v1698 = vshrl.u32 %v1266, 16
        %v1699 = vshrl.u32 %v1267, 16
        %v1700 = vshrl.u32 %v1268, 16
        %v1701 = vshrl.u32 %v1269, 16
        %v1702 = vshrl.u32 %v1270, 16
        %v1703 = vshrl.u32 %v1271, 16
        %v1704 = vshrl.u32 %v1272, 16
        %v1705 = vshrl.u32 %v1273, 16
        %v1706 = vshrl.u32 %v1274, 16
        %v1707 = vshrl.u32 %v1275, 16
        %v1708 = vshrl.u32 %v1276, 16
        %v1709 = vshrl.u32 %v1277, 16
        %v1710 = vshrl.u32 %v1278, 16
        %v1711 = vshrl.u32 %v1279, 16
        %v1712 = vshrl.u32 %v1280, 16
        %v1713 = vshrl.u32 %v1281, 16
        %v1714 = vshrl.u32 %v1282, 16
        %v1715 = vshrl.u32 %v1283, 16
        %v1716 = vshrl.u32 %v1284, 16
        %v1717 = vshrl.u32 %v1285, 16
        %v1718 = vshrl.u32 %v1286, 16
        %v1719 = vshrl.u32 %v1287, 16
        %v1720 = vshrl.u32 %v1288, 16
        %v1721 = vshrl.u32 %v1289, 16
        %v1722 = vshrl.u32 %v1290, 16
        %v1723 = vshrl.u32 %v1291, 16
        %v1724 = vshrl.u32 %v1292, 16
        %v1725 = vshrl.u32 %v1293, 16
        %v1726 = vshrl.u32 %v1294, 16
        %v1727 = vshrl.u32 %v1295, 16
        %v1728 = vshrl.u32 %v1296, 16
        %v1729 = vshrl.u32 %v1297, 16
        %v1730 = vshrl.u32 %v1298, 16
        %v1731 = vshrl.u32 %v1299, 16
        %v1732 = vshrl.u32 %v1300, 16
        %v1733 = vshrl.u32 %v1301, 16
        %v1734 = vshrl.u32 %v1302, 16
        %v1735 = vshrl.u32 %v1303, 16
        %v1736 = vshrl.u32 %v1304, 16
        %v1737 = vshrl.u32 %v1305, 16
        %v1738 = vshrl.u32 %v1306, 16
        %v1739 = vshrl.u32 %v1307, 16
        %v1740 = vshrl.u32 %v1308, 16
        %v1741 = vshrl.u32 %v1309, 16
        %v1742 = vshrl.u32 %v1310, 16
        %v1743 = vshrl.u32 %v1311, 16
        %v1744 = vshrl.u32 %v1312, 16
        %v1745 = vshrl.u32 %v1313, 16
        %v1746 = vshrl.u32 %v1314, 16
        %v1747 = vshrl.u32 %v1315, 16
        %v1748 = vshrl.u32 %v1316, 16
        %v1749 = vshrl.u32 %v1317, 16
        %v1750 = vshrl.u32 %v1318, 16
        %v1751 = vshrl.u32 %v1319, 16
        %v1752 = vshrl.u32 %v1320, 16
        %v1753 = vshrl.u32 %v1321, 16
        %v1754 = vshrl.u32 %v1322, 16
        %v1755 = vshrl.u32 %v1323, 16
        %v1756 = vshrl.u32 %v1324, 16
        %v1757 = vshrl.u32 %v1325, 16
        %v1758 = vshrl.u32 %v1326, 16
        %v1759 = vshrl.u32 %v1327, 16
        %v1760 = vshrl.u32 %v1328, 16
        %v1761 = vshrl.u32 %v1329, 16
        %v1762 = vshrl.u32 %v1330, 16
        %v1763 = vshrl.u32 %v1331, 16
        %v1764 = vshrl.u32 %v1332, 16
        %v1765 = vshrl.u32 %v1333, 16
        %v1766 = vshrl.u32 %v1334, 16
        %v1767 = vshrl.u32 %v1335, 16
        %v1768 = vshrl.u32 %v1336, 16
        %v1769 = vshrl.u32 %v1337, 16
        %v1770 = vshrl.u32 %v1338, 16
        %v1771 = vshrl.u32 %v1339, 16
        %v1772 = vshrl.u32 %v1340, 16
        %v1773 = vshrl.u32 %v1341, 16
        %v1774 = vshrl.u32 %v1342, 16
        %v1775 = vshrl.u32 %v1343, 16
        %v1776 = vshrl.u32 %v1344, 16
        %v1777 = vshrl.u32 %v1345, 16
        %v1778 = vshrl.u32 %v1346, 16
        %v1779 = vshrl.u32 %v1347, 16
        %v1780 = vshrl.u32 %v1348, 16
        %v1781 = vshrl.u32 %v1349, 16
        %v1782 = vshrl.u32 %v1350, 16
        %v1783 = vshrl.u32 %v1351, 16
        %v1784 = vshrl.u32 %v1352, 16
        %v1785 = vshrl.u32 %v1353, 16
        %v1786 = vshrl.u32 %v1354, 16
        %v1787 = vshrl.u32 %v1355, 16
        %v1788 = vshrl.u32 %v1356, 16
        %v1789 = vshrl.u32 %v1357, 16
        %v1790 = vshrl.u32 %v1358, 16
        %v1791 = vshrl.u32 %v1359, 16
        %v1792 = vshrl.u32 %v1360, 16
        %v1793 = vshrl.u32 %v1361, 16
        %v1794 = vshrl.u32 %v1362, 16
        %v1795 = vshrl.u32 %v1363, 16
        %v1796 = vshrl.u32 %v1364, 16
        %v1797 = vshrl.u32 %v1365, 16
        %v1798 = vshrl.u32 %v1366, 16
        %v1799 = vshrl.u32 %v1367, 16
        %v1800 = vshrl.u32 %v1368, 16
        %v1801 = vshrl.u32 %v1369, 16
        %v1802 = vshrl.u32 %v1370, 16
        %v1803 = vshrl.u32 %v1371, 16
        %v1804 = vshrl.u32 %v1372, 16
        %v1805 = vshrl.u32 %v1373, 16
        %v1806 = vshrl.u32 %v1374, 16
        %v1807 = vshrl.u32 %v1375, 16
        %v1808 = vshrl.u32 %v1376, 16
        %v1809 = vshrl.u32 %v1377, 16
        %v1810 = vshrl.u32 %v1378, 16
        %v1811 = vshrl.u32 %v1379, 16
        %v1812 = vshrl.u32 %v1380, 16
        %v1813 = vshrl.u32 %v1381, 16
        %v1814 = vshrl.u32 %v1382, 16
        %v1815 = vshrl.u32 %v1383, 16
        %v1816 = vshrl.u32 %v1384, 16
        %v1817 = vshrl.u32 %v1385, 16
        %v1818 = vshrl.u32 %v1386, 16
        %v1819 = vshrl.u32 %v1387, 16
        %v1820 = vshrl.u32 %v1388, 16
        %v1821 = vshrl.u32 %v1389, 16
        %v1822 = vshrl.u32 %v1390, 16
        %v1823 = vshrl.u32 %v1391, 16
        %v1824 = vshrl.u32 %v1392, 16
        %v1825 = vshrl.u32 %v1393, 16
        %v1826 = vshrl.u32 %v1394, 16
        %v1827 = vshrl.u32 %v1395, 16
        %v1828 = vshrl.u32 %v1396, 16
        %v1829 = vshrl.u32 %v1397, 16
        %v1830 = vshrl.u32 %v1398, 16
        %v1831 = vshrl.u32 %v1399, 16
        %v1832 = vshrl.u32 %v1400, 16
        %v1833 = vshrl.u32 %v1401, 16
        %v1834 = vshrl.u32 %v1402, 16
        %v1835 = vshrl.u32 %v1403, 16
        %v1836 = vshrl.u32 %v1404, 16
        %v1837 = vshrl.u32 %v1405, 16
        %v1838 = vshrl.u32 %v1406, 16
        %v1839 = vshrl.u32 %v1407, 16
        %v1840 = vshrl.u32 %v1408, 16
        %v1841 = vshrl.u32 %v1409, 16
        %v1842 = vshrl.u32 %v1410, 16
        %v1843 = vshrl.u32 %v1411, 16
        %v1844 = vshrl.u32 %v1412, 16
        %v1845 = vshrl.u32 %v1413, 16
        %v1846 = vshrl.u32 %v1414, 16
        %v1847 = vshrl.u32 %v1415, 16
        %v1848 = vshrl.u32 %v1416, 16
        %v1849 = vshrl.u32 %v1417, 16
        %v1850 = vshrl.u32 %v1418, 16
        %v1851 = vshrl.u32 %v1419, 16
        %v1852 = vshrl.u32 %v1420, 16
        %v1853 = vshrl.u32 %v1421, 16
        %v1854 = vshrl.u32 %v1422, 16
        %v1855 = vshrl.u32 %v1423, 16
        %v1856 = vshrl.u32 %v1424, 16
        %v1857 = vshrl.u32 %v1425, 16
        %v1858 = vshrl.u32 %v1426, 16
        %v1859 = vshrl.u32 %v1427, 16
        %v1860 = vshrl.u32 %v1428, 16
        %v1861 = vshrl.u32 %v1429, 16
        %v1862 = vshrl.u32 %v1430, 16
        %v1863 = vshrl.u32 %v1431, 16
        %v1864 = vshrl.u32 %v1432, 16
        %v1865 = vshrl.u32 %v1433, 16
        %v1866 = vshrl.u32 %v1434, 16
        %v1867 = vshrl.u32 %v1435, 16
        %v1868 = vshrl.u32 %v1436, 16
        %v1869 = vshrl.u32 %v1437, 16
        %v1870 = vshrl.u32 %v1438, 16
        %v1871 = vshrl.u32 %v1439, 16
        %v1872 = vshrl.u32 %v1440, 16
        %v1873 = vshrl.u32 %v1441, 16
        %v1874 = vshrl.u32 %v1442, 16
        %v1875 = vshrl.u32 %v1443, 16
        %v1876 = vshrl.u32 %v1444, 16
        %v1877 = vshrl.u32 %v1445, 16
        %v1878 = vxor.u32 %v1014, %v1446
        %v1879 = vxor.u32 %v1015, %v1447
        %v1880 = vxor.u32 %v1016, %v1448
        %v1881 = vxor.u32 %v1017, %v1449
        %v1882 = vxor.u32 %v1018, %v1450
        %v1883 = vxor.u32 %v1019, %v1451
        %v1884 = vxor.u32 %v1020, %v1452
        %v1885 = vxor.u32 %v1021, %v1453
        %v1886 = vxor.u32 %v1022, %v1454
        %v1887 = vxor.u32 %v1023, %v1455
        %v1888 = vxor.u32 %v1024, %v1456
        %v1889 = vxor.u32 %v1025, %v1457
        %v1890 = vxor.u32 %v1026, %v1458
        %v1891 = vxor.u32 %v1027, %v1459
        %v1892 = vxor.u32 %v1028, %v1460
        %v1893 = vxor.u32 %v1029, %v1461
        %v1894 = vxor.u32 %v1030, %v1462
        %v1895 = vxor.u32 %v1031, %v1463
        %v1896 = vxor.u32 %v1032, %v1464
        %v1897 = vxor.u32 %v1033, %v1465
        %v1898 = vxor.u32 %v1034, %v1466
        %v1899 = vxor.u32 %v1035, %v1467
        %v1900 = vxor.u32 %v1036, %v1468
        %v1901 = vxor.u32 %v1037, %v1469
        %v1902 = vxor.u32 %v1038, %v1470
        %v1903 = vxor.u32 %v1039, %v1471
        %v1904 = vxor.u32 %v1040, %v1472
        %v1905 = vxor.u32 %v1041, %v1473
        %v1906 = vxor.u32 %v1042, %v1474
        %v1907 = vxor.u32 %v1043, %v1475
        %v1908 = vxor.u32 %v1044, %v1476
        %v1909 = vxor.u32 %v1045, %v1477
        %v1910 = vxor.u32 %v1046, %v1478
        %v1911 = vxor.u32 %v1047, %v1479
        %v1912 = vxor.u32 %v1048, %v1480
        %v1913 = vxor.u32 %v1049, %v1481
        %v1914 = vxor.u32 %v1050, %v1482
        %v1915 = vxor.u32 %v1051, %v1483
        %v1916 = vxor.u32 %v1052, %v1484
        %v1917 = vxor.u32 %v1053, %v1485
        %v1918 = vxor.u32 %v1054, %v1486
        %v1919 = vxor.u32 %v1055, %v1487
        %v1920 = vxor.u32 %v1056, %v1488
        %v1921 = vxor.u32 %v1057, %v1489
        %v1922 = vxor.u32 %v1058, %v1490
        %v1923 = vxor.u32 %v1059, %v1491
        %v1924 = vxor.u32 %v1060, %v1492
        %v1925 = vxor.u32 %v1061, %v1493
        %v1926 = vxor.u32 %v1062, %v1494
        %v1927 = vxor.u32 %v1063, %v1495
        %v1928 = vxor.u32 %v1064, %v1496
        %v1929 = vxor.u32 %v1065, %v1497
        %v1930 = vxor.u32 %v1066, %v1498
        %v1931 = vxor.u32 %v1067, %v1499
        %v1932 = vxor.u32 %v1068, %v1500
        %v1933 = vxor.u32 %v1069, %v1501
        %v1934 = vxor.u32 %v1070, %v1502
        %v1935 = vxor.u32 %v1071, %v1503
        %v1936 = vxor.u32 %v1072, %v1504
        %v1937 = vxor.u32 %v1073, %v1505
        %v1938 = vxor.u32 %v1074, %v1506
        %v1939 = vxor.u32 %v1075, %v1507
        %v1940 = vxor.u32 %v1076, %v1508
        %v1941 = vxor.u32 %v1077, %v1509
        %v1942 = vxor.u32 %v1078, %v1510
        %v1943 = vxor.u32 %v1079, %v1511
        %v1944 = vxor.u32 %v1080, %v1512
        %v1945 = vxor.u32 %v1081, %v1513
        %v1946 = vxor.u32 %v1082, %v1514
        %v1947 = vxor.u32 %v1083, %v1515
        %v1948 = vxor.u32 %v1084, %v1516
        %v1949 = vxor.u32 %v1085, %v1517
        %v1950 = vxor.u32 %v1086, %v1518
        %v1951 = vxor.u32 %v1087, %v1519
        %v1952 = vxor.u32 %v1088, %v1520
        %v1953 = vxor.u32 %v1089, %v1521
        %v1954 = vxor.u32 %v1090, %v1522
        %v1955 = vxor.u32 %v1091, %v1523
        %v1956 = vxor.u32 %v1092, %v1524
        %v1957 = vxor.u32 %v1093, %v1525
        %v1958 = vxor.u32 %v1094, %v1526
        %v1959 = vxor.u32 %v1095, %v1527
        %v1960 = vxor.u32 %v1096, %v1528
        %v1961 = vxor.u32 %v1097, %v1529
        %v1962 = vxor.u32 %v1098, %v1530
        %v1963 = vxor.u32 %v1099, %v1531
        %v1964 = vxor.u32 %v1100, %v1532
        %v1965 = vxor.u32 %v1101, %v1533
        %v1966 = vxor.u32 %v1102, %v1534
        %v1967 = vxor.u32 %v1103, %v1535
        %v1968 = vxor.u32 %v1104, %v1536
        %v1969 = vxor.u32 %v1105, %v1537
        %v1970 = vxor.u32 %v1106, %v1538
        %v1971 = vxor.u32 %v1107, %v1539
        %v1972 = vxor.u32 %v1108, %v1540
        %v1973 = vxor.u32 %v1109, %v1541
        %v1974 = vxor.u32 %v1110, %v1542
        %v1975 = vxor.u32 %v1111, %v1543
        %v1976 = vxor.u32 %v1112, %v1544
        %v1977 = vxor.u32 %v1113, %v1545
        %v1978 = vxor.u32 %v1114, %v1546
        %v1979 = vxor.u32 %v1115, %v1547
        %v1980 = vxor.u32 %v1116, %v1548
        %v1981 = vxor.u32 %v1117, %v1549
        %v1982 = vxor.u32 %v1118, %v1550
        %v1983 = vxor.u32 %v1119, %v1551
        %v1984 = vxor.u32 %v1120, %v1552
        %v1985 = vxor.u32 %v1121, %v1553
        %v1986 = vxor.u32 %v1122, %v1554
        %v1987 = vxor.u32 %v1123, %v1555
        %v1988 = vxor.u32 %v1124, %v1556
        %v1989 = vxor.u32 %v1125, %v1557
        %v1990 = vxor.u32 %v1126, %v1558
        %v1991 = vxor.u32 %v1127, %v1559
        %v1992 = vxor.u32 %v1128, %v1560
        %v1993 = vxor.u32 %v1129, %v1561
        %v1994 = vxor.u32 %v1130, %v1562
        %v1995 = vxor.u32 %v1131, %v1563
        %v1996 = vxor.u32 %v1132, %v1564
        %v1997 = vxor.u32 %v1133, %v1565
        %v1998 = vxor.u32 %v1134, %v1566
        %v1999 = vxor.u32 %v1135, %v1567
        %v2000 = vxor.u32 %v1136, %v1568
        %v2001 = vxor.u32 %v1137, %v1569
        %v2002 = vxor.u32 %v1138, %v1570
        %v2003 = vxor.u32 %v1139, %v1571
        %v2004 = vxor.u32 %v1140, %v1572
        %v2005 = vxor.u32 %v1141, %v1573
        %v2006 = vxor.u32 %v1142, %v1574
        %v2007 = vxor.u32 %v1143, %v1575
        %v2008 = vxor.u32 %v1144, %v1576
        %v2009 = vxor.u32 %v1145, %v1577
        %v2010 = vxor.u32 %v1146, %v1578
        %v2011 = vxor.u32 %v1147, %v1579
        %v2012 = vxor.u32 %v1148, %v1580
        %v2013 = vxor.u32 %v1149, %v1581
        %v2014 = vxor.u32 %v1150, %v1582
        %v2015 = vxor.u32 %v1151, %v1583
        %v2016 = vxor.u32 %v1152, %v1584
        %v2017 = vxor.u32 %v1153, %v1585
        %v2018 = vxor.u32 %v1154, %v1586
        %v2019 = vxor.u32 %v1155, %v1587
        %v2020 = vxor.u32 %v1156, %v1588
        %v2021 = vxor.u32 %v1157, %v1589
        %v2022 = vxor.u32 %v1158, %v1590
        %v2023 = vxor.u32 %v1159, %v1591
        %v2024 = vxor.u32 %v1160, %v1592
        %v2025 = vxor.u32 %v1161, %v1593
        %v2026 = vxor.u32 %v1162, %v1594
        %v2027 = vxor.u32 %v1163, %v1595
        %v2028 = vxor.u32 %v1164, %v1596
        %v2029 = vxor.u32 %v1165, %v1597
        %v2030 = vxor.u32 %v1166, %v1598
        %v2031 = vxor.u32 %v1167, %v1599
        %v2032 = vxor.u32 %v1168, %v1600
        %v2033 = vxor.u32 %v1169, %v1601
        %v2034 = vxor.u32 %v1170, %v1602
        %v2035 = vxor.u32 %v1171, %v1603
        %v2036 = vxor.u32 %v1172, %v1604
        %v2037 = vxor.u32 %v1173, %v1605
        %v2038 = vxor.u32 %v1174, %v1606
        %v2039 = vxor.u32 %v1175, %v1607
        %v2040 = vxor.u32 %v1176, %v1608
        %v2041 = vxor.u32 %v1177, %v1609
        %v2042 = vxor.u32 %v1178, %v1610
        %v2043 = vxor.u32 %v1179, %v1611
        %v2044 = vxor.u32 %v1180, %v1612
        %v2045 = vxor.u32 %v1181, %v1613
        %v2046 = vxor.u32 %v1182, %v1614
        %v2047 = vxor.u32 %v1183, %v1615
        %v2048 = vxor.u32 %v1184, %v1616
        %v2049 = vxor.u32 %v1185, %v1617
        %v2050 = vxor.u32 %v1186, %v1618
        %v2051 = vxor.u32 %v1187, %v1619
        %v2052 = vxor.u32 %v1188, %v1620
        %v2053 = vxor.u32 %v1189, %v1621
        %v2054 = vxor.u32 %v1190, %v1622
        %v2055 = vxor.u32 %v1191, %v1623
        %v2056 = vxor.u32 %v1192, %v1624
        %v2057 = vxor.u32 %v1193, %v1625
        %v2058 = vxor.u32 %v1194, %v1626
        %v2059 = vxor.u32 %v1195, %v1627
        %v2060 = vxor.u32 %v1196, %v1628
        %v2061 = vxor.u32 %v1197, %v1629
        %v2062 = vxor.u32 %v1198, %v1630
        %v2063 = vxor.u32 %v1199, %v1631
        %v2064 = vxor.u32 %v1200, %v1632
        %v2065 = vxor.u32 %v1201, %v1633
        %v2066 = vxor.u32 %v1202, %v1634
        %v2067 = vxor.u32 %v1203, %v1635
        %v2068 = vxor.u32 %v1204, %v1636
        %v2069 = vxor.u32 %v1205, %v1637
        %v2070 = vxor.u32 %v1206, %v1638
        %v2071 = vxor.u32 %v1207, %v1639
        %v2072 = vxor.u32 %v1208, %v1640
        %v2073 = vxor.u32 %v1209, %v1641
        %v2074 = vxor.u32 %v1210, %v1642
        %v2075 = vxor.u32 %v1211, %v1643
        %v2076 = vxor.u32 %v1212, %v1644
        %v2077 = vxor.u32 %v1213, %v1645
        %v2078 = vxor.u32 %v1214, %v1646
        %v2079 = vxor.u32 %v1215, %v1647
        %v2080 = vxor.u32 %v1216, %v1648
        %v2081 = vxor.u32 %v1217, %v1649
        %v2082 = vxor.u32 %v1218, %v1650
        %v2083 = vxor.u32 %v1219, %v1651
        %v2084 = vxor.u32 %v1220, %v1652
        %v2085 = vxor.u32 %v1221, %v1653
        %v2086 = vxor.u32 %v1222, %v1654
        %v2087 = vxor.u32 %v1223, %v1655
        %v2088 = vxor.u32 %v1224, %v1656
        %v2089 = vxor.u32 %v1225, %v1657
        %v2090 = vxor.u32 %v1226, %v1658
        %v2091 = vxor.u32 %v1227, %v1659
        %v2092 = vxor.u32 %v1228, %v1660
        %v2093 = vxor.u32 %v1229, %v1661
        %v2094 = vxor.u32 %v1230, %v1662
        %v2095 = vxor.u32 %v1231, %v1663
        %v2096 = vxor.u32 %v1232, %v1664
        %v2097 = vxor.u32 %v1233, %v1665
        %v2098 = vxor.u32 %v1234, %v1666
        %v2099 = vxor.u32 %v1235, %v1667
        %v2100 = vxor.u32 %v1236, %v1668
        %v2101 = vxor.u32 %v1237, %v1669
        %v2102 = vxor.u32 %v1238, %v1670
        %v2103 = vxor.u32 %v1239, %v1671
        %v2104 = vxor.u32 %v1240, %v1672
        %v2105 = vxor.u32 %v1241, %v1673
        %v2106 = vxor.u32 %v1242, %v1674
        %v2107 = vxor.u32 %v1243, %v1675
        %v2108 = vxor.u32 %v1244, %v1676
        %v2109 = vxor.u32 %v1245, %v1677
        %v2110 = vxor.u32 %v1246, %v1678
        %v2111 = vxor.u32 %v1247, %v1679
        %v2112 = vxor.u32 %v1248, %v1680
        %v2113 = vxor.u32 %v1249, %v1681
        %v2114 = vxor.u32 %v1250, %v1682
        %v2115 = vxor.u32 %v1251, %v1683
        %v2116 = vxor.u32 %v1252, %v1684
        %v2117 = vxor.u32 %v1253, %v1685
        %v2118 = vxor.u32 %v1254, %v1686
        %v2119 = vxor.u32 %v1255, %v1687
        %v2120 = vxor.u32 %v1256, %v1688
        %v2121 = vxor.u32 %v1257, %v1689
        %v2122 = vxor.u32 %v1258, %v1690
        %v2123 = vxor.u32 %v1259, %v1691
        %v2124 = vxor.u32 %v1260, %v1692
        %v2125 = vxor.u32 %v1261, %v1693
        %v2126 = vxor.u32 %v1262, %v1694
        %v2127 = vxor.u32 %v1263, %v1695
        %v2128 = vxor.u32 %v1264, %v1696
        %v2129 = vxor.u32 %v1265, %v1697
        %v2130 = vxor.u32 %v1266, %v1698
        %v2131 = vxor.u32 %v1267, %v1699
        %v2132 = vxor.u32 %v1268, %v1700
        %v2133 = vxor.u32 %v1269, %v1701
        %v2134 = vxor.u32 %v1270, %v1702
        %v2135 = vxor.u32 %v1271, %v1703
        %v2136 = vxor.u32 %v1272, %v1704
        %v2137 = vxor.u32 %v1273, %v1705
        %v2138 = vxor.u32 %v1274, %v1706
        %v2139 = vxor.u32 %v1275, %v1707
        %v2140 = vxor.u32 %v1276, %v1708
        %v2141 = vxor.u32 %v1277, %v1709
        %v2142 = vxor.u32 %v1278, %v1710
        %v2143 = vxor.u32 %v1279, %v1711
        %v2144 = vxor.u32 %v1280, %v1712
        %v2145 = vxor.u32 %v1281, %v1713
        %v2146 = vxor.u32 %v1282, %v1714
        %v2147 = vxor.u32 %v1283, %v1715
        %v2148 = vxor.u32 %v1284, %v1716
        %v2149 = vxor.u32 %v1285, %v1717
        %v2150 = vxor.u32 %v1286, %v1718
        %v2151 = vxor.u32 %v1287, %v1719
        %v2152 = vxor.u32 %v1288, %v1720
        %v2153 = vxor.u32 %v1289, %v1721
        %v2154 = vxor.u32 %v1290, %v1722
        %v2155 = vxor.u32 %v1291, %v1723
        %v2156 = vxor.u32 %v1292, %v1724
        %v2157 = vxor.u32 %v1293, %v1725
        %v2158 = vxor.u32 %v1294, %v1726
        %v2159 = vxor.u32 %v1295, %v1727
        %v2160 = vxor.u32 %v1296, %v1728
        %v2161 = vxor.u32 %v1297, %v1729
        %v2162 = vxor.u32 %v1298, %v1730
        %v2163 = vxor.u32 %v1299, %v1731
        %v2164 = vxor.u32 %v1300, %v1732
        %v2165 = vxor.u32 %v1301, %v1733
        %v2166 = vxor.u32 %v1302, %v1734
        %v2167 = vxor.u32 %v1303, %v1735
        %v2168 = vxor.u32 %v1304, %v1736
        %v2169 = vxor.u32 %v1305, %v1737
        %v2170 = vxor.u32 %v1306, %v1738
        %v2171 = vxor.u32 %v1307, %v1739
        %v2172 = vxor.u32 %v1308, %v1740
        %v2173 = vxor.u32 %v1309, %v1741
        %v2174 = vxor.u32 %v1310, %v1742
        %v2175 = vxor.u32 %v1311, %v1743
        %v2176 = vxor.u32 %v1312, %v1744
        %v2177 = vxor.u32 %v1313, %v1745
        %v2178 = vxor.u32 %v1314, %v1746
        %v2179 = vxor.u32 %v1315, %v1747
        %v2180 = vxor.u32 %v1316, %v1748
        %v2181 = vxor.u32 %v1317, %v1749
        %v2182 = vxor.u32 %v1318, %v1750
        %v2183 = vxor.u32 %v1319, %v1751
        %v2184 = vxor.u32 %v1320, %v1752
        %v2185 = vxor.u32 %v1321, %v1753
        %v2186 = vxor.u32 %v1322, %v1754
        %v2187 = vxor.u32 %v1323, %v1755
        %v2188 = vxor.u32 %v1324, %v1756
        %v2189 = vxor.u32 %v1325, %v1757
        %v2190 = vxor.u32 %v1326, %v1758
        %v2191 = vxor.u32 %v1327, %v1759
        %v2192 = vxor.u32 %v1328, %v1760
        %v2193 = vxor.u32 %v1329, %v1761
        %v2194 = vxor.u32 %v1330, %v1762
        %v2195 = vxor.u32 %v1331, %v1763
        %v2196 = vxor.u32 %v1332, %v1764
        %v2197 = vxor.u32 %v1333, %v1765
        %v2198 = vxor.u32 %v1334, %v1766
        %v2199 = vxor.u32 %v1335, %v1767
        %v2200 = vxor.u32 %v1336, %v1768
        %v2201 = vxor.u32 %v1337, %v1769
        %v2202 = vxor.u32 %v1338, %v1770
        %v2203 = vxor.u32 %v1339, %v1771
        %v2204 = vxor.u32 %v1340, %v1772
        %v2205 = vxor.u32 %v1341, %v1773
        %v2206 = vxor.u32 %v1342, %v1774
        %v2207 = vxor.u32 %v1343, %v1775
        %v2208 = vxor.u32 %v1344, %v1776
        %v2209 = vxor.u32 %v1345, %v1777
        %v2210 = vxor.u32 %v1346, %v1778
        %v2211 = vxor.u32 %v1347, %v1779
        %v2212 = vxor.u32 %v1348, %v1780
        %v2213 = vxor.u32 %v1349, %v1781
        %v2214 = vxor.u32 %v1350, %v1782
        %v2215 = vxor.u32 %v1351, %v1783
        %v2216 = vxor.u32 %v1352, %v1784
        %v2217 = vxor.u32 %v1353, %v1785
        %v2218 = vxor.u32 %v1354, %v1786
        %v2219 = vxor.u32 %v1355, %v1787
        %v2220 = vxor.u32 %v1356, %v1788
        %v2221 = vxor.u32 %v1357, %v1789
        %v2222 = vxor.u32 %v1358, %v1790
        %v2223 = vxor.u32 %v1359, %v1791
        %v2224 = vxor.u32 %v1360, %v1792
        %v2225 = vxor.u32 %v1361, %v1793
        %v2226 = vxor.u32 %v1362, %v1794
        %v2227 = vxor.u32 %v1363, %v1795
        %v2228 = vxor.u32 %v1364, %v1796
        %v2229 = vxor.u32 %v1365, %v1797
        %v2230 = vxor.u32 %v1366, %v1798
        %v2231 = vxor.u32 %v1367, %v1799
        %v2232 = vxor.u32 %v1368, %v1800
        %v2233 = vxor.u32 %v1369, %v1801
        %v2234 = vxor.u32 %v1370, %v1802
        %v2235 = vxor.u32 %v1371, %v1803
        %v2236 = vxor.u32 %v1372, %v1804
        %v2237 = vxor.u32 %v1373, %v1805
        %v2238 = vxor.u32 %v1374, %v1806
        %v2239 = vxor.u32 %v1375, %v1807
        %v2240 = vxor.u32 %v1376, %v1808
        %v2241 = vxor.u32 %v1377, %v1809
        %v2242 = vxor.u32 %v1378, %v1810
        %v2243 = vxor.u32 %v1379, %v1811
        %v2244 = vxor.u32 %v1380, %v1812
        %v2245 = vxor.u32 %v1381, %v1813
        %v2246 = vxor.u32 %v1382, %v1814
        %v2247 = vxor.u32 %v1383, %v1815
        %v2248 = vxor.u32 %v1384, %v1816
        %v2249 = vxor.u32 %v1385, %v1817
        %v2250 = vxor.u32 %v1386, %v1818
        %v2251 = vxor.u32 %v1387, %v1819
        %v2252 = vxor.u32 %v1388, %v1820
        %v2253 = vxor.u32 %v1389, %v1821
        %v2254 = vxor.u32 %v1390, %v1822
        %v2255 = vxor.u32 %v1391, %v1823
        %v2256 = vxor.u32 %v1392, %v1824
        %v2257 = vxor.u32 %v1393, %v1825
        %v2258 = vxor.u32 %v1394, %v1826
        %v2259 = vxor.u32 %v1395, %v1827
        %v2260 = vxor.u32 %v1396, %v1828
        %v2261 = vxor.u32 %v1397, %v1829
        %v2262 = vxor.u32 %v1398, %v1830
        %v2263 = vxor.u32 %v1399, %v1831
        %v2264 = vxor.u32 %v1400, %v1832
        %v2265 = vxor.u32 %v1401, %v1833
        %v2266 = vxor.u32 %v1402, %v1834
        %v2267 = vxor.u32 %v1403, %v1835
        %v2268 = vxor.u32 %v1404, %v1836
        %v2269 = vxor.u32 %v1405, %v1837
        %v2270 = vxor.u32 %v1406, %v1838
        %v2271 = vxor.u32 %v1407, %v1839
        %v2272 = vxor.u32 %v1408, %v1840
        %v2273 = vxor.u32 %v1409, %v1841
        %v2274 = vxor.u32 %v1410, %v1842
        %v2275 = vxor.u32 %v1411, %v1843
        %v2276 = vxor.u32 %v1412, %v1844
        %v2277 = vxor.u32 %v1413, %v1845
        %v2278 = vxor.u32 %v1414, %v1846
        %v2279 = vxor.u32 %v1415, %v1847
        %v2280 = vxor.u32 %v1416, %v1848
        %v2281 = vxor.u32 %v1417, %v1849
        %v2282 = vxor.u32 %v1418, %v1850
        %v2283 = vxor.u32 %v1419, %v1851
        %v2284 = vxor.u32 %v1420, %v1852
        %v2285 = vxor.u32 %v1421, %v1853
        %v2286 = vxor.u32 %v1422, %v1854
        %v2287 = vxor.u32 %v1423, %v1855
        %v2288 = vxor.u32 %v1424, %v1856
        %v2289 = vxor.u32 %v1425, %v1857
        %v2290 = vxor.u32 %v1426, %v1858
        %v2291 = vxor.u32 %v1427, %v1859
        %v2292 = vxor.u32 %v1428, %v1860
        %v2293 = vxor.u32 %v1429, %v1861
        %v2294 = vxor.u32 %v1430, %v1862
        %v2295 = vxor.u32 %v1431, %v1863
        %v2296 = vxor.u32 %v1432, %v1864
        %v2297 = vxor.u32 %v1433, %v1865
        %v2298 = vxor.u32 %v1434, %v1866
        %v2299 = vxor.u32 %v1435, %v1867
        %v2300 = vxor.u32 %v1436, %v1868
        %v2301 = vxor.u32 %v1437, %v1869
        %v2302 = vxor.u32 %v1438, %v1870
        %v2303 = vxor.u32 %v1439, %v1871
        %v2304 = vxor.u32 %v1440, %v1872
        %v2305 = vxor.u32 %v1441, %v1873
        %v2306 = vxor.u32 %v1442, %v1874
        %v2307 = vxor.u32 %v1443, %v1875
        %v2308 = vxor.u32 %v1444, %v1876
        %v2309 = vxor.u32 %v1445, %v1877
        %v2310 = vmul.u32 %v1878, 569420461
        %v2311 = vmul.u32 %v1879, 569420461
        %v2312 = vmul.u32 %v1880, 569420461
        %v2313 = vmul.u32 %v1881, 569420461
        %v2314 = vmul.u32 %v1882, 569420461
        %v2315 = vmul.u32 %v1883, 569420461
        %v2316 = vmul.u32 %v1884, 569420461
        %v2317 = vmul.u32 %v1885, 569420461
        %v2318 = vmul.u32 %v1886, 569420461
        %v2319 = vmul.u32 %v1887, 569420461
        %v2320 = vmul.u32 %v1888, 569420461
        %v2321 = vmul.u32 %v1889, 569420461
        %v2322 = vmul.u32 %v1890, 569420461
        %v2323 = vmul.u32 %v1891, 569420461
        %v2324 = vmul.u32 %v1892, 569420461
        %v2325 = vmul.u32 %v1893, 569420461
        %v2326 = vmul.u32 %v1894, 569420461
        %v2327 = vmul.u32 %v1895, 569420461
        %v2328 = vmul.u32 %v1896, 569420461
        %v2329 = vmul.u32 %v1897, 569420461
        %v2330 = vmul.u32 %v1898, 569420461
        %v2331 = vmul.u32 %v1899, 569420461
        %v2332 = vmul.u32 %v1900, 569420461
        %v2333 = vmul.u32 %v1901, 569420461
        %v2334 = vmul.u32 %v1902, 569420461
        %v2335 = vmul.u32 %v1903, 569420461
        %v2336 = vmul.u32 %v1904, 569420461
        %v2337 = vmul.u32 %v1905, 569420461
        %v2338 = vmul.u32 %v1906, 569420461
        %v2339 = vmul.u32 %v1907, 569420461
        %v2340 = vmul.u32 %v1908, 569420461
        %v2341 = vmul.u32 %v1909, 569420461
        %v2342 = vmul.u32 %v1910, 569420461
        %v2343 = vmul.u32 %v1911, 569420461
        %v2344 = vmul.u32 %v1912, 569420461
        %v2345 = vmul.u32 %v1913, 569420461
        %v2346 = vmul.u32 %v1914, 569420461
        %v2347 = vmul.u32 %v1915, 569420461
        %v2348 = vmul.u32 %v1916, 569420461
        %v2349 = vmul.u32 %v1917, 569420461
        %v2350 = vmul.u32 %v1918, 569420461
        %v2351 = vmul.u32 %v1919, 569420461
        %v2352 = vmul.u32 %v1920, 569420461
        %v2353 = vmul.u32 %v1921, 569420461
        %v2354 = vmul.u32 %v1922, 569420461
        %v2355 = vmul.u32 %v1923, 569420461
        %v2356 = vmul.u32 %v1924, 569420461
        %v2357 = vmul.u32 %v1925, 569420461
        %v2358 = vmul.u32 %v1926, 569420461
        %v2359 = vmul.u32 %v1927, 569420461
        %v2360 = vmul.u32 %v1928, 569420461
        %v2361 = vmul.u32 %v1929, 569420461
        %v2362 = vmul.u32 %v1930, 569420461
        %v2363 = vmul.u32 %v1931, 569420461
        %v2364 = vmul.u32 %v1932, 569420461
        %v2365 = vmul.u32 %v1933, 569420461
        %v2366 = vmul.u32 %v1934, 569420461
        %v2367 = vmul.u32 %v1935, 569420461
        %v2368 = vmul.u32 %v1936, 569420461
        %v2369 = vmul.u32 %v1937, 569420461
        %v2370 = vmul.u32 %v1938, 569420461
        %v2371 = vmul.u32 %v1939, 569420461
        %v2372 = vmul.u32 %v1940, 569420461
        %v2373 = vmul.u32 %v1941, 569420461
        %v2374 = vmul.u32 %v1942, 569420461
        %v2375 = vmul.u32 %v1943, 569420461
        %v2376 = vmul.u32 %v1944, 569420461
        %v2377 = vmul.u32 %v1945, 569420461
        %v2378 = vmul.u32 %v1946, 569420461
        %v2379 = vmul.u32 %v1947, 569420461
        %v2380 = vmul.u32 %v1948, 569420461
        %v2381 = vmul.u32 %v1949, 569420461
        %v2382 = vmul.u32 %v1950, 569420461
        %v2383 = vmul.u32 %v1951, 569420461
        %v2384 = vmul.u32 %v1952, 569420461
        %v2385 = vmul.u32 %v1953, 569420461
        %v2386 = vmul.u32 %v1954, 569420461
        %v2387 = vmul.u32 %v1955, 569420461
        %v2388 = vmul.u32 %v1956, 569420461
        %v2389 = vmul.u32 %v1957, 569420461
        %v2390 = vmul.u32 %v1958, 569420461
        %v2391 = vmul.u32 %v1959, 569420461
        %v2392 = vmul.u32 %v1960, 569420461
        %v2393 = vmul.u32 %v1961, 569420461
        %v2394 = vmul.u32 %v1962, 569420461
        %v2395 = vmul.u32 %v1963, 569420461
        %v2396 = vmul.u32 %v1964, 569420461
        %v2397 = vmul.u32 %v1965, 569420461
        %v2398 = vmul.u32 %v1966, 569420461
        %v2399 = vmul.u32 %v1967, 569420461
        %v2400 = vmul.u32 %v1968, 569420461
        %v2401 = vmul.u32 %v1969, 569420461
        %v2402 = vmul.u32 %v1970, 569420461
        %v2403 = vmul.u32 %v1971, 569420461
        %v2404 = vmul.u32 %v1972, 569420461
        %v2405 = vmul.u32 %v1973, 569420461
        %v2406 = vmul.u32 %v1974, 569420461
        %v2407 = vmul.u32 %v1975, 569420461
        %v2408 = vmul.u32 %v1976, 569420461
        %v2409 = vmul.u32 %v1977, 569420461
        %v2410 = vmul.u32 %v1978, 569420461
        %v2411 = vmul.u32 %v1979, 569420461
        %v2412 = vmul.u32 %v1980, 569420461
        %v2413 = vmul.u32 %v1981, 569420461
        %v2414 = vmul.u32 %v1982, 569420461
        %v2415 = vmul.u32 %v1983, 569420461
        %v2416 = vmul.u32 %v1984, 569420461
        %v2417 = vmul.u32 %v1985, 569420461
        %v2418 = vmul.u32 %v1986, 569420461
        %v2419 = vmul.u32 %v1987, 569420461
        %v2420 = vmul.u32 %v1988, 569420461
        %v2421 = vmul.u32 %v1989, 569420461
        %v2422 = vmul.u32 %v1990, 569420461
        %v2423 = vmul.u32 %v1991, 569420461
        %v2424 = vmul.u32 %v1992, 569420461
        %v2425 = vmul.u32 %v1993, 569420461
        %v2426 = vmul.u32 %v1994, 569420461
        %v2427 = vmul.u32 %v1995, 569420461
        %v2428 = vmul.u32 %v1996, 569420461
        %v2429 = vmul.u32 %v1997, 569420461
        %v2430 = vmul.u32 %v1998, 569420461
        %v2431 = vmul.u32 %v1999, 569420461
        %v2432 = vmul.u32 %v2000, 569420461
        %v2433 = vmul.u32 %v2001, 569420461
        %v2434 = vmul.u32 %v2002, 569420461
        %v2435 = vmul.u32 %v2003, 569420461
        %v2436 = vmul.u32 %v2004, 569420461
        %v2437 = vmul.u32 %v2005, 569420461
        %v2438 = vmul.u32 %v2006, 569420461
        %v2439 = vmul.u32 %v2007, 569420461
        %v2440 = vmul.u32 %v2008, 569420461
        %v2441 = vmul.u32 %v2009, 569420461
        %v2442 = vmul.u32 %v2010, 569420461
        %v2443 = vmul.u32 %v2011, 569420461
        %v2444 = vmul.u32 %v2012, 569420461
        %v2445 = vmul.u32 %v2013, 569420461
        %v2446 = vmul.u32 %v2014, 569420461
        %v2447 = vmul.u32 %v2015, 569420461
        %v2448 = vmul.u32 %v2016, 569420461
        %v2449 = vmul.u32 %v2017, 569420461
        %v2450 = vmul.u32 %v2018, 569420461
        %v2451 = vmul.u32 %v2019, 569420461
        %v2452 = vmul.u32 %v2020, 569420461
        %v2453 = vmul.u32 %v2021, 569420461
        %v2454 = vmul.u32 %v2022, 569420461
        %v2455 = vmul.u32 %v2023, 569420461
        %v2456 = vmul.u32 %v2024, 569420461
        %v2457 = vmul.u32 %v2025, 569420461
        %v2458 = vmul.u32 %v2026, 569420461
        %v2459 = vmul.u32 %v2027, 569420461
        %v2460 = vmul.u32 %v2028, 569420461
        %v2461 = vmul.u32 %v2029, 569420461
        %v2462 = vmul.u32 %v2030, 569420461
        %v2463 = vmul.u32 %v2031, 569420461
        %v2464 = vmul.u32 %v2032, 569420461
        %v2465 = vmul.u32 %v2033, 569420461
        %v2466 = vmul.u32 %v2034, 569420461
        %v2467 = vmul.u32 %v2035, 569420461
        %v2468 = vmul.u32 %v2036, 569420461
        %v2469 = vmul.u32 %v2037, 569420461
        %v2470 = vmul.u32 %v2038, 569420461
        %v2471 = vmul.u32 %v2039, 569420461
        %v2472 = vmul.u32 %v2040, 569420461
        %v2473 = vmul.u32 %v2041, 569420461
        %v2474 = vmul.u32 %v2042, 569420461
        %v2475 = vmul.u32 %v2043, 569420461
        %v2476 = vmul.u32 %v2044, 569420461
        %v2477 = vmul.u32 %v2045, 569420461
        %v2478 = vmul.u32 %v2046, 569420461
        %v2479 = vmul.u32 %v2047, 569420461
        %v2480 = vmul.u32 %v2048, 569420461
        %v2481 = vmul.u32 %v2049, 569420461
        %v2482 = vmul.u32 %v2050, 569420461
        %v2483 = vmul.u32 %v2051, 569420461
        %v2484 = vmul.u32 %v2052, 569420461
        %v2485 = vmul.u32 %v2053, 569420461
        %v2486 = vmul.u32 %v2054, 569420461
        %v2487 = vmul.u32 %v2055, 569420461
        %v2488 = vmul.u32 %v2056, 569420461
        %v2489 = vmul.u32 %v2057, 569420461
        %v2490 = vmul.u32 %v2058, 569420461
        %v2491 = vmul.u32 %v2059, 569420461
        %v2492 = vmul.u32 %v2060, 569420461
        %v2493 = vmul.u32 %v2061, 569420461
        %v2494 = vmul.u32 %v2062, 569420461
        %v2495 = vmul.u32 %v2063, 569420461
        %v2496 = vmul.u32 %v2064, 569420461
        %v2497 = vmul.u32 %v2065, 569420461
        %v2498 = vmul.u32 %v2066, 569420461
        %v2499 = vmul.u32 %v2067, 569420461
        %v2500 = vmul.u32 %v2068, 569420461
        %v2501 = vmul.u32 %v2069, 569420461
        %v2502 = vmul.u32 %v2070, 569420461
        %v2503 = vmul.u32 %v2071, 569420461
        %v2504 = vmul.u32 %v2072, 569420461
        %v2505 = vmul.u32 %v2073, 569420461
        %v2506 = vmul.u32 %v2074, 569420461
        %v2507 = vmul.u32 %v2075, 569420461
        %v2508 = vmul.u32 %v2076, 569420461
        %v2509 = vmul.u32 %v2077, 569420461
        %v2510 = vmul.u32 %v2078, 569420461
        %v2511 = vmul.u32 %v2079, 569420461
        %v2512 = vmul.u32 %v2080, 569420461
        %v2513 = vmul.u32 %v2081, 569420461
        %v2514 = vmul.u32 %v2082, 569420461
        %v2515 = vmul.u32 %v2083, 569420461
        %v2516 = vmul.u32 %v2084, 569420461
        %v2517 = vmul.u32 %v2085, 569420461
        %v2518 = vmul.u32 %v2086, 569420461
        %v2519 = vmul.u32 %v2087, 569420461
        %v2520 = vmul.u32 %v2088, 569420461
        %v2521 = vmul.u32 %v2089, 569420461
        %v2522 = vmul.u32 %v2090, 569420461
        %v2523 = vmul.u32 %v2091, 569420461
        %v2524 = vmul.u32 %v2092, 569420461
        %v2525 = vmul.u32 %v2093, 569420461
        %v2526 = vmul.u32 %v2094, 569420461
        %v2527 = vmul.u32 %v2095, 569420461
        %v2528 = vmul.u32 %v2096, 569420461
        %v2529 = vmul.u32 %v2097, 569420461
        %v2530 = vmul.u32 %v2098, 569420461
        %v2531 = vmul.u32 %v2099, 569420461
        %v2532 = vmul.u32 %v2100, 569420461
        %v2533 = vmul.u32 %v2101, 569420461
        %v2534 = vmul.u32 %v2102, 569420461
        %v2535 = vmul.u32 %v2103, 569420461
        %v2536 = vmul.u32 %v2104, 569420461
        %v2537 = vmul.u32 %v2105, 569420461
        %v2538 = vmul.u32 %v2106, 569420461
        %v2539 = vmul.u32 %v2107, 569420461
        %v2540 = vmul.u32 %v2108, 569420461
        %v2541 = vmul.u32 %v2109, 569420461
        %v2542 = vmul.u32 %v2110, 569420461
        %v2543 = vmul.u32 %v2111, 569420461
        %v2544 = vmul.u32 %v2112, 569420461
        %v2545 = vmul.u32 %v2113, 569420461
        %v2546 = vmul.u32 %v2114, 569420461
        %v2547 = vmul.u32 %v2115, 569420461
        %v2548 = vmul.u32 %v2116, 569420461
        %v2549 = vmul.u32 %v2117, 569420461
        %v2550 = vmul.u32 %v2118, 569420461
        %v2551 = vmul.u32 %v2119, 569420461
        %v2552 = vmul.u32 %v2120, 569420461
        %v2553 = vmul.u32 %v2121, 569420461
        %v2554 = vmul.u32 %v2122, 569420461
        %v2555 = vmul.u32 %v2123, 569420461
        %v2556 = vmul.u32 %v2124, 569420461
        %v2557 = vmul.u32 %v2125, 569420461
        %v2558 = vmul.u32 %v2126, 569420461
        %v2559 = vmul.u32 %v2127, 569420461
        %v2560 = vmul.u32 %v2128, 569420461
        %v2561 = vmul.u32 %v2129, 569420461
        %v2562 = vmul.u32 %v2130, 569420461
        %v2563 = vmul.u32 %v2131, 569420461
        %v2564 = vmul.u32 %v2132, 569420461
        %v2565 = vmul.u32 %v2133, 569420461
        %v2566 = vmul.u32 %v2134, 569420461
        %v2567 = vmul.u32 %v2135, 569420461
        %v2568 = vmul.u32 %v2136, 569420461
        %v2569 = vmul.u32 %v2137, 569420461
        %v2570 = vmul.u32 %v2138, 569420461
        %v2571 = vmul.u32 %v2139, 569420461
        %v2572 = vmul.u32 %v2140, 569420461
        %v2573 = vmul.u32 %v2141, 569420461
        %v2574 = vmul.u32 %v2142, 569420461
        %v2575 = vmul.u32 %v2143, 569420461
        %v2576 = vmul.u32 %v2144, 569420461
        %v2577 = vmul.u32 %v2145, 569420461
        %v2578 = vmul.u32 %v2146, 569420461
        %v2579 = vmul.u32 %v2147, 569420461
        %v2580 = vmul.u32 %v2148, 569420461
        %v2581 = vmul.u32 %v2149, 569420461
        %v2582 = vmul.u32 %v2150, 569420461
        %v2583 = vmul.u32 %v2151, 569420461
        %v2584 = vmul.u32 %v2152, 569420461
        %v2585 = vmul.u32 %v2153, 569420461
        %v2586 = vmul.u32 %v2154, 569420461
        %v2587 = vmul.u32 %v2155, 569420461
        %v2588 = vmul.u32 %v2156, 569420461
        %v2589 = vmul.u32 %v2157, 569420461
        %v2590 = vmul.u32 %v2158, 569420461
        %v2591 = vmul.u32 %v2159, 569420461
        %v2592 = vmul.u32 %v2160, 569420461
        %v2593 = vmul.u32 %v2161, 569420461
        %v2594 = vmul.u32 %v2162, 569420461
        %v2595 = vmul.u32 %v2163, 569420461
        %v2596 = vmul.u32 %v2164, 569420461
        %v2597 = vmul.u32 %v2165, 569420461
        %v2598 = vmul.u32 %v2166, 569420461
        %v2599 = vmul.u32 %v2167, 569420461
        %v2600 = vmul.u32 %v2168, 569420461
        %v2601 = vmul.u32 %v2169, 569420461
        %v2602 = vmul.u32 %v2170, 569420461
        %v2603 = vmul.u32 %v2171, 569420461
        %v2604 = vmul.u32 %v2172, 569420461
        %v2605 = vmul.u32 %v2173, 569420461
        %v2606 = vmul.u32 %v2174, 569420461
        %v2607 = vmul.u32 %v2175, 569420461
        %v2608 = vmul.u32 %v2176, 569420461
        %v2609 = vmul.u32 %v2177, 569420461
        %v2610 = vmul.u32 %v2178, 569420461
        %v2611 = vmul.u32 %v2179, 569420461
        %v2612 = vmul.u32 %v2180, 569420461
        %v2613 = vmul.u32 %v2181, 569420461
        %v2614 = vmul.u32 %v2182, 569420461
        %v2615 = vmul.u32 %v2183, 569420461
        %v2616 = vmul.u32 %v2184, 569420461
        %v2617 = vmul.u32 %v2185, 569420461
        %v2618 = vmul.u32 %v2186, 569420461
        %v2619 = vmul.u32 %v2187, 569420461
        %v2620 = vmul.u32 %v2188, 569420461
        %v2621 = vmul.u32 %v2189, 569420461
        %v2622 = vmul.u32 %v2190, 569420461
        %v2623 = vmul.u32 %v2191, 569420461
        %v2624 = vmul.u32 %v2192, 569420461
        %v2625 = vmul.u32 %v2193, 569420461
        %v2626 = vmul.u32 %v2194, 569420461
        %v2627 = vmul.u32 %v2195, 569420461
        %v2628 = vmul.u32 %v2196, 569420461
        %v2629 = vmul.u32 %v2197, 569420461
        %v2630 = vmul.u32 %v2198, 569420461
        %v2631 = vmul.u32 %v2199, 569420461
        %v2632 = vmul.u32 %v2200, 569420461
        %v2633 = vmul.u32 %v2201, 569420461
        %v2634 = vmul.u32 %v2202, 569420461
        %v2635 = vmul.u32 %v2203, 569420461
        %v2636 = vmul.u32 %v2204, 569420461
        %v2637 = vmul.u32 %v2205, 569420461
        %v2638 = vmul.u32 %v2206, 569420461
        %v2639 = vmul.u32 %v2207, 569420461
        %v2640 = vmul.u32 %v2208, 569420461
        %v2641 = vmul.u32 %v2209, 569420461
        %v2642 = vmul.u32 %v2210, 569420461
        %v2643 = vmul.u32 %v2211, 569420461
        %v2644 = vmul.u32 %v2212, 569420461
        %v2645 = vmul.u32 %v2213, 569420461
        %v2646 = vmul.u32 %v2214, 569420461
        %v2647 = vmul.u32 %v2215, 569420461
        %v2648 = vmul.u32 %v2216, 569420461
        %v2649 = vmul.u32 %v2217, 569420461
        %v2650 = vmul.u32 %v2218, 569420461
        %v2651 = vmul.u32 %v2219, 569420461
        %v2652 = vmul.u32 %v2220, 569420461
        %v2653 = vmul.u32 %v2221, 569420461
        %v2654 = vmul.u32 %v2222, 569420461
        %v2655 = vmul.u32 %v2223, 569420461
        %v2656 = vmul.u32 %v2224, 569420461
        %v2657 = vmul.u32 %v2225, 569420461
        %v2658 = vmul.u32 %v2226, 569420461
        %v2659 = vmul.u32 %v2227, 569420461
        %v2660 = vmul.u32 %v2228, 569420461
        %v2661 = vmul.u32 %v2229, 569420461
        %v2662 = vmul.u32 %v2230, 569420461
        %v2663 = vmul.u32 %v2231, 569420461
        %v2664 = vmul.u32 %v2232, 569420461
        %v2665 = vmul.u32 %v2233, 569420461
        %v2666 = vmul.u32 %v2234, 569420461
        %v2667 = vmul.u32 %v2235, 569420461
        %v2668 = vmul.u32 %v2236, 569420461
        %v2669 = vmul.u32 %v2237, 569420461
        %v2670 = vmul.u32 %v2238, 569420461
        %v2671 = vmul.u32 %v2239, 569420461
        %v2672 = vmul.u32 %v2240, 569420461
        %v2673 = vmul.u32 %v2241, 569420461
        %v2674 = vmul.u32 %v2242, 569420461
        %v2675 = vmul.u32 %v2243, 569420461
        %v2676 = vmul.u32 %v2244, 569420461
        %v2677 = vmul.u32 %v2245, 569420461
        %v2678 = vmul.u32 %v2246, 569420461
        %v2679 = vmul.u32 %v2247, 569420461
        %v2680 = vmul.u32 %v2248, 569420461
        %v2681 = vmul.u32 %v2249, 569420461
        %v2682 = vmul.u32 %v2250, 569420461
        %v2683 = vmul.u32 %v2251, 569420461
        %v2684 = vmul.u32 %v2252, 569420461
        %v2685 = vmul.u32 %v2253, 569420461
        %v2686 = vmul.u32 %v2254, 569420461
        %v2687 = vmul.u32 %v2255, 569420461
        %v2688 = vmul.u32 %v2256, 569420461
        %v2689 = vmul.u32 %v2257, 569420461
        %v2690 = vmul.u32 %v2258, 569420461
        %v2691 = vmul.u32 %v2259, 569420461
        %v2692 = vmul.u32 %v2260, 569420461
        %v2693 = vmul.u32 %v2261, 569420461
        %v2694 = vmul.u32 %v2262, 569420461
        %v2695 = vmul.u32 %v2263, 569420461
        %v2696 = vmul.u32 %v2264, 569420461
        %v2697 = vmul.u32 %v2265, 569420461
        %v2698 = vmul.u32 %v2266, 569420461
        %v2699 = vmul.u32 %v2267, 569420461
        %v2700 = vmul.u32 %v2268, 569420461
        %v2701 = vmul.u32 %v2269, 569420461
        %v2702 = vmul.u32 %v2270, 569420461
        %v2703 = vmul.u32 %v2271, 569420461
        %v2704 = vmul.u32 %v2272, 569420461
        %v2705 = vmul.u32 %v2273, 569420461
        %v2706 = vmul.u32 %v2274, 569420461
        %v2707 = vmul.u32 %v2275, 569420461
        %v2708 = vmul.u32 %v2276, 569420461
        %v2709 = vmul.u32 %v2277, 569420461
        %v2710 = vmul.u32 %v2278, 569420461
        %v2711 = vmul.u32 %v2279, 569420461
        %v2712 = vmul.u32 %v2280, 569420461
        %v2713 = vmul.u32 %v2281, 569420461
        %v2714 = vmul.u32 %v2282, 569420461
        %v2715 = vmul.u32 %v2283, 569420461
        %v2716 = vmul.u32 %v2284, 569420461
        %v2717 = vmul.u32 %v2285, 569420461
        %v2718 = vmul.u32 %v2286, 569420461
        %v2719 = vmul.u32 %v2287, 569420461
        %v2720 = vmul.u32 %v2288, 569420461
        %v2721 = vmul.u32 %v2289, 569420461
        %v2722 = vmul.u32 %v2290, 569420461
        %v2723 = vmul.u32 %v2291, 569420461
        %v2724 = vmul.u32 %v2292, 569420461
        %v2725 = vmul.u32 %v2293, 569420461
        %v2726 = vmul.u32 %v2294, 569420461
        %v2727 = vmul.u32 %v2295, 569420461
        %v2728 = vmul.u32 %v2296, 569420461
        %v2729 = vmul.u32 %v2297, 569420461
        %v2730 = vmul.u32 %v2298, 569420461
        %v2731 = vmul.u32 %v2299, 569420461
        %v2732 = vmul.u32 %v2300, 569420461
        %v2733 = vmul.u32 %v2301, 569420461
        %v2734 = vmul.u32 %v2302, 569420461
        %v2735 = vmul.u32 %v2303, 569420461
        %v2736 = vmul.u32 %v2304, 569420461
        %v2737 = vmul.u32 %v2305, 569420461
        %v2738 = vmul.u32 %v2306, 569420461
        %v2739 = vmul.u32 %v2307, 569420461
        %v2740 = vmul.u32 %v2308, 569420461
        %v2741 = vmul.u32 %v2309, 569420461
        %v2742 = vshrl.u32 %v2310, 15
        %v2743 = vshrl.u32 %v2311, 15
        %v2744 = vshrl.u32 %v2312, 15
        %v2745 = vshrl.u32 %v2313, 15
        %v2746 = vshrl.u32 %v2314, 15
        %v2747 = vshrl.u32 %v2315, 15
        %v2748 = vshrl.u32 %v2316, 15
        %v2749 = vshrl.u32 %v2317, 15
        %v2750 = vshrl.u32 %v2318, 15
        %v2751 = vshrl.u32 %v2319, 15
        %v2752 = vshrl.u32 %v2320, 15
        %v2753 = vshrl.u32 %v2321, 15
        %v2754 = vshrl.u32 %v2322, 15
        %v2755 = vshrl.u32 %v2323, 15
        %v2756 = vshrl.u32 %v2324, 15
        %v2757 = vshrl.u32 %v2325, 15
        %v2758 = vshrl.u32 %v2326, 15
        %v2759 = vshrl.u32 %v2327, 15
        %v2760 = vshrl.u32 %v2328, 15
        %v2761 = vshrl.u32 %v2329, 15
        %v2762 = vshrl.u32 %v2330, 15
        %v2763 = vshrl.u32 %v2331, 15
        %v2764 = vshrl.u32 %v2332, 15
        %v2765 = vshrl.u32 %v2333, 15
        %v2766 = vshrl.u32 %v2334, 15
        %v2767 = vshrl.u32 %v2335, 15
        %v2768 = vshrl.u32 %v2336, 15
        %v2769 = vshrl.u32 %v2337, 15
        %v2770 = vshrl.u32 %v2338, 15
        %v2771 = vshrl.u32 %v2339, 15
        %v2772 = vshrl.u32 %v2340, 15
        %v2773 = vshrl.u32 %v2341, 15
        %v2774 = vshrl.u32 %v2342, 15
        %v2775 = vshrl.u32 %v2343, 15
        %v2776 = vshrl.u32 %v2344, 15
        %v2777 = vshrl.u32 %v2345, 15
        %v2778 = vshrl.u32 %v2346, 15
        %v2779 = vshrl.u32 %v2347, 15
        %v2780 = vshrl.u32 %v2348, 15
        %v2781 = vshrl.u32 %v2349, 15
        %v2782 = vshrl.u32 %v2350, 15
        %v2783 = vshrl.u32 %v2351, 15
        %v2784 = vshrl.u32 %v2352, 15
        %v2785 = vshrl.u32 %v2353, 15
        %v2786 = vshrl.u32 %v2354, 15
        %v2787 = vshrl.u32 %v2355, 15
        %v2788 = vshrl.u32 %v2356, 15
        %v2789 = vshrl.u32 %v2357, 15
        %v2790 = vshrl.u32 %v2358, 15
        %v2791 = vshrl.u32 %v2359, 15
        %v2792 = vshrl.u32 %v2360, 15
        %v2793 = vshrl.u32 %v2361, 15
        %v2794 = vshrl.u32 %v2362, 15
        %v2795 = vshrl.u32 %v2363, 15
        %v2796 = vshrl.u32 %v2364, 15
        %v2797 = vshrl.u32 %v2365, 15
        %v2798 = vshrl.u32 %v2366, 15
        %v2799 = vshrl.u32 %v2367, 15
        %v2800 = vshrl.u32 %v2368, 15
        %v2801 = vshrl.u32 %v2369, 15
        %v2802 = vshrl.u32 %v2370, 15
        %v2803 = vshrl.u32 %v2371, 15
        %v2804 = vshrl.u32 %v2372, 15
        %v2805 = vshrl.u32 %v2373, 15
        %v2806 = vshrl.u32 %v2374, 15
        %v2807 = vshrl.u32 %v2375, 15
        %v2808 = vshrl.u32 %v2376, 15
        %v2809 = vshrl.u32 %v2377, 15
        %v2810 = vshrl.u32 %v2378, 15
        %v2811 = vshrl.u32 %v2379, 15
        %v2812 = vshrl.u32 %v2380, 15
        %v2813 = vshrl.u32 %v2381, 15
        %v2814 = vshrl.u32 %v2382, 15
        %v2815 = vshrl.u32 %v2383, 15
        %v2816 = vshrl.u32 %v2384, 15
        %v2817 = vshrl.u32 %v2385, 15
        %v2818 = vshrl.u32 %v2386, 15
        %v2819 = vshrl.u32 %v2387, 15
        %v2820 = vshrl.u32 %v2388, 15
        %v2821 = vshrl.u32 %v2389, 15
        %v2822 = vshrl.u32 %v2390, 15
        %v2823 = vshrl.u32 %v2391, 15
        %v2824 = vshrl.u32 %v2392, 15
        %v2825 = vshrl.u32 %v2393, 15
        %v2826 = vshrl.u32 %v2394, 15
        %v2827 = vshrl.u32 %v2395, 15
        %v2828 = vshrl.u32 %v2396, 15
        %v2829 = vshrl.u32 %v2397, 15
        %v2830 = vshrl.u32 %v2398, 15
        %v2831 = vshrl.u32 %v2399, 15
        %v2832 = vshrl.u32 %v2400, 15
        %v2833 = vshrl.u32 %v2401, 15
        %v2834 = vshrl.u32 %v2402, 15
        %v2835 = vshrl.u32 %v2403, 15
        %v2836 = vshrl.u32 %v2404, 15
        %v2837 = vshrl.u32 %v2405, 15
        %v2838 = vshrl.u32 %v2406, 15
        %v2839 = vshrl.u32 %v2407, 15
        %v2840 = vshrl.u32 %v2408, 15
        %v2841 = vshrl.u32 %v2409, 15
        %v2842 = vshrl.u32 %v2410, 15
        %v2843 = vshrl.u32 %v2411, 15
        %v2844 = vshrl.u32 %v2412, 15
        %v2845 = vshrl.u32 %v2413, 15
        %v2846 = vshrl.u32 %v2414, 15
        %v2847 = vshrl.u32 %v2415, 15
        %v2848 = vshrl.u32 %v2416, 15
        %v2849 = vshrl.u32 %v2417, 15
        %v2850 = vshrl.u32 %v2418, 15
        %v2851 = vshrl.u32 %v2419, 15
        %v2852 = vshrl.u32 %v2420, 15
        %v2853 = vshrl.u32 %v2421, 15
        %v2854 = vshrl.u32 %v2422, 15
        %v2855 = vshrl.u32 %v2423, 15
        %v2856 = vshrl.u32 %v2424, 15
        %v2857 = vshrl.u32 %v2425, 15
        %v2858 = vshrl.u32 %v2426, 15
        %v2859 = vshrl.u32 %v2427, 15
        %v2860 = vshrl.u32 %v2428, 15
        %v2861 = vshrl.u32 %v2429, 15
        %v2862 = vshrl.u32 %v2430, 15
        %v2863 = vshrl.u32 %v2431, 15
        %v2864 = vshrl.u32 %v2432, 15
        %v2865 = vshrl.u32 %v2433, 15
        %v2866 = vshrl.u32 %v2434, 15
        %v2867 = vshrl.u32 %v2435, 15
        %v2868 = vshrl.u32 %v2436, 15
        %v2869 = vshrl.u32 %v2437, 15
        %v2870 = vshrl.u32 %v2438, 15
        %v2871 = vshrl.u32 %v2439, 15
        %v2872 = vshrl.u32 %v2440, 15
        %v2873 = vshrl.u32 %v2441, 15
        %v2874 = vshrl.u32 %v2442, 15
        %v2875 = vshrl.u32 %v2443, 15
        %v2876 = vshrl.u32 %v2444, 15
        %v2877 = vshrl.u32 %v2445, 15
        %v2878 = vshrl.u32 %v2446, 15
        %v2879 = vshrl.u32 %v2447, 15
        %v2880 = vshrl.u32 %v2448, 15
        %v2881 = vshrl.u32 %v2449, 15
        %v2882 = vshrl.u32 %v2450, 15
        %v2883 = vshrl.u32 %v2451, 15
        %v2884 = vshrl.u32 %v2452, 15
        %v2885 = vshrl.u32 %v2453, 15
        %v2886 = vshrl.u32 %v2454, 15
        %v2887 = vshrl.u32 %v2455, 15
        %v2888 = vshrl.u32 %v2456, 15
        %v2889 = vshrl.u32 %v2457, 15
        %v2890 = vshrl.u32 %v2458, 15
        %v2891 = vshrl.u32 %v2459, 15
        %v2892 = vshrl.u32 %v2460, 15
        %v2893 = vshrl.u32 %v2461, 15
        %v2894 = vshrl.u32 %v2462, 15
        %v2895 = vshrl.u32 %v2463, 15
        %v2896 = vshrl.u32 %v2464, 15
        %v2897 = vshrl.u32 %v2465, 15
        %v2898 = vshrl.u32 %v2466, 15
        %v2899 = vshrl.u32 %v2467, 15
        %v2900 = vshrl.u32 %v2468, 15
        %v2901 = vshrl.u32 %v2469, 15
        %v2902 = vshrl.u32 %v2470, 15
        %v2903 = vshrl.u32 %v2471, 15
        %v2904 = vshrl.u32 %v2472, 15
        %v2905 = vshrl.u32 %v2473, 15
        %v2906 = vshrl.u32 %v2474, 15
        %v2907 = vshrl.u32 %v2475, 15
        %v2908 = vshrl.u32 %v2476, 15
        %v2909 = vshrl.u32 %v2477, 15
        %v2910 = vshrl.u32 %v2478, 15
        %v2911 = vshrl.u32 %v2479, 15
        %v2912 = vshrl.u32 %v2480, 15
        %v2913 = vshrl.u32 %v2481, 15
        %v2914 = vshrl.u32 %v2482, 15
        %v2915 = vshrl.u32 %v2483, 15
        %v2916 = vshrl.u32 %v2484, 15
        %v2917 = vshrl.u32 %v2485, 15
        %v2918 = vshrl.u32 %v2486, 15
        %v2919 = vshrl.u32 %v2487, 15
        %v2920 = vshrl.u32 %v2488, 15
        %v2921 = vshrl.u32 %v2489, 15
        %v2922 = vshrl.u32 %v2490, 15
        %v2923 = vshrl.u32 %v2491, 15
        %v2924 = vshrl.u32 %v2492, 15
        %v2925 = vshrl.u32 %v2493, 15
        %v2926 = vshrl.u32 %v2494, 15
        %v2927 = vshrl.u32 %v2495, 15
        %v2928 = vshrl.u32 %v2496, 15
        %v2929 = vshrl.u32 %v2497, 15
        %v2930 = vshrl.u32 %v2498, 15
        %v2931 = vshrl.u32 %v2499, 15
        %v2932 = vshrl.u32 %v2500, 15
        %v2933 = vshrl.u32 %v2501, 15
        %v2934 = vshrl.u32 %v2502, 15
        %v2935 = vshrl.u32 %v2503, 15
        %v2936 = vshrl.u32 %v2504, 15
        %v2937 = vshrl.u32 %v2505, 15
        %v2938 = vshrl.u32 %v2506, 15
        %v2939 = vshrl.u32 %v2507, 15
        %v2940 = vshrl.u32 %v2508, 15
        %v2941 = vshrl.u32 %v2509, 15
        %v2942 = vshrl.u32 %v2510, 15
        %v2943 = vshrl.u32 %v2511, 15
        %v2944 = vshrl.u32 %v2512, 15
        %v2945 = vshrl.u32 %v2513, 15
        %v2946 = vshrl.u32 %v2514, 15
        %v2947 = vshrl.u32 %v2515, 15
        %v2948 = vshrl.u32 %v2516, 15
        %v2949 = vshrl.u32 %v2517, 15
        %v2950 = vshrl.u32 %v2518, 15
        %v2951 = vshrl.u32 %v2519, 15
        %v2952 = vshrl.u32 %v2520, 15
        %v2953 = vshrl.u32 %v2521, 15
        %v2954 = vshrl.u32 %v2522, 15
        %v2955 = vshrl.u32 %v2523, 15
        %v2956 = vshrl.u32 %v2524, 15
        %v2957 = vshrl.u32 %v2525, 15
        %v2958 = vshrl.u32 %v2526, 15
        %v2959 = vshrl.u32 %v2527, 15
        %v2960 = vshrl.u32 %v2528, 15
        %v2961 = vshrl.u32 %v2529, 15
        %v2962 = vshrl.u32 %v2530, 15
        %v2963 = vshrl.u32 %v2531, 15
        %v2964 = vshrl.u32 %v2532, 15
        %v2965 = vshrl.u32 %v2533, 15
        %v2966 = vshrl.u32 %v2534, 15
        %v2967 = vshrl.u32 %v2535, 15
        %v2968 = vshrl.u32 %v2536, 15
        %v2969 = vshrl.u32 %v2537, 15
        %v2970 = vshrl.u32 %v2538, 15
        %v2971 = vshrl.u32 %v2539, 15
        %v2972 = vshrl.u32 %v2540, 15
        %v2973 = vshrl.u32 %v2541, 15
        %v2974 = vshrl.u32 %v2542, 15
        %v2975 = vshrl.u32 %v2543, 15
        %v2976 = vshrl.u32 %v2544, 15
        %v2977 = vshrl.u32 %v2545, 15
        %v2978 = vshrl.u32 %v2546, 15
        %v2979 = vshrl.u32 %v2547, 15
        %v2980 = vshrl.u32 %v2548, 15
        %v2981 = vshrl.u32 %v2549, 15
        %v2982 = vshrl.u32 %v2550, 15
        %v2983 = vshrl.u32 %v2551, 15
        %v2984 = vshrl.u32 %v2552, 15
        %v2985 = vshrl.u32 %v2553, 15
        %v2986 = vshrl.u32 %v2554, 15
        %v2987 = vshrl.u32 %v2555, 15
        %v2988 = vshrl.u32 %v2556, 15
        %v2989 = vshrl.u32 %v2557, 15
        %v2990 = vshrl.u32 %v2558, 15
        %v2991 = vshrl.u32 %v2559, 15
        %v2992 = vshrl.u32 %v2560, 15
        %v2993 = vshrl.u32 %v2561, 15
        %v2994 = vshrl.u32 %v2562, 15
        %v2995 = vshrl.u32 %v2563, 15
        %v2996 = vshrl.u32 %v2564, 15
        %v2997 = vshrl.u32 %v2565, 15
        %v2998 = vshrl.u32 %v2566, 15
        %v2999 = vshrl.u32 %v2567, 15
        %v3000 = vshrl.u32 %v2568, 15
        %v3001 = vshrl.u32 %v2569, 15
        %v3002 = vshrl.u32 %v2570, 15
        %v3003 = vshrl.u32 %v2571, 15
        %v3004 = vshrl.u32 %v2572, 15
        %v3005 = vshrl.u32 %v2573, 15
        %v3006 = vshrl.u32 %v2574, 15
        %v3007 = vshrl.u32 %v2575, 15
        %v3008 = vshrl.u32 %v2576, 15
        %v3009 = vshrl.u32 %v2577, 15
        %v3010 = vshrl.u32 %v2578, 15
        %v3011 = vshrl.u32 %v2579, 15
        %v3012 = vshrl.u32 %v2580, 15
        %v3013 = vshrl.u32 %v2581, 15
        %v3014 = vshrl.u32 %v2582, 15
        %v3015 = vshrl.u32 %v2583, 15
        %v3016 = vshrl.u32 %v2584, 15
        %v3017 = vshrl.u32 %v2585, 15
        %v3018 = vshrl.u32 %v2586, 15
        %v3019 = vshrl.u32 %v2587, 15
        %v3020 = vshrl.u32 %v2588, 15
        %v3021 = vshrl.u32 %v2589, 15
        %v3022 = vshrl.u32 %v2590, 15
        %v3023 = vshrl.u32 %v2591, 15
        %v3024 = vshrl.u32 %v2592, 15
        %v3025 = vshrl.u32 %v2593, 15
        %v3026 = vshrl.u32 %v2594, 15
        %v3027 = vshrl.u32 %v2595, 15
        %v3028 = vshrl.u32 %v2596, 15
        %v3029 = vshrl.u32 %v2597, 15
        %v3030 = vshrl.u32 %v2598, 15
        %v3031 = vshrl.u32 %v2599, 15
        %v3032 = vshrl.u32 %v2600, 15
        %v3033 = vshrl.u32 %v2601, 15
        %v3034 = vshrl.u32 %v2602, 15
        %v3035 = vshrl.u32 %v2603, 15
        %v3036 = vshrl.u32 %v2604, 15
        %v3037 = vshrl.u32 %v2605, 15
        %v3038 = vshrl.u32 %v2606, 15
        %v3039 = vshrl.u32 %v2607, 15
        %v3040 = vshrl.u32 %v2608, 15
        %v3041 = vshrl.u32 %v2609, 15
        %v3042 = vshrl.u32 %v2610, 15
        %v3043 = vshrl.u32 %v2611, 15
        %v3044 = vshrl.u32 %v2612, 15
        %v3045 = vshrl.u32 %v2613, 15
        %v3046 = vshrl.u32 %v2614, 15
        %v3047 = vshrl.u32 %v2615, 15
        %v3048 = vshrl.u32 %v2616, 15
        %v3049 = vshrl.u32 %v2617, 15
        %v3050 = vshrl.u32 %v2618, 15
        %v3051 = vshrl.u32 %v2619, 15
        %v3052 = vshrl.u32 %v2620, 15
        %v3053 = vshrl.u32 %v2621, 15
        %v3054 = vshrl.u32 %v2622, 15
        %v3055 = vshrl.u32 %v2623, 15
        %v3056 = vshrl.u32 %v2624, 15
        %v3057 = vshrl.u32 %v2625, 15
        %v3058 = vshrl.u32 %v2626, 15
        %v3059 = vshrl.u32 %v2627, 15
        %v3060 = vshrl.u32 %v2628, 15
        %v3061 = vshrl.u32 %v2629, 15
        %v3062 = vshrl.u32 %v2630, 15
        %v3063 = vshrl.u32 %v2631, 15
        %v3064 = vshrl.u32 %v2632, 15
        %v3065 = vshrl.u32 %v2633, 15
        %v3066 = vshrl.u32 %v2634, 15
        %v3067 = vshrl.u32 %v2635, 15
        %v3068 = vshrl.u32 %v2636, 15
        %v3069 = vshrl.u32 %v2637, 15
        %v3070 = vshrl.u32 %v2638, 15
        %v3071 = vshrl.u32 %v2639, 15
        %v3072 = vshrl.u32 %v2640, 15
        %v3073 = vshrl.u32 %v2641, 15
        %v3074 = vshrl.u32 %v2642, 15
        %v3075 = vshrl.u32 %v2643, 15
        %v3076 = vshrl.u32 %v2644, 15
        %v3077 = vshrl.u32 %v2645, 15
        %v3078 = vshrl.u32 %v2646, 15
        %v3079 = vshrl.u32 %v2647, 15
        %v3080 = vshrl.u32 %v2648, 15
        %v3081 = vshrl.u32 %v2649, 15
        %v3082 = vshrl.u32 %v2650, 15
        %v3083 = vshrl.u32 %v2651, 15
        %v3084 = vshrl.u32 %v2652, 15
        %v3085 = vshrl.u32 %v2653, 15
        %v3086 = vshrl.u32 %v2654, 15
        %v3087 = vshrl.u32 %v2655, 15
        %v3088 = vshrl.u32 %v2656, 15
        %v3089 = vshrl.u32 %v2657, 15
        %v3090 = vshrl.u32 %v2658, 15
        %v3091 = vshrl.u32 %v2659, 15
        %v3092 = vshrl.u32 %v2660, 15
        %v3093 = vshrl.u32 %v2661, 15
        %v3094 = vshrl.u32 %v2662, 15
        %v3095 = vshrl.u32 %v2663, 15
        %v3096 = vshrl.u32 %v2664, 15
        %v3097 = vshrl.u32 %v2665, 15
        %v3098 = vshrl.u32 %v2666, 15
        %v3099 = vshrl.u32 %v2667, 15
        %v3100 = vshrl.u32 %v2668, 15
        %v3101 = vshrl.u32 %v2669, 15
        %v3102 = vshrl.u32 %v2670, 15
        %v3103 = vshrl.u32 %v2671, 15
        %v3104 = vshrl.u32 %v2672, 15
        %v3105 = vshrl.u32 %v2673, 15
        %v3106 = vshrl.u32 %v2674, 15
        %v3107 = vshrl.u32 %v2675, 15
        %v3108 = vshrl.u32 %v2676, 15
        %v3109 = vshrl.u32 %v2677, 15
        %v3110 = vshrl.u32 %v2678, 15
        %v3111 = vshrl.u32 %v2679, 15
        %v3112 = vshrl.u32 %v2680, 15
        %v3113 = vshrl.u32 %v2681, 15
        %v3114 = vshrl.u32 %v2682, 15
        %v3115 = vshrl.u32 %v2683, 15
        %v3116 = vshrl.u32 %v2684, 15
        %v3117 = vshrl.u32 %v2685, 15
        %v3118 = vshrl.u32 %v2686, 15
        %v3119 = vshrl.u32 %v2687, 15
        %v3120 = vshrl.u32 %v2688, 15
        %v3121 = vshrl.u32 %v2689, 15
        %v3122 = vshrl.u32 %v2690, 15
        %v3123 = vshrl.u32 %v2691, 15
        %v3124 = vshrl.u32 %v2692, 15
        %v3125 = vshrl.u32 %v2693, 15
        %v3126 = vshrl.u32 %v2694, 15
        %v3127 = vshrl.u32 %v2695, 15
        %v3128 = vshrl.u32 %v2696, 15
        %v3129 = vshrl.u32 %v2697, 15
        %v3130 = vshrl.u32 %v2698, 15
        %v3131 = vshrl.u32 %v2699, 15
        %v3132 = vshrl.u32 %v2700, 15
        %v3133 = vshrl.u32 %v2701, 15
        %v3134 = vshrl.u32 %v2702, 15
        %v3135 = vshrl.u32 %v2703, 15
        %v3136 = vshrl.u32 %v2704, 15
        %v3137 = vshrl.u32 %v2705, 15
        %v3138 = vshrl.u32 %v2706, 15
        %v3139 = vshrl.u32 %v2707, 15
        %v3140 = vshrl.u32 %v2708, 15
        %v3141 = vshrl.u32 %v2709, 15
        %v3142 = vshrl.u32 %v2710, 15
        %v3143 = vshrl.u32 %v2711, 15
        %v3144 = vshrl.u32 %v2712, 15
        %v3145 = vshrl.u32 %v2713, 15
        %v3146 = vshrl.u32 %v2714, 15
        %v3147 = vshrl.u32 %v2715, 15
        %v3148 = vshrl.u32 %v2716, 15
        %v3149 = vshrl.u32 %v2717, 15
        %v3150 = vshrl.u32 %v2718, 15
        %v3151 = vshrl.u32 %v2719, 15
        %v3152 = vshrl.u32 %v2720, 15
        %v3153 = vshrl.u32 %v2721, 15
        %v3154 = vshrl.u32 %v2722, 15
        %v3155 = vshrl.u32 %v2723, 15
        %v3156 = vshrl.u32 %v2724, 15
        %v3157 = vshrl.u32 %v2725, 15
        %v3158 = vshrl.u32 %v2726, 15
        %v3159 = vshrl.u32 %v2727, 15
        %v3160 = vshrl.u32 %v2728, 15
        %v3161 = vshrl.u32 %v2729, 15
        %v3162 = vshrl.u32 %v2730, 15
        %v3163 = vshrl.u32 %v2731, 15
        %v3164 = vshrl.u32 %v2732, 15
        %v3165 = vshrl.u32 %v2733, 15
        %v3166 = vshrl.u32 %v2734, 15
        %v3167 = vshrl.u32 %v2735, 15
        %v3168 = vshrl.u32 %v2736, 15
        %v3169 = vshrl.u32 %v2737, 15
        %v3170 = vshrl.u32 %v2738, 15
        %v3171 = vshrl.u32 %v2739, 15
        %v3172 = vshrl.u32 %v2740, 15
        %v3173 = vshrl.u32 %v2741, 15
        %v3174 = vxor.u32 %v2310, %v2742
        %v3175 = vxor.u32 %v2311, %v2743
        %v3176 = vxor.u32 %v2312, %v2744
        %v3177 = vxor.u32 %v2313, %v2745
        %v3178 = vxor.u32 %v2314, %v2746
        %v3179 = vxor.u32 %v2315, %v2747
        %v3180 = vxor.u32 %v2316, %v2748
        %v3181 = vxor.u32 %v2317, %v2749
        %v3182 = vxor.u32 %v2318, %v2750
        %v3183 = vxor.u32 %v2319, %v2751
        %v3184 = vxor.u32 %v2320, %v2752
        %v3185 = vxor.u32 %v2321, %v2753
        %v3186 = vxor.u32 %v2322, %v2754
        %v3187 = vxor.u32 %v2323, %v2755
        %v3188 = vxor.u32 %v2324, %v2756
        %v3189 = vxor.u32 %v2325, %v2757
        %v3190 = vxor.u32 %v2326, %v2758
        %v3191 = vxor.u32 %v2327, %v2759
        %v3192 = vxor.u32 %v2328, %v2760
        %v3193 = vxor.u32 %v2329, %v2761
        %v3194 = vxor.u32 %v2330, %v2762
        %v3195 = vxor.u32 %v2331, %v2763
        %v3196 = vxor.u32 %v2332, %v2764
        %v3197 = vxor.u32 %v2333, %v2765
        %v3198 = vxor.u32 %v2334, %v2766
        %v3199 = vxor.u32 %v2335, %v2767
        %v3200 = vxor.u32 %v2336, %v2768
        %v3201 = vxor.u32 %v2337, %v2769
        %v3202 = vxor.u32 %v2338, %v2770
        %v3203 = vxor.u32 %v2339, %v2771
        %v3204 = vxor.u32 %v2340, %v2772
        %v3205 = vxor.u32 %v2341, %v2773
        %v3206 = vxor.u32 %v2342, %v2774
        %v3207 = vxor.u32 %v2343, %v2775
        %v3208 = vxor.u32 %v2344, %v2776
        %v3209 = vxor.u32 %v2345, %v2777
        %v3210 = vxor.u32 %v2346, %v2778
        %v3211 = vxor.u32 %v2347, %v2779
        %v3212 = vxor.u32 %v2348, %v2780
        %v3213 = vxor.u32 %v2349, %v2781
        %v3214 = vxor.u32 %v2350, %v2782
        %v3215 = vxor.u32 %v2351, %v2783
        %v3216 = vxor.u32 %v2352, %v2784
        %v3217 = vxor.u32 %v2353, %v2785
        %v3218 = vxor.u32 %v2354, %v2786
        %v3219 = vxor.u32 %v2355, %v2787
        %v3220 = vxor.u32 %v2356, %v2788
        %v3221 = vxor.u32 %v2357, %v2789
        %v3222 = vxor.u32 %v2358, %v2790
        %v3223 = vxor.u32 %v2359, %v2791
        %v3224 = vxor.u32 %v2360, %v2792
        %v3225 = vxor.u32 %v2361, %v2793
        %v3226 = vxor.u32 %v2362, %v2794
        %v3227 = vxor.u32 %v2363, %v2795
        %v3228 = vxor.u32 %v2364, %v2796
        %v3229 = vxor.u32 %v2365, %v2797
        %v3230 = vxor.u32 %v2366, %v2798
        %v3231 = vxor.u32 %v2367, %v2799
        %v3232 = vxor.u32 %v2368, %v2800
        %v3233 = vxor.u32 %v2369, %v2801
        %v3234 = vxor.u32 %v2370, %v2802
        %v3235 = vxor.u32 %v2371, %v2803
        %v3236 = vxor.u32 %v2372, %v2804
        %v3237 = vxor.u32 %v2373, %v2805
        %v3238 = vxor.u32 %v2374, %v2806
        %v3239 = vxor.u32 %v2375, %v2807
        %v3240 = vxor.u32 %v2376, %v2808
        %v3241 = vxor.u32 %v2377, %v2809
        %v3242 = vxor.u32 %v2378, %v2810
        %v3243 = vxor.u32 %v2379, %v2811
        %v3244 = vxor.u32 %v2380, %v2812
        %v3245 = vxor.u32 %v2381, %v2813
        %v3246 = vxor.u32 %v2382, %v2814
        %v3247 = vxor.u32 %v2383, %v2815
        %v3248 = vxor.u32 %v2384, %v2816
        %v3249 = vxor.u32 %v2385, %v2817
        %v3250 = vxor.u32 %v2386, %v2818
        %v3251 = vxor.u32 %v2387, %v2819
        %v3252 = vxor.u32 %v2388, %v2820
        %v3253 = vxor.u32 %v2389, %v2821
        %v3254 = vxor.u32 %v2390, %v2822
        %v3255 = vxor.u32 %v2391, %v2823
        %v3256 = vxor.u32 %v2392, %v2824
        %v3257 = vxor.u32 %v2393, %v2825
        %v3258 = vxor.u32 %v2394, %v2826
        %v3259 = vxor.u32 %v2395, %v2827
        %v3260 = vxor.u32 %v2396, %v2828
        %v3261 = vxor.u32 %v2397, %v2829
        %v3262 = vxor.u32 %v2398, %v2830
        %v3263 = vxor.u32 %v2399, %v2831
        %v3264 = vxor.u32 %v2400, %v2832
        %v3265 = vxor.u32 %v2401, %v2833
        %v3266 = vxor.u32 %v2402, %v2834
        %v3267 = vxor.u32 %v2403, %v2835
        %v3268 = vxor.u32 %v2404, %v2836
        %v3269 = vxor.u32 %v2405, %v2837
        %v3270 = vxor.u32 %v2406, %v2838
        %v3271 = vxor.u32 %v2407, %v2839
        %v3272 = vxor.u32 %v2408, %v2840
        %v3273 = vxor.u32 %v2409, %v2841
        %v3274 = vxor.u32 %v2410, %v2842
        %v3275 = vxor.u32 %v2411, %v2843
        %v3276 = vxor.u32 %v2412, %v2844
        %v3277 = vxor.u32 %v2413, %v2845
        %v3278 = vxor.u32 %v2414, %v2846
        %v3279 = vxor.u32 %v2415, %v2847
        %v3280 = vxor.u32 %v2416, %v2848
        %v3281 = vxor.u32 %v2417, %v2849
        %v3282 = vxor.u32 %v2418, %v2850
        %v3283 = vxor.u32 %v2419, %v2851
        %v3284 = vxor.u32 %v2420, %v2852
        %v3285 = vxor.u32 %v2421, %v2853
        %v3286 = vxor.u32 %v2422, %v2854
        %v3287 = vxor.u32 %v2423, %v2855
        %v3288 = vxor.u32 %v2424, %v2856
        %v3289 = vxor.u32 %v2425, %v2857
        %v3290 = vxor.u32 %v2426, %v2858
        %v3291 = vxor.u32 %v2427, %v2859
        %v3292 = vxor.u32 %v2428, %v2860
        %v3293 = vxor.u32 %v2429, %v2861
        %v3294 = vxor.u32 %v2430, %v2862
        %v3295 = vxor.u32 %v2431, %v2863
        %v3296 = vxor.u32 %v2432, %v2864
        %v3297 = vxor.u32 %v2433, %v2865
        %v3298 = vxor.u32 %v2434, %v2866
        %v3299 = vxor.u32 %v2435, %v2867
        %v3300 = vxor.u32 %v2436, %v2868
        %v3301 = vxor.u32 %v2437, %v2869
        %v3302 = vxor.u32 %v2438, %v2870
        %v3303 = vxor.u32 %v2439, %v2871
        %v3304 = vxor.u32 %v2440, %v2872
        %v3305 = vxor.u32 %v2441, %v2873
        %v3306 = vxor.u32 %v2442, %v2874
        %v3307 = vxor.u32 %v2443, %v2875
        %v3308 = vxor.u32 %v2444, %v2876
        %v3309 = vxor.u32 %v2445, %v2877
        %v3310 = vxor.u32 %v2446, %v2878
        %v3311 = vxor.u32 %v2447, %v2879
        %v3312 = vxor.u32 %v2448, %v2880
        %v3313 = vxor.u32 %v2449, %v2881
        %v3314 = vxor.u32 %v2450, %v2882
        %v3315 = vxor.u32 %v2451, %v2883
        %v3316 = vxor.u32 %v2452, %v2884
        %v3317 = vxor.u32 %v2453, %v2885
        %v3318 = vxor.u32 %v2454, %v2886
        %v3319 = vxor.u32 %v2455, %v2887
        %v3320 = vxor.u32 %v2456, %v2888
        %v3321 = vxor.u32 %v2457, %v2889
        %v3322 = vxor.u32 %v2458, %v2890
        %v3323 = vxor.u32 %v2459, %v2891
        %v3324 = vxor.u32 %v2460, %v2892
        %v3325 = vxor.u32 %v2461, %v2893
        %v3326 = vxor.u32 %v2462, %v2894
        %v3327 = vxor.u32 %v2463, %v2895
        %v3328 = vxor.u32 %v2464, %v2896
        %v3329 = vxor.u32 %v2465, %v2897
        %v3330 = vxor.u32 %v2466, %v2898
        %v3331 = vxor.u32 %v2467, %v2899
        %v3332 = vxor.u32 %v2468, %v2900
        %v3333 = vxor.u32 %v2469, %v2901
        %v3334 = vxor.u32 %v2470, %v2902
        %v3335 = vxor.u32 %v2471, %v2903
        %v3336 = vxor.u32 %v2472, %v2904
        %v3337 = vxor.u32 %v2473, %v2905
        %v3338 = vxor.u32 %v2474, %v2906
        %v3339 = vxor.u32 %v2475, %v2907
        %v3340 = vxor.u32 %v2476, %v2908
        %v3341 = vxor.u32 %v2477, %v2909
        %v3342 = vxor.u32 %v2478, %v2910
        %v3343 = vxor.u32 %v2479, %v2911
        %v3344 = vxor.u32 %v2480, %v2912
        %v3345 = vxor.u32 %v2481, %v2913
        %v3346 = vxor.u32 %v2482, %v2914
        %v3347 = vxor.u32 %v2483, %v2915
        %v3348 = vxor.u32 %v2484, %v2916
        %v3349 = vxor.u32 %v2485, %v2917
        %v3350 = vxor.u32 %v2486, %v2918
        %v3351 = vxor.u32 %v2487, %v2919
        %v3352 = vxor.u32 %v2488, %v2920
        %v3353 = vxor.u32 %v2489, %v2921
        %v3354 = vxor.u32 %v2490, %v2922
        %v3355 = vxor.u32 %v2491, %v2923
        %v3356 = vxor.u32 %v2492, %v2924
        %v3357 = vxor.u32 %v2493, %v2925
        %v3358 = vxor.u32 %v2494, %v2926
        %v3359 = vxor.u32 %v2495, %v2927
        %v3360 = vxor.u32 %v2496, %v2928
        %v3361 = vxor.u32 %v2497, %v2929
        %v3362 = vxor.u32 %v2498, %v2930
        %v3363 = vxor.u32 %v2499, %v2931
        %v3364 = vxor.u32 %v2500, %v2932
        %v3365 = vxor.u32 %v2501, %v2933
        %v3366 = vxor.u32 %v2502, %v2934
        %v3367 = vxor.u32 %v2503, %v2935
        %v3368 = vxor.u32 %v2504, %v2936
        %v3369 = vxor.u32 %v2505, %v2937
        %v3370 = vxor.u32 %v2506, %v2938
        %v3371 = vxor.u32 %v2507, %v2939
        %v3372 = vxor.u32 %v2508, %v2940
        %v3373 = vxor.u32 %v2509, %v2941
        %v3374 = vxor.u32 %v2510, %v2942
        %v3375 = vxor.u32 %v2511, %v2943
        %v3376 = vxor.u32 %v2512, %v2944
        %v3377 = vxor.u32 %v2513, %v2945
        %v3378 = vxor.u32 %v2514, %v2946
        %v3379 = vxor.u32 %v2515, %v2947
        %v3380 = vxor.u32 %v2516, %v2948
        %v3381 = vxor.u32 %v2517, %v2949
        %v3382 = vxor.u32 %v2518, %v2950
        %v3383 = vxor.u32 %v2519, %v2951
        %v3384 = vxor.u32 %v2520, %v2952
        %v3385 = vxor.u32 %v2521, %v2953
        %v3386 = vxor.u32 %v2522, %v2954
        %v3387 = vxor.u32 %v2523, %v2955
        %v3388 = vxor.u32 %v2524, %v2956
        %v3389 = vxor.u32 %v2525, %v2957
        %v3390 = vxor.u32 %v2526, %v2958
        %v3391 = vxor.u32 %v2527, %v2959
        %v3392 = vxor.u32 %v2528, %v2960
        %v3393 = vxor.u32 %v2529, %v2961
        %v3394 = vxor.u32 %v2530, %v2962
        %v3395 = vxor.u32 %v2531, %v2963
        %v3396 = vxor.u32 %v2532, %v2964
        %v3397 = vxor.u32 %v2533, %v2965
        %v3398 = vxor.u32 %v2534, %v2966
        %v3399 = vxor.u32 %v2535, %v2967
        %v3400 = vxor.u32 %v2536, %v2968
        %v3401 = vxor.u32 %v2537, %v2969
        %v3402 = vxor.u32 %v2538, %v2970
        %v3403 = vxor.u32 %v2539, %v2971
        %v3404 = vxor.u32 %v2540, %v2972
        %v3405 = vxor.u32 %v2541, %v2973
        %v3406 = vxor.u32 %v2542, %v2974
        %v3407 = vxor.u32 %v2543, %v2975
        %v3408 = vxor.u32 %v2544, %v2976
        %v3409 = vxor.u32 %v2545, %v2977
        %v3410 = vxor.u32 %v2546, %v2978
        %v3411 = vxor.u32 %v2547, %v2979
        %v3412 = vxor.u32 %v2548, %v2980
        %v3413 = vxor.u32 %v2549, %v2981
        %v3414 = vxor.u32 %v2550, %v2982
        %v3415 = vxor.u32 %v2551, %v2983
        %v3416 = vxor.u32 %v2552, %v2984
        %v3417 = vxor.u32 %v2553, %v2985
        %v3418 = vxor.u32 %v2554, %v2986
        %v3419 = vxor.u32 %v2555, %v2987
        %v3420 = vxor.u32 %v2556, %v2988
        %v3421 = vxor.u32 %v2557, %v2989
        %v3422 = vxor.u32 %v2558, %v2990
        %v3423 = vxor.u32 %v2559, %v2991
        %v3424 = vxor.u32 %v2560, %v2992
        %v3425 = vxor.u32 %v2561, %v2993
        %v3426 = vxor.u32 %v2562, %v2994
        %v3427 = vxor.u32 %v2563, %v2995
        %v3428 = vxor.u32 %v2564, %v2996
        %v3429 = vxor.u32 %v2565, %v2997
        %v3430 = vxor.u32 %v2566, %v2998
        %v3431 = vxor.u32 %v2567, %v2999
        %v3432 = vxor.u32 %v2568, %v3000
        %v3433 = vxor.u32 %v2569, %v3001
        %v3434 = vxor.u32 %v2570, %v3002
        %v3435 = vxor.u32 %v2571, %v3003
        %v3436 = vxor.u32 %v2572, %v3004
        %v3437 = vxor.u32 %v2573, %v3005
        %v3438 = vxor.u32 %v2574, %v3006
        %v3439 = vxor.u32 %v2575, %v3007
        %v3440 = vxor.u32 %v2576, %v3008
        %v3441 = vxor.u32 %v2577, %v3009
        %v3442 = vxor.u32 %v2578, %v3010
        %v3443 = vxor.u32 %v2579, %v3011
        %v3444 = vxor.u32 %v2580, %v3012
        %v3445 = vxor.u32 %v2581, %v3013
        %v3446 = vxor.u32 %v2582, %v3014
        %v3447 = vxor.u32 %v2583, %v3015
        %v3448 = vxor.u32 %v2584, %v3016
        %v3449 = vxor.u32 %v2585, %v3017
        %v3450 = vxor.u32 %v2586, %v3018
        %v3451 = vxor.u32 %v2587, %v3019
        %v3452 = vxor.u32 %v2588, %v3020
        %v3453 = vxor.u32 %v2589, %v3021
        %v3454 = vxor.u32 %v2590, %v3022
        %v3455 = vxor.u32 %v2591, %v3023
        %v3456 = vxor.u32 %v2592, %v3024
        %v3457 = vxor.u32 %v2593, %v3025
        %v3458 = vxor.u32 %v2594, %v3026
        %v3459 = vxor.u32 %v2595, %v3027
        %v3460 = vxor.u32 %v2596, %v3028
        %v3461 = vxor.u32 %v2597, %v3029
        %v3462 = vxor.u32 %v2598, %v3030
        %v3463 = vxor.u32 %v2599, %v3031
        %v3464 = vxor.u32 %v2600, %v3032
        %v3465 = vxor.u32 %v2601, %v3033
        %v3466 = vxor.u32 %v2602, %v3034
        %v3467 = vxor.u32 %v2603, %v3035
        %v3468 = vxor.u32 %v2604, %v3036
        %v3469 = vxor.u32 %v2605, %v3037
        %v3470 = vxor.u32 %v2606, %v3038
        %v3471 = vxor.u32 %v2607, %v3039
        %v3472 = vxor.u32 %v2608, %v3040
        %v3473 = vxor.u32 %v2609, %v3041
        %v3474 = vxor.u32 %v2610, %v3042
        %v3475 = vxor.u32 %v2611, %v3043
        %v3476 = vxor.u32 %v2612, %v3044
        %v3477 = vxor.u32 %v2613, %v3045
        %v3478 = vxor.u32 %v2614, %v3046
        %v3479 = vxor.u32 %v2615, %v3047
        %v3480 = vxor.u32 %v2616, %v3048
        %v3481 = vxor.u32 %v2617, %v3049
        %v3482 = vxor.u32 %v2618, %v3050
        %v3483 = vxor.u32 %v2619, %v3051
        %v3484 = vxor.u32 %v2620, %v3052
        %v3485 = vxor.u32 %v2621, %v3053
        %v3486 = vxor.u32 %v2622, %v3054
        %v3487 = vxor.u32 %v2623, %v3055
        %v3488 = vxor.u32 %v2624, %v3056
        %v3489 = vxor.u32 %v2625, %v3057
        %v3490 = vxor.u32 %v2626, %v3058
        %v3491 = vxor.u32 %v2627, %v3059
        %v3492 = vxor.u32 %v2628, %v3060
        %v3493 = vxor.u32 %v2629, %v3061
        %v3494 = vxor.u32 %v2630, %v3062
        %v3495 = vxor.u32 %v2631, %v3063
        %v3496 = vxor.u32 %v2632, %v3064
        %v3497 = vxor.u32 %v2633, %v3065
        %v3498 = vxor.u32 %v2634, %v3066
        %v3499 = vxor.u32 %v2635, %v3067
        %v3500 = vxor.u32 %v2636, %v3068
        %v3501 = vxor.u32 %v2637, %v3069
        %v3502 = vxor.u32 %v2638, %v3070
        %v3503 = vxor.u32 %v2639, %v3071
        %v3504 = vxor.u32 %v2640, %v3072
        %v3505 = vxor.u32 %v2641, %v3073
        %v3506 = vxor.u32 %v2642, %v3074
        %v3507 = vxor.u32 %v2643, %v3075
        %v3508 = vxor.u32 %v2644, %v3076
        %v3509 = vxor.u32 %v2645, %v3077
        %v3510 = vxor.u32 %v2646, %v3078
        %v3511 = vxor.u32 %v2647, %v3079
        %v3512 = vxor.u32 %v2648, %v3080
        %v3513 = vxor.u32 %v2649, %v3081
        %v3514 = vxor.u32 %v2650, %v3082
        %v3515 = vxor.u32 %v2651, %v3083
        %v3516 = vxor.u32 %v2652, %v3084
        %v3517 = vxor.u32 %v2653, %v3085
        %v3518 = vxor.u32 %v2654, %v3086
        %v3519 = vxor.u32 %v2655, %v3087
        %v3520 = vxor.u32 %v2656, %v3088
        %v3521 = vxor.u32 %v2657, %v3089
        %v3522 = vxor.u32 %v2658, %v3090
        %v3523 = vxor.u32 %v2659, %v3091
        %v3524 = vxor.u32 %v2660, %v3092
        %v3525 = vxor.u32 %v2661, %v3093
        %v3526 = vxor.u32 %v2662, %v3094
        %v3527 = vxor.u32 %v2663, %v3095
        %v3528 = vxor.u32 %v2664, %v3096
        %v3529 = vxor.u32 %v2665, %v3097
        %v3530 = vxor.u32 %v2666, %v3098
        %v3531 = vxor.u32 %v2667, %v3099
        %v3532 = vxor.u32 %v2668, %v3100
        %v3533 = vxor.u32 %v2669, %v3101
        %v3534 = vxor.u32 %v2670, %v3102
        %v3535 = vxor.u32 %v2671, %v3103
        %v3536 = vxor.u32 %v2672, %v3104
        %v3537 = vxor.u32 %v2673, %v3105
        %v3538 = vxor.u32 %v2674, %v3106
        %v3539 = vxor.u32 %v2675, %v3107
        %v3540 = vxor.u32 %v2676, %v3108
        %v3541 = vxor.u32 %v2677, %v3109
        %v3542 = vxor.u32 %v2678, %v3110
        %v3543 = vxor.u32 %v2679, %v3111
        %v3544 = vxor.u32 %v2680, %v3112
        %v3545 = vxor.u32 %v2681, %v3113
        %v3546 = vxor.u32 %v2682, %v3114
        %v3547 = vxor.u32 %v2683, %v3115
        %v3548 = vxor.u32 %v2684, %v3116
        %v3549 = vxor.u32 %v2685, %v3117
        %v3550 = vxor.u32 %v2686, %v3118
        %v3551 = vxor.u32 %v2687, %v3119
        %v3552 = vxor.u32 %v2688, %v3120
        %v3553 = vxor.u32 %v2689, %v3121
        %v3554 = vxor.u32 %v2690, %v3122
        %v3555 = vxor.u32 %v2691, %v3123
        %v3556 = vxor.u32 %v2692, %v3124
        %v3557 = vxor.u32 %v2693, %v3125
        %v3558 = vxor.u32 %v2694, %v3126
        %v3559 = vxor.u32 %v2695, %v3127
        %v3560 = vxor.u32 %v2696, %v3128
        %v3561 = vxor.u32 %v2697, %v3129
        %v3562 = vxor.u32 %v2698, %v3130
        %v3563 = vxor.u32 %v2699, %v3131
        %v3564 = vxor.u32 %v2700, %v3132
        %v3565 = vxor.u32 %v2701, %v3133
        %v3566 = vxor.u32 %v2702, %v3134
        %v3567 = vxor.u32 %v2703, %v3135
        %v3568 = vxor.u32 %v2704, %v3136
        %v3569 = vxor.u32 %v2705, %v3137
        %v3570 = vxor.u32 %v2706, %v3138
        %v3571 = vxor.u32 %v2707, %v3139
        %v3572 = vxor.u32 %v2708, %v3140
        %v3573 = vxor.u32 %v2709, %v3141
        %v3574 = vxor.u32 %v2710, %v3142
        %v3575 = vxor.u32 %v2711, %v3143
        %v3576 = vxor.u32 %v2712, %v3144
        %v3577 = vxor.u32 %v2713, %v3145
        %v3578 = vxor.u32 %v2714, %v3146
        %v3579 = vxor.u32 %v2715, %v3147
        %v3580 = vxor.u32 %v2716, %v3148
        %v3581 = vxor.u32 %v2717, %v3149
        %v3582 = vxor.u32 %v2718, %v3150
        %v3583 = vxor.u32 %v2719, %v3151
        %v3584 = vxor.u32 %v2720, %v3152
        %v3585 = vxor.u32 %v2721, %v3153
        %v3586 = vxor.u32 %v2722, %v3154
        %v3587 = vxor.u32 %v2723, %v3155
        %v3588 = vxor.u32 %v2724, %v3156
        %v3589 = vxor.u32 %v2725, %v3157
        %v3590 = vxor.u32 %v2726, %v3158
        %v3591 = vxor.u32 %v2727, %v3159
        %v3592 = vxor.u32 %v2728, %v3160
        %v3593 = vxor.u32 %v2729, %v3161
        %v3594 = vxor.u32 %v2730, %v3162
        %v3595 = vxor.u32 %v2731, %v3163
        %v3596 = vxor.u32 %v2732, %v3164
        %v3597 = vxor.u32 %v2733, %v3165
        %v3598 = vxor.u32 %v2734, %v3166
        %v3599 = vxor.u32 %v2735, %v3167
        %v3600 = vxor.u32 %v2736, %v3168
        %v3601 = vxor.u32 %v2737, %v3169
        %v3602 = vxor.u32 %v2738, %v3170
        %v3603 = vxor.u32 %v2739, %v3171
        %v3604 = vxor.u32 %v2740, %v3172
        %v3605 = vxor.u32 %v2741, %v3173
        %v3606 = vmul.u32 %v3174, 1935289751
        %v3607 = vmul.u32 %v3175, 1935289751
        %v3608 = vmul.u32 %v3176, 1935289751
        %v3609 = vmul.u32 %v3177, 1935289751
        %v3610 = vmul.u32 %v3178, 1935289751
        %v3611 = vmul.u32 %v3179, 1935289751
        %v3612 = vmul.u32 %v3180, 1935289751
        %v3613 = vmul.u32 %v3181, 1935289751
        %v3614 = vmul.u32 %v3182, 1935289751
        %v3615 = vmul.u32 %v3183, 1935289751
        %v3616 = vmul.u32 %v3184, 1935289751
        %v3617 = vmul.u32 %v3185, 1935289751
        %v3618 = vmul.u32 %v3186, 1935289751
        %v3619 = vmul.u32 %v3187, 1935289751
        %v3620 = vmul.u32 %v3188, 1935289751
        %v3621 = vmul.u32 %v3189, 1935289751
        %v3622 = vmul.u32 %v3190, 1935289751
        %v3623 = vmul.u32 %v3191, 1935289751
        %v3624 = vmul.u32 %v3192, 1935289751
        %v3625 = vmul.u32 %v3193, 1935289751
        %v3626 = vmul.u32 %v3194, 1935289751
        %v3627 = vmul.u32 %v3195, 1935289751
        %v3628 = vmul.u32 %v3196, 1935289751
        %v3629 = vmul.u32 %v3197, 1935289751
        %v3630 = vmul.u32 %v3198, 1935289751
        %v3631 = vmul.u32 %v3199, 1935289751
        %v3632 = vmul.u32 %v3200, 1935289751
        %v3633 = vmul.u32 %v3201, 1935289751
        %v3634 = vmul.u32 %v3202, 1935289751
        %v3635 = vmul.u32 %v3203, 1935289751
        %v3636 = vmul.u32 %v3204, 1935289751
        %v3637 = vmul.u32 %v3205, 1935289751
        %v3638 = vmul.u32 %v3206, 1935289751
        %v3639 = vmul.u32 %v3207, 1935289751
        %v3640 = vmul.u32 %v3208, 1935289751
        %v3641 = vmul.u32 %v3209, 1935289751
        %v3642 = vmul.u32 %v3210, 1935289751
        %v3643 = vmul.u32 %v3211, 1935289751
        %v3644 = vmul.u32 %v3212, 1935289751
        %v3645 = vmul.u32 %v3213, 1935289751
        %v3646 = vmul.u32 %v3214, 1935289751
        %v3647 = vmul.u32 %v3215, 1935289751
        %v3648 = vmul.u32 %v3216, 1935289751
        %v3649 = vmul.u32 %v3217, 1935289751
        %v3650 = vmul.u32 %v3218, 1935289751
        %v3651 = vmul.u32 %v3219, 1935289751
        %v3652 = vmul.u32 %v3220, 1935289751
        %v3653 = vmul.u32 %v3221, 1935289751
        %v3654 = vmul.u32 %v3222, 1935289751
        %v3655 = vmul.u32 %v3223, 1935289751
        %v3656 = vmul.u32 %v3224, 1935289751
        %v3657 = vmul.u32 %v3225, 1935289751
        %v3658 = vmul.u32 %v3226, 1935289751
        %v3659 = vmul.u32 %v3227, 1935289751
        %v3660 = vmul.u32 %v3228, 1935289751
        %v3661 = vmul.u32 %v3229, 1935289751
        %v3662 = vmul.u32 %v3230, 1935289751
        %v3663 = vmul.u32 %v3231, 1935289751
        %v3664 = vmul.u32 %v3232, 1935289751
        %v3665 = vmul.u32 %v3233, 1935289751
        %v3666 = vmul.u32 %v3234, 1935289751
        %v3667 = vmul.u32 %v3235, 1935289751
        %v3668 = vmul.u32 %v3236, 1935289751
        %v3669 = vmul.u32 %v3237, 1935289751
        %v3670 = vmul.u32 %v3238, 1935289751
        %v3671 = vmul.u32 %v3239, 1935289751
        %v3672 = vmul.u32 %v3240, 1935289751
        %v3673 = vmul.u32 %v3241, 1935289751
        %v3674 = vmul.u32 %v3242, 1935289751
        %v3675 = vmul.u32 %v3243, 1935289751
        %v3676 = vmul.u32 %v3244, 1935289751
        %v3677 = vmul.u32 %v3245, 1935289751
        %v3678 = vmul.u32 %v3246, 1935289751
        %v3679 = vmul.u32 %v3247, 1935289751
        %v3680 = vmul.u32 %v3248, 1935289751
        %v3681 = vmul.u32 %v3249, 1935289751
        %v3682 = vmul.u32 %v3250, 1935289751
        %v3683 = vmul.u32 %v3251, 1935289751
        %v3684 = vmul.u32 %v3252, 1935289751
        %v3685 = vmul.u32 %v3253, 1935289751
        %v3686 = vmul.u32 %v3254, 1935289751
        %v3687 = vmul.u32 %v3255, 1935289751
        %v3688 = vmul.u32 %v3256, 1935289751
        %v3689 = vmul.u32 %v3257, 1935289751
        %v3690 = vmul.u32 %v3258, 1935289751
        %v3691 = vmul.u32 %v3259, 1935289751
        %v3692 = vmul.u32 %v3260, 1935289751
        %v3693 = vmul.u32 %v3261, 1935289751
        %v3694 = vmul.u32 %v3262, 1935289751
        %v3695 = vmul.u32 %v3263, 1935289751
        %v3696 = vmul.u32 %v3264, 1935289751
        %v3697 = vmul.u32 %v3265, 1935289751
        %v3698 = vmul.u32 %v3266, 1935289751
        %v3699 = vmul.u32 %v3267, 1935289751
        %v3700 = vmul.u32 %v3268, 1935289751
        %v3701 = vmul.u32 %v3269, 1935289751
        %v3702 = vmul.u32 %v3270, 1935289751
        %v3703 = vmul.u32 %v3271, 1935289751
        %v3704 = vmul.u32 %v3272, 1935289751
        %v3705 = vmul.u32 %v3273, 1935289751
        %v3706 = vmul.u32 %v3274, 1935289751
        %v3707 = vmul.u32 %v3275, 1935289751
        %v3708 = vmul.u32 %v3276, 1935289751
        %v3709 = vmul.u32 %v3277, 1935289751
        %v3710 = vmul.u32 %v3278, 1935289751
        %v3711 = vmul.u32 %v3279, 1935289751
        %v3712 = vmul.u32 %v3280, 1935289751
        %v3713 = vmul.u32 %v3281, 1935289751
        %v3714 = vmul.u32 %v3282, 1935289751
        %v3715 = vmul.u32 %v3283, 1935289751
        %v3716 = vmul.u32 %v3284, 1935289751
        %v3717 = vmul.u32 %v3285, 1935289751
        %v3718 = vmul.u32 %v3286, 1935289751
        %v3719 = vmul.u32 %v3287, 1935289751
        %v3720 = vmul.u32 %v3288, 1935289751
        %v3721 = vmul.u32 %v3289, 1935289751
        %v3722 = vmul.u32 %v3290, 1935289751
        %v3723 = vmul.u32 %v3291, 1935289751
        %v3724 = vmul.u32 %v3292, 1935289751
        %v3725 = vmul.u32 %v3293, 1935289751
        %v3726 = vmul.u32 %v3294, 1935289751
        %v3727 = vmul.u32 %v3295, 1935289751
        %v3728 = vmul.u32 %v3296, 1935289751
        %v3729 = vmul.u32 %v3297, 1935289751
        %v3730 = vmul.u32 %v3298, 1935289751
        %v3731 = vmul.u32 %v3299, 1935289751
        %v3732 = vmul.u32 %v3300, 1935289751
        %v3733 = vmul.u32 %v3301, 1935289751
        %v3734 = vmul.u32 %v3302, 1935289751
        %v3735 = vmul.u32 %v3303, 1935289751
        %v3736 = vmul.u32 %v3304, 1935289751
        %v3737 = vmul.u32 %v3305, 1935289751
        %v3738 = vmul.u32 %v3306, 1935289751
        %v3739 = vmul.u32 %v3307, 1935289751
        %v3740 = vmul.u32 %v3308, 1935289751
        %v3741 = vmul.u32 %v3309, 1935289751
        %v3742 = vmul.u32 %v3310, 1935289751
        %v3743 = vmul.u32 %v3311, 1935289751
        %v3744 = vmul.u32 %v3312, 1935289751
        %v3745 = vmul.u32 %v3313, 1935289751
        %v3746 = vmul.u32 %v3314, 1935289751
        %v3747 = vmul.u32 %v3315, 1935289751
        %v3748 = vmul.u32 %v3316, 1935289751
        %v3749 = vmul.u32 %v3317, 1935289751
        %v3750 = vmul.u32 %v3318, 1935289751
        %v3751 = vmul.u32 %v3319, 1935289751
        %v3752 = vmul.u32 %v3320, 1935289751
        %v3753 = vmul.u32 %v3321, 1935289751
        %v3754 = vmul.u32 %v3322, 1935289751
        %v3755 = vmul.u32 %v3323, 1935289751
        %v3756 = vmul.u32 %v3324, 1935289751
        %v3757 = vmul.u32 %v3325, 1935289751
        %v3758 = vmul.u32 %v3326, 1935289751
        %v3759 = vmul.u32 %v3327, 1935289751
        %v3760 = vmul.u32 %v3328, 1935289751
        %v3761 = vmul.u32 %v3329, 1935289751
        %v3762 = vmul.u32 %v3330, 1935289751
        %v3763 = vmul.u32 %v3331, 1935289751
        %v3764 = vmul.u32 %v3332, 1935289751
        %v3765 = vmul.u32 %v3333, 1935289751
        %v3766 = vmul.u32 %v3334, 1935289751
        %v3767 = vmul.u32 %v3335, 1935289751
        %v3768 = vmul.u32 %v3336, 1935289751
        %v3769 = vmul.u32 %v3337, 1935289751
        %v3770 = vmul.u32 %v3338, 1935289751
        %v3771 = vmul.u32 %v3339, 1935289751
        %v3772 = vmul.u32 %v3340, 1935289751
        %v3773 = vmul.u32 %v3341, 1935289751
        %v3774 = vmul.u32 %v3342, 1935289751
        %v3775 = vmul.u32 %v3343, 1935289751
        %v3776 = vmul.u32 %v3344, 1935289751
        %v3777 = vmul.u32 %v3345, 1935289751
        %v3778 = vmul.u32 %v3346, 1935289751
        %v3779 = vmul.u32 %v3347, 1935289751
        %v3780 = vmul.u32 %v3348, 1935289751
        %v3781 = vmul.u32 %v3349, 1935289751
        %v3782 = vmul.u32 %v3350, 1935289751
        %v3783 = vmul.u32 %v3351, 1935289751
        %v3784 = vmul.u32 %v3352, 1935289751
        %v3785 = vmul.u32 %v3353, 1935289751
        %v3786 = vmul.u32 %v3354, 1935289751
        %v3787 = vmul.u32 %v3355, 1935289751
        %v3788 = vmul.u32 %v3356, 1935289751
        %v3789 = vmul.u32 %v3357, 1935289751
        %v3790 = vmul.u32 %v3358, 1935289751
        %v3791 = vmul.u32 %v3359, 1935289751
        %v3792 = vmul.u32 %v3360, 1935289751
        %v3793 = vmul.u32 %v3361, 1935289751
        %v3794 = vmul.u32 %v3362, 1935289751
        %v3795 = vmul.u32 %v3363, 1935289751
        %v3796 = vmul.u32 %v3364, 1935289751
        %v3797 = vmul.u32 %v3365, 1935289751
        %v3798 = vmul.u32 %v3366, 1935289751
        %v3799 = vmul.u32 %v3367, 1935289751
        %v3800 = vmul.u32 %v3368, 1935289751
        %v3801 = vmul.u32 %v3369, 1935289751
        %v3802 = vmul.u32 %v3370, 1935289751
        %v3803 = vmul.u32 %v3371, 1935289751
        %v3804 = vmul.u32 %v3372, 1935289751
        %v3805 = vmul.u32 %v3373, 1935289751
        %v3806 = vmul.u32 %v3374, 1935289751
        %v3807 = vmul.u32 %v3375, 1935289751
        %v3808 = vmul.u32 %v3376, 1935289751
        %v3809 = vmul.u32 %v3377, 1935289751
        %v3810 = vmul.u32 %v3378, 1935289751
        %v3811 = vmul.u32 %v3379, 1935289751
        %v3812 = vmul.u32 %v3380, 1935289751
        %v3813 = vmul.u32 %v3381, 1935289751
        %v3814 = vmul.u32 %v3382, 1935289751
        %v3815 = vmul.u32 %v3383, 1935289751
        %v3816 = vmul.u32 %v3384, 1935289751
        %v3817 = vmul.u32 %v3385, 1935289751
        %v3818 = vmul.u32 %v3386, 1935289751
        %v3819 = vmul.u32 %v3387, 1935289751
        %v3820 = vmul.u32 %v3388, 1935289751
        %v3821 = vmul.u32 %v3389, 1935289751
        %v3822 = vmul.u32 %v3390, 1935289751
        %v3823 = vmul.u32 %v3391, 1935289751
        %v3824 = vmul.u32 %v3392, 1935289751
        %v3825 = vmul.u32 %v3393, 1935289751
        %v3826 = vmul.u32 %v3394, 1935289751
        %v3827 = vmul.u32 %v3395, 1935289751
        %v3828 = vmul.u32 %v3396, 1935289751
        %v3829 = vmul.u32 %v3397, 1935289751
        %v3830 = vmul.u32 %v3398, 1935289751
        %v3831 = vmul.u32 %v3399, 1935289751
        %v3832 = vmul.u32 %v3400, 1935289751
        %v3833 = vmul.u32 %v3401, 1935289751
        %v3834 = vmul.u32 %v3402, 1935289751
        %v3835 = vmul.u32 %v3403, 1935289751
        %v3836 = vmul.u32 %v3404, 1935289751
        %v3837 = vmul.u32 %v3405, 1935289751
        %v3838 = vmul.u32 %v3406, 1935289751
        %v3839 = vmul.u32 %v3407, 1935289751
        %v3840 = vmul.u32 %v3408, 1935289751
        %v3841 = vmul.u32 %v3409, 1935289751
        %v3842 = vmul.u32 %v3410, 1935289751
        %v3843 = vmul.u32 %v3411, 1935289751
        %v3844 = vmul.u32 %v3412, 1935289751
        %v3845 = vmul.u32 %v3413, 1935289751
        %v3846 = vmul.u32 %v3414, 1935289751
        %v3847 = vmul.u32 %v3415, 1935289751
        %v3848 = vmul.u32 %v3416, 1935289751
        %v3849 = vmul.u32 %v3417, 1935289751
        %v3850 = vmul.u32 %v3418, 1935289751
        %v3851 = vmul.u32 %v3419, 1935289751
        %v3852 = vmul.u32 %v3420, 1935289751
        %v3853 = vmul.u32 %v3421, 1935289751
        %v3854 = vmul.u32 %v3422, 1935289751
        %v3855 = vmul.u32 %v3423, 1935289751
        %v3856 = vmul.u32 %v3424, 1935289751
        %v3857 = vmul.u32 %v3425, 1935289751
        %v3858 = vmul.u32 %v3426, 1935289751
        %v3859 = vmul.u32 %v3427, 1935289751
        %v3860 = vmul.u32 %v3428, 1935289751
        %v3861 = vmul.u32 %v3429, 1935289751
        %v3862 = vmul.u32 %v3430, 1935289751
        %v3863 = vmul.u32 %v3431, 1935289751
        %v3864 = vmul.u32 %v3432, 1935289751
        %v3865 = vmul.u32 %v3433, 1935289751
        %v3866 = vmul.u32 %v3434, 1935289751
        %v3867 = vmul.u32 %v3435, 1935289751
        %v3868 = vmul.u32 %v3436, 1935289751
        %v3869 = vmul.u32 %v3437, 1935289751
        %v3870 = vmul.u32 %v3438, 1935289751
        %v3871 = vmul.u32 %v3439, 1935289751
        %v3872 = vmul.u32 %v3440, 1935289751
        %v3873 = vmul.u32 %v3441, 1935289751
        %v3874 = vmul.u32 %v3442, 1935289751
        %v3875 = vmul.u32 %v3443, 1935289751
        %v3876 = vmul.u32 %v3444, 1935289751
        %v3877 = vmul.u32 %v3445, 1935289751
        %v3878 = vmul.u32 %v3446, 1935289751
        %v3879 = vmul.u32 %v3447, 1935289751
        %v3880 = vmul.u32 %v3448, 1935289751
        %v3881 = vmul.u32 %v3449, 1935289751
        %v3882 = vmul.u32 %v3450, 1935289751
        %v3883 = vmul.u32 %v3451, 1935289751
        %v3884 = vmul.u32 %v3452, 1935289751
        %v3885 = vmul.u32 %v3453, 1935289751
        %v3886 = vmul.u32 %v3454, 1935289751
        %v3887 = vmul.u32 %v3455, 1935289751
        %v3888 = vmul.u32 %v3456, 1935289751
        %v3889 = vmul.u32 %v3457, 1935289751
        %v3890 = vmul.u32 %v3458, 1935289751
        %v3891 = vmul.u32 %v3459, 1935289751
        %v3892 = vmul.u32 %v3460, 1935289751
        %v3893 = vmul.u32 %v3461, 1935289751
        %v3894 = vmul.u32 %v3462, 1935289751
        %v3895 = vmul.u32 %v3463, 1935289751
        %v3896 = vmul.u32 %v3464, 1935289751
        %v3897 = vmul.u32 %v3465, 1935289751
        %v3898 = vmul.u32 %v3466, 1935289751
        %v3899 = vmul.u32 %v3467, 1935289751
        %v3900 = vmul.u32 %v3468, 1935289751
        %v3901 = vmul.u32 %v3469, 1935289751
        %v3902 = vmul.u32 %v3470, 1935289751
        %v3903 = vmul.u32 %v3471, 1935289751
        %v3904 = vmul.u32 %v3472, 1935289751
        %v3905 = vmul.u32 %v3473, 1935289751
        %v3906 = vmul.u32 %v3474, 1935289751
        %v3907 = vmul.u32 %v3475, 1935289751
        %v3908 = vmul.u32 %v3476, 1935289751
        %v3909 = vmul.u32 %v3477, 1935289751
        %v3910 = vmul.u32 %v3478, 1935289751
        %v3911 = vmul.u32 %v3479, 1935289751
        %v3912 = vmul.u32 %v3480, 1935289751
        %v3913 = vmul.u32 %v3481, 1935289751
        %v3914 = vmul.u32 %v3482, 1935289751
        %v3915 = vmul.u32 %v3483, 1935289751
        %v3916 = vmul.u32 %v3484, 1935289751
        %v3917 = vmul.u32 %v3485, 1935289751
        %v3918 = vmul.u32 %v3486, 1935289751
        %v3919 = vmul.u32 %v3487, 1935289751
        %v3920 = vmul.u32 %v3488, 1935289751
        %v3921 = vmul.u32 %v3489, 1935289751
        %v3922 = vmul.u32 %v3490, 1935289751
        %v3923 = vmul.u32 %v3491, 1935289751
        %v3924 = vmul.u32 %v3492, 1935289751
        %v3925 = vmul.u32 %v3493, 1935289751
        %v3926 = vmul.u32 %v3494, 1935289751
        %v3927 = vmul.u32 %v3495, 1935289751
        %v3928 = vmul.u32 %v3496, 1935289751
        %v3929 = vmul.u32 %v3497, 1935289751
        %v3930 = vmul.u32 %v3498, 1935289751
        %v3931 = vmul.u32 %v3499, 1935289751
        %v3932 = vmul.u32 %v3500, 1935289751
        %v3933 = vmul.u32 %v3501, 1935289751
        %v3934 = vmul.u32 %v3502, 1935289751
        %v3935 = vmul.u32 %v3503, 1935289751
        %v3936 = vmul.u32 %v3504, 1935289751
        %v3937 = vmul.u32 %v3505, 1935289751
        %v3938 = vmul.u32 %v3506, 1935289751
        %v3939 = vmul.u32 %v3507, 1935289751
        %v3940 = vmul.u32 %v3508, 1935289751
        %v3941 = vmul.u32 %v3509, 1935289751
        %v3942 = vmul.u32 %v3510, 1935289751
        %v3943 = vmul.u32 %v3511, 1935289751
        %v3944 = vmul.u32 %v3512, 1935289751
        %v3945 = vmul.u32 %v3513, 1935289751
        %v3946 = vmul.u32 %v3514, 1935289751
        %v3947 = vmul.u32 %v3515, 1935289751
        %v3948 = vmul.u32 %v3516, 1935289751
        %v3949 = vmul.u32 %v3517, 1935289751
        %v3950 = vmul.u32 %v3518, 1935289751
        %v3951 = vmul.u32 %v3519, 1935289751
        %v3952 = vmul.u32 %v3520, 1935289751
        %v3953 = vmul.u32 %v3521, 1935289751
        %v3954 = vmul.u32 %v3522, 1935289751
        %v3955 = vmul.u32 %v3523, 1935289751
        %v3956 = vmul.u32 %v3524, 1935289751
        %v3957 = vmul.u32 %v3525, 1935289751
        %v3958 = vmul.u32 %v3526, 1935289751
        %v3959 = vmul.u32 %v3527, 1935289751
        %v3960 = vmul.u32 %v3528, 1935289751
        %v3961 = vmul.u32 %v3529, 1935289751
        %v3962 = vmul.u32 %v3530, 1935289751
        %v3963 = vmul.u32 %v3531, 1935289751
        %v3964 = vmul.u32 %v3532, 1935289751
        %v3965 = vmul.u32 %v3533, 1935289751
        %v3966 = vmul.u32 %v3534, 1935289751
        %v3967 = vmul.u32 %v3535, 1935289751
        %v3968 = vmul.u32 %v3536, 1935289751
        %v3969 = vmul.u32 %v3537, 1935289751
        %v3970 = vmul.u32 %v3538, 1935289751
        %v3971 = vmul.u32 %v3539, 1935289751
        %v3972 = vmul.u32 %v3540, 1935289751
        %v3973 = vmul.u32 %v3541, 1935289751
        %v3974 = vmul.u32 %v3542, 1935289751
        %v3975 = vmul.u32 %v3543, 1935289751
        %v3976 = vmul.u32 %v3544, 1935289751
        %v3977 = vmul.u32 %v3545, 1935289751
        %v3978 = vmul.u32 %v3546, 1935289751
        %v3979 = vmul.u32 %v3547, 1935289751
        %v3980 = vmul.u32 %v3548, 1935289751
        %v3981 = vmul.u32 %v3549, 1935289751
        %v3982 = vmul.u32 %v3550, 1935289751
        %v3983 = vmul.u32 %v3551, 1935289751
        %v3984 = vmul.u32 %v3552, 1935289751
        %v3985 = vmul.u32 %v3553, 1935289751
        %v3986 = vmul.u32 %v3554, 1935289751
        %v3987 = vmul.u32 %v3555, 1935289751
        %v3988 = vmul.u32 %v3556, 1935289751
        %v3989 = vmul.u32 %v3557, 1935289751
        %v3990 = vmul.u32 %v3558, 1935289751
        %v3991 = vmul.u32 %v3559, 1935289751
        %v3992 = vmul.u32 %v3560, 1935289751
        %v3993 = vmul.u32 %v3561, 1935289751
        %v3994 = vmul.u32 %v3562, 1935289751
        %v3995 = vmul.u32 %v3563, 1935289751
        %v3996 = vmul.u32 %v3564, 1935289751
        %v3997 = vmul.u32 %v3565, 1935289751
        %v3998 = vmul.u32 %v3566, 1935289751
        %v3999 = vmul.u32 %v3567, 1935289751
        %v4000 = vmul.u32 %v3568, 1935289751
        %v4001 = vmul.u32 %v3569, 1935289751
        %v4002 = vmul.u32 %v3570, 1935289751
        %v4003 = vmul.u32 %v3571, 1935289751
        %v4004 = vmul.u32 %v3572, 1935289751
        %v4005 = vmul.u32 %v3573, 1935289751
        %v4006 = vmul.u32 %v3574, 1935289751
        %v4007 = vmul.u32 %v3575, 1935289751
        %v4008 = vmul.u32 %v3576, 1935289751
        %v4009 = vmul.u32 %v3577, 1935289751
        %v4010 = vmul.u32 %v3578, 1935289751
        %v4011 = vmul.u32 %v3579, 1935289751
        %v4012 = vmul.u32 %v3580, 1935289751
        %v4013 = vmul.u32 %v3581, 1935289751
        %v4014 = vmul.u32 %v3582, 1935289751
        %v4015 = vmul.u32 %v3583, 1935289751
        %v4016 = vmul.u32 %v3584, 1935289751
        %v4017 = vmul.u32 %v3585, 1935289751
        %v4018 = vmul.u32 %v3586, 1935289751
        %v4019 = vmul.u32 %v3587, 1935289751
        %v4020 = vmul.u32 %v3588, 1935289751
        %v4021 = vmul.u32 %v3589, 1935289751
        %v4022 = vmul.u32 %v3590, 1935289751
        %v4023 = vmul.u32 %v3591, 1935289751
        %v4024 = vmul.u32 %v3592, 1935289751
        %v4025 = vmul.u32 %v3593, 1935289751
        %v4026 = vmul.u32 %v3594, 1935289751
        %v4027 = vmul.u32 %v3595, 1935289751
        %v4028 = vmul.u32 %v3596, 1935289751
        %v4029 = vmul.u32 %v3597, 1935289751
        %v4030 = vmul.u32 %v3598, 1935289751
        %v4031 = vmul.u32 %v3599, 1935289751
        %v4032 = vmul.u32 %v3600, 1935289751
        %v4033 = vmul.u32 %v3601, 1935289751
        %v4034 = vmul.u32 %v3602, 1935289751
        %v4035 = vmul.u32 %v3603, 1935289751
        %v4036 = vmul.u32 %v3604, 1935289751
        %v4037 = vmul.u32 %v3605, 1935289751
        %v4038 = vshrl.u32 %v3606, 15
        %v4039 = vshrl.u32 %v3607, 15
        %v4040 = vshrl.u32 %v3608, 15
        %v4041 = vshrl.u32 %v3609, 15
        %v4042 = vshrl.u32 %v3610, 15
        %v4043 = vshrl.u32 %v3611, 15
        %v4044 = vshrl.u32 %v3612, 15
        %v4045 = vshrl.u32 %v3613, 15
        %v4046 = vshrl.u32 %v3614, 15
        %v4047 = vshrl.u32 %v3615, 15
        %v4048 = vshrl.u32 %v3616, 15
        %v4049 = vshrl.u32 %v3617, 15
        %v4050 = vshrl.u32 %v3618, 15
        %v4051 = vshrl.u32 %v3619, 15
        %v4052 = vshrl.u32 %v3620, 15
        %v4053 = vshrl.u32 %v3621, 15
        %v4054 = vshrl.u32 %v3622, 15
        %v4055 = vshrl.u32 %v3623, 15
        %v4056 = vshrl.u32 %v3624, 15
        %v4057 = vshrl.u32 %v3625, 15
        %v4058 = vshrl.u32 %v3626, 15
        %v4059 = vshrl.u32 %v3627, 15
        %v4060 = vshrl.u32 %v3628, 15
        %v4061 = vshrl.u32 %v3629, 15
        %v4062 = vshrl.u32 %v3630, 15
        %v4063 = vshrl.u32 %v3631, 15
        %v4064 = vshrl.u32 %v3632, 15
        %v4065 = vshrl.u32 %v3633, 15
        %v4066 = vshrl.u32 %v3634, 15
        %v4067 = vshrl.u32 %v3635, 15
        %v4068 = vshrl.u32 %v3636, 15
        %v4069 = vshrl.u32 %v3637, 15
        %v4070 = vshrl.u32 %v3638, 15
        %v4071 = vshrl.u32 %v3639, 15
        %v4072 = vshrl.u32 %v3640, 15
        %v4073 = vshrl.u32 %v3641, 15
        %v4074 = vshrl.u32 %v3642, 15
        %v4075 = vshrl.u32 %v3643, 15
        %v4076 = vshrl.u32 %v3644, 15
        %v4077 = vshrl.u32 %v3645, 15
        %v4078 = vshrl.u32 %v3646, 15
        %v4079 = vshrl.u32 %v3647, 15
        %v4080 = vshrl.u32 %v3648, 15
        %v4081 = vshrl.u32 %v3649, 15
        %v4082 = vshrl.u32 %v3650, 15
        %v4083 = vshrl.u32 %v3651, 15
        %v4084 = vshrl.u32 %v3652, 15
        %v4085 = vshrl.u32 %v3653, 15
        %v4086 = vshrl.u32 %v3654, 15
        %v4087 = vshrl.u32 %v3655, 15
        %v4088 = vshrl.u32 %v3656, 15
        %v4089 = vshrl.u32 %v3657, 15
        %v4090 = vshrl.u32 %v3658, 15
        %v4091 = vshrl.u32 %v3659, 15
        %v4092 = vshrl.u32 %v3660, 15
        %v4093 = vshrl.u32 %v3661, 15
        %v4094 = vshrl.u32 %v3662, 15
        %v4095 = vshrl.u32 %v3663, 15
        %v4096 = vshrl.u32 %v3664, 15
        %v4097 = vshrl.u32 %v3665, 15
        %v4098 = vshrl.u32 %v3666, 15
        %v4099 = vshrl.u32 %v3667, 15
        %v4100 = vshrl.u32 %v3668, 15
        %v4101 = vshrl.u32 %v3669, 15
        %v4102 = vshrl.u32 %v3670, 15
        %v4103 = vshrl.u32 %v3671, 15
        %v4104 = vshrl.u32 %v3672, 15
        %v4105 = vshrl.u32 %v3673, 15
        %v4106 = vshrl.u32 %v3674, 15
        %v4107 = vshrl.u32 %v3675, 15
        %v4108 = vshrl.u32 %v3676, 15
        %v4109 = vshrl.u32 %v3677, 15
        %v4110 = vshrl.u32 %v3678, 15
        %v4111 = vshrl.u32 %v3679, 15
        %v4112 = vshrl.u32 %v3680, 15
        %v4113 = vshrl.u32 %v3681, 15
        %v4114 = vshrl.u32 %v3682, 15
        %v4115 = vshrl.u32 %v3683, 15
        %v4116 = vshrl.u32 %v3684, 15
        %v4117 = vshrl.u32 %v3685, 15
        %v4118 = vshrl.u32 %v3686, 15
        %v4119 = vshrl.u32 %v3687, 15
        %v4120 = vshrl.u32 %v3688, 15
        %v4121 = vshrl.u32 %v3689, 15
        %v4122 = vshrl.u32 %v3690, 15
        %v4123 = vshrl.u32 %v3691, 15
        %v4124 = vshrl.u32 %v3692, 15
        %v4125 = vshrl.u32 %v3693, 15
        %v4126 = vshrl.u32 %v3694, 15
        %v4127 = vshrl.u32 %v3695, 15
        %v4128 = vshrl.u32 %v3696, 15
        %v4129 = vshrl.u32 %v3697, 15
        %v4130 = vshrl.u32 %v3698, 15
        %v4131 = vshrl.u32 %v3699, 15
        %v4132 = vshrl.u32 %v3700, 15
        %v4133 = vshrl.u32 %v3701, 15
        %v4134 = vshrl.u32 %v3702, 15
        %v4135 = vshrl.u32 %v3703, 15
        %v4136 = vshrl.u32 %v3704, 15
        %v4137 = vshrl.u32 %v3705, 15
        %v4138 = vshrl.u32 %v3706, 15
        %v4139 = vshrl.u32 %v3707, 15
        %v4140 = vshrl.u32 %v3708, 15
        %v4141 = vshrl.u32 %v3709, 15
        %v4142 = vshrl.u32 %v3710, 15
        %v4143 = vshrl.u32 %v3711, 15
        %v4144 = vshrl.u32 %v3712, 15
        %v4145 = vshrl.u32 %v3713, 15
        %v4146 = vshrl.u32 %v3714, 15
        %v4147 = vshrl.u32 %v3715, 15
        %v4148 = vshrl.u32 %v3716, 15
        %v4149 = vshrl.u32 %v3717, 15
        %v4150 = vshrl.u32 %v3718, 15
        %v4151 = vshrl.u32 %v3719, 15
        %v4152 = vshrl.u32 %v3720, 15
        %v4153 = vshrl.u32 %v3721, 15
        %v4154 = vshrl.u32 %v3722, 15
        %v4155 = vshrl.u32 %v3723, 15
        %v4156 = vshrl.u32 %v3724, 15
        %v4157 = vshrl.u32 %v3725, 15
        %v4158 = vshrl.u32 %v3726, 15
        %v4159 = vshrl.u32 %v3727, 15
        %v4160 = vshrl.u32 %v3728, 15
        %v4161 = vshrl.u32 %v3729, 15
        %v4162 = vshrl.u32 %v3730, 15
        %v4163 = vshrl.u32 %v3731, 15
        %v4164 = vshrl.u32 %v3732, 15
        %v4165 = vshrl.u32 %v3733, 15
        %v4166 = vshrl.u32 %v3734, 15
        %v4167 = vshrl.u32 %v3735, 15
        %v4168 = vshrl.u32 %v3736, 15
        %v4169 = vshrl.u32 %v3737, 15
        %v4170 = vshrl.u32 %v3738, 15
        %v4171 = vshrl.u32 %v3739, 15
        %v4172 = vshrl.u32 %v3740, 15
        %v4173 = vshrl.u32 %v3741, 15
        %v4174 = vshrl.u32 %v3742, 15
        %v4175 = vshrl.u32 %v3743, 15
        %v4176 = vshrl.u32 %v3744, 15
        %v4177 = vshrl.u32 %v3745, 15
        %v4178 = vshrl.u32 %v3746, 15
        %v4179 = vshrl.u32 %v3747, 15
        %v4180 = vshrl.u32 %v3748, 15
        %v4181 = vshrl.u32 %v3749, 15
        %v4182 = vshrl.u32 %v3750, 15
        %v4183 = vshrl.u32 %v3751, 15
        %v4184 = vshrl.u32 %v3752, 15
        %v4185 = vshrl.u32 %v3753, 15
        %v4186 = vshrl.u32 %v3754, 15
        %v4187 = vshrl.u32 %v3755, 15
        %v4188 = vshrl.u32 %v3756, 15
        %v4189 = vshrl.u32 %v3757, 15
        %v4190 = vshrl.u32 %v3758, 15
        %v4191 = vshrl.u32 %v3759, 15
        %v4192 = vshrl.u32 %v3760, 15
        %v4193 = vshrl.u32 %v3761, 15
        %v4194 = vshrl.u32 %v3762, 15
        %v4195 = vshrl.u32 %v3763, 15
        %v4196 = vshrl.u32 %v3764, 15
        %v4197 = vshrl.u32 %v3765, 15
        %v4198 = vshrl.u32 %v3766, 15
        %v4199 = vshrl.u32 %v3767, 15
        %v4200 = vshrl.u32 %v3768, 15
        %v4201 = vshrl.u32 %v3769, 15
        %v4202 = vshrl.u32 %v3770, 15
        %v4203 = vshrl.u32 %v3771, 15
        %v4204 = vshrl.u32 %v3772, 15
        %v4205 = vshrl.u32 %v3773, 15
        %v4206 = vshrl.u32 %v3774, 15
        %v4207 = vshrl.u32 %v3775, 15
        %v4208 = vshrl.u32 %v3776, 15
        %v4209 = vshrl.u32 %v3777, 15
        %v4210 = vshrl.u32 %v3778, 15
        %v4211 = vshrl.u32 %v3779, 15
        %v4212 = vshrl.u32 %v3780, 15
        %v4213 = vshrl.u32 %v3781, 15
        %v4214 = vshrl.u32 %v3782, 15
        %v4215 = vshrl.u32 %v3783, 15
        %v4216 = vshrl.u32 %v3784, 15
        %v4217 = vshrl.u32 %v3785, 15
        %v4218 = vshrl.u32 %v3786, 15
        %v4219 = vshrl.u32 %v3787, 15
        %v4220 = vshrl.u32 %v3788, 15
        %v4221 = vshrl.u32 %v3789, 15
        %v4222 = vshrl.u32 %v3790, 15
        %v4223 = vshrl.u32 %v3791, 15
        %v4224 = vshrl.u32 %v3792, 15
        %v4225 = vshrl.u32 %v3793, 15
        %v4226 = vshrl.u32 %v3794, 15
        %v4227 = vshrl.u32 %v3795, 15
        %v4228 = vshrl.u32 %v3796, 15
        %v4229 = vshrl.u32 %v3797, 15
        %v4230 = vshrl.u32 %v3798, 15
        %v4231 = vshrl.u32 %v3799, 15
        %v4232 = vshrl.u32 %v3800, 15
        %v4233 = vshrl.u32 %v3801, 15
        %v4234 = vshrl.u32 %v3802, 15
        %v4235 = vshrl.u32 %v3803, 15
        %v4236 = vshrl.u32 %v3804, 15
        %v4237 = vshrl.u32 %v3805, 15
        %v4238 = vshrl.u32 %v3806, 15
        %v4239 = vshrl.u32 %v3807, 15
        %v4240 = vshrl.u32 %v3808, 15
        %v4241 = vshrl.u32 %v3809, 15
        %v4242 = vshrl.u32 %v3810, 15
        %v4243 = vshrl.u32 %v3811, 15
        %v4244 = vshrl.u32 %v3812, 15
        %v4245 = vshrl.u32 %v3813, 15
        %v4246 = vshrl.u32 %v3814, 15
        %v4247 = vshrl.u32 %v3815, 15
        %v4248 = vshrl.u32 %v3816, 15
        %v4249 = vshrl.u32 %v3817, 15
        %v4250 = vshrl.u32 %v3818, 15
        %v4251 = vshrl.u32 %v3819, 15
        %v4252 = vshrl.u32 %v3820, 15
        %v4253 = vshrl.u32 %v3821, 15
        %v4254 = vshrl.u32 %v3822, 15
        %v4255 = vshrl.u32 %v3823, 15
        %v4256 = vshrl.u32 %v3824, 15
        %v4257 = vshrl.u32 %v3825, 15
        %v4258 = vshrl.u32 %v3826, 15
        %v4259 = vshrl.u32 %v3827, 15
        %v4260 = vshrl.u32 %v3828, 15
        %v4261 = vshrl.u32 %v3829, 15
        %v4262 = vshrl.u32 %v3830, 15
        %v4263 = vshrl.u32 %v3831, 15
        %v4264 = vshrl.u32 %v3832, 15
        %v4265 = vshrl.u32 %v3833, 15
        %v4266 = vshrl.u32 %v3834, 15
        %v4267 = vshrl.u32 %v3835, 15
        %v4268 = vshrl.u32 %v3836, 15
        %v4269 = vshrl.u32 %v3837, 15
        %v4270 = vshrl.u32 %v3838, 15
        %v4271 = vshrl.u32 %v3839, 15
        %v4272 = vshrl.u32 %v3840, 15
        %v4273 = vshrl.u32 %v3841, 15
        %v4274 = vshrl.u32 %v3842, 15
        %v4275 = vshrl.u32 %v3843, 15
        %v4276 = vshrl.u32 %v3844, 15
        %v4277 = vshrl.u32 %v3845, 15
        %v4278 = vshrl.u32 %v3846, 15
        %v4279 = vshrl.u32 %v3847, 15
        %v4280 = vshrl.u32 %v3848, 15
        %v4281 = vshrl.u32 %v3849, 15
        %v4282 = vshrl.u32 %v3850, 15
        %v4283 = vshrl.u32 %v3851, 15
        %v4284 = vshrl.u32 %v3852, 15
        %v4285 = vshrl.u32 %v3853, 15
        %v4286 = vshrl.u32 %v3854, 15
        %v4287 = vshrl.u32 %v3855, 15
        %v4288 = vshrl.u32 %v3856, 15
        %v4289 = vshrl.u32 %v3857, 15
        %v4290 = vshrl.u32 %v3858, 15
        %v4291 = vshrl.u32 %v3859, 15
        %v4292 = vshrl.u32 %v3860, 15
        %v4293 = vshrl.u32 %v3861, 15
        %v4294 = vshrl.u32 %v3862, 15
        %v4295 = vshrl.u32 %v3863, 15
        %v4296 = vshrl.u32 %v3864, 15
        %v4297 = vshrl.u32 %v3865, 15
        %v4298 = vshrl.u32 %v3866, 15
        %v4299 = vshrl.u32 %v3867, 15
        %v4300 = vshrl.u32 %v3868, 15
        %v4301 = vshrl.u32 %v3869, 15
        %v4302 = vshrl.u32 %v3870, 15
        %v4303 = vshrl.u32 %v3871, 15
        %v4304 = vshrl.u32 %v3872, 15
        %v4305 = vshrl.u32 %v3873, 15
        %v4306 = vshrl.u32 %v3874, 15
        %v4307 = vshrl.u32 %v3875, 15
        %v4308 = vshrl.u32 %v3876, 15
        %v4309 = vshrl.u32 %v3877, 15
        %v4310 = vshrl.u32 %v3878, 15
        %v4311 = vshrl.u32 %v3879, 15
        %v4312 = vshrl.u32 %v3880, 15
        %v4313 = vshrl.u32 %v3881, 15
        %v4314 = vshrl.u32 %v3882, 15
        %v4315 = vshrl.u32 %v3883, 15
        %v4316 = vshrl.u32 %v3884, 15
        %v4317 = vshrl.u32 %v3885, 15
        %v4318 = vshrl.u32 %v3886, 15
        %v4319 = vshrl.u32 %v3887, 15
        %v4320 = vshrl.u32 %v3888, 15
        %v4321 = vshrl.u32 %v3889, 15
        %v4322 = vshrl.u32 %v3890, 15
        %v4323 = vshrl.u32 %v3891, 15
        %v4324 = vshrl.u32 %v3892, 15
        %v4325 = vshrl.u32 %v3893, 15
        %v4326 = vshrl.u32 %v3894, 15
        %v4327 = vshrl.u32 %v3895, 15
        %v4328 = vshrl.u32 %v3896, 15
        %v4329 = vshrl.u32 %v3897, 15
        %v4330 = vshrl.u32 %v3898, 15
        %v4331 = vshrl.u32 %v3899, 15
        %v4332 = vshrl.u32 %v3900, 15
        %v4333 = vshrl.u32 %v3901, 15
        %v4334 = vshrl.u32 %v3902, 15
        %v4335 = vshrl.u32 %v3903, 15
        %v4336 = vshrl.u32 %v3904, 15
        %v4337 = vshrl.u32 %v3905, 15
        %v4338 = vshrl.u32 %v3906, 15
        %v4339 = vshrl.u32 %v3907, 15
        %v4340 = vshrl.u32 %v3908, 15
        %v4341 = vshrl.u32 %v3909, 15
        %v4342 = vshrl.u32 %v3910, 15
        %v4343 = vshrl.u32 %v3911, 15
        %v4344 = vshrl.u32 %v3912, 15
        %v4345 = vshrl.u32 %v3913, 15
        %v4346 = vshrl.u32 %v3914, 15
        %v4347 = vshrl.u32 %v3915, 15
        %v4348 = vshrl.u32 %v3916, 15
        %v4349 = vshrl.u32 %v3917, 15
        %v4350 = vshrl.u32 %v3918, 15
        %v4351 = vshrl.u32 %v3919, 15
        %v4352 = vshrl.u32 %v3920, 15
        %v4353 = vshrl.u32 %v3921, 15
        %v4354 = vshrl.u32 %v3922, 15
        %v4355 = vshrl.u32 %v3923, 15
        %v4356 = vshrl.u32 %v3924, 15
        %v4357 = vshrl.u32 %v3925, 15
        %v4358 = vshrl.u32 %v3926, 15
        %v4359 = vshrl.u32 %v3927, 15
        %v4360 = vshrl.u32 %v3928, 15
        %v4361 = vshrl.u32 %v3929, 15
        %v4362 = vshrl.u32 %v3930, 15
        %v4363 = vshrl.u32 %v3931, 15
        %v4364 = vshrl.u32 %v3932, 15
        %v4365 = vshrl.u32 %v3933, 15
        %v4366 = vshrl.u32 %v3934, 15
        %v4367 = vshrl.u32 %v3935, 15
        %v4368 = vshrl.u32 %v3936, 15
        %v4369 = vshrl.u32 %v3937, 15
        %v4370 = vshrl.u32 %v3938, 15
        %v4371 = vshrl.u32 %v3939, 15
        %v4372 = vshrl.u32 %v3940, 15
        %v4373 = vshrl.u32 %v3941, 15
        %v4374 = vshrl.u32 %v3942, 15
        %v4375 = vshrl.u32 %v3943, 15
        %v4376 = vshrl.u32 %v3944, 15
        %v4377 = vshrl.u32 %v3945, 15
        %v4378 = vshrl.u32 %v3946, 15
        %v4379 = vshrl.u32 %v3947, 15
        %v4380 = vshrl.u32 %v3948, 15
        %v4381 = vshrl.u32 %v3949, 15
        %v4382 = vshrl.u32 %v3950, 15
        %v4383 = vshrl.u32 %v3951, 15
        %v4384 = vshrl.u32 %v3952, 15
        %v4385 = vshrl.u32 %v3953, 15
        %v4386 = vshrl.u32 %v3954, 15
        %v4387 = vshrl.u32 %v3955, 15
        %v4388 = vshrl.u32 %v3956, 15
        %v4389 = vshrl.u32 %v3957, 15
        %v4390 = vshrl.u32 %v3958, 15
        %v4391 = vshrl.u32 %v3959, 15
        %v4392 = vshrl.u32 %v3960, 15
        %v4393 = vshrl.u32 %v3961, 15
        %v4394 = vshrl.u32 %v3962, 15
        %v4395 = vshrl.u32 %v3963, 15
        %v4396 = vshrl.u32 %v3964, 15
        %v4397 = vshrl.u32 %v3965, 15
        %v4398 = vshrl.u32 %v3966, 15
        %v4399 = vshrl.u32 %v3967, 15
        %v4400 = vshrl.u32 %v3968, 15
        %v4401 = vshrl.u32 %v3969, 15
        %v4402 = vshrl.u32 %v3970, 15
        %v4403 = vshrl.u32 %v3971, 15
        %v4404 = vshrl.u32 %v3972, 15
        %v4405 = vshrl.u32 %v3973, 15
        %v4406 = vshrl.u32 %v3974, 15
        %v4407 = vshrl.u32 %v3975, 15
        %v4408 = vshrl.u32 %v3976, 15
        %v4409 = vshrl.u32 %v3977, 15
        %v4410 = vshrl.u32 %v3978, 15
        %v4411 = vshrl.u32 %v3979, 15
        %v4412 = vshrl.u32 %v3980, 15
        %v4413 = vshrl.u32 %v3981, 15
        %v4414 = vshrl.u32 %v3982, 15
        %v4415 = vshrl.u32 %v3983, 15
        %v4416 = vshrl.u32 %v3984, 15
        %v4417 = vshrl.u32 %v3985, 15
        %v4418 = vshrl.u32 %v3986, 15
        %v4419 = vshrl.u32 %v3987, 15
        %v4420 = vshrl.u32 %v3988, 15
        %v4421 = vshrl.u32 %v3989, 15
        %v4422 = vshrl.u32 %v3990, 15
        %v4423 = vshrl.u32 %v3991, 15
        %v4424 = vshrl.u32 %v3992, 15
        %v4425 = vshrl.u32 %v3993, 15
        %v4426 = vshrl.u32 %v3994, 15
        %v4427 = vshrl.u32 %v3995, 15
        %v4428 = vshrl.u32 %v3996, 15
        %v4429 = vshrl.u32 %v3997, 15
        %v4430 = vshrl.u32 %v3998, 15
        %v4431 = vshrl.u32 %v3999, 15
        %v4432 = vshrl.u32 %v4000, 15
        %v4433 = vshrl.u32 %v4001, 15
        %v4434 = vshrl.u32 %v4002, 15
        %v4435 = vshrl.u32 %v4003, 15
        %v4436 = vshrl.u32 %v4004, 15
        %v4437 = vshrl.u32 %v4005, 15
        %v4438 = vshrl.u32 %v4006, 15
        %v4439 = vshrl.u32 %v4007, 15
        %v4440 = vshrl.u32 %v4008, 15
        %v4441 = vshrl.u32 %v4009, 15
        %v4442 = vshrl.u32 %v4010, 15
        %v4443 = vshrl.u32 %v4011, 15
        %v4444 = vshrl.u32 %v4012, 15
        %v4445 = vshrl.u32 %v4013, 15
        %v4446 = vshrl.u32 %v4014, 15
        %v4447 = vshrl.u32 %v4015, 15
        %v4448 = vshrl.u32 %v4016, 15
        %v4449 = vshrl.u32 %v4017, 15
        %v4450 = vshrl.u32 %v4018, 15
        %v4451 = vshrl.u32 %v4019, 15
        %v4452 = vshrl.u32 %v4020, 15
        %v4453 = vshrl.u32 %v4021, 15
        %v4454 = vshrl.u32 %v4022, 15
        %v4455 = vshrl.u32 %v4023, 15
        %v4456 = vshrl.u32 %v4024, 15
        %v4457 = vshrl.u32 %v4025, 15
        %v4458 = vshrl.u32 %v4026, 15
        %v4459 = vshrl.u32 %v4027, 15
        %v4460 = vshrl.u32 %v4028, 15
        %v4461 = vshrl.u32 %v4029, 15
        %v4462 = vshrl.u32 %v4030, 15
        %v4463 = vshrl.u32 %v4031, 15
        %v4464 = vshrl.u32 %v4032, 15
        %v4465 = vshrl.u32 %v4033, 15
        %v4466 = vshrl.u32 %v4034, 15
        %v4467 = vshrl.u32 %v4035, 15
        %v4468 = vshrl.u32 %v4036, 15
        %v4469 = vshrl.u32 %v4037, 15
        %v4470 = vxor.u32 %v3606, %v4038
        %v4471 = vxor.u32 %v3607, %v4039
        %v4472 = vxor.u32 %v3608, %v4040
        %v4473 = vxor.u32 %v3609, %v4041
        %v4474 = vxor.u32 %v3610, %v4042
        %v4475 = vxor.u32 %v3611, %v4043
        %v4476 = vxor.u32 %v3612, %v4044
        %v4477 = vxor.u32 %v3613, %v4045
        %v4478 = vxor.u32 %v3614, %v4046
        %v4479 = vxor.u32 %v3615, %v4047
        %v4480 = vxor.u32 %v3616, %v4048
        %v4481 = vxor.u32 %v3617, %v4049
        %v4482 = vxor.u32 %v3618, %v4050
        %v4483 = vxor.u32 %v3619, %v4051
        %v4484 = vxor.u32 %v3620, %v4052
        %v4485 = vxor.u32 %v3621, %v4053
        %v4486 = vxor.u32 %v3622, %v4054
        %v4487 = vxor.u32 %v3623, %v4055
        %v4488 = vxor.u32 %v3624, %v4056
        %v4489 = vxor.u32 %v3625, %v4057
        %v4490 = vxor.u32 %v3626, %v4058
        %v4491 = vxor.u32 %v3627, %v4059
        %v4492 = vxor.u32 %v3628, %v4060
        %v4493 = vxor.u32 %v3629, %v4061
        %v4494 = vxor.u32 %v3630, %v4062
        %v4495 = vxor.u32 %v3631, %v4063
        %v4496 = vxor.u32 %v3632, %v4064
        %v4497 = vxor.u32 %v3633, %v4065
        %v4498 = vxor.u32 %v3634, %v4066
        %v4499 = vxor.u32 %v3635, %v4067
        %v4500 = vxor.u32 %v3636, %v4068
        %v4501 = vxor.u32 %v3637, %v4069
        %v4502 = vxor.u32 %v3638, %v4070
        %v4503 = vxor.u32 %v3639, %v4071
        %v4504 = vxor.u32 %v3640, %v4072
        %v4505 = vxor.u32 %v3641, %v4073
        %v4506 = vxor.u32 %v3642, %v4074
        %v4507 = vxor.u32 %v3643, %v4075
        %v4508 = vxor.u32 %v3644, %v4076
        %v4509 = vxor.u32 %v3645, %v4077
        %v4510 = vxor.u32 %v3646, %v4078
        %v4511 = vxor.u32 %v3647, %v4079
        %v4512 = vxor.u32 %v3648, %v4080
        %v4513 = vxor.u32 %v3649, %v4081
        %v4514 = vxor.u32 %v3650, %v4082
        %v4515 = vxor.u32 %v3651, %v4083
        %v4516 = vxor.u32 %v3652, %v4084
        %v4517 = vxor.u32 %v3653, %v4085
        %v4518 = vxor.u32 %v3654, %v4086
        %v4519 = vxor.u32 %v3655, %v4087
        %v4520 = vxor.u32 %v3656, %v4088
        %v4521 = vxor.u32 %v3657, %v4089
        %v4522 = vxor.u32 %v3658, %v4090
        %v4523 = vxor.u32 %v3659, %v4091
        %v4524 = vxor.u32 %v3660, %v4092
        %v4525 = vxor.u32 %v3661, %v4093
        %v4526 = vxor.u32 %v3662, %v4094
        %v4527 = vxor.u32 %v3663, %v4095
        %v4528 = vxor.u32 %v3664, %v4096
        %v4529 = vxor.u32 %v3665, %v4097
        %v4530 = vxor.u32 %v3666, %v4098
        %v4531 = vxor.u32 %v3667, %v4099
        %v4532 = vxor.u32 %v3668, %v4100
        %v4533 = vxor.u32 %v3669, %v4101
        %v4534 = vxor.u32 %v3670, %v4102
        %v4535 = vxor.u32 %v3671, %v4103
        %v4536 = vxor.u32 %v3672, %v4104
        %v4537 = vxor.u32 %v3673, %v4105
        %v4538 = vxor.u32 %v3674, %v4106
        %v4539 = vxor.u32 %v3675, %v4107
        %v4540 = vxor.u32 %v3676, %v4108
        %v4541 = vxor.u32 %v3677, %v4109
        %v4542 = vxor.u32 %v3678, %v4110
        %v4543 = vxor.u32 %v3679, %v4111
        %v4544 = vxor.u32 %v3680, %v4112
        %v4545 = vxor.u32 %v3681, %v4113
        %v4546 = vxor.u32 %v3682, %v4114
        %v4547 = vxor.u32 %v3683, %v4115
        %v4548 = vxor.u32 %v3684, %v4116
        %v4549 = vxor.u32 %v3685, %v4117
        %v4550 = vxor.u32 %v3686, %v4118
        %v4551 = vxor.u32 %v3687, %v4119
        %v4552 = vxor.u32 %v3688, %v4120
        %v4553 = vxor.u32 %v3689, %v4121
        %v4554 = vxor.u32 %v3690, %v4122
        %v4555 = vxor.u32 %v3691, %v4123
        %v4556 = vxor.u32 %v3692, %v4124
        %v4557 = vxor.u32 %v3693, %v4125
        %v4558 = vxor.u32 %v3694, %v4126
        %v4559 = vxor.u32 %v3695, %v4127
        %v4560 = vxor.u32 %v3696, %v4128
        %v4561 = vxor.u32 %v3697, %v4129
        %v4562 = vxor.u32 %v3698, %v4130
        %v4563 = vxor.u32 %v3699, %v4131
        %v4564 = vxor.u32 %v3700, %v4132
        %v4565 = vxor.u32 %v3701, %v4133
        %v4566 = vxor.u32 %v3702, %v4134
        %v4567 = vxor.u32 %v3703, %v4135
        %v4568 = vxor.u32 %v3704, %v4136
        %v4569 = vxor.u32 %v3705, %v4137
        %v4570 = vxor.u32 %v3706, %v4138
        %v4571 = vxor.u32 %v3707, %v4139
        %v4572 = vxor.u32 %v3708, %v4140
        %v4573 = vxor.u32 %v3709, %v4141
        %v4574 = vxor.u32 %v3710, %v4142
        %v4575 = vxor.u32 %v3711, %v4143
        %v4576 = vxor.u32 %v3712, %v4144
        %v4577 = vxor.u32 %v3713, %v4145
        %v4578 = vxor.u32 %v3714, %v4146
        %v4579 = vxor.u32 %v3715, %v4147
        %v4580 = vxor.u32 %v3716, %v4148
        %v4581 = vxor.u32 %v3717, %v4149
        %v4582 = vxor.u32 %v3718, %v4150
        %v4583 = vxor.u32 %v3719, %v4151
        %v4584 = vxor.u32 %v3720, %v4152
        %v4585 = vxor.u32 %v3721, %v4153
        %v4586 = vxor.u32 %v3722, %v4154
        %v4587 = vxor.u32 %v3723, %v4155
        %v4588 = vxor.u32 %v3724, %v4156
        %v4589 = vxor.u32 %v3725, %v4157
        %v4590 = vxor.u32 %v3726, %v4158
        %v4591 = vxor.u32 %v3727, %v4159
        %v4592 = vxor.u32 %v3728, %v4160
        %v4593 = vxor.u32 %v3729, %v4161
        %v4594 = vxor.u32 %v3730, %v4162
        %v4595 = vxor.u32 %v3731, %v4163
        %v4596 = vxor.u32 %v3732, %v4164
        %v4597 = vxor.u32 %v3733, %v4165
        %v4598 = vxor.u32 %v3734, %v4166
        %v4599 = vxor.u32 %v3735, %v4167
        %v4600 = vxor.u32 %v3736, %v4168
        %v4601 = vxor.u32 %v3737, %v4169
        %v4602 = vxor.u32 %v3738, %v4170
        %v4603 = vxor.u32 %v3739, %v4171
        %v4604 = vxor.u32 %v3740, %v4172
        %v4605 = vxor.u32 %v3741, %v4173
        %v4606 = vxor.u32 %v3742, %v4174
        %v4607 = vxor.u32 %v3743, %v4175
        %v4608 = vxor.u32 %v3744, %v4176
        %v4609 = vxor.u32 %v3745, %v4177
        %v4610 = vxor.u32 %v3746, %v4178
        %v4611 = vxor.u32 %v3747, %v4179
        %v4612 = vxor.u32 %v3748, %v4180
        %v4613 = vxor.u32 %v3749, %v4181
        %v4614 = vxor.u32 %v3750, %v4182
        %v4615 = vxor.u32 %v3751, %v4183
        %v4616 = vxor.u32 %v3752, %v4184
        %v4617 = vxor.u32 %v3753, %v4185
        %v4618 = vxor.u32 %v3754, %v4186
        %v4619 = vxor.u32 %v3755, %v4187
        %v4620 = vxor.u32 %v3756, %v4188
        %v4621 = vxor.u32 %v3757, %v4189
        %v4622 = vxor.u32 %v3758, %v4190
        %v4623 = vxor.u32 %v3759, %v4191
        %v4624 = vxor.u32 %v3760, %v4192
        %v4625 = vxor.u32 %v3761, %v4193
        %v4626 = vxor.u32 %v3762, %v4194
        %v4627 = vxor.u32 %v3763, %v4195
        %v4628 = vxor.u32 %v3764, %v4196
        %v4629 = vxor.u32 %v3765, %v4197
        %v4630 = vxor.u32 %v3766, %v4198
        %v4631 = vxor.u32 %v3767, %v4199
        %v4632 = vxor.u32 %v3768, %v4200
        %v4633 = vxor.u32 %v3769, %v4201
        %v4634 = vxor.u32 %v3770, %v4202
        %v4635 = vxor.u32 %v3771, %v4203
        %v4636 = vxor.u32 %v3772, %v4204
        %v4637 = vxor.u32 %v3773, %v4205
        %v4638 = vxor.u32 %v3774, %v4206
        %v4639 = vxor.u32 %v3775, %v4207
        %v4640 = vxor.u32 %v3776, %v4208
        %v4641 = vxor.u32 %v3777, %v4209
        %v4642 = vxor.u32 %v3778, %v4210
        %v4643 = vxor.u32 %v3779, %v4211
        %v4644 = vxor.u32 %v3780, %v4212
        %v4645 = vxor.u32 %v3781, %v4213
        %v4646 = vxor.u32 %v3782, %v4214
        %v4647 = vxor.u32 %v3783, %v4215
        %v4648 = vxor.u32 %v3784, %v4216
        %v4649 = vxor.u32 %v3785, %v4217
        %v4650 = vxor.u32 %v3786, %v4218
        %v4651 = vxor.u32 %v3787, %v4219
        %v4652 = vxor.u32 %v3788, %v4220
        %v4653 = vxor.u32 %v3789, %v4221
        %v4654 = vxor.u32 %v3790, %v4222
        %v4655 = vxor.u32 %v3791, %v4223
        %v4656 = vxor.u32 %v3792, %v4224
        %v4657 = vxor.u32 %v3793, %v4225
        %v4658 = vxor.u32 %v3794, %v4226
        %v4659 = vxor.u32 %v3795, %v4227
        %v4660 = vxor.u32 %v3796, %v4228
        %v4661 = vxor.u32 %v3797, %v4229
        %v4662 = vxor.u32 %v3798, %v4230
        %v4663 = vxor.u32 %v3799, %v4231
        %v4664 = vxor.u32 %v3800, %v4232
        %v4665 = vxor.u32 %v3801, %v4233
        %v4666 = vxor.u32 %v3802, %v4234
        %v4667 = vxor.u32 %v3803, %v4235
        %v4668 = vxor.u32 %v3804, %v4236
        %v4669 = vxor.u32 %v3805, %v4237
        %v4670 = vxor.u32 %v3806, %v4238
        %v4671 = vxor.u32 %v3807, %v4239
        %v4672 = vxor.u32 %v3808, %v4240
        %v4673 = vxor.u32 %v3809, %v4241
        %v4674 = vxor.u32 %v3810, %v4242
        %v4675 = vxor.u32 %v3811, %v4243
        %v4676 = vxor.u32 %v3812, %v4244
        %v4677 = vxor.u32 %v3813, %v4245
        %v4678 = vxor.u32 %v3814, %v4246
        %v4679 = vxor.u32 %v3815, %v4247
        %v4680 = vxor.u32 %v3816, %v4248
        %v4681 = vxor.u32 %v3817, %v4249
        %v4682 = vxor.u32 %v3818, %v4250
        %v4683 = vxor.u32 %v3819, %v4251
        %v4684 = vxor.u32 %v3820, %v4252
        %v4685 = vxor.u32 %v3821, %v4253
        %v4686 = vxor.u32 %v3822, %v4254
        %v4687 = vxor.u32 %v3823, %v4255
        %v4688 = vxor.u32 %v3824, %v4256
        %v4689 = vxor.u32 %v3825, %v4257
        %v4690 = vxor.u32 %v3826, %v4258
        %v4691 = vxor.u32 %v3827, %v4259
        %v4692 = vxor.u32 %v3828, %v4260
        %v4693 = vxor.u32 %v3829, %v4261
        %v4694 = vxor.u32 %v3830, %v4262
        %v4695 = vxor.u32 %v3831, %v4263
        %v4696 = vxor.u32 %v3832, %v4264
        %v4697 = vxor.u32 %v3833, %v4265
        %v4698 = vxor.u32 %v3834, %v4266
        %v4699 = vxor.u32 %v3835, %v4267
        %v4700 = vxor.u32 %v3836, %v4268
        %v4701 = vxor.u32 %v3837, %v4269
        %v4702 = vxor.u32 %v3838, %v4270
        %v4703 = vxor.u32 %v3839, %v4271
        %v4704 = vxor.u32 %v3840, %v4272
        %v4705 = vxor.u32 %v3841, %v4273
        %v4706 = vxor.u32 %v3842, %v4274
        %v4707 = vxor.u32 %v3843, %v4275
        %v4708 = vxor.u32 %v3844, %v4276
        %v4709 = vxor.u32 %v3845, %v4277
        %v4710 = vxor.u32 %v3846, %v4278
        %v4711 = vxor.u32 %v3847, %v4279
        %v4712 = vxor.u32 %v3848, %v4280
        %v4713 = vxor.u32 %v3849, %v4281
        %v4714 = vxor.u32 %v3850, %v4282
        %v4715 = vxor.u32 %v3851, %v4283
        %v4716 = vxor.u32 %v3852, %v4284
        %v4717 = vxor.u32 %v3853, %v4285
        %v4718 = vxor.u32 %v3854, %v4286
        %v4719 = vxor.u32 %v3855, %v4287
        %v4720 = vxor.u32 %v3856, %v4288
        %v4721 = vxor.u32 %v3857, %v4289
        %v4722 = vxor.u32 %v3858, %v4290
        %v4723 = vxor.u32 %v3859, %v4291
        %v4724 = vxor.u32 %v3860, %v4292
        %v4725 = vxor.u32 %v3861, %v4293
        %v4726 = vxor.u32 %v3862, %v4294
        %v4727 = vxor.u32 %v3863, %v4295
        %v4728 = vxor.u32 %v3864, %v4296
        %v4729 = vxor.u32 %v3865, %v4297
        %v4730 = vxor.u32 %v3866, %v4298
        %v4731 = vxor.u32 %v3867, %v4299
        %v4732 = vxor.u32 %v3868, %v4300
        %v4733 = vxor.u32 %v3869, %v4301
        %v4734 = vxor.u32 %v3870, %v4302
        %v4735 = vxor.u32 %v3871, %v4303
        %v4736 = vxor.u32 %v3872, %v4304
        %v4737 = vxor.u32 %v3873, %v4305
        %v4738 = vxor.u32 %v3874, %v4306
        %v4739 = vxor.u32 %v3875, %v4307
        %v4740 = vxor.u32 %v3876, %v4308
        %v4741 = vxor.u32 %v3877, %v4309
        %v4742 = vxor.u32 %v3878, %v4310
        %v4743 = vxor.u32 %v3879, %v4311
        %v4744 = vxor.u32 %v3880, %v4312
        %v4745 = vxor.u32 %v3881, %v4313
        %v4746 = vxor.u32 %v3882, %v4314
        %v4747 = vxor.u32 %v3883, %v4315
        %v4748 = vxor.u32 %v3884, %v4316
        %v4749 = vxor.u32 %v3885, %v4317
        %v4750 = vxor.u32 %v3886, %v4318
        %v4751 = vxor.u32 %v3887, %v4319
        %v4752 = vxor.u32 %v3888, %v4320
        %v4753 = vxor.u32 %v3889, %v4321
        %v4754 = vxor.u32 %v3890, %v4322
        %v4755 = vxor.u32 %v3891, %v4323
        %v4756 = vxor.u32 %v3892, %v4324
        %v4757 = vxor.u32 %v3893, %v4325
        %v4758 = vxor.u32 %v3894, %v4326
        %v4759 = vxor.u32 %v3895, %v4327
        %v4760 = vxor.u32 %v3896, %v4328
        %v4761 = vxor.u32 %v3897, %v4329
        %v4762 = vxor.u32 %v3898, %v4330
        %v4763 = vxor.u32 %v3899, %v4331
        %v4764 = vxor.u32 %v3900, %v4332
        %v4765 = vxor.u32 %v3901, %v4333
        %v4766 = vxor.u32 %v3902, %v4334
        %v4767 = vxor.u32 %v3903, %v4335
        %v4768 = vxor.u32 %v3904, %v4336
        %v4769 = vxor.u32 %v3905, %v4337
        %v4770 = vxor.u32 %v3906, %v4338
        %v4771 = vxor.u32 %v3907, %v4339
        %v4772 = vxor.u32 %v3908, %v4340
        %v4773 = vxor.u32 %v3909, %v4341
        %v4774 = vxor.u32 %v3910, %v4342
        %v4775 = vxor.u32 %v3911, %v4343
        %v4776 = vxor.u32 %v3912, %v4344
        %v4777 = vxor.u32 %v3913, %v4345
        %v4778 = vxor.u32 %v3914, %v4346
        %v4779 = vxor.u32 %v3915, %v4347
        %v4780 = vxor.u32 %v3916, %v4348
        %v4781 = vxor.u32 %v3917, %v4349
        %v4782 = vxor.u32 %v3918, %v4350
        %v4783 = vxor.u32 %v3919, %v4351
        %v4784 = vxor.u32 %v3920, %v4352
        %v4785 = vxor.u32 %v3921, %v4353
        %v4786 = vxor.u32 %v3922, %v4354
        %v4787 = vxor.u32 %v3923, %v4355
        %v4788 = vxor.u32 %v3924, %v4356
        %v4789 = vxor.u32 %v3925, %v4357
        %v4790 = vxor.u32 %v3926, %v4358
        %v4791 = vxor.u32 %v3927, %v4359
        %v4792 = vxor.u32 %v3928, %v4360
        %v4793 = vxor.u32 %v3929, %v4361
        %v4794 = vxor.u32 %v3930, %v4362
        %v4795 = vxor.u32 %v3931, %v4363
        %v4796 = vxor.u32 %v3932, %v4364
        %v4797 = vxor.u32 %v3933, %v4365
        %v4798 = vxor.u32 %v3934, %v4366
        %v4799 = vxor.u32 %v3935, %v4367
        %v4800 = vxor.u32 %v3936, %v4368
        %v4801 = vxor.u32 %v3937, %v4369
        %v4802 = vxor.u32 %v3938, %v4370
        %v4803 = vxor.u32 %v3939, %v4371
        %v4804 = vxor.u32 %v3940, %v4372
        %v4805 = vxor.u32 %v3941, %v4373
        %v4806 = vxor.u32 %v3942, %v4374
        %v4807 = vxor.u32 %v3943, %v4375
        %v4808 = vxor.u32 %v3944, %v4376
        %v4809 = vxor.u32 %v3945, %v4377
        %v4810 = vxor.u32 %v3946, %v4378
        %v4811 = vxor.u32 %v3947, %v4379
        %v4812 = vxor.u32 %v3948, %v4380
        %v4813 = vxor.u32 %v3949, %v4381
        %v4814 = vxor.u32 %v3950, %v4382
        %v4815 = vxor.u32 %v3951, %v4383
        %v4816 = vxor.u32 %v3952, %v4384
        %v4817 = vxor.u32 %v3953, %v4385
        %v4818 = vxor.u32 %v3954, %v4386
        %v4819 = vxor.u32 %v3955, %v4387
        %v4820 = vxor.u32 %v3956, %v4388
        %v4821 = vxor.u32 %v3957, %v4389
        %v4822 = vxor.u32 %v3958, %v4390
        %v4823 = vxor.u32 %v3959, %v4391
        %v4824 = vxor.u32 %v3960, %v4392
        %v4825 = vxor.u32 %v3961, %v4393
        %v4826 = vxor.u32 %v3962, %v4394
        %v4827 = vxor.u32 %v3963, %v4395
        %v4828 = vxor.u32 %v3964, %v4396
        %v4829 = vxor.u32 %v3965, %v4397
        %v4830 = vxor.u32 %v3966, %v4398
        %v4831 = vxor.u32 %v3967, %v4399
        %v4832 = vxor.u32 %v3968, %v4400
        %v4833 = vxor.u32 %v3969, %v4401
        %v4834 = vxor.u32 %v3970, %v4402
        %v4835 = vxor.u32 %v3971, %v4403
        %v4836 = vxor.u32 %v3972, %v4404
        %v4837 = vxor.u32 %v3973, %v4405
        %v4838 = vxor.u32 %v3974, %v4406
        %v4839 = vxor.u32 %v3975, %v4407
        %v4840 = vxor.u32 %v3976, %v4408
        %v4841 = vxor.u32 %v3977, %v4409
        %v4842 = vxor.u32 %v3978, %v4410
        %v4843 = vxor.u32 %v3979, %v4411
        %v4844 = vxor.u32 %v3980, %v4412
        %v4845 = vxor.u32 %v3981, %v4413
        %v4846 = vxor.u32 %v3982, %v4414
        %v4847 = vxor.u32 %v3983, %v4415
        %v4848 = vxor.u32 %v3984, %v4416
        %v4849 = vxor.u32 %v3985, %v4417
        %v4850 = vxor.u32 %v3986, %v4418
        %v4851 = vxor.u32 %v3987, %v4419
        %v4852 = vxor.u32 %v3988, %v4420
        %v4853 = vxor.u32 %v3989, %v4421
        %v4854 = vxor.u32 %v3990, %v4422
        %v4855 = vxor.u32 %v3991, %v4423
        %v4856 = vxor.u32 %v3992, %v4424
        %v4857 = vxor.u32 %v3993, %v4425
        %v4858 = vxor.u32 %v3994, %v4426
        %v4859 = vxor.u32 %v3995, %v4427
        %v4860 = vxor.u32 %v3996, %v4428
        %v4861 = vxor.u32 %v3997, %v4429
        %v4862 = vxor.u32 %v3998, %v4430
        %v4863 = vxor.u32 %v3999, %v4431
        %v4864 = vxor.u32 %v4000, %v4432
        %v4865 = vxor.u32 %v4001, %v4433
        %v4866 = vxor.u32 %v4002, %v4434
        %v4867 = vxor.u32 %v4003, %v4435
        %v4868 = vxor.u32 %v4004, %v4436
        %v4869 = vxor.u32 %v4005, %v4437
        %v4870 = vxor.u32 %v4006, %v4438
        %v4871 = vxor.u32 %v4007, %v4439
        %v4872 = vxor.u32 %v4008, %v4440
        %v4873 = vxor.u32 %v4009, %v4441
        %v4874 = vxor.u32 %v4010, %v4442
        %v4875 = vxor.u32 %v4011, %v4443
        %v4876 = vxor.u32 %v4012, %v4444
        %v4877 = vxor.u32 %v4013, %v4445
        %v4878 = vxor.u32 %v4014, %v4446
        %v4879 = vxor.u32 %v4015, %v4447
        %v4880 = vxor.u32 %v4016, %v4448
        %v4881 = vxor.u32 %v4017, %v4449
        %v4882 = vxor.u32 %v4018, %v4450
        %v4883 = vxor.u32 %v4019, %v4451
        %v4884 = vxor.u32 %v4020, %v4452
        %v4885 = vxor.u32 %v4021, %v4453
        %v4886 = vxor.u32 %v4022, %v4454
        %v4887 = vxor.u32 %v4023, %v4455
        %v4888 = vxor.u32 %v4024, %v4456
        %v4889 = vxor.u32 %v4025, %v4457
        %v4890 = vxor.u32 %v4026, %v4458
        %v4891 = vxor.u32 %v4027, %v4459
        %v4892 = vxor.u32 %v4028, %v4460
        %v4893 = vxor.u32 %v4029, %v4461
        %v4894 = vxor.u32 %v4030, %v4462
        %v4895 = vxor.u32 %v4031, %v4463
        %v4896 = vxor.u32 %v4032, %v4464
        %v4897 = vxor.u32 %v4033, %v4465
        %v4898 = vxor.u32 %v4034, %v4466
        %v4899 = vxor.u32 %v4035, %v4467
        %v4900 = vxor.u32 %v4036, %v4468
        %v4901 = vxor.u32 %v4037, %v4469
        %v4902 = vshrl.u32 %v4470, 1
        %v4903 = vshrl.u32 %v4471, 1
        %v4904 = vshrl.u32 %v4472, 1
        %v4905 = vshrl.u32 %v4473, 1
        %v4906 = vshrl.u32 %v4474, 1
        %v4907 = vshrl.u32 %v4475, 1
        %v4908 = vshrl.u32 %v4476, 1
        %v4909 = vshrl.u32 %v4477, 1
        %v4910 = vshrl.u32 %v4478, 1
        %v4911 = vshrl.u32 %v4479, 1
        %v4912 = vshrl.u32 %v4480, 1
        %v4913 = vshrl.u32 %v4481, 1
        %v4914 = vshrl.u32 %v4482, 1
        %v4915 = vshrl.u32 %v4483, 1
        %v4916 = vshrl.u32 %v4484, 1
        %v4917 = vshrl.u32 %v4485, 1
        %v4918 = vshrl.u32 %v4486, 1
        %v4919 = vshrl.u32 %v4487, 1
        %v4920 = vshrl.u32 %v4488, 1
        %v4921 = vshrl.u32 %v4489, 1
        %v4922 = vshrl.u32 %v4490, 1
        %v4923 = vshrl.u32 %v4491, 1
        %v4924 = vshrl.u32 %v4492, 1
        %v4925 = vshrl.u32 %v4493, 1
        %v4926 = vshrl.u32 %v4494, 1
        %v4927 = vshrl.u32 %v4495, 1
        %v4928 = vshrl.u32 %v4496, 1
        %v4929 = vshrl.u32 %v4497, 1
        %v4930 = vshrl.u32 %v4498, 1
        %v4931 = vshrl.u32 %v4499, 1
        %v4932 = vshrl.u32 %v4500, 1
        %v4933 = vshrl.u32 %v4501, 1
        %v4934 = vshrl.u32 %v4502, 1
        %v4935 = vshrl.u32 %v4503, 1
        %v4936 = vshrl.u32 %v4504, 1
        %v4937 = vshrl.u32 %v4505, 1
        %v4938 = vshrl.u32 %v4506, 1
        %v4939 = vshrl.u32 %v4507, 1
        %v4940 = vshrl.u32 %v4508, 1
        %v4941 = vshrl.u32 %v4509, 1
        %v4942 = vshrl.u32 %v4510, 1
        %v4943 = vshrl.u32 %v4511, 1
        %v4944 = vshrl.u32 %v4512, 1
        %v4945 = vshrl.u32 %v4513, 1
        %v4946 = vshrl.u32 %v4514, 1
        %v4947 = vshrl.u32 %v4515, 1
        %v4948 = vshrl.u32 %v4516, 1
        %v4949 = vshrl.u32 %v4517, 1
        %v4950 = vshrl.u32 %v4518, 1
        %v4951 = vshrl.u32 %v4519, 1
        %v4952 = vshrl.u32 %v4520, 1
        %v4953 = vshrl.u32 %v4521, 1
        %v4954 = vshrl.u32 %v4522, 1
        %v4955 = vshrl.u32 %v4523, 1
        %v4956 = vshrl.u32 %v4524, 1
        %v4957 = vshrl.u32 %v4525, 1
        %v4958 = vshrl.u32 %v4526, 1
        %v4959 = vshrl.u32 %v4527, 1
        %v4960 = vshrl.u32 %v4528, 1
        %v4961 = vshrl.u32 %v4529, 1
        %v4962 = vshrl.u32 %v4530, 1
        %v4963 = vshrl.u32 %v4531, 1
        %v4964 = vshrl.u32 %v4532, 1
        %v4965 = vshrl.u32 %v4533, 1
        %v4966 = vshrl.u32 %v4534, 1
        %v4967 = vshrl.u32 %v4535, 1
        %v4968 = vshrl.u32 %v4536, 1
        %v4969 = vshrl.u32 %v4537, 1
        %v4970 = vshrl.u32 %v4538, 1
        %v4971 = vshrl.u32 %v4539, 1
        %v4972 = vshrl.u32 %v4540, 1
        %v4973 = vshrl.u32 %v4541, 1
        %v4974 = vshrl.u32 %v4542, 1
        %v4975 = vshrl.u32 %v4543, 1
        %v4976 = vshrl.u32 %v4544, 1
        %v4977 = vshrl.u32 %v4545, 1
        %v4978 = vshrl.u32 %v4546, 1
        %v4979 = vshrl.u32 %v4547, 1
        %v4980 = vshrl.u32 %v4548, 1
        %v4981 = vshrl.u32 %v4549, 1
        %v4982 = vshrl.u32 %v4550, 1
        %v4983 = vshrl.u32 %v4551, 1
        %v4984 = vshrl.u32 %v4552, 1
        %v4985 = vshrl.u32 %v4553, 1
        %v4986 = vshrl.u32 %v4554, 1
        %v4987 = vshrl.u32 %v4555, 1
        %v4988 = vshrl.u32 %v4556, 1
        %v4989 = vshrl.u32 %v4557, 1
        %v4990 = vshrl.u32 %v4558, 1
        %v4991 = vshrl.u32 %v4559, 1
        %v4992 = vshrl.u32 %v4560, 1
        %v4993 = vshrl.u32 %v4561, 1
        %v4994 = vshrl.u32 %v4562, 1
        %v4995 = vshrl.u32 %v4563, 1
        %v4996 = vshrl.u32 %v4564, 1
        %v4997 = vshrl.u32 %v4565, 1
        %v4998 = vshrl.u32 %v4566, 1
        %v4999 = vshrl.u32 %v4567, 1
        %v5000 = vshrl.u32 %v4568, 1
        %v5001 = vshrl.u32 %v4569, 1
        %v5002 = vshrl.u32 %v4570, 1
        %v5003 = vshrl.u32 %v4571, 1
        %v5004 = vshrl.u32 %v4572, 1
        %v5005 = vshrl.u32 %v4573, 1
        %v5006 = vshrl.u32 %v4574, 1
        %v5007 = vshrl.u32 %v4575, 1
        %v5008 = vshrl.u32 %v4576, 1
        %v5009 = vshrl.u32 %v4577, 1
        %v5010 = vshrl.u32 %v4578, 1
        %v5011 = vshrl.u32 %v4579, 1
        %v5012 = vshrl.u32 %v4580, 1
        %v5013 = vshrl.u32 %v4581, 1
        %v5014 = vshrl.u32 %v4582, 1
        %v5015 = vshrl.u32 %v4583, 1
        %v5016 = vshrl.u32 %v4584, 1
        %v5017 = vshrl.u32 %v4585, 1
        %v5018 = vshrl.u32 %v4586, 1
        %v5019 = vshrl.u32 %v4587, 1
        %v5020 = vshrl.u32 %v4588, 1
        %v5021 = vshrl.u32 %v4589, 1
        %v5022 = vshrl.u32 %v4590, 1
        %v5023 = vshrl.u32 %v4591, 1
        %v5024 = vshrl.u32 %v4592, 1
        %v5025 = vshrl.u32 %v4593, 1
        %v5026 = vshrl.u32 %v4594, 1
        %v5027 = vshrl.u32 %v4595, 1
        %v5028 = vshrl.u32 %v4596, 1
        %v5029 = vshrl.u32 %v4597, 1
        %v5030 = vshrl.u32 %v4598, 1
        %v5031 = vshrl.u32 %v4599, 1
        %v5032 = vshrl.u32 %v4600, 1
        %v5033 = vshrl.u32 %v4601, 1
        %v5034 = vshrl.u32 %v4602, 1
        %v5035 = vshrl.u32 %v4603, 1
        %v5036 = vshrl.u32 %v4604, 1
        %v5037 = vshrl.u32 %v4605, 1
        %v5038 = vshrl.u32 %v4606, 1
        %v5039 = vshrl.u32 %v4607, 1
        %v5040 = vshrl.u32 %v4608, 1
        %v5041 = vshrl.u32 %v4609, 1
        %v5042 = vshrl.u32 %v4610, 1
        %v5043 = vshrl.u32 %v4611, 1
        %v5044 = vshrl.u32 %v4612, 1
        %v5045 = vshrl.u32 %v4613, 1
        %v5046 = vshrl.u32 %v4614, 1
        %v5047 = vshrl.u32 %v4615, 1
        %v5048 = vshrl.u32 %v4616, 1
        %v5049 = vshrl.u32 %v4617, 1
        %v5050 = vshrl.u32 %v4618, 1
        %v5051 = vshrl.u32 %v4619, 1
        %v5052 = vshrl.u32 %v4620, 1
        %v5053 = vshrl.u32 %v4621, 1
        %v5054 = vshrl.u32 %v4622, 1
        %v5055 = vshrl.u32 %v4623, 1
        %v5056 = vshrl.u32 %v4624, 1
        %v5057 = vshrl.u32 %v4625, 1
        %v5058 = vshrl.u32 %v4626, 1
        %v5059 = vshrl.u32 %v4627, 1
        %v5060 = vshrl.u32 %v4628, 1
        %v5061 = vshrl.u32 %v4629, 1
        %v5062 = vshrl.u32 %v4630, 1
        %v5063 = vshrl.u32 %v4631, 1
        %v5064 = vshrl.u32 %v4632, 1
        %v5065 = vshrl.u32 %v4633, 1
        %v5066 = vshrl.u32 %v4634, 1
        %v5067 = vshrl.u32 %v4635, 1
        %v5068 = vshrl.u32 %v4636, 1
        %v5069 = vshrl.u32 %v4637, 1
        %v5070 = vshrl.u32 %v4638, 1
        %v5071 = vshrl.u32 %v4639, 1
        %v5072 = vshrl.u32 %v4640, 1
        %v5073 = vshrl.u32 %v4641, 1
        %v5074 = vshrl.u32 %v4642, 1
        %v5075 = vshrl.u32 %v4643, 1
        %v5076 = vshrl.u32 %v4644, 1
        %v5077 = vshrl.u32 %v4645, 1
        %v5078 = vshrl.u32 %v4646, 1
        %v5079 = vshrl.u32 %v4647, 1
        %v5080 = vshrl.u32 %v4648, 1
        %v5081 = vshrl.u32 %v4649, 1
        %v5082 = vshrl.u32 %v4650, 1
        %v5083 = vshrl.u32 %v4651, 1
        %v5084 = vshrl.u32 %v4652, 1
        %v5085 = vshrl.u32 %v4653, 1
        %v5086 = vshrl.u32 %v4654, 1
        %v5087 = vshrl.u32 %v4655, 1
        %v5088 = vshrl.u32 %v4656, 1
        %v5089 = vshrl.u32 %v4657, 1
        %v5090 = vshrl.u32 %v4658, 1
        %v5091 = vshrl.u32 %v4659, 1
        %v5092 = vshrl.u32 %v4660, 1
        %v5093 = vshrl.u32 %v4661, 1
        %v5094 = vshrl.u32 %v4662, 1
        %v5095 = vshrl.u32 %v4663, 1
        %v5096 = vshrl.u32 %v4664, 1
        %v5097 = vshrl.u32 %v4665, 1
        %v5098 = vshrl.u32 %v4666, 1
        %v5099 = vshrl.u32 %v4667, 1
        %v5100 = vshrl.u32 %v4668, 1
        %v5101 = vshrl.u32 %v4669, 1
        %v5102 = vshrl.u32 %v4670, 1
        %v5103 = vshrl.u32 %v4671, 1
        %v5104 = vshrl.u32 %v4672, 1
        %v5105 = vshrl.u32 %v4673, 1
        %v5106 = vshrl.u32 %v4674, 1
        %v5107 = vshrl.u32 %v4675, 1
        %v5108 = vshrl.u32 %v4676, 1
        %v5109 = vshrl.u32 %v4677, 1
        %v5110 = vshrl.u32 %v4678, 1
        %v5111 = vshrl.u32 %v4679, 1
        %v5112 = vshrl.u32 %v4680, 1
        %v5113 = vshrl.u32 %v4681, 1
        %v5114 = vshrl.u32 %v4682, 1
        %v5115 = vshrl.u32 %v4683, 1
        %v5116 = vshrl.u32 %v4684, 1
        %v5117 = vshrl.u32 %v4685, 1
        %v5118 = vshrl.u32 %v4686, 1
        %v5119 = vshrl.u32 %v4687, 1
        %v5120 = vshrl.u32 %v4688, 1
        %v5121 = vshrl.u32 %v4689, 1
        %v5122 = vshrl.u32 %v4690, 1
        %v5123 = vshrl.u32 %v4691, 1
        %v5124 = vshrl.u32 %v4692, 1
        %v5125 = vshrl.u32 %v4693, 1
        %v5126 = vshrl.u32 %v4694, 1
        %v5127 = vshrl.u32 %v4695, 1
        %v5128 = vshrl.u32 %v4696, 1
        %v5129 = vshrl.u32 %v4697, 1
        %v5130 = vshrl.u32 %v4698, 1
        %v5131 = vshrl.u32 %v4699, 1
        %v5132 = vshrl.u32 %v4700, 1
        %v5133 = vshrl.u32 %v4701, 1
        %v5134 = vshrl.u32 %v4702, 1
        %v5135 = vshrl.u32 %v4703, 1
        %v5136 = vshrl.u32 %v4704, 1
        %v5137 = vshrl.u32 %v4705, 1
        %v5138 = vshrl.u32 %v4706, 1
        %v5139 = vshrl.u32 %v4707, 1
        %v5140 = vshrl.u32 %v4708, 1
        %v5141 = vshrl.u32 %v4709, 1
        %v5142 = vshrl.u32 %v4710, 1
        %v5143 = vshrl.u32 %v4711, 1
        %v5144 = vshrl.u32 %v4712, 1
        %v5145 = vshrl.u32 %v4713, 1
        %v5146 = vshrl.u32 %v4714, 1
        %v5147 = vshrl.u32 %v4715, 1
        %v5148 = vshrl.u32 %v4716, 1
        %v5149 = vshrl.u32 %v4717, 1
        %v5150 = vshrl.u32 %v4718, 1
        %v5151 = vshrl.u32 %v4719, 1
        %v5152 = vshrl.u32 %v4720, 1
        %v5153 = vshrl.u32 %v4721, 1
        %v5154 = vshrl.u32 %v4722, 1
        %v5155 = vshrl.u32 %v4723, 1
        %v5156 = vshrl.u32 %v4724, 1
        %v5157 = vshrl.u32 %v4725, 1
        %v5158 = vshrl.u32 %v4726, 1
        %v5159 = vshrl.u32 %v4727, 1
        %v5160 = vshrl.u32 %v4728, 1
        %v5161 = vshrl.u32 %v4729, 1
        %v5162 = vshrl.u32 %v4730, 1
        %v5163 = vshrl.u32 %v4731, 1
        %v5164 = vshrl.u32 %v4732, 1
        %v5165 = vshrl.u32 %v4733, 1
        %v5166 = vshrl.u32 %v4734, 1
        %v5167 = vshrl.u32 %v4735, 1
        %v5168 = vshrl.u32 %v4736, 1
        %v5169 = vshrl.u32 %v4737, 1
        %v5170 = vshrl.u32 %v4738, 1
        %v5171 = vshrl.u32 %v4739, 1
        %v5172 = vshrl.u32 %v4740, 1
        %v5173 = vshrl.u32 %v4741, 1
        %v5174 = vshrl.u32 %v4742, 1
        %v5175 = vshrl.u32 %v4743, 1
        %v5176 = vshrl.u32 %v4744, 1
        %v5177 = vshrl.u32 %v4745, 1
        %v5178 = vshrl.u32 %v4746, 1
        %v5179 = vshrl.u32 %v4747, 1
        %v5180 = vshrl.u32 %v4748, 1
        %v5181 = vshrl.u32 %v4749, 1
        %v5182 = vshrl.u32 %v4750, 1
        %v5183 = vshrl.u32 %v4751, 1
        %v5184 = vshrl.u32 %v4752, 1
        %v5185 = vshrl.u32 %v4753, 1
        %v5186 = vshrl.u32 %v4754, 1
        %v5187 = vshrl.u32 %v4755, 1
        %v5188 = vshrl.u32 %v4756, 1
        %v5189 = vshrl.u32 %v4757, 1
        %v5190 = vshrl.u32 %v4758, 1
        %v5191 = vshrl.u32 %v4759, 1
        %v5192 = vshrl.u32 %v4760, 1
        %v5193 = vshrl.u32 %v4761, 1
        %v5194 = vshrl.u32 %v4762, 1
        %v5195 = vshrl.u32 %v4763, 1
        %v5196 = vshrl.u32 %v4764, 1
        %v5197 = vshrl.u32 %v4765, 1
        %v5198 = vshrl.u32 %v4766, 1
        %v5199 = vshrl.u32 %v4767, 1
        %v5200 = vshrl.u32 %v4768, 1
        %v5201 = vshrl.u32 %v4769, 1
        %v5202 = vshrl.u32 %v4770, 1
        %v5203 = vshrl.u32 %v4771, 1
        %v5204 = vshrl.u32 %v4772, 1
        %v5205 = vshrl.u32 %v4773, 1
        %v5206 = vshrl.u32 %v4774, 1
        %v5207 = vshrl.u32 %v4775, 1
        %v5208 = vshrl.u32 %v4776, 1
        %v5209 = vshrl.u32 %v4777, 1
        %v5210 = vshrl.u32 %v4778, 1
        %v5211 = vshrl.u32 %v4779, 1
        %v5212 = vshrl.u32 %v4780, 1
        %v5213 = vshrl.u32 %v4781, 1
        %v5214 = vshrl.u32 %v4782, 1
        %v5215 = vshrl.u32 %v4783, 1
        %v5216 = vshrl.u32 %v4784, 1
        %v5217 = vshrl.u32 %v4785, 1
        %v5218 = vshrl.u32 %v4786, 1
        %v5219 = vshrl.u32 %v4787, 1
        %v5220 = vshrl.u32 %v4788, 1
        %v5221 = vshrl.u32 %v4789, 1
        %v5222 = vshrl.u32 %v4790, 1
        %v5223 = vshrl.u32 %v4791, 1
        %v5224 = vshrl.u32 %v4792, 1
        %v5225 = vshrl.u32 %v4793, 1
        %v5226 = vshrl.u32 %v4794, 1
        %v5227 = vshrl.u32 %v4795, 1
        %v5228 = vshrl.u32 %v4796, 1
        %v5229 = vshrl.u32 %v4797, 1
        %v5230 = vshrl.u32 %v4798, 1
        %v5231 = vshrl.u32 %v4799, 1
        %v5232 = vshrl.u32 %v4800, 1
        %v5233 = vshrl.u32 %v4801, 1
        %v5234 = vshrl.u32 %v4802, 1
        %v5235 = vshrl.u32 %v4803, 1
        %v5236 = vshrl.u32 %v4804, 1
        %v5237 = vshrl.u32 %v4805, 1
        %v5238 = vshrl.u32 %v4806, 1
        %v5239 = vshrl.u32 %v4807, 1
        %v5240 = vshrl.u32 %v4808, 1
        %v5241 = vshrl.u32 %v4809, 1
        %v5242 = vshrl.u32 %v4810, 1
        %v5243 = vshrl.u32 %v4811, 1
        %v5244 = vshrl.u32 %v4812, 1
        %v5245 = vshrl.u32 %v4813, 1
        %v5246 = vshrl.u32 %v4814, 1
        %v5247 = vshrl.u32 %v4815, 1
        %v5248 = vshrl.u32 %v4816, 1
        %v5249 = vshrl.u32 %v4817, 1
        %v5250 = vshrl.u32 %v4818, 1
        %v5251 = vshrl.u32 %v4819, 1
        %v5252 = vshrl.u32 %v4820, 1
        %v5253 = vshrl.u32 %v4821, 1
        %v5254 = vshrl.u32 %v4822, 1
        %v5255 = vshrl.u32 %v4823, 1
        %v5256 = vshrl.u32 %v4824, 1
        %v5257 = vshrl.u32 %v4825, 1
        %v5258 = vshrl.u32 %v4826, 1
        %v5259 = vshrl.u32 %v4827, 1
        %v5260 = vshrl.u32 %v4828, 1
        %v5261 = vshrl.u32 %v4829, 1
        %v5262 = vshrl.u32 %v4830, 1
        %v5263 = vshrl.u32 %v4831, 1
        %v5264 = vshrl.u32 %v4832, 1
        %v5265 = vshrl.u32 %v4833, 1
        %v5266 = vshrl.u32 %v4834, 1
        %v5267 = vshrl.u32 %v4835, 1
        %v5268 = vshrl.u32 %v4836, 1
        %v5269 = vshrl.u32 %v4837, 1
        %v5270 = vshrl.u32 %v4838, 1
        %v5271 = vshrl.u32 %v4839, 1
        %v5272 = vshrl.u32 %v4840, 1
        %v5273 = vshrl.u32 %v4841, 1
        %v5274 = vshrl.u32 %v4842, 1
        %v5275 = vshrl.u32 %v4843, 1
        %v5276 = vshrl.u32 %v4844, 1
        %v5277 = vshrl.u32 %v4845, 1
        %v5278 = vshrl.u32 %v4846, 1
        %v5279 = vshrl.u32 %v4847, 1
        %v5280 = vshrl.u32 %v4848, 1
        %v5281 = vshrl.u32 %v4849, 1
        %v5282 = vshrl.u32 %v4850, 1
        %v5283 = vshrl.u32 %v4851, 1
        %v5284 = vshrl.u32 %v4852, 1
        %v5285 = vshrl.u32 %v4853, 1
        %v5286 = vshrl.u32 %v4854, 1
        %v5287 = vshrl.u32 %v4855, 1
        %v5288 = vshrl.u32 %v4856, 1
        %v5289 = vshrl.u32 %v4857, 1
        %v5290 = vshrl.u32 %v4858, 1
        %v5291 = vshrl.u32 %v4859, 1
        %v5292 = vshrl.u32 %v4860, 1
        %v5293 = vshrl.u32 %v4861, 1
        %v5294 = vshrl.u32 %v4862, 1
        %v5295 = vshrl.u32 %v4863, 1
        %v5296 = vshrl.u32 %v4864, 1
        %v5297 = vshrl.u32 %v4865, 1
        %v5298 = vshrl.u32 %v4866, 1
        %v5299 = vshrl.u32 %v4867, 1
        %v5300 = vshrl.u32 %v4868, 1
        %v5301 = vshrl.u32 %v4869, 1
        %v5302 = vshrl.u32 %v4870, 1
        %v5303 = vshrl.u32 %v4871, 1
        %v5304 = vshrl.u32 %v4872, 1
        %v5305 = vshrl.u32 %v4873, 1
        %v5306 = vshrl.u32 %v4874, 1
        %v5307 = vshrl.u32 %v4875, 1
        %v5308 = vshrl.u32 %v4876, 1
        %v5309 = vshrl.u32 %v4877, 1
        %v5310 = vshrl.u32 %v4878, 1
        %v5311 = vshrl.u32 %v4879, 1
        %v5312 = vshrl.u32 %v4880, 1
        %v5313 = vshrl.u32 %v4881, 1
        %v5314 = vshrl.u32 %v4882, 1
        %v5315 = vshrl.u32 %v4883, 1
        %v5316 = vshrl.u32 %v4884, 1
        %v5317 = vshrl.u32 %v4885, 1
        %v5318 = vshrl.u32 %v4886, 1
        %v5319 = vshrl.u32 %v4887, 1
        %v5320 = vshrl.u32 %v4888, 1
        %v5321 = vshrl.u32 %v4889, 1
        %v5322 = vshrl.u32 %v4890, 1
        %v5323 = vshrl.u32 %v4891, 1
        %v5324 = vshrl.u32 %v4892, 1
        %v5325 = vshrl.u32 %v4893, 1
        %v5326 = vshrl.u32 %v4894, 1
        %v5327 = vshrl.u32 %v4895, 1
        %v5328 = vshrl.u32 %v4896, 1
        %v5329 = vshrl.u32 %v4897, 1
        %v5330 = vshrl.u32 %v4898, 1
        %v5331 = vshrl.u32 %v4899, 1
        %v5332 = vshrl.u32 %v4900, 1
        %v5333 = vshrl.u32 %v4901, 1
        %vm5334 = vcmp.ge.s32.totalorder %v4902, 214748364
        %vm5335 = vcmp.ge.s32.totalorder %v4903, 214748364
        %vm5336 = vcmp.ge.s32.totalorder %v4904, 214748364
        %vm5337 = vcmp.ge.s32.totalorder %v4905, 214748364
        %vm5338 = vcmp.ge.s32.totalorder %v4906, 214748364
        %vm5339 = vcmp.ge.s32.totalorder %v4907, 214748364
        %vm5340 = vcmp.ge.s32.totalorder %v4908, 214748364
        %vm5341 = vcmp.ge.s32.totalorder %v4909, 214748364
        %vm5342 = vcmp.ge.s32.totalorder %v4910, 214748364
        %vm5343 = vcmp.ge.s32.totalorder %v4911, 214748364
        %vm5344 = vcmp.ge.s32.totalorder %v4912, 214748364
        %vm5345 = vcmp.ge.s32.totalorder %v4913, 214748364
        %vm5346 = vcmp.ge.s32.totalorder %v4914, 214748364
        %vm5347 = vcmp.ge.s32.totalorder %v4915, 214748364
        %vm5348 = vcmp.ge.s32.totalorder %v4916, 214748364
        %vm5349 = vcmp.ge.s32.totalorder %v4917, 214748364
        %vm5350 = vcmp.ge.s32.totalorder %v4918, 214748364
        %vm5351 = vcmp.ge.s32.totalorder %v4919, 214748364
        %vm5352 = vcmp.ge.s32.totalorder %v4920, 214748364
        %vm5353 = vcmp.ge.s32.totalorder %v4921, 214748364
        %vm5354 = vcmp.ge.s32.totalorder %v4922, 214748364
        %vm5355 = vcmp.ge.s32.totalorder %v4923, 214748364
        %vm5356 = vcmp.ge.s32.totalorder %v4924, 214748364
        %vm5357 = vcmp.ge.s32.totalorder %v4925, 214748364
        %vm5358 = vcmp.ge.s32.totalorder %v4926, 214748364
        %vm5359 = vcmp.ge.s32.totalorder %v4927, 214748364
        %vm5360 = vcmp.ge.s32.totalorder %v4928, 214748364
        %vm5361 = vcmp.ge.s32.totalorder %v4929, 214748364
        %vm5362 = vcmp.ge.s32.totalorder %v4930, 214748364
        %vm5363 = vcmp.ge.s32.totalorder %v4931, 214748364
        %vm5364 = vcmp.ge.s32.totalorder %v4932, 214748364
        %vm5365 = vcmp.ge.s32.totalorder %v4933, 214748364
        %vm5366 = vcmp.ge.s32.totalorder %v4934, 214748364
        %vm5367 = vcmp.ge.s32.totalorder %v4935, 214748364
        %vm5368 = vcmp.ge.s32.totalorder %v4936, 214748364
        %vm5369 = vcmp.ge.s32.totalorder %v4937, 214748364
        %vm5370 = vcmp.ge.s32.totalorder %v4938, 214748364
        %vm5371 = vcmp.ge.s32.totalorder %v4939, 214748364
        %vm5372 = vcmp.ge.s32.totalorder %v4940, 214748364
        %vm5373 = vcmp.ge.s32.totalorder %v4941, 214748364
        %vm5374 = vcmp.ge.s32.totalorder %v4942, 214748364
        %vm5375 = vcmp.ge.s32.totalorder %v4943, 214748364
        %vm5376 = vcmp.ge.s32.totalorder %v4944, 214748364
        %vm5377 = vcmp.ge.s32.totalorder %v4945, 214748364
        %vm5378 = vcmp.ge.s32.totalorder %v4946, 214748364
        %vm5379 = vcmp.ge.s32.totalorder %v4947, 214748364
        %vm5380 = vcmp.ge.s32.totalorder %v4948, 214748364
        %vm5381 = vcmp.ge.s32.totalorder %v4949, 214748364
        %vm5382 = vcmp.ge.s32.totalorder %v4950, 214748364
        %vm5383 = vcmp.ge.s32.totalorder %v4951, 214748364
        %vm5384 = vcmp.ge.s32.totalorder %v4952, 214748364
        %vm5385 = vcmp.ge.s32.totalorder %v4953, 214748364
        %vm5386 = vcmp.ge.s32.totalorder %v4954, 214748364
        %vm5387 = vcmp.ge.s32.totalorder %v4955, 214748364
        %vm5388 = vcmp.ge.s32.totalorder %v4956, 214748364
        %vm5389 = vcmp.ge.s32.totalorder %v4957, 214748364
        %vm5390 = vcmp.ge.s32.totalorder %v4958, 214748364
        %vm5391 = vcmp.ge.s32.totalorder %v4959, 214748364
        %vm5392 = vcmp.ge.s32.totalorder %v4960, 214748364
        %vm5393 = vcmp.ge.s32.totalorder %v4961, 214748364
        %vm5394 = vcmp.ge.s32.totalorder %v4962, 214748364
        %vm5395 = vcmp.ge.s32.totalorder %v4963, 214748364
        %vm5396 = vcmp.ge.s32.totalorder %v4964, 214748364
        %vm5397 = vcmp.ge.s32.totalorder %v4965, 214748364
        %vm5398 = vcmp.ge.s32.totalorder %v4966, 214748364
        %vm5399 = vcmp.ge.s32.totalorder %v4967, 214748364
        %vm5400 = vcmp.ge.s32.totalorder %v4968, 214748364
        %vm5401 = vcmp.ge.s32.totalorder %v4969, 214748364
        %vm5402 = vcmp.ge.s32.totalorder %v4970, 214748364
        %vm5403 = vcmp.ge.s32.totalorder %v4971, 214748364
        %vm5404 = vcmp.ge.s32.totalorder %v4972, 214748364
        %vm5405 = vcmp.ge.s32.totalorder %v4973, 214748364
        %vm5406 = vcmp.ge.s32.totalorder %v4974, 214748364
        %vm5407 = vcmp.ge.s32.totalorder %v4975, 214748364
        %vm5408 = vcmp.ge.s32.totalorder %v4976, 214748364
        %vm5409 = vcmp.ge.s32.totalorder %v4977, 214748364
        %vm5410 = vcmp.ge.s32.totalorder %v4978, 214748364
        %vm5411 = vcmp.ge.s32.totalorder %v4979, 214748364
        %vm5412 = vcmp.ge.s32.totalorder %v4980, 214748364
        %vm5413 = vcmp.ge.s32.totalorder %v4981, 214748364
        %vm5414 = vcmp.ge.s32.totalorder %v4982, 214748364
        %vm5415 = vcmp.ge.s32.totalorder %v4983, 214748364
        %vm5416 = vcmp.ge.s32.totalorder %v4984, 214748364
        %vm5417 = vcmp.ge.s32.totalorder %v4985, 214748364
        %vm5418 = vcmp.ge.s32.totalorder %v4986, 214748364
        %vm5419 = vcmp.ge.s32.totalorder %v4987, 214748364
        %vm5420 = vcmp.ge.s32.totalorder %v4988, 214748364
        %vm5421 = vcmp.ge.s32.totalorder %v4989, 214748364
        %vm5422 = vcmp.ge.s32.totalorder %v4990, 214748364
        %vm5423 = vcmp.ge.s32.totalorder %v4991, 214748364
        %vm5424 = vcmp.ge.s32.totalorder %v4992, 214748364
        %vm5425 = vcmp.ge.s32.totalorder %v4993, 214748364
        %vm5426 = vcmp.ge.s32.totalorder %v4994, 214748364
        %vm5427 = vcmp.ge.s32.totalorder %v4995, 214748364
        %vm5428 = vcmp.ge.s32.totalorder %v4996, 214748364
        %vm5429 = vcmp.ge.s32.totalorder %v4997, 214748364
        %vm5430 = vcmp.ge.s32.totalorder %v4998, 214748364
        %vm5431 = vcmp.ge.s32.totalorder %v4999, 214748364
        %vm5432 = vcmp.ge.s32.totalorder %v5000, 214748364
        %vm5433 = vcmp.ge.s32.totalorder %v5001, 214748364
        %vm5434 = vcmp.ge.s32.totalorder %v5002, 214748364
        %vm5435 = vcmp.ge.s32.totalorder %v5003, 214748364
        %vm5436 = vcmp.ge.s32.totalorder %v5004, 214748364
        %vm5437 = vcmp.ge.s32.totalorder %v5005, 214748364
        %vm5438 = vcmp.ge.s32.totalorder %v5006, 214748364
        %vm5439 = vcmp.ge.s32.totalorder %v5007, 214748364
        %vm5440 = vcmp.ge.s32.totalorder %v5008, 214748364
        %vm5441 = vcmp.ge.s32.totalorder %v5009, 214748364
        %vm5442 = vcmp.ge.s32.totalorder %v5010, 214748364
        %vm5443 = vcmp.ge.s32.totalorder %v5011, 214748364
        %vm5444 = vcmp.ge.s32.totalorder %v5012, 214748364
        %vm5445 = vcmp.ge.s32.totalorder %v5013, 214748364
        %vm5446 = vcmp.ge.s32.totalorder %v5014, 214748364
        %vm5447 = vcmp.ge.s32.totalorder %v5015, 214748364
        %vm5448 = vcmp.ge.s32.totalorder %v5016, 214748364
        %vm5449 = vcmp.ge.s32.totalorder %v5017, 214748364
        %vm5450 = vcmp.ge.s32.totalorder %v5018, 214748364
        %vm5451 = vcmp.ge.s32.totalorder %v5019, 214748364
        %vm5452 = vcmp.ge.s32.totalorder %v5020, 214748364
        %vm5453 = vcmp.ge.s32.totalorder %v5021, 214748364
        %vm5454 = vcmp.ge.s32.totalorder %v5022, 214748364
        %vm5455 = vcmp.ge.s32.totalorder %v5023, 214748364
        %vm5456 = vcmp.ge.s32.totalorder %v5024, 214748364
        %vm5457 = vcmp.ge.s32.totalorder %v5025, 214748364
        %vm5458 = vcmp.ge.s32.totalorder %v5026, 214748364
        %vm5459 = vcmp.ge.s32.totalorder %v5027, 214748364
        %vm5460 = vcmp.ge.s32.totalorder %v5028, 214748364
        %vm5461 = vcmp.ge.s32.totalorder %v5029, 214748364
        %vm5462 = vcmp.ge.s32.totalorder %v5030, 214748364
        %vm5463 = vcmp.ge.s32.totalorder %v5031, 214748364
        %vm5464 = vcmp.ge.s32.totalorder %v5032, 214748364
        %vm5465 = vcmp.ge.s32.totalorder %v5033, 214748364
        %vm5466 = vcmp.ge.s32.totalorder %v5034, 214748364
        %vm5467 = vcmp.ge.s32.totalorder %v5035, 214748364
        %vm5468 = vcmp.ge.s32.totalorder %v5036, 214748364
        %vm5469 = vcmp.ge.s32.totalorder %v5037, 214748364
        %vm5470 = vcmp.ge.s32.totalorder %v5038, 214748364
        %vm5471 = vcmp.ge.s32.totalorder %v5039, 214748364
        %vm5472 = vcmp.ge.s32.totalorder %v5040, 214748364
        %vm5473 = vcmp.ge.s32.totalorder %v5041, 214748364
        %vm5474 = vcmp.ge.s32.totalorder %v5042, 214748364
        %vm5475 = vcmp.ge.s32.totalorder %v5043, 214748364
        %vm5476 = vcmp.ge.s32.totalorder %v5044, 214748364
        %vm5477 = vcmp.ge.s32.totalorder %v5045, 214748364
        %vm5478 = vcmp.ge.s32.totalorder %v5046, 214748364
        %vm5479 = vcmp.ge.s32.totalorder %v5047, 214748364
        %vm5480 = vcmp.ge.s32.totalorder %v5048, 214748364
        %vm5481 = vcmp.ge.s32.totalorder %v5049, 214748364
        %vm5482 = vcmp.ge.s32.totalorder %v5050, 214748364
        %vm5483 = vcmp.ge.s32.totalorder %v5051, 214748364
        %vm5484 = vcmp.ge.s32.totalorder %v5052, 214748364
        %vm5485 = vcmp.ge.s32.totalorder %v5053, 214748364
        %vm5486 = vcmp.ge.s32.totalorder %v5054, 214748364
        %vm5487 = vcmp.ge.s32.totalorder %v5055, 214748364
        %vm5488 = vcmp.ge.s32.totalorder %v5056, 214748364
        %vm5489 = vcmp.ge.s32.totalorder %v5057, 214748364
        %vm5490 = vcmp.ge.s32.totalorder %v5058, 214748364
        %vm5491 = vcmp.ge.s32.totalorder %v5059, 214748364
        %vm5492 = vcmp.ge.s32.totalorder %v5060, 214748364
        %vm5493 = vcmp.ge.s32.totalorder %v5061, 214748364
        %vm5494 = vcmp.ge.s32.totalorder %v5062, 214748364
        %vm5495 = vcmp.ge.s32.totalorder %v5063, 214748364
        %vm5496 = vcmp.ge.s32.totalorder %v5064, 214748364
        %vm5497 = vcmp.ge.s32.totalorder %v5065, 214748364
        %vm5498 = vcmp.ge.s32.totalorder %v5066, 214748364
        %vm5499 = vcmp.ge.s32.totalorder %v5067, 214748364
        %vm5500 = vcmp.ge.s32.totalorder %v5068, 214748364
        %vm5501 = vcmp.ge.s32.totalorder %v5069, 214748364
        %vm5502 = vcmp.ge.s32.totalorder %v5070, 214748364
        %vm5503 = vcmp.ge.s32.totalorder %v5071, 214748364
        %vm5504 = vcmp.ge.s32.totalorder %v5072, 214748364
        %vm5505 = vcmp.ge.s32.totalorder %v5073, 214748364
        %vm5506 = vcmp.ge.s32.totalorder %v5074, 214748364
        %vm5507 = vcmp.ge.s32.totalorder %v5075, 214748364
        %vm5508 = vcmp.ge.s32.totalorder %v5076, 214748364
        %vm5509 = vcmp.ge.s32.totalorder %v5077, 214748364
        %vm5510 = vcmp.ge.s32.totalorder %v5078, 214748364
        %vm5511 = vcmp.ge.s32.totalorder %v5079, 214748364
        %vm5512 = vcmp.ge.s32.totalorder %v5080, 214748364
        %vm5513 = vcmp.ge.s32.totalorder %v5081, 214748364
        %vm5514 = vcmp.ge.s32.totalorder %v5082, 214748364
        %vm5515 = vcmp.ge.s32.totalorder %v5083, 214748364
        %vm5516 = vcmp.ge.s32.totalorder %v5084, 214748364
        %vm5517 = vcmp.ge.s32.totalorder %v5085, 214748364
        %vm5518 = vcmp.ge.s32.totalorder %v5086, 214748364
        %vm5519 = vcmp.ge.s32.totalorder %v5087, 214748364
        %vm5520 = vcmp.ge.s32.totalorder %v5088, 214748364
        %vm5521 = vcmp.ge.s32.totalorder %v5089, 214748364
        %vm5522 = vcmp.ge.s32.totalorder %v5090, 214748364
        %vm5523 = vcmp.ge.s32.totalorder %v5091, 214748364
        %vm5524 = vcmp.ge.s32.totalorder %v5092, 214748364
        %vm5525 = vcmp.ge.s32.totalorder %v5093, 214748364
        %vm5526 = vcmp.ge.s32.totalorder %v5094, 214748364
        %vm5527 = vcmp.ge.s32.totalorder %v5095, 214748364
        %vm5528 = vcmp.ge.s32.totalorder %v5096, 214748364
        %vm5529 = vcmp.ge.s32.totalorder %v5097, 214748364
        %vm5530 = vcmp.ge.s32.totalorder %v5098, 214748364
        %vm5531 = vcmp.ge.s32.totalorder %v5099, 214748364
        %vm5532 = vcmp.ge.s32.totalorder %v5100, 214748364
        %vm5533 = vcmp.ge.s32.totalorder %v5101, 214748364
        %vm5534 = vcmp.ge.s32.totalorder %v5102, 214748364
        %vm5535 = vcmp.ge.s32.totalorder %v5103, 214748364
        %vm5536 = vcmp.ge.s32.totalorder %v5104, 214748364
        %vm5537 = vcmp.ge.s32.totalorder %v5105, 214748364
        %vm5538 = vcmp.ge.s32.totalorder %v5106, 214748364
        %vm5539 = vcmp.ge.s32.totalorder %v5107, 214748364
        %vm5540 = vcmp.ge.s32.totalorder %v5108, 214748364
        %vm5541 = vcmp.ge.s32.totalorder %v5109, 214748364
        %vm5542 = vcmp.ge.s32.totalorder %v5110, 214748364
        %vm5543 = vcmp.ge.s32.totalorder %v5111, 214748364
        %vm5544 = vcmp.ge.s32.totalorder %v5112, 214748364
        %vm5545 = vcmp.ge.s32.totalorder %v5113, 214748364
        %vm5546 = vcmp.ge.s32.totalorder %v5114, 214748364
        %vm5547 = vcmp.ge.s32.totalorder %v5115, 214748364
        %vm5548 = vcmp.ge.s32.totalorder %v5116, 214748364
        %vm5549 = vcmp.ge.s32.totalorder %v5117, 214748364
        %vm5550 = vcmp.ge.s32.totalorder %v5118, 214748364
        %vm5551 = vcmp.ge.s32.totalorder %v5119, 214748364
        %vm5552 = vcmp.ge.s32.totalorder %v5120, 214748364
        %vm5553 = vcmp.ge.s32.totalorder %v5121, 214748364
        %vm5554 = vcmp.ge.s32.totalorder %v5122, 214748364
        %vm5555 = vcmp.ge.s32.totalorder %v5123, 214748364
        %vm5556 = vcmp.ge.s32.totalorder %v5124, 214748364
        %vm5557 = vcmp.ge.s32.totalorder %v5125, 214748364
        %vm5558 = vcmp.ge.s32.totalorder %v5126, 214748364
        %vm5559 = vcmp.ge.s32.totalorder %v5127, 214748364
        %vm5560 = vcmp.ge.s32.totalorder %v5128, 214748364
        %vm5561 = vcmp.ge.s32.totalorder %v5129, 214748364
        %vm5562 = vcmp.ge.s32.totalorder %v5130, 214748364
        %vm5563 = vcmp.ge.s32.totalorder %v5131, 214748364
        %vm5564 = vcmp.ge.s32.totalorder %v5132, 214748364
        %vm5565 = vcmp.ge.s32.totalorder %v5133, 214748364
        %vm5566 = vcmp.ge.s32.totalorder %v5134, 214748364
        %vm5567 = vcmp.ge.s32.totalorder %v5135, 214748364
        %vm5568 = vcmp.ge.s32.totalorder %v5136, 214748364
        %vm5569 = vcmp.ge.s32.totalorder %v5137, 214748364
        %vm5570 = vcmp.ge.s32.totalorder %v5138, 214748364
        %vm5571 = vcmp.ge.s32.totalorder %v5139, 214748364
        %vm5572 = vcmp.ge.s32.totalorder %v5140, 214748364
        %vm5573 = vcmp.ge.s32.totalorder %v5141, 214748364
        %vm5574 = vcmp.ge.s32.totalorder %v5142, 214748364
        %vm5575 = vcmp.ge.s32.totalorder %v5143, 214748364
        %vm5576 = vcmp.ge.s32.totalorder %v5144, 214748364
        %vm5577 = vcmp.ge.s32.totalorder %v5145, 214748364
        %vm5578 = vcmp.ge.s32.totalorder %v5146, 214748364
        %vm5579 = vcmp.ge.s32.totalorder %v5147, 214748364
        %vm5580 = vcmp.ge.s32.totalorder %v5148, 214748364
        %vm5581 = vcmp.ge.s32.totalorder %v5149, 214748364
        %vm5582 = vcmp.ge.s32.totalorder %v5150, 214748364
        %vm5583 = vcmp.ge.s32.totalorder %v5151, 214748364
        %vm5584 = vcmp.ge.s32.totalorder %v5152, 214748364
        %vm5585 = vcmp.ge.s32.totalorder %v5153, 214748364
        %vm5586 = vcmp.ge.s32.totalorder %v5154, 214748364
        %vm5587 = vcmp.ge.s32.totalorder %v5155, 214748364
        %vm5588 = vcmp.ge.s32.totalorder %v5156, 214748364
        %vm5589 = vcmp.ge.s32.totalorder %v5157, 214748364
        %vm5590 = vcmp.ge.s32.totalorder %v5158, 214748364
        %vm5591 = vcmp.ge.s32.totalorder %v5159, 214748364
        %vm5592 = vcmp.ge.s32.totalorder %v5160, 214748364
        %vm5593 = vcmp.ge.s32.totalorder %v5161, 214748364
        %vm5594 = vcmp.ge.s32.totalorder %v5162, 214748364
        %vm5595 = vcmp.ge.s32.totalorder %v5163, 214748364
        %vm5596 = vcmp.ge.s32.totalorder %v5164, 214748364
        %vm5597 = vcmp.ge.s32.totalorder %v5165, 214748364
        %vm5598 = vcmp.ge.s32.totalorder %v5166, 214748364
        %vm5599 = vcmp.ge.s32.totalorder %v5167, 214748364
        %vm5600 = vcmp.ge.s32.totalorder %v5168, 214748364
        %vm5601 = vcmp.ge.s32.totalorder %v5169, 214748364
        %vm5602 = vcmp.ge.s32.totalorder %v5170, 214748364
        %vm5603 = vcmp.ge.s32.totalorder %v5171, 214748364
        %vm5604 = vcmp.ge.s32.totalorder %v5172, 214748364
        %vm5605 = vcmp.ge.s32.totalorder %v5173, 214748364
        %vm5606 = vcmp.ge.s32.totalorder %v5174, 214748364
        %vm5607 = vcmp.ge.s32.totalorder %v5175, 214748364
        %vm5608 = vcmp.ge.s32.totalorder %v5176, 214748364
        %vm5609 = vcmp.ge.s32.totalorder %v5177, 214748364
        %vm5610 = vcmp.ge.s32.totalorder %v5178, 214748364
        %vm5611 = vcmp.ge.s32.totalorder %v5179, 214748364
        %vm5612 = vcmp.ge.s32.totalorder %v5180, 214748364
        %vm5613 = vcmp.ge.s32.totalorder %v5181, 214748364
        %vm5614 = vcmp.ge.s32.totalorder %v5182, 214748364
        %vm5615 = vcmp.ge.s32.totalorder %v5183, 214748364
        %vm5616 = vcmp.ge.s32.totalorder %v5184, 214748364
        %vm5617 = vcmp.ge.s32.totalorder %v5185, 214748364
        %vm5618 = vcmp.ge.s32.totalorder %v5186, 214748364
        %vm5619 = vcmp.ge.s32.totalorder %v5187, 214748364
        %vm5620 = vcmp.ge.s32.totalorder %v5188, 214748364
        %vm5621 = vcmp.ge.s32.totalorder %v5189, 214748364
        %vm5622 = vcmp.ge.s32.totalorder %v5190, 214748364
        %vm5623 = vcmp.ge.s32.totalorder %v5191, 214748364
        %vm5624 = vcmp.ge.s32.totalorder %v5192, 214748364
        %vm5625 = vcmp.ge.s32.totalorder %v5193, 214748364
        %vm5626 = vcmp.ge.s32.totalorder %v5194, 214748364
        %vm5627 = vcmp.ge.s32.totalorder %v5195, 214748364
        %vm5628 = vcmp.ge.s32.totalorder %v5196, 214748364
        %vm5629 = vcmp.ge.s32.totalorder %v5197, 214748364
        %vm5630 = vcmp.ge.s32.totalorder %v5198, 214748364
        %vm5631 = vcmp.ge.s32.totalorder %v5199, 214748364
        %vm5632 = vcmp.ge.s32.totalorder %v5200, 214748364
        %vm5633 = vcmp.ge.s32.totalorder %v5201, 214748364
        %vm5634 = vcmp.ge.s32.totalorder %v5202, 214748364
        %vm5635 = vcmp.ge.s32.totalorder %v5203, 214748364
        %vm5636 = vcmp.ge.s32.totalorder %v5204, 214748364
        %vm5637 = vcmp.ge.s32.totalorder %v5205, 214748364
        %vm5638 = vcmp.ge.s32.totalorder %v5206, 214748364
        %vm5639 = vcmp.ge.s32.totalorder %v5207, 214748364
        %vm5640 = vcmp.ge.s32.totalorder %v5208, 214748364
        %vm5641 = vcmp.ge.s32.totalorder %v5209, 214748364
        %vm5642 = vcmp.ge.s32.totalorder %v5210, 214748364
        %vm5643 = vcmp.ge.s32.totalorder %v5211, 214748364
        %vm5644 = vcmp.ge.s32.totalorder %v5212, 214748364
        %vm5645 = vcmp.ge.s32.totalorder %v5213, 214748364
        %vm5646 = vcmp.ge.s32.totalorder %v5214, 214748364
        %vm5647 = vcmp.ge.s32.totalorder %v5215, 214748364
        %vm5648 = vcmp.ge.s32.totalorder %v5216, 214748364
        %vm5649 = vcmp.ge.s32.totalorder %v5217, 214748364
        %vm5650 = vcmp.ge.s32.totalorder %v5218, 214748364
        %vm5651 = vcmp.ge.s32.totalorder %v5219, 214748364
        %vm5652 = vcmp.ge.s32.totalorder %v5220, 214748364
        %vm5653 = vcmp.ge.s32.totalorder %v5221, 214748364
        %vm5654 = vcmp.ge.s32.totalorder %v5222, 214748364
        %vm5655 = vcmp.ge.s32.totalorder %v5223, 214748364
        %vm5656 = vcmp.ge.s32.totalorder %v5224, 214748364
        %vm5657 = vcmp.ge.s32.totalorder %v5225, 214748364
        %vm5658 = vcmp.ge.s32.totalorder %v5226, 214748364
        %vm5659 = vcmp.ge.s32.totalorder %v5227, 214748364
        %vm5660 = vcmp.ge.s32.totalorder %v5228, 214748364
        %vm5661 = vcmp.ge.s32.totalorder %v5229, 214748364
        %vm5662 = vcmp.ge.s32.totalorder %v5230, 214748364
        %vm5663 = vcmp.ge.s32.totalorder %v5231, 214748364
        %vm5664 = vcmp.ge.s32.totalorder %v5232, 214748364
        %vm5665 = vcmp.ge.s32.totalorder %v5233, 214748364
        %vm5666 = vcmp.ge.s32.totalorder %v5234, 214748364
        %vm5667 = vcmp.ge.s32.totalorder %v5235, 214748364
        %vm5668 = vcmp.ge.s32.totalorder %v5236, 214748364
        %vm5669 = vcmp.ge.s32.totalorder %v5237, 214748364
        %vm5670 = vcmp.ge.s32.totalorder %v5238, 214748364
        %vm5671 = vcmp.ge.s32.totalorder %v5239, 214748364
        %vm5672 = vcmp.ge.s32.totalorder %v5240, 214748364
        %vm5673 = vcmp.ge.s32.totalorder %v5241, 214748364
        %vm5674 = vcmp.ge.s32.totalorder %v5242, 214748364
        %vm5675 = vcmp.ge.s32.totalorder %v5243, 214748364
        %vm5676 = vcmp.ge.s32.totalorder %v5244, 214748364
        %vm5677 = vcmp.ge.s32.totalorder %v5245, 214748364
        %vm5678 = vcmp.ge.s32.totalorder %v5246, 214748364
        %vm5679 = vcmp.ge.s32.totalorder %v5247, 214748364
        %vm5680 = vcmp.ge.s32.totalorder %v5248, 214748364
        %vm5681 = vcmp.ge.s32.totalorder %v5249, 214748364
        %vm5682 = vcmp.ge.s32.totalorder %v5250, 214748364
        %vm5683 = vcmp.ge.s32.totalorder %v5251, 214748364
        %vm5684 = vcmp.ge.s32.totalorder %v5252, 214748364
        %vm5685 = vcmp.ge.s32.totalorder %v5253, 214748364
        %vm5686 = vcmp.ge.s32.totalorder %v5254, 214748364
        %vm5687 = vcmp.ge.s32.totalorder %v5255, 214748364
        %vm5688 = vcmp.ge.s32.totalorder %v5256, 214748364
        %vm5689 = vcmp.ge.s32.totalorder %v5257, 214748364
        %vm5690 = vcmp.ge.s32.totalorder %v5258, 214748364
        %vm5691 = vcmp.ge.s32.totalorder %v5259, 214748364
        %vm5692 = vcmp.ge.s32.totalorder %v5260, 214748364
        %vm5693 = vcmp.ge.s32.totalorder %v5261, 214748364
        %vm5694 = vcmp.ge.s32.totalorder %v5262, 214748364
        %vm5695 = vcmp.ge.s32.totalorder %v5263, 214748364
        %vm5696 = vcmp.ge.s32.totalorder %v5264, 214748364
        %vm5697 = vcmp.ge.s32.totalorder %v5265, 214748364
        %vm5698 = vcmp.ge.s32.totalorder %v5266, 214748364
        %vm5699 = vcmp.ge.s32.totalorder %v5267, 214748364
        %vm5700 = vcmp.ge.s32.totalorder %v5268, 214748364
        %vm5701 = vcmp.ge.s32.totalorder %v5269, 214748364
        %vm5702 = vcmp.ge.s32.totalorder %v5270, 214748364
        %vm5703 = vcmp.ge.s32.totalorder %v5271, 214748364
        %vm5704 = vcmp.ge.s32.totalorder %v5272, 214748364
        %vm5705 = vcmp.ge.s32.totalorder %v5273, 214748364
        %vm5706 = vcmp.ge.s32.totalorder %v5274, 214748364
        %vm5707 = vcmp.ge.s32.totalorder %v5275, 214748364
        %vm5708 = vcmp.ge.s32.totalorder %v5276, 214748364
        %vm5709 = vcmp.ge.s32.totalorder %v5277, 214748364
        %vm5710 = vcmp.ge.s32.totalorder %v5278, 214748364
        %vm5711 = vcmp.ge.s32.totalorder %v5279, 214748364
        %vm5712 = vcmp.ge.s32.totalorder %v5280, 214748364
        %vm5713 = vcmp.ge.s32.totalorder %v5281, 214748364
        %vm5714 = vcmp.ge.s32.totalorder %v5282, 214748364
        %vm5715 = vcmp.ge.s32.totalorder %v5283, 214748364
        %vm5716 = vcmp.ge.s32.totalorder %v5284, 214748364
        %vm5717 = vcmp.ge.s32.totalorder %v5285, 214748364
        %vm5718 = vcmp.ge.s32.totalorder %v5286, 214748364
        %vm5719 = vcmp.ge.s32.totalorder %v5287, 214748364
        %vm5720 = vcmp.ge.s32.totalorder %v5288, 214748364
        %vm5721 = vcmp.ge.s32.totalorder %v5289, 214748364
        %vm5722 = vcmp.ge.s32.totalorder %v5290, 214748364
        %vm5723 = vcmp.ge.s32.totalorder %v5291, 214748364
        %vm5724 = vcmp.ge.s32.totalorder %v5292, 214748364
        %vm5725 = vcmp.ge.s32.totalorder %v5293, 214748364
        %vm5726 = vcmp.ge.s32.totalorder %v5294, 214748364
        %vm5727 = vcmp.ge.s32.totalorder %v5295, 214748364
        %vm5728 = vcmp.ge.s32.totalorder %v5296, 214748364
        %vm5729 = vcmp.ge.s32.totalorder %v5297, 214748364
        %vm5730 = vcmp.ge.s32.totalorder %v5298, 214748364
        %vm5731 = vcmp.ge.s32.totalorder %v5299, 214748364
        %vm5732 = vcmp.ge.s32.totalorder %v5300, 214748364
        %vm5733 = vcmp.ge.s32.totalorder %v5301, 214748364
        %vm5734 = vcmp.ge.s32.totalorder %v5302, 214748364
        %vm5735 = vcmp.ge.s32.totalorder %v5303, 214748364
        %vm5736 = vcmp.ge.s32.totalorder %v5304, 214748364
        %vm5737 = vcmp.ge.s32.totalorder %v5305, 214748364
        %vm5738 = vcmp.ge.s32.totalorder %v5306, 214748364
        %vm5739 = vcmp.ge.s32.totalorder %v5307, 214748364
        %vm5740 = vcmp.ge.s32.totalorder %v5308, 214748364
        %vm5741 = vcmp.ge.s32.totalorder %v5309, 214748364
        %vm5742 = vcmp.ge.s32.totalorder %v5310, 214748364
        %vm5743 = vcmp.ge.s32.totalorder %v5311, 214748364
        %vm5744 = vcmp.ge.s32.totalorder %v5312, 214748364
        %vm5745 = vcmp.ge.s32.totalorder %v5313, 214748364
        %vm5746 = vcmp.ge.s32.totalorder %v5314, 214748364
        %vm5747 = vcmp.ge.s32.totalorder %v5315, 214748364
        %vm5748 = vcmp.ge.s32.totalorder %v5316, 214748364
        %vm5749 = vcmp.ge.s32.totalorder %v5317, 214748364
        %vm5750 = vcmp.ge.s32.totalorder %v5318, 214748364
        %vm5751 = vcmp.ge.s32.totalorder %v5319, 214748364
        %vm5752 = vcmp.ge.s32.totalorder %v5320, 214748364
        %vm5753 = vcmp.ge.s32.totalorder %v5321, 214748364
        %vm5754 = vcmp.ge.s32.totalorder %v5322, 214748364
        %vm5755 = vcmp.ge.s32.totalorder %v5323, 214748364
        %vm5756 = vcmp.ge.s32.totalorder %v5324, 214748364
        %vm5757 = vcmp.ge.s32.totalorder %v5325, 214748364
        %vm5758 = vcmp.ge.s32.totalorder %v5326, 214748364
        %vm5759 = vcmp.ge.s32.totalorder %v5327, 214748364
        %vm5760 = vcmp.ge.s32.totalorder %v5328, 214748364
        %vm5761 = vcmp.ge.s32.totalorder %v5329, 214748364
        %vm5762 = vcmp.ge.s32.totalorder %v5330, 214748364
        %vm5763 = vcmp.ge.s32.totalorder %v5331, 214748364
        %vm5764 = vcmp.ge.s32.totalorder %v5332, 214748364
        %vm5765 = vcmp.ge.s32.totalorder %v5333, 214748364
        %v5766 = vld [vmem:[%s119] sm:$0xff]
        %v5767 = vld [vmem:[%s119 + $0x8] sm:$0xff]
        %v5768 = vld [vmem:[%s119 + $0x10] sm:$0xff]
        %v5769 = vld [vmem:[%s119 + $0x18] sm:$0xff]
        %v5770 = vld [vmem:[%s119 + $0x20] sm:$0xff]
        %v5771 = vld [vmem:[%s119 + $0x28] sm:$0xff]
        %v5772 = vld [vmem:[%s119 + $0x30] sm:$0xff]
        %v5773 = vld [vmem:[%s119 + $0x38] sm:$0xff]
        %v5774 = vld [vmem:[%s119 + $0x40] sm:$0xff]
        %v5775 = vld [vmem:[%s119 + $0x48] sm:$0xff]
        %v5776 = vld [vmem:[%s119 + $0x50] sm:$0xff]
        %v5777 = vld [vmem:[%s119 + $0x58] sm:$0xff]
        %v5778 = vld [vmem:[%s119 + $0x60] sm:$0xff]
        %v5779 = vld [vmem:[%s119 + $0x68] sm:$0xff]
        %v5780 = vld [vmem:[%s119 + $0x70] sm:$0xff]
        %v5781 = vld [vmem:[%s119 + $0x78] sm:$0xff]
        %v5782 = vld [vmem:[%s119 + $0x80] sm:$0xff]
        %v5783 = vld [vmem:[%s119 + $0x88] sm:$0xff]
        %v5784 = vld [vmem:[%s119 + $0x90] sm:$0xff]
        %v5785 = vld [vmem:[%s119 + $0x98] sm:$0xff]
        %v5786 = vld [vmem:[%s119 + $0xa0] sm:$0xff]
        %v5787 = vld [vmem:[%s119 + $0xa8] sm:$0xff]
        %v5788 = vld [vmem:[%s119 + $0xb0] sm:$0xff]
        %v5789 = vld [vmem:[%s119 + $0xb8] sm:$0xff]
        %v5790 = vld [vmem:[%s119 + $0xc0] sm:$0xff]
        %v5791 = vld [vmem:[%s119 + $0xc8] sm:$0xff]
        %v5792 = vld [vmem:[%s119 + $0xd0] sm:$0xff]
        %v5793 = vld [vmem:[%s119 + $0xd8] sm:$0xff]
        %v5794 = vld [vmem:[%s119 + $0xe0] sm:$0xff]
        %v5795 = vld [vmem:[%s119 + $0xe8] sm:$0xff]
        %v5796 = vld [vmem:[%s119 + $0xf0] sm:$0xff]
        %v5797 = vld [vmem:[%s119 + $0xf8] sm:$0xff]
        %v5798 = vld [vmem:[%s119 + $0x100] sm:$0xff]
        %v5799 = vld [vmem:[%s119 + $0x108] sm:$0xff]
        %v5800 = vld [vmem:[%s119 + $0x110] sm:$0xff]
        %v5801 = vld [vmem:[%s119 + $0x118] sm:$0xff]
        %v5802 = vld [vmem:[%s119 + $0x120] sm:$0xff]
        %v5803 = vld [vmem:[%s119 + $0x128] sm:$0xff]
        %v5804 = vld [vmem:[%s119 + $0x130] sm:$0xff]
        %v5805 = vld [vmem:[%s119 + $0x138] sm:$0xff]
        %v5806 = vld [vmem:[%s119 + $0x140] sm:$0xff]
        %v5807 = vld [vmem:[%s119 + $0x148] sm:$0xff]
        %v5808 = vld [vmem:[%s119 + $0x150] sm:$0xff]
        %v5809 = vld [vmem:[%s119 + $0x158] sm:$0xff]
        %v5810 = vld [vmem:[%s119 + $0x160] sm:$0xff]
        %v5811 = vld [vmem:[%s119 + $0x168] sm:$0xff]
        %v5812 = vld [vmem:[%s119 + $0x170] sm:$0xff]
        %v5813 = vld [vmem:[%s119 + $0x178] sm:$0xff]
        %v5814 = vld [vmem:[%s119 + $0x180] sm:$0xff]
        %v5815 = vld [vmem:[%s119 + $0x188] sm:$0xff]
        %v5816 = vld [vmem:[%s119 + $0x190] sm:$0xff]
        %v5817 = vld [vmem:[%s119 + $0x198] sm:$0xff]
        %v5818 = vld [vmem:[%s119 + $0x1a0] sm:$0xff]
        %v5819 = vld [vmem:[%s119 + $0x1a8] sm:$0xff]
        %v5820 = vld [vmem:[%s119 + $0x1b0] sm:$0xff]
        %v5821 = vld [vmem:[%s119 + $0x1b8] sm:$0xff]
        %v5822 = vld [vmem:[%s119 + $0x1c0] sm:$0xff]
        %v5823 = vld [vmem:[%s119 + $0x1c8] sm:$0xff]
        %v5824 = vld [vmem:[%s119 + $0x1d0] sm:$0xff]
        %v5825 = vld [vmem:[%s119 + $0x1d8] sm:$0xff]
        %v5826 = vld [vmem:[%s119 + $0x1e0] sm:$0xff]
        %v5827 = vld [vmem:[%s119 + $0x1e8] sm:$0xff]
        %v5828 = vld [vmem:[%s119 + $0x1f0] sm:$0xff]
        %v5829 = vld [vmem:[%s119 + $0x1f8] sm:$0xff]
        %v5830 = vld [vmem:[%s119 + $0x200] sm:$0xff]
        %v5831 = vld [vmem:[%s119 + $0x208] sm:$0xff]
        %v5832 = vld [vmem:[%s119 + $0x210] sm:$0xff]
        %v5833 = vld [vmem:[%s119 + $0x218] sm:$0xff]
        %v5834 = vld [vmem:[%s119 + $0x220] sm:$0xff]
        %v5835 = vld [vmem:[%s119 + $0x228] sm:$0xff]
        %v5836 = vld [vmem:[%s119 + $0x230] sm:$0xff]
        %v5837 = vld [vmem:[%s119 + $0x238] sm:$0xff]
        %v5838 = vld [vmem:[%s119 + $0x240] sm:$0xff]
        %v5839 = vld [vmem:[%s119 + $0x248] sm:$0xff]
        %v5840 = vld [vmem:[%s119 + $0x250] sm:$0xff]
        %v5841 = vld [vmem:[%s119 + $0x258] sm:$0xff]
        %v5842 = vld [vmem:[%s119 + $0x260] sm:$0xff]
        %v5843 = vld [vmem:[%s119 + $0x268] sm:$0xff]
        %v5844 = vld [vmem:[%s119 + $0x270] sm:$0xff]
        %v5845 = vld [vmem:[%s119 + $0x278] sm:$0xff]
        %v5846 = vld [vmem:[%s119 + $0x280] sm:$0xff]
        %v5847 = vld [vmem:[%s119 + $0x288] sm:$0xff]
        %v5848 = vld [vmem:[%s119 + $0x290] sm:$0xff]
        %v5849 = vld [vmem:[%s119 + $0x298] sm:$0xff]
        %v5850 = vld [vmem:[%s119 + $0x2a0] sm:$0xff]
        %v5851 = vld [vmem:[%s119 + $0x2a8] sm:$0xff]
        %v5852 = vld [vmem:[%s119 + $0x2b0] sm:$0xff]
        %v5853 = vld [vmem:[%s119 + $0x2b8] sm:$0xff]
        %v5854 = vld [vmem:[%s119 + $0x2c0] sm:$0xff]
        %v5855 = vld [vmem:[%s119 + $0x2c8] sm:$0xff]
        %v5856 = vld [vmem:[%s119 + $0x2d0] sm:$0xff]
        %v5857 = vld [vmem:[%s119 + $0x2d8] sm:$0xff]
        %v5858 = vld [vmem:[%s119 + $0x2e0] sm:$0xff]
        %v5859 = vld [vmem:[%s119 + $0x2e8] sm:$0xff]
        %v5860 = vld [vmem:[%s119 + $0x2f0] sm:$0xff]
        %v5861 = vld [vmem:[%s119 + $0x2f8] sm:$0xff]
        %v5862 = vld [vmem:[%s119 + $0x300] sm:$0xff]
        %v5863 = vld [vmem:[%s119 + $0x308] sm:$0xff]
        %v5864 = vld [vmem:[%s119 + $0x310] sm:$0xff]
        %v5865 = vld [vmem:[%s119 + $0x318] sm:$0xff]
        %v5866 = vld [vmem:[%s119 + $0x320] sm:$0xff]
        %v5867 = vld [vmem:[%s119 + $0x328] sm:$0xff]
        %v5868 = vld [vmem:[%s119 + $0x330] sm:$0xff]
        %v5869 = vld [vmem:[%s119 + $0x338] sm:$0xff]
        %v5870 = vld [vmem:[%s119 + $0x340] sm:$0xff]
        %v5871 = vld [vmem:[%s119 + $0x348] sm:$0xff]
        %v5872 = vld [vmem:[%s119 + $0x350] sm:$0xff]
        %v5873 = vld [vmem:[%s119 + $0x358] sm:$0xff]
        %v5874 = vld [vmem:[%s119 + $0x360] sm:$0xff]
        %v5875 = vld [vmem:[%s119 + $0x368] sm:$0xff]
        %v5876 = vld [vmem:[%s119 + $0x370] sm:$0xff]
        %v5877 = vld [vmem:[%s119 + $0x378] sm:$0xff]
        %v5878 = vld [vmem:[%s119 + $0x380] sm:$0xff]
        %v5879 = vld [vmem:[%s119 + $0x388] sm:$0xff]
        %v5880 = vld [vmem:[%s119 + $0x390] sm:$0xff]
        %v5881 = vld [vmem:[%s119 + $0x398] sm:$0xff]
        %v5882 = vld [vmem:[%s119 + $0x3a0] sm:$0xff]
        %v5883 = vld [vmem:[%s119 + $0x3a8] sm:$0xff]
        %v5884 = vld [vmem:[%s119 + $0x3b0] sm:$0xff]
        %v5885 = vld [vmem:[%s119 + $0x3b8] sm:$0xff]
        %v5886 = vld [vmem:[%s119 + $0x3c0] sm:$0xff]
        %v5887 = vld [vmem:[%s119 + $0x3c8] sm:$0xff]
        %v5888 = vld [vmem:[%s119 + $0x3d0] sm:$0xff]
        %v5889 = vld [vmem:[%s119 + $0x3d8] sm:$0xff]
        %v5890 = vld [vmem:[%s119 + $0x3e0] sm:$0xff]
        %v5891 = vld [vmem:[%s119 + $0x3e8] sm:$0xff]
        %v5892 = vld [vmem:[%s119 + $0x3f0] sm:$0xff]
        %v5893 = vld [vmem:[%s119 + $0x3f8] sm:$0xff]
        %v5894 = vld [vmem:[%s119 + $0x400] sm:$0xff]
        %v5895 = vld [vmem:[%s119 + $0x408] sm:$0xff]
        %v5896 = vld [vmem:[%s119 + $0x410] sm:$0xff]
        %v5897 = vld [vmem:[%s119 + $0x418] sm:$0xff]
        %v5898 = vld [vmem:[%s119 + $0x420] sm:$0xff]
        %v5899 = vld [vmem:[%s119 + $0x428] sm:$0xff]
        %v5900 = vld [vmem:[%s119 + $0x430] sm:$0xff]
        %v5901 = vld [vmem:[%s119 + $0x438] sm:$0xff]
        %v5902 = vld [vmem:[%s119 + $0x440] sm:$0xff]
        %v5903 = vld [vmem:[%s119 + $0x448] sm:$0xff]
        %v5904 = vld [vmem:[%s119 + $0x450] sm:$0xff]
        %v5905 = vld [vmem:[%s119 + $0x458] sm:$0xff]
        %v5906 = vld [vmem:[%s119 + $0x460] sm:$0xff]
        %v5907 = vld [vmem:[%s119 + $0x468] sm:$0xff]
        %v5908 = vld [vmem:[%s119 + $0x470] sm:$0xff]
        %v5909 = vld [vmem:[%s119 + $0x478] sm:$0xff]
        %v5910 = vld [vmem:[%s119 + $0x480] sm:$0xff]
        %v5911 = vld [vmem:[%s119 + $0x488] sm:$0xff]
        %v5912 = vld [vmem:[%s119 + $0x490] sm:$0xff]
        %v5913 = vld [vmem:[%s119 + $0x498] sm:$0xff]
        %v5914 = vld [vmem:[%s119 + $0x4a0] sm:$0xff]
        %v5915 = vld [vmem:[%s119 + $0x4a8] sm:$0xff]
        %v5916 = vld [vmem:[%s119 + $0x4b0] sm:$0xff]
        %v5917 = vld [vmem:[%s119 + $0x4b8] sm:$0xff]
        %v5918 = vld [vmem:[%s119 + $0x4c0] sm:$0xff]
        %v5919 = vld [vmem:[%s119 + $0x4c8] sm:$0xff]
        %v5920 = vld [vmem:[%s119 + $0x4d0] sm:$0xff]
        %v5921 = vld [vmem:[%s119 + $0x4d8] sm:$0xff]
        %v5922 = vld [vmem:[%s119 + $0x4e0] sm:$0xff]
        %v5923 = vld [vmem:[%s119 + $0x4e8] sm:$0xff]
        %v5924 = vld [vmem:[%s119 + $0x4f0] sm:$0xff]
        %v5925 = vld [vmem:[%s119 + $0x4f8] sm:$0xff]
        %v5926 = vld [vmem:[%s119 + $0x500] sm:$0xff]
        %v5927 = vld [vmem:[%s119 + $0x508] sm:$0xff]
        %v5928 = vld [vmem:[%s119 + $0x510] sm:$0xff]
        %v5929 = vld [vmem:[%s119 + $0x518] sm:$0xff]
        %v5930 = vld [vmem:[%s119 + $0x520] sm:$0xff]
        %v5931 = vld [vmem:[%s119 + $0x528] sm:$0xff]
        %v5932 = vld [vmem:[%s119 + $0x530] sm:$0xff]
        %v5933 = vld [vmem:[%s119 + $0x538] sm:$0xff]
        %v5934 = vld [vmem:[%s119 + $0x540] sm:$0xff]
        %v5935 = vld [vmem:[%s119 + $0x548] sm:$0xff]
        %v5936 = vld [vmem:[%s119 + $0x550] sm:$0xff]
        %v5937 = vld [vmem:[%s119 + $0x558] sm:$0xff]
        %v5938 = vld [vmem:[%s119 + $0x560] sm:$0xff]
        %v5939 = vld [vmem:[%s119 + $0x568] sm:$0xff]
        %v5940 = vld [vmem:[%s119 + $0x570] sm:$0xff]
        %v5941 = vld [vmem:[%s119 + $0x578] sm:$0xff]
        %v5942 = vld [vmem:[%s119 + $0x580] sm:$0xff]
        %v5943 = vld [vmem:[%s119 + $0x588] sm:$0xff]
        %v5944 = vld [vmem:[%s119 + $0x590] sm:$0xff]
        %v5945 = vld [vmem:[%s119 + $0x598] sm:$0xff]
        %v5946 = vld [vmem:[%s119 + $0x5a0] sm:$0xff]
        %v5947 = vld [vmem:[%s119 + $0x5a8] sm:$0xff]
        %v5948 = vld [vmem:[%s119 + $0x5b0] sm:$0xff]
        %v5949 = vld [vmem:[%s119 + $0x5b8] sm:$0xff]
        %v5950 = vld [vmem:[%s119 + $0x5c0] sm:$0xff]
        %v5951 = vld [vmem:[%s119 + $0x5c8] sm:$0xff]
        %v5952 = vld [vmem:[%s119 + $0x5d0] sm:$0xff]
        %v5953 = vld [vmem:[%s119 + $0x5d8] sm:$0xff]
        %v5954 = vld [vmem:[%s119 + $0x5e0] sm:$0xff]
        %v5955 = vld [vmem:[%s119 + $0x5e8] sm:$0xff]
        %v5956 = vld [vmem:[%s119 + $0x5f0] sm:$0xff]
        %v5957 = vld [vmem:[%s119 + $0x5f8] sm:$0xff]
        %v5958 = vld [vmem:[%s119 + $0x600] sm:$0xff]
        %v5959 = vld [vmem:[%s119 + $0x608] sm:$0xff]
        %v5960 = vld [vmem:[%s119 + $0x610] sm:$0xff]
        %v5961 = vld [vmem:[%s119 + $0x618] sm:$0xff]
        %v5962 = vld [vmem:[%s119 + $0x620] sm:$0xff]
        %v5963 = vld [vmem:[%s119 + $0x628] sm:$0xff]
        %v5964 = vld [vmem:[%s119 + $0x630] sm:$0xff]
        %v5965 = vld [vmem:[%s119 + $0x638] sm:$0xff]
        %v5966 = vld [vmem:[%s119 + $0x640] sm:$0xff]
        %v5967 = vld [vmem:[%s119 + $0x648] sm:$0xff]
        %v5968 = vld [vmem:[%s119 + $0x650] sm:$0xff]
        %v5969 = vld [vmem:[%s119 + $0x658] sm:$0xff]
        %v5970 = vld [vmem:[%s119 + $0x660] sm:$0xff]
        %v5971 = vld [vmem:[%s119 + $0x668] sm:$0xff]
        %v5972 = vld [vmem:[%s119 + $0x670] sm:$0xff]
        %v5973 = vld [vmem:[%s119 + $0x678] sm:$0xff]
        %v5974 = vld [vmem:[%s119 + $0x680] sm:$0xff]
        %v5975 = vld [vmem:[%s119 + $0x688] sm:$0xff]
        %v5976 = vld [vmem:[%s119 + $0x690] sm:$0xff]
        %v5977 = vld [vmem:[%s119 + $0x698] sm:$0xff]
        %v5978 = vld [vmem:[%s119 + $0x6a0] sm:$0xff]
        %v5979 = vld [vmem:[%s119 + $0x6a8] sm:$0xff]
        %v5980 = vld [vmem:[%s119 + $0x6b0] sm:$0xff]
        %v5981 = vld [vmem:[%s119 + $0x6b8] sm:$0xff]
        %v5982 = vld [vmem:[%s119 + $0x6c0] sm:$0xff]
        %v5983 = vld [vmem:[%s119 + $0x6c8] sm:$0xff]
        %v5984 = vld [vmem:[%s119 + $0x6d0] sm:$0xff]
        %v5985 = vld [vmem:[%s119 + $0x6d8] sm:$0xff]
        %v5986 = vld [vmem:[%s119 + $0x6e0] sm:$0xff]
        %v5987 = vld [vmem:[%s119 + $0x6e8] sm:$0xff]
        %v5988 = vld [vmem:[%s119 + $0x6f0] sm:$0xff]
        %v5989 = vld [vmem:[%s119 + $0x6f8] sm:$0xff]
        %v5990 = vld [vmem:[%s119 + $0x700] sm:$0xff]
        %v5991 = vld [vmem:[%s119 + $0x708] sm:$0xff]
        %v5992 = vld [vmem:[%s119 + $0x710] sm:$0xff]
        %v5993 = vld [vmem:[%s119 + $0x718] sm:$0xff]
        %v5994 = vld [vmem:[%s119 + $0x720] sm:$0xff]
        %v5995 = vld [vmem:[%s119 + $0x728] sm:$0xff]
        %v5996 = vld [vmem:[%s119 + $0x730] sm:$0xff]
        %v5997 = vld [vmem:[%s119 + $0x738] sm:$0xff]
        %v5998 = vld [vmem:[%s119 + $0x740] sm:$0xff]
        %v5999 = vld [vmem:[%s119 + $0x748] sm:$0xff]
        %v6000 = vld [vmem:[%s119 + $0x750] sm:$0xff]
        %v6001 = vld [vmem:[%s119 + $0x758] sm:$0xff]
        %v6002 = vld [vmem:[%s119 + $0x760] sm:$0xff]
        %v6003 = vld [vmem:[%s119 + $0x768] sm:$0xff]
        %v6004 = vld [vmem:[%s119 + $0x770] sm:$0xff]
        %v6005 = vld [vmem:[%s119 + $0x778] sm:$0xff]
        %v6006 = vld [vmem:[%s119 + $0x780] sm:$0xff]
        %v6007 = vld [vmem:[%s119 + $0x788] sm:$0xff]
        %v6008 = vld [vmem:[%s119 + $0x790] sm:$0xff]
        %v6009 = vld [vmem:[%s119 + $0x798] sm:$0xff]
        %v6010 = vld [vmem:[%s119 + $0x7a0] sm:$0xff]
        %v6011 = vld [vmem:[%s119 + $0x7a8] sm:$0xff]
        %v6012 = vld [vmem:[%s119 + $0x7b0] sm:$0xff]
        %v6013 = vld [vmem:[%s119 + $0x7b8] sm:$0xff]
        %v6014 = vld [vmem:[%s119 + $0x7c0] sm:$0xff]
        %v6015 = vld [vmem:[%s119 + $0x7c8] sm:$0xff]
        %v6016 = vld [vmem:[%s119 + $0x7d0] sm:$0xff]
        %v6017 = vld [vmem:[%s119 + $0x7d8] sm:$0xff]
        %v6018 = vld [vmem:[%s119 + $0x7e0] sm:$0xff]
        %v6019 = vld [vmem:[%s119 + $0x7e8] sm:$0xff]
        %v6020 = vld [vmem:[%s119 + $0x7f0] sm:$0xff]
        %v6021 = vld [vmem:[%s119 + $0x7f8] sm:$0xff]
        %v6022 = vld [vmem:[%s119 + $0x800] sm:$0xff]
        %v6023 = vld [vmem:[%s119 + $0x808] sm:$0xff]
        %v6024 = vld [vmem:[%s119 + $0x810] sm:$0xff]
        %v6025 = vld [vmem:[%s119 + $0x818] sm:$0xff]
        %v6026 = vld [vmem:[%s119 + $0x820] sm:$0xff]
        %v6027 = vld [vmem:[%s119 + $0x828] sm:$0xff]
        %v6028 = vld [vmem:[%s119 + $0x830] sm:$0xff]
        %v6029 = vld [vmem:[%s119 + $0x838] sm:$0xff]
        %v6030 = vld [vmem:[%s119 + $0x840] sm:$0xff]
        %v6031 = vld [vmem:[%s119 + $0x848] sm:$0xff]
        %v6032 = vld [vmem:[%s119 + $0x850] sm:$0xff]
        %v6033 = vld [vmem:[%s119 + $0x858] sm:$0xff]
        %v6034 = vld [vmem:[%s119 + $0x860] sm:$0xff]
        %v6035 = vld [vmem:[%s119 + $0x868] sm:$0xff]
        %v6036 = vld [vmem:[%s119 + $0x870] sm:$0xff]
        %v6037 = vld [vmem:[%s119 + $0x878] sm:$0xff]
        %v6038 = vld [vmem:[%s119 + $0x880] sm:$0xff]
        %v6039 = vld [vmem:[%s119 + $0x888] sm:$0xff]
        %v6040 = vld [vmem:[%s119 + $0x890] sm:$0xff]
        %v6041 = vld [vmem:[%s119 + $0x898] sm:$0xff]
        %v6042 = vld [vmem:[%s119 + $0x8a0] sm:$0xff]
        %v6043 = vld [vmem:[%s119 + $0x8a8] sm:$0xff]
        %v6044 = vld [vmem:[%s119 + $0x8b0] sm:$0xff]
        %v6045 = vld [vmem:[%s119 + $0x8b8] sm:$0xff]
        %v6046 = vld [vmem:[%s119 + $0x8c0] sm:$0xff]
        %v6047 = vld [vmem:[%s119 + $0x8c8] sm:$0xff]
        %v6048 = vld [vmem:[%s119 + $0x8d0] sm:$0xff]
        %v6049 = vld [vmem:[%s119 + $0x8d8] sm:$0xff]
        %v6050 = vld [vmem:[%s119 + $0x8e0] sm:$0xff]
        %v6051 = vld [vmem:[%s119 + $0x8e8] sm:$0xff]
        %v6052 = vld [vmem:[%s119 + $0x8f0] sm:$0xff]
        %v6053 = vld [vmem:[%s119 + $0x8f8] sm:$0xff]
        %v6054 = vld [vmem:[%s119 + $0x900] sm:$0xff]
        %v6055 = vld [vmem:[%s119 + $0x908] sm:$0xff]
        %v6056 = vld [vmem:[%s119 + $0x910] sm:$0xff]
        %v6057 = vld [vmem:[%s119 + $0x918] sm:$0xff]
        %v6058 = vld [vmem:[%s119 + $0x920] sm:$0xff]
        %v6059 = vld [vmem:[%s119 + $0x928] sm:$0xff]
        %v6060 = vld [vmem:[%s119 + $0x930] sm:$0xff]
        %v6061 = vld [vmem:[%s119 + $0x938] sm:$0xff]
        %v6062 = vld [vmem:[%s119 + $0x940] sm:$0xff]
        %v6063 = vld [vmem:[%s119 + $0x948] sm:$0xff]
        %v6064 = vld [vmem:[%s119 + $0x950] sm:$0xff]
        %v6065 = vld [vmem:[%s119 + $0x958] sm:$0xff]
        %v6066 = vld [vmem:[%s119 + $0x960] sm:$0xff]
        %v6067 = vld [vmem:[%s119 + $0x968] sm:$0xff]
        %v6068 = vld [vmem:[%s119 + $0x970] sm:$0xff]
        %v6069 = vld [vmem:[%s119 + $0x978] sm:$0xff]
        %v6070 = vld [vmem:[%s119 + $0x980] sm:$0xff]
        %v6071 = vld [vmem:[%s119 + $0x988] sm:$0xff]
        %v6072 = vld [vmem:[%s119 + $0x990] sm:$0xff]
        %v6073 = vld [vmem:[%s119 + $0x998] sm:$0xff]
        %v6074 = vld [vmem:[%s119 + $0x9a0] sm:$0xff]
        %v6075 = vld [vmem:[%s119 + $0x9a8] sm:$0xff]
        %v6076 = vld [vmem:[%s119 + $0x9b0] sm:$0xff]
        %v6077 = vld [vmem:[%s119 + $0x9b8] sm:$0xff]
        %v6078 = vld [vmem:[%s119 + $0x9c0] sm:$0xff]
        %v6079 = vld [vmem:[%s119 + $0x9c8] sm:$0xff]
        %v6080 = vld [vmem:[%s119 + $0x9d0] sm:$0xff]
        %v6081 = vld [vmem:[%s119 + $0x9d8] sm:$0xff]
        %v6082 = vld [vmem:[%s119 + $0x9e0] sm:$0xff]
        %v6083 = vld [vmem:[%s119 + $0x9e8] sm:$0xff]
        %v6084 = vld [vmem:[%s119 + $0x9f0] sm:$0xff]
        %v6085 = vld [vmem:[%s119 + $0x9f8] sm:$0xff]
        %v6086 = vld [vmem:[%s119 + $0xa00] sm:$0xff]
        %v6087 = vld [vmem:[%s119 + $0xa08] sm:$0xff]
        %v6088 = vld [vmem:[%s119 + $0xa10] sm:$0xff]
        %v6089 = vld [vmem:[%s119 + $0xa18] sm:$0xff]
        %v6090 = vld [vmem:[%s119 + $0xa20] sm:$0xff]
        %v6091 = vld [vmem:[%s119 + $0xa28] sm:$0xff]
        %v6092 = vld [vmem:[%s119 + $0xa30] sm:$0xff]
        %v6093 = vld [vmem:[%s119 + $0xa38] sm:$0xff]
        %v6094 = vld [vmem:[%s119 + $0xa40] sm:$0xff]
        %v6095 = vld [vmem:[%s119 + $0xa48] sm:$0xff]
        %v6096 = vld [vmem:[%s119 + $0xa50] sm:$0xff]
        %v6097 = vld [vmem:[%s119 + $0xa58] sm:$0xff]
        %v6098 = vld [vmem:[%s119 + $0xa60] sm:$0xff]
        %v6099 = vld [vmem:[%s119 + $0xa68] sm:$0xff]
        %v6100 = vld [vmem:[%s119 + $0xa70] sm:$0xff]
        %v6101 = vld [vmem:[%s119 + $0xa78] sm:$0xff]
        %v6102 = vld [vmem:[%s119 + $0xa80] sm:$0xff]
        %v6103 = vld [vmem:[%s119 + $0xa88] sm:$0xff]
        %v6104 = vld [vmem:[%s119 + $0xa90] sm:$0xff]
        %v6105 = vld [vmem:[%s119 + $0xa98] sm:$0xff]
        %v6106 = vld [vmem:[%s119 + $0xaa0] sm:$0xff]
        %v6107 = vld [vmem:[%s119 + $0xaa8] sm:$0xff]
        %v6108 = vld [vmem:[%s119 + $0xab0] sm:$0xff]
        %v6109 = vld [vmem:[%s119 + $0xab8] sm:$0xff]
        %v6110 = vld [vmem:[%s119 + $0xac0] sm:$0xff]
        %v6111 = vld [vmem:[%s119 + $0xac8] sm:$0xff]
        %v6112 = vld [vmem:[%s119 + $0xad0] sm:$0xff]
        %v6113 = vld [vmem:[%s119 + $0xad8] sm:$0xff]
        %v6114 = vld [vmem:[%s119 + $0xae0] sm:$0xff]
        %v6115 = vld [vmem:[%s119 + $0xae8] sm:$0xff]
        %v6116 = vld [vmem:[%s119 + $0xaf0] sm:$0xff]
        %v6117 = vld [vmem:[%s119 + $0xaf8] sm:$0xff]
        %v6118 = vld [vmem:[%s119 + $0xb00] sm:$0xff]
        %v6119 = vld [vmem:[%s119 + $0xb08] sm:$0xff]
        %v6120 = vld [vmem:[%s119 + $0xb10] sm:$0xff]
        %v6121 = vld [vmem:[%s119 + $0xb18] sm:$0xff]
        %v6122 = vld [vmem:[%s119 + $0xb20] sm:$0xff]
        %v6123 = vld [vmem:[%s119 + $0xb28] sm:$0xff]
        %v6124 = vld [vmem:[%s119 + $0xb30] sm:$0xff]
        %v6125 = vld [vmem:[%s119 + $0xb38] sm:$0xff]
        %v6126 = vld [vmem:[%s119 + $0xb40] sm:$0xff]
        %v6127 = vld [vmem:[%s119 + $0xb48] sm:$0xff]
        %v6128 = vld [vmem:[%s119 + $0xb50] sm:$0xff]
        %v6129 = vld [vmem:[%s119 + $0xb58] sm:$0xff]
        %v6130 = vld [vmem:[%s119 + $0xb60] sm:$0xff]
        %v6131 = vld [vmem:[%s119 + $0xb68] sm:$0xff]
        %v6132 = vld [vmem:[%s119 + $0xb70] sm:$0xff]
        %v6133 = vld [vmem:[%s119 + $0xb78] sm:$0xff]
        %v6134 = vld [vmem:[%s119 + $0xb80] sm:$0xff]
        %v6135 = vld [vmem:[%s119 + $0xb88] sm:$0xff]
        %v6136 = vld [vmem:[%s119 + $0xb90] sm:$0xff]
        %v6137 = vld [vmem:[%s119 + $0xb98] sm:$0xff]
        %v6138 = vld [vmem:[%s119 + $0xba0] sm:$0xff]
        %v6139 = vld [vmem:[%s119 + $0xba8] sm:$0xff]
        %v6140 = vld [vmem:[%s119 + $0xbb0] sm:$0xff]
        %v6141 = vld [vmem:[%s119 + $0xbb8] sm:$0xff]
        %v6142 = vld [vmem:[%s119 + $0xbc0] sm:$0xff]
        %v6143 = vld [vmem:[%s119 + $0xbc8] sm:$0xff]
        %v6144 = vld [vmem:[%s119 + $0xbd0] sm:$0xff]
        %v6145 = vld [vmem:[%s119 + $0xbd8] sm:$0xff]
        %v6146 = vld [vmem:[%s119 + $0xbe0] sm:$0xff]
        %v6147 = vld [vmem:[%s119 + $0xbe8] sm:$0xff]
        %v6148 = vld [vmem:[%s119 + $0xbf0] sm:$0xff]
        %v6149 = vld [vmem:[%s119 + $0xbf8] sm:$0xff]
        %v6150 = vld [vmem:[%s119 + $0xc00] sm:$0xff]
        %v6151 = vld [vmem:[%s119 + $0xc08] sm:$0xff]
        %v6152 = vld [vmem:[%s119 + $0xc10] sm:$0xff]
        %v6153 = vld [vmem:[%s119 + $0xc18] sm:$0xff]
        %v6154 = vld [vmem:[%s119 + $0xc20] sm:$0xff]
        %v6155 = vld [vmem:[%s119 + $0xc28] sm:$0xff]
        %v6156 = vld [vmem:[%s119 + $0xc30] sm:$0xff]
        %v6157 = vld [vmem:[%s119 + $0xc38] sm:$0xff]
        %v6158 = vld [vmem:[%s119 + $0xc40] sm:$0xff]
        %v6159 = vld [vmem:[%s119 + $0xc48] sm:$0xff]
        %v6160 = vld [vmem:[%s119 + $0xc50] sm:$0xff]
        %v6161 = vld [vmem:[%s119 + $0xc58] sm:$0xff]
        %v6162 = vld [vmem:[%s119 + $0xc60] sm:$0xff]
        %v6163 = vld [vmem:[%s119 + $0xc68] sm:$0xff]
        %v6164 = vld [vmem:[%s119 + $0xc70] sm:$0xff]
        %v6165 = vld [vmem:[%s119 + $0xc78] sm:$0xff]
        %v6166 = vld [vmem:[%s119 + $0xc80] sm:$0xff]
        %v6167 = vld [vmem:[%s119 + $0xc88] sm:$0xff]
        %v6168 = vld [vmem:[%s119 + $0xc90] sm:$0xff]
        %v6169 = vld [vmem:[%s119 + $0xc98] sm:$0xff]
        %v6170 = vld [vmem:[%s119 + $0xca0] sm:$0xff]
        %v6171 = vld [vmem:[%s119 + $0xca8] sm:$0xff]
        %v6172 = vld [vmem:[%s119 + $0xcb0] sm:$0xff]
        %v6173 = vld [vmem:[%s119 + $0xcb8] sm:$0xff]
        %v6174 = vld [vmem:[%s119 + $0xcc0] sm:$0xff]
        %v6175 = vld [vmem:[%s119 + $0xcc8] sm:$0xff]
        %v6176 = vld [vmem:[%s119 + $0xcd0] sm:$0xff]
        %v6177 = vld [vmem:[%s119 + $0xcd8] sm:$0xff]
        %v6178 = vld [vmem:[%s119 + $0xce0] sm:$0xff]
        %v6179 = vld [vmem:[%s119 + $0xce8] sm:$0xff]
        %v6180 = vld [vmem:[%s119 + $0xcf0] sm:$0xff]
        %v6181 = vld [vmem:[%s119 + $0xcf8] sm:$0xff]
        %v6182 = vld [vmem:[%s119 + $0xd00] sm:$0xff]
        %v6183 = vld [vmem:[%s119 + $0xd08] sm:$0xff]
        %v6184 = vld [vmem:[%s119 + $0xd10] sm:$0xff]
        %v6185 = vld [vmem:[%s119 + $0xd18] sm:$0xff]
        %v6186 = vld [vmem:[%s119 + $0xd20] sm:$0xff]
        %v6187 = vld [vmem:[%s119 + $0xd28] sm:$0xff]
        %v6188 = vld [vmem:[%s119 + $0xd30] sm:$0xff]
        %v6189 = vld [vmem:[%s119 + $0xd38] sm:$0xff]
        %v6190 = vld [vmem:[%s119 + $0xd40] sm:$0xff]
        %v6191 = vld [vmem:[%s119 + $0xd48] sm:$0xff]
        %v6192 = vld [vmem:[%s119 + $0xd50] sm:$0xff]
        %v6193 = vld [vmem:[%s119 + $0xd58] sm:$0xff]
        %v6194 = vld [vmem:[%s119 + $0xd60] sm:$0xff]
        %v6195 = vld [vmem:[%s119 + $0xd68] sm:$0xff]
        %v6196 = vld [vmem:[%s119 + $0xd70] sm:$0xff]
        %v6197 = vld [vmem:[%s119 + $0xd78] sm:$0xff]
        %v6198 = vmul.f32 %v5766, 1.1111112
        %v6199 = vmul.f32 %v5767, 1.1111112
        %v6200 = vmul.f32 %v5768, 1.1111112
        %v6201 = vmul.f32 %v5769, 1.1111112
        %v6202 = vmul.f32 %v5770, 1.1111112
        %v6203 = vmul.f32 %v5771, 1.1111112
        %v6204 = vmul.f32 %v5772, 1.1111112
        %v6205 = vmul.f32 %v5773, 1.1111112
        %v6206 = vmul.f32 %v5774, 1.1111112
        %v6207 = vmul.f32 %v5775, 1.1111112
        %v6208 = vmul.f32 %v5776, 1.1111112
        %v6209 = vmul.f32 %v5777, 1.1111112
        %v6210 = vmul.f32 %v5778, 1.1111112
        %v6211 = vmul.f32 %v5779, 1.1111112
        %v6212 = vmul.f32 %v5780, 1.1111112
        %v6213 = vmul.f32 %v5781, 1.1111112
        %v6214 = vmul.f32 %v5782, 1.1111112
        %v6215 = vmul.f32 %v5783, 1.1111112
        %v6216 = vmul.f32 %v5784, 1.1111112
        %v6217 = vmul.f32 %v5785, 1.1111112
        %v6218 = vmul.f32 %v5786, 1.1111112
        %v6219 = vmul.f32 %v5787, 1.1111112
        %v6220 = vmul.f32 %v5788, 1.1111112
        %v6221 = vmul.f32 %v5789, 1.1111112
        %v6222 = vmul.f32 %v5790, 1.1111112
        %v6223 = vmul.f32 %v5791, 1.1111112
        %v6224 = vmul.f32 %v5792, 1.1111112
        %v6225 = vmul.f32 %v5793, 1.1111112
        %v6226 = vmul.f32 %v5794, 1.1111112
        %v6227 = vmul.f32 %v5795, 1.1111112
        %v6228 = vmul.f32 %v5796, 1.1111112
        %v6229 = vmul.f32 %v5797, 1.1111112
        %v6230 = vmul.f32 %v5798, 1.1111112
        %v6231 = vmul.f32 %v5799, 1.1111112
        %v6232 = vmul.f32 %v5800, 1.1111112
        %v6233 = vmul.f32 %v5801, 1.1111112
        %v6234 = vmul.f32 %v5802, 1.1111112
        %v6235 = vmul.f32 %v5803, 1.1111112
        %v6236 = vmul.f32 %v5804, 1.1111112
        %v6237 = vmul.f32 %v5805, 1.1111112
        %v6238 = vmul.f32 %v5806, 1.1111112
        %v6239 = vmul.f32 %v5807, 1.1111112
        %v6240 = vmul.f32 %v5808, 1.1111112
        %v6241 = vmul.f32 %v5809, 1.1111112
        %v6242 = vmul.f32 %v5810, 1.1111112
        %v6243 = vmul.f32 %v5811, 1.1111112
        %v6244 = vmul.f32 %v5812, 1.1111112
        %v6245 = vmul.f32 %v5813, 1.1111112
        %v6246 = vmul.f32 %v5814, 1.1111112
        %v6247 = vmul.f32 %v5815, 1.1111112
        %v6248 = vmul.f32 %v5816, 1.1111112
        %v6249 = vmul.f32 %v5817, 1.1111112
        %v6250 = vmul.f32 %v5818, 1.1111112
        %v6251 = vmul.f32 %v5819, 1.1111112
        %v6252 = vmul.f32 %v5820, 1.1111112
        %v6253 = vmul.f32 %v5821, 1.1111112
        %v6254 = vmul.f32 %v5822, 1.1111112
        %v6255 = vmul.f32 %v5823, 1.1111112
        %v6256 = vmul.f32 %v5824, 1.1111112
        %v6257 = vmul.f32 %v5825, 1.1111112
        %v6258 = vmul.f32 %v5826, 1.1111112
        %v6259 = vmul.f32 %v5827, 1.1111112
        %v6260 = vmul.f32 %v5828, 1.1111112
        %v6261 = vmul.f32 %v5829, 1.1111112
        %v6262 = vmul.f32 %v5830, 1.1111112
        %v6263 = vmul.f32 %v5831, 1.1111112
        %v6264 = vmul.f32 %v5832, 1.1111112
        %v6265 = vmul.f32 %v5833, 1.1111112
        %v6266 = vmul.f32 %v5834, 1.1111112
        %v6267 = vmul.f32 %v5835, 1.1111112
        %v6268 = vmul.f32 %v5836, 1.1111112
        %v6269 = vmul.f32 %v5837, 1.1111112
        %v6270 = vmul.f32 %v5838, 1.1111112
        %v6271 = vmul.f32 %v5839, 1.1111112
        %v6272 = vmul.f32 %v5840, 1.1111112
        %v6273 = vmul.f32 %v5841, 1.1111112
        %v6274 = vmul.f32 %v5842, 1.1111112
        %v6275 = vmul.f32 %v5843, 1.1111112
        %v6276 = vmul.f32 %v5844, 1.1111112
        %v6277 = vmul.f32 %v5845, 1.1111112
        %v6278 = vmul.f32 %v5846, 1.1111112
        %v6279 = vmul.f32 %v5847, 1.1111112
        %v6280 = vmul.f32 %v5848, 1.1111112
        %v6281 = vmul.f32 %v5849, 1.1111112
        %v6282 = vmul.f32 %v5850, 1.1111112
        %v6283 = vmul.f32 %v5851, 1.1111112
        %v6284 = vmul.f32 %v5852, 1.1111112
        %v6285 = vmul.f32 %v5853, 1.1111112
        %v6286 = vmul.f32 %v5854, 1.1111112
        %v6287 = vmul.f32 %v5855, 1.1111112
        %v6288 = vmul.f32 %v5856, 1.1111112
        %v6289 = vmul.f32 %v5857, 1.1111112
        %v6290 = vmul.f32 %v5858, 1.1111112
        %v6291 = vmul.f32 %v5859, 1.1111112
        %v6292 = vmul.f32 %v5860, 1.1111112
        %v6293 = vmul.f32 %v5861, 1.1111112
        %v6294 = vmul.f32 %v5862, 1.1111112
        %v6295 = vmul.f32 %v5863, 1.1111112
        %v6296 = vmul.f32 %v5864, 1.1111112
        %v6297 = vmul.f32 %v5865, 1.1111112
        %v6298 = vmul.f32 %v5866, 1.1111112
        %v6299 = vmul.f32 %v5867, 1.1111112
        %v6300 = vmul.f32 %v5868, 1.1111112
        %v6301 = vmul.f32 %v5869, 1.1111112
        %v6302 = vmul.f32 %v5870, 1.1111112
        %v6303 = vmul.f32 %v5871, 1.1111112
        %v6304 = vmul.f32 %v5872, 1.1111112
        %v6305 = vmul.f32 %v5873, 1.1111112
        %v6306 = vmul.f32 %v5874, 1.1111112
        %v6307 = vmul.f32 %v5875, 1.1111112
        %v6308 = vmul.f32 %v5876, 1.1111112
        %v6309 = vmul.f32 %v5877, 1.1111112
        %v6310 = vmul.f32 %v5878, 1.1111112
        %v6311 = vmul.f32 %v5879, 1.1111112
        %v6312 = vmul.f32 %v5880, 1.1111112
        %v6313 = vmul.f32 %v5881, 1.1111112
        %v6314 = vmul.f32 %v5882, 1.1111112
        %v6315 = vmul.f32 %v5883, 1.1111112
        %v6316 = vmul.f32 %v5884, 1.1111112
        %v6317 = vmul.f32 %v5885, 1.1111112
        %v6318 = vmul.f32 %v5886, 1.1111112
        %v6319 = vmul.f32 %v5887, 1.1111112
        %v6320 = vmul.f32 %v5888, 1.1111112
        %v6321 = vmul.f32 %v5889, 1.1111112
        %v6322 = vmul.f32 %v5890, 1.1111112
        %v6323 = vmul.f32 %v5891, 1.1111112
        %v6324 = vmul.f32 %v5892, 1.1111112
        %v6325 = vmul.f32 %v5893, 1.1111112
        %v6326 = vmul.f32 %v5894, 1.1111112
        %v6327 = vmul.f32 %v5895, 1.1111112
        %v6328 = vmul.f32 %v5896, 1.1111112
        %v6329 = vmul.f32 %v5897, 1.1111112
        %v6330 = vmul.f32 %v5898, 1.1111112
        %v6331 = vmul.f32 %v5899, 1.1111112
        %v6332 = vmul.f32 %v5900, 1.1111112
        %v6333 = vmul.f32 %v5901, 1.1111112
        %v6334 = vmul.f32 %v5902, 1.1111112
        %v6335 = vmul.f32 %v5903, 1.1111112
        %v6336 = vmul.f32 %v5904, 1.1111112
        %v6337 = vmul.f32 %v5905, 1.1111112
        %v6338 = vmul.f32 %v5906, 1.1111112
        %v6339 = vmul.f32 %v5907, 1.1111112
        %v6340 = vmul.f32 %v5908, 1.1111112
        %v6341 = vmul.f32 %v5909, 1.1111112
        %v6342 = vmul.f32 %v5910, 1.1111112
        %v6343 = vmul.f32 %v5911, 1.1111112
        %v6344 = vmul.f32 %v5912, 1.1111112
        %v6345 = vmul.f32 %v5913, 1.1111112
        %v6346 = vmul.f32 %v5914, 1.1111112
        %v6347 = vmul.f32 %v5915, 1.1111112
        %v6348 = vmul.f32 %v5916, 1.1111112
        %v6349 = vmul.f32 %v5917, 1.1111112
        %v6350 = vmul.f32 %v5918, 1.1111112
        %v6351 = vmul.f32 %v5919, 1.1111112
        %v6352 = vmul.f32 %v5920, 1.1111112
        %v6353 = vmul.f32 %v5921, 1.1111112
        %v6354 = vmul.f32 %v5922, 1.1111112
        %v6355 = vmul.f32 %v5923, 1.1111112
        %v6356 = vmul.f32 %v5924, 1.1111112
        %v6357 = vmul.f32 %v5925, 1.1111112
        %v6358 = vmul.f32 %v5926, 1.1111112
        %v6359 = vmul.f32 %v5927, 1.1111112
        %v6360 = vmul.f32 %v5928, 1.1111112
        %v6361 = vmul.f32 %v5929, 1.1111112
        %v6362 = vmul.f32 %v5930, 1.1111112
        %v6363 = vmul.f32 %v5931, 1.1111112
        %v6364 = vmul.f32 %v5932, 1.1111112
        %v6365 = vmul.f32 %v5933, 1.1111112
        %v6366 = vmul.f32 %v5934, 1.1111112
        %v6367 = vmul.f32 %v5935, 1.1111112
        %v6368 = vmul.f32 %v5936, 1.1111112
        %v6369 = vmul.f32 %v5937, 1.1111112
        %v6370 = vmul.f32 %v5938, 1.1111112
        %v6371 = vmul.f32 %v5939, 1.1111112
        %v6372 = vmul.f32 %v5940, 1.1111112
        %v6373 = vmul.f32 %v5941, 1.1111112
        %v6374 = vmul.f32 %v5942, 1.1111112
        %v6375 = vmul.f32 %v5943, 1.1111112
        %v6376 = vmul.f32 %v5944, 1.1111112
        %v6377 = vmul.f32 %v5945, 1.1111112
        %v6378 = vmul.f32 %v5946, 1.1111112
        %v6379 = vmul.f32 %v5947, 1.1111112
        %v6380 = vmul.f32 %v5948, 1.1111112
        %v6381 = vmul.f32 %v5949, 1.1111112
        %v6382 = vmul.f32 %v5950, 1.1111112
        %v6383 = vmul.f32 %v5951, 1.1111112
        %v6384 = vmul.f32 %v5952, 1.1111112
        %v6385 = vmul.f32 %v5953, 1.1111112
        %v6386 = vmul.f32 %v5954, 1.1111112
        %v6387 = vmul.f32 %v5955, 1.1111112
        %v6388 = vmul.f32 %v5956, 1.1111112
        %v6389 = vmul.f32 %v5957, 1.1111112
        %v6390 = vmul.f32 %v5958, 1.1111112
        %v6391 = vmul.f32 %v5959, 1.1111112
        %v6392 = vmul.f32 %v5960, 1.1111112
        %v6393 = vmul.f32 %v5961, 1.1111112
        %v6394 = vmul.f32 %v5962, 1.1111112
        %v6395 = vmul.f32 %v5963, 1.1111112
        %v6396 = vmul.f32 %v5964, 1.1111112
        %v6397 = vmul.f32 %v5965, 1.1111112
        %v6398 = vmul.f32 %v5966, 1.1111112
        %v6399 = vmul.f32 %v5967, 1.1111112
        %v6400 = vmul.f32 %v5968, 1.1111112
        %v6401 = vmul.f32 %v5969, 1.1111112
        %v6402 = vmul.f32 %v5970, 1.1111112
        %v6403 = vmul.f32 %v5971, 1.1111112
        %v6404 = vmul.f32 %v5972, 1.1111112
        %v6405 = vmul.f32 %v5973, 1.1111112
        %v6406 = vmul.f32 %v5974, 1.1111112
        %v6407 = vmul.f32 %v5975, 1.1111112
        %v6408 = vmul.f32 %v5976, 1.1111112
        %v6409 = vmul.f32 %v5977, 1.1111112
        %v6410 = vmul.f32 %v5978, 1.1111112
        %v6411 = vmul.f32 %v5979, 1.1111112
        %v6412 = vmul.f32 %v5980, 1.1111112
        %v6413 = vmul.f32 %v5981, 1.1111112
        %v6414 = vmul.f32 %v5982, 1.1111112
        %v6415 = vmul.f32 %v5983, 1.1111112
        %v6416 = vmul.f32 %v5984, 1.1111112
        %v6417 = vmul.f32 %v5985, 1.1111112
        %v6418 = vmul.f32 %v5986, 1.1111112
        %v6419 = vmul.f32 %v5987, 1.1111112
        %v6420 = vmul.f32 %v5988, 1.1111112
        %v6421 = vmul.f32 %v5989, 1.1111112
        %v6422 = vmul.f32 %v5990, 1.1111112
        %v6423 = vmul.f32 %v5991, 1.1111112
        %v6424 = vmul.f32 %v5992, 1.1111112
        %v6425 = vmul.f32 %v5993, 1.1111112
        %v6426 = vmul.f32 %v5994, 1.1111112
        %v6427 = vmul.f32 %v5995, 1.1111112
        %v6428 = vmul.f32 %v5996, 1.1111112
        %v6429 = vmul.f32 %v5997, 1.1111112
        %v6430 = vmul.f32 %v5998, 1.1111112
        %v6431 = vmul.f32 %v5999, 1.1111112
        %v6432 = vmul.f32 %v6000, 1.1111112
        %v6433 = vmul.f32 %v6001, 1.1111112
        %v6434 = vmul.f32 %v6002, 1.1111112
        %v6435 = vmul.f32 %v6003, 1.1111112
        %v6436 = vmul.f32 %v6004, 1.1111112
        %v6437 = vmul.f32 %v6005, 1.1111112
        %v6438 = vmul.f32 %v6006, 1.1111112
        %v6439 = vmul.f32 %v6007, 1.1111112
        %v6440 = vmul.f32 %v6008, 1.1111112
        %v6441 = vmul.f32 %v6009, 1.1111112
        %v6442 = vmul.f32 %v6010, 1.1111112
        %v6443 = vmul.f32 %v6011, 1.1111112
        %v6444 = vmul.f32 %v6012, 1.1111112
        %v6445 = vmul.f32 %v6013, 1.1111112
        %v6446 = vmul.f32 %v6014, 1.1111112
        %v6447 = vmul.f32 %v6015, 1.1111112
        %v6448 = vmul.f32 %v6016, 1.1111112
        %v6449 = vmul.f32 %v6017, 1.1111112
        %v6450 = vmul.f32 %v6018, 1.1111112
        %v6451 = vmul.f32 %v6019, 1.1111112
        %v6452 = vmul.f32 %v6020, 1.1111112
        %v6453 = vmul.f32 %v6021, 1.1111112
        %v6454 = vmul.f32 %v6022, 1.1111112
        %v6455 = vmul.f32 %v6023, 1.1111112
        %v6456 = vmul.f32 %v6024, 1.1111112
        %v6457 = vmul.f32 %v6025, 1.1111112
        %v6458 = vmul.f32 %v6026, 1.1111112
        %v6459 = vmul.f32 %v6027, 1.1111112
        %v6460 = vmul.f32 %v6028, 1.1111112
        %v6461 = vmul.f32 %v6029, 1.1111112
        %v6462 = vmul.f32 %v6030, 1.1111112
        %v6463 = vmul.f32 %v6031, 1.1111112
        %v6464 = vmul.f32 %v6032, 1.1111112
        %v6465 = vmul.f32 %v6033, 1.1111112
        %v6466 = vmul.f32 %v6034, 1.1111112
        %v6467 = vmul.f32 %v6035, 1.1111112
        %v6468 = vmul.f32 %v6036, 1.1111112
        %v6469 = vmul.f32 %v6037, 1.1111112
        %v6470 = vmul.f32 %v6038, 1.1111112
        %v6471 = vmul.f32 %v6039, 1.1111112
        %v6472 = vmul.f32 %v6040, 1.1111112
        %v6473 = vmul.f32 %v6041, 1.1111112
        %v6474 = vmul.f32 %v6042, 1.1111112
        %v6475 = vmul.f32 %v6043, 1.1111112
        %v6476 = vmul.f32 %v6044, 1.1111112
        %v6477 = vmul.f32 %v6045, 1.1111112
        %v6478 = vmul.f32 %v6046, 1.1111112
        %v6479 = vmul.f32 %v6047, 1.1111112
        %v6480 = vmul.f32 %v6048, 1.1111112
        %v6481 = vmul.f32 %v6049, 1.1111112
        %v6482 = vmul.f32 %v6050, 1.1111112
        %v6483 = vmul.f32 %v6051, 1.1111112
        %v6484 = vmul.f32 %v6052, 1.1111112
        %v6485 = vmul.f32 %v6053, 1.1111112
        %v6486 = vmul.f32 %v6054, 1.1111112
        %v6487 = vmul.f32 %v6055, 1.1111112
        %v6488 = vmul.f32 %v6056, 1.1111112
        %v6489 = vmul.f32 %v6057, 1.1111112
        %v6490 = vmul.f32 %v6058, 1.1111112
        %v6491 = vmul.f32 %v6059, 1.1111112
        %v6492 = vmul.f32 %v6060, 1.1111112
        %v6493 = vmul.f32 %v6061, 1.1111112
        %v6494 = vmul.f32 %v6062, 1.1111112
        %v6495 = vmul.f32 %v6063, 1.1111112
        %v6496 = vmul.f32 %v6064, 1.1111112
        %v6497 = vmul.f32 %v6065, 1.1111112
        %v6498 = vmul.f32 %v6066, 1.1111112
        %v6499 = vmul.f32 %v6067, 1.1111112
        %v6500 = vmul.f32 %v6068, 1.1111112
        %v6501 = vmul.f32 %v6069, 1.1111112
        %v6502 = vmul.f32 %v6070, 1.1111112
        %v6503 = vmul.f32 %v6071, 1.1111112
        %v6504 = vmul.f32 %v6072, 1.1111112
        %v6505 = vmul.f32 %v6073, 1.1111112
        %v6506 = vmul.f32 %v6074, 1.1111112
        %v6507 = vmul.f32 %v6075, 1.1111112
        %v6508 = vmul.f32 %v6076, 1.1111112
        %v6509 = vmul.f32 %v6077, 1.1111112
        %v6510 = vmul.f32 %v6078, 1.1111112
        %v6511 = vmul.f32 %v6079, 1.1111112
        %v6512 = vmul.f32 %v6080, 1.1111112
        %v6513 = vmul.f32 %v6081, 1.1111112
        %v6514 = vmul.f32 %v6082, 1.1111112
        %v6515 = vmul.f32 %v6083, 1.1111112
        %v6516 = vmul.f32 %v6084, 1.1111112
        %v6517 = vmul.f32 %v6085, 1.1111112
        %v6518 = vmul.f32 %v6086, 1.1111112
        %v6519 = vmul.f32 %v6087, 1.1111112
        %v6520 = vmul.f32 %v6088, 1.1111112
        %v6521 = vmul.f32 %v6089, 1.1111112
        %v6522 = vmul.f32 %v6090, 1.1111112
        %v6523 = vmul.f32 %v6091, 1.1111112
        %v6524 = vmul.f32 %v6092, 1.1111112
        %v6525 = vmul.f32 %v6093, 1.1111112
        %v6526 = vmul.f32 %v6094, 1.1111112
        %v6527 = vmul.f32 %v6095, 1.1111112
        %v6528 = vmul.f32 %v6096, 1.1111112
        %v6529 = vmul.f32 %v6097, 1.1111112
        %v6530 = vmul.f32 %v6098, 1.1111112
        %v6531 = vmul.f32 %v6099, 1.1111112
        %v6532 = vmul.f32 %v6100, 1.1111112
        %v6533 = vmul.f32 %v6101, 1.1111112
        %v6534 = vmul.f32 %v6102, 1.1111112
        %v6535 = vmul.f32 %v6103, 1.1111112
        %v6536 = vmul.f32 %v6104, 1.1111112
        %v6537 = vmul.f32 %v6105, 1.1111112
        %v6538 = vmul.f32 %v6106, 1.1111112
        %v6539 = vmul.f32 %v6107, 1.1111112
        %v6540 = vmul.f32 %v6108, 1.1111112
        %v6541 = vmul.f32 %v6109, 1.1111112
        %v6542 = vmul.f32 %v6110, 1.1111112
        %v6543 = vmul.f32 %v6111, 1.1111112
        %v6544 = vmul.f32 %v6112, 1.1111112
        %v6545 = vmul.f32 %v6113, 1.1111112
        %v6546 = vmul.f32 %v6114, 1.1111112
        %v6547 = vmul.f32 %v6115, 1.1111112
        %v6548 = vmul.f32 %v6116, 1.1111112
        %v6549 = vmul.f32 %v6117, 1.1111112
        %v6550 = vmul.f32 %v6118, 1.1111112
        %v6551 = vmul.f32 %v6119, 1.1111112
        %v6552 = vmul.f32 %v6120, 1.1111112
        %v6553 = vmul.f32 %v6121, 1.1111112
        %v6554 = vmul.f32 %v6122, 1.1111112
        %v6555 = vmul.f32 %v6123, 1.1111112
        %v6556 = vmul.f32 %v6124, 1.1111112
        %v6557 = vmul.f32 %v6125, 1.1111112
        %v6558 = vmul.f32 %v6126, 1.1111112
        %v6559 = vmul.f32 %v6127, 1.1111112
        %v6560 = vmul.f32 %v6128, 1.1111112
        %v6561 = vmul.f32 %v6129, 1.1111112
        %v6562 = vmul.f32 %v6130, 1.1111112
        %v6563 = vmul.f32 %v6131, 1.1111112
        %v6564 = vmul.f32 %v6132, 1.1111112
        %v6565 = vmul.f32 %v6133, 1.1111112
        %v6566 = vmul.f32 %v6134, 1.1111112
        %v6567 = vmul.f32 %v6135, 1.1111112
        %v6568 = vmul.f32 %v6136, 1.1111112
        %v6569 = vmul.f32 %v6137, 1.1111112
        %v6570 = vmul.f32 %v6138, 1.1111112
        %v6571 = vmul.f32 %v6139, 1.1111112
        %v6572 = vmul.f32 %v6140, 1.1111112
        %v6573 = vmul.f32 %v6141, 1.1111112
        %v6574 = vmul.f32 %v6142, 1.1111112
        %v6575 = vmul.f32 %v6143, 1.1111112
        %v6576 = vmul.f32 %v6144, 1.1111112
        %v6577 = vmul.f32 %v6145, 1.1111112
        %v6578 = vmul.f32 %v6146, 1.1111112
        %v6579 = vmul.f32 %v6147, 1.1111112
        %v6580 = vmul.f32 %v6148, 1.1111112
        %v6581 = vmul.f32 %v6149, 1.1111112
        %v6582 = vmul.f32 %v6150, 1.1111112
        %v6583 = vmul.f32 %v6151, 1.1111112
        %v6584 = vmul.f32 %v6152, 1.1111112
        %v6585 = vmul.f32 %v6153, 1.1111112
        %v6586 = vmul.f32 %v6154, 1.1111112
        %v6587 = vmul.f32 %v6155, 1.1111112
        %v6588 = vmul.f32 %v6156, 1.1111112
        %v6589 = vmul.f32 %v6157, 1.1111112
        %v6590 = vmul.f32 %v6158, 1.1111112
        %v6591 = vmul.f32 %v6159, 1.1111112
        %v6592 = vmul.f32 %v6160, 1.1111112
        %v6593 = vmul.f32 %v6161, 1.1111112
        %v6594 = vmul.f32 %v6162, 1.1111112
        %v6595 = vmul.f32 %v6163, 1.1111112
        %v6596 = vmul.f32 %v6164, 1.1111112
        %v6597 = vmul.f32 %v6165, 1.1111112
        %v6598 = vmul.f32 %v6166, 1.1111112
        %v6599 = vmul.f32 %v6167, 1.1111112
        %v6600 = vmul.f32 %v6168, 1.1111112
        %v6601 = vmul.f32 %v6169, 1.1111112
        %v6602 = vmul.f32 %v6170, 1.1111112
        %v6603 = vmul.f32 %v6171, 1.1111112
        %v6604 = vmul.f32 %v6172, 1.1111112
        %v6605 = vmul.f32 %v6173, 1.1111112
        %v6606 = vmul.f32 %v6174, 1.1111112
        %v6607 = vmul.f32 %v6175, 1.1111112
        %v6608 = vmul.f32 %v6176, 1.1111112
        %v6609 = vmul.f32 %v6177, 1.1111112
        %v6610 = vmul.f32 %v6178, 1.1111112
        %v6611 = vmul.f32 %v6179, 1.1111112
        %v6612 = vmul.f32 %v6180, 1.1111112
        %v6613 = vmul.f32 %v6181, 1.1111112
        %v6614 = vmul.f32 %v6182, 1.1111112
        %v6615 = vmul.f32 %v6183, 1.1111112
        %v6616 = vmul.f32 %v6184, 1.1111112
        %v6617 = vmul.f32 %v6185, 1.1111112
        %v6618 = vmul.f32 %v6186, 1.1111112
        %v6619 = vmul.f32 %v6187, 1.1111112
        %v6620 = vmul.f32 %v6188, 1.1111112
        %v6621 = vmul.f32 %v6189, 1.1111112
        %v6622 = vmul.f32 %v6190, 1.1111112
        %v6623 = vmul.f32 %v6191, 1.1111112
        %v6624 = vmul.f32 %v6192, 1.1111112
        %v6625 = vmul.f32 %v6193, 1.1111112
        %v6626 = vmul.f32 %v6194, 1.1111112
        %v6627 = vmul.f32 %v6195, 1.1111112
        %v6628 = vmul.f32 %v6196, 1.1111112
        %v6629 = vmul.f32 %v6197, 1.1111112
        %v6630 = vsel %vm5334, %v6198, 0.0
        %v6631 = vsel %vm5335, %v6199, 0.0
        %v6632 = vsel %vm5336, %v6200, 0.0
        %v6633 = vsel %vm5337, %v6201, 0.0
        %v6634 = vsel %vm5338, %v6202, 0.0
        %v6635 = vsel %vm5339, %v6203, 0.0
        %v6636 = vsel %vm5340, %v6204, 0.0
        %v6637 = vsel %vm5341, %v6205, 0.0
        %v6638 = vsel %vm5342, %v6206, 0.0
        %v6639 = vsel %vm5343, %v6207, 0.0
        %v6640 = vsel %vm5344, %v6208, 0.0
        %v6641 = vsel %vm5345, %v6209, 0.0
        %v6642 = vsel %vm5346, %v6210, 0.0
        %v6643 = vsel %vm5347, %v6211, 0.0
        %v6644 = vsel %vm5348, %v6212, 0.0
        %v6645 = vsel %vm5349, %v6213, 0.0
        %v6646 = vsel %vm5350, %v6214, 0.0
        %v6647 = vsel %vm5351, %v6215, 0.0
        %v6648 = vsel %vm5352, %v6216, 0.0
        %v6649 = vsel %vm5353, %v6217, 0.0
        %v6650 = vsel %vm5354, %v6218, 0.0
        %v6651 = vsel %vm5355, %v6219, 0.0
        %v6652 = vsel %vm5356, %v6220, 0.0
        %v6653 = vsel %vm5357, %v6221, 0.0
        %v6654 = vsel %vm5358, %v6222, 0.0
        %v6655 = vsel %vm5359, %v6223, 0.0
        %v6656 = vsel %vm5360, %v6224, 0.0
        %v6657 = vsel %vm5361, %v6225, 0.0
        %v6658 = vsel %vm5362, %v6226, 0.0
        %v6659 = vsel %vm5363, %v6227, 0.0
        %v6660 = vsel %vm5364, %v6228, 0.0
        %v6661 = vsel %vm5365, %v6229, 0.0
        %v6662 = vsel %vm5366, %v6230, 0.0
        %v6663 = vsel %vm5367, %v6231, 0.0
        %v6664 = vsel %vm5368, %v6232, 0.0
        %v6665 = vsel %vm5369, %v6233, 0.0
        %v6666 = vsel %vm5370, %v6234, 0.0
        %v6667 = vsel %vm5371, %v6235, 0.0
        %v6668 = vsel %vm5372, %v6236, 0.0
        %v6669 = vsel %vm5373, %v6237, 0.0
        %v6670 = vsel %vm5374, %v6238, 0.0
        %v6671 = vsel %vm5375, %v6239, 0.0
        %v6672 = vsel %vm5376, %v6240, 0.0
        %v6673 = vsel %vm5377, %v6241, 0.0
        %v6674 = vsel %vm5378, %v6242, 0.0
        %v6675 = vsel %vm5379, %v6243, 0.0
        %v6676 = vsel %vm5380, %v6244, 0.0
        %v6677 = vsel %vm5381, %v6245, 0.0
        %v6678 = vsel %vm5382, %v6246, 0.0
        %v6679 = vsel %vm5383, %v6247, 0.0
        %v6680 = vsel %vm5384, %v6248, 0.0
        %v6681 = vsel %vm5385, %v6249, 0.0
        %v6682 = vsel %vm5386, %v6250, 0.0
        %v6683 = vsel %vm5387, %v6251, 0.0
        %v6684 = vsel %vm5388, %v6252, 0.0
        %v6685 = vsel %vm5389, %v6253, 0.0
        %v6686 = vsel %vm5390, %v6254, 0.0
        %v6687 = vsel %vm5391, %v6255, 0.0
        %v6688 = vsel %vm5392, %v6256, 0.0
        %v6689 = vsel %vm5393, %v6257, 0.0
        %v6690 = vsel %vm5394, %v6258, 0.0
        %v6691 = vsel %vm5395, %v6259, 0.0
        %v6692 = vsel %vm5396, %v6260, 0.0
        %v6693 = vsel %vm5397, %v6261, 0.0
        %v6694 = vsel %vm5398, %v6262, 0.0
        %v6695 = vsel %vm5399, %v6263, 0.0
        %v6696 = vsel %vm5400, %v6264, 0.0
        %v6697 = vsel %vm5401, %v6265, 0.0
        %v6698 = vsel %vm5402, %v6266, 0.0
        %v6699 = vsel %vm5403, %v6267, 0.0
        %v6700 = vsel %vm5404, %v6268, 0.0
        %v6701 = vsel %vm5405, %v6269, 0.0
        %v6702 = vsel %vm5406, %v6270, 0.0
        %v6703 = vsel %vm5407, %v6271, 0.0
        %v6704 = vsel %vm5408, %v6272, 0.0
        %v6705 = vsel %vm5409, %v6273, 0.0
        %v6706 = vsel %vm5410, %v6274, 0.0
        %v6707 = vsel %vm5411, %v6275, 0.0
        %v6708 = vsel %vm5412, %v6276, 0.0
        %v6709 = vsel %vm5413, %v6277, 0.0
        %v6710 = vsel %vm5414, %v6278, 0.0
        %v6711 = vsel %vm5415, %v6279, 0.0
        %v6712 = vsel %vm5416, %v6280, 0.0
        %v6713 = vsel %vm5417, %v6281, 0.0
        %v6714 = vsel %vm5418, %v6282, 0.0
        %v6715 = vsel %vm5419, %v6283, 0.0
        %v6716 = vsel %vm5420, %v6284, 0.0
        %v6717 = vsel %vm5421, %v6285, 0.0
        %v6718 = vsel %vm5422, %v6286, 0.0
        %v6719 = vsel %vm5423, %v6287, 0.0
        %v6720 = vsel %vm5424, %v6288, 0.0
        %v6721 = vsel %vm5425, %v6289, 0.0
        %v6722 = vsel %vm5426, %v6290, 0.0
        %v6723 = vsel %vm5427, %v6291, 0.0
        %v6724 = vsel %vm5428, %v6292, 0.0
        %v6725 = vsel %vm5429, %v6293, 0.0
        %v6726 = vsel %vm5430, %v6294, 0.0
        %v6727 = vsel %vm5431, %v6295, 0.0
        %v6728 = vsel %vm5432, %v6296, 0.0
        %v6729 = vsel %vm5433, %v6297, 0.0
        %v6730 = vsel %vm5434, %v6298, 0.0
        %v6731 = vsel %vm5435, %v6299, 0.0
        %v6732 = vsel %vm5436, %v6300, 0.0
        %v6733 = vsel %vm5437, %v6301, 0.0
        %v6734 = vsel %vm5438, %v6302, 0.0
        %v6735 = vsel %vm5439, %v6303, 0.0
        %v6736 = vsel %vm5440, %v6304, 0.0
        %v6737 = vsel %vm5441, %v6305, 0.0
        %v6738 = vsel %vm5442, %v6306, 0.0
        %v6739 = vsel %vm5443, %v6307, 0.0
        %v6740 = vsel %vm5444, %v6308, 0.0
        %v6741 = vsel %vm5445, %v6309, 0.0
        %v6742 = vsel %vm5446, %v6310, 0.0
        %v6743 = vsel %vm5447, %v6311, 0.0
        %v6744 = vsel %vm5448, %v6312, 0.0
        %v6745 = vsel %vm5449, %v6313, 0.0
        %v6746 = vsel %vm5450, %v6314, 0.0
        %v6747 = vsel %vm5451, %v6315, 0.0
        %v6748 = vsel %vm5452, %v6316, 0.0
        %v6749 = vsel %vm5453, %v6317, 0.0
        %v6750 = vsel %vm5454, %v6318, 0.0
        %v6751 = vsel %vm5455, %v6319, 0.0
        %v6752 = vsel %vm5456, %v6320, 0.0
        %v6753 = vsel %vm5457, %v6321, 0.0
        %v6754 = vsel %vm5458, %v6322, 0.0
        %v6755 = vsel %vm5459, %v6323, 0.0
        %v6756 = vsel %vm5460, %v6324, 0.0
        %v6757 = vsel %vm5461, %v6325, 0.0
        %v6758 = vsel %vm5462, %v6326, 0.0
        %v6759 = vsel %vm5463, %v6327, 0.0
        %v6760 = vsel %vm5464, %v6328, 0.0
        %v6761 = vsel %vm5465, %v6329, 0.0
        %v6762 = vsel %vm5466, %v6330, 0.0
        %v6763 = vsel %vm5467, %v6331, 0.0
        %v6764 = vsel %vm5468, %v6332, 0.0
        %v6765 = vsel %vm5469, %v6333, 0.0
        %v6766 = vsel %vm5470, %v6334, 0.0
        %v6767 = vsel %vm5471, %v6335, 0.0
        %v6768 = vsel %vm5472, %v6336, 0.0
        %v6769 = vsel %vm5473, %v6337, 0.0
        %v6770 = vsel %vm5474, %v6338, 0.0
        %v6771 = vsel %vm5475, %v6339, 0.0
        %v6772 = vsel %vm5476, %v6340, 0.0
        %v6773 = vsel %vm5477, %v6341, 0.0
        %v6774 = vsel %vm5478, %v6342, 0.0
        %v6775 = vsel %vm5479, %v6343, 0.0
        %v6776 = vsel %vm5480, %v6344, 0.0
        %v6777 = vsel %vm5481, %v6345, 0.0
        %v6778 = vsel %vm5482, %v6346, 0.0
        %v6779 = vsel %vm5483, %v6347, 0.0
        %v6780 = vsel %vm5484, %v6348, 0.0
        %v6781 = vsel %vm5485, %v6349, 0.0
        %v6782 = vsel %vm5486, %v6350, 0.0
        %v6783 = vsel %vm5487, %v6351, 0.0
        %v6784 = vsel %vm5488, %v6352, 0.0
        %v6785 = vsel %vm5489, %v6353, 0.0
        %v6786 = vsel %vm5490, %v6354, 0.0
        %v6787 = vsel %vm5491, %v6355, 0.0
        %v6788 = vsel %vm5492, %v6356, 0.0
        %v6789 = vsel %vm5493, %v6357, 0.0
        %v6790 = vsel %vm5494, %v6358, 0.0
        %v6791 = vsel %vm5495, %v6359, 0.0
        %v6792 = vsel %vm5496, %v6360, 0.0
        %v6793 = vsel %vm5497, %v6361, 0.0
        %v6794 = vsel %vm5498, %v6362, 0.0
        %v6795 = vsel %vm5499, %v6363, 0.0
        %v6796 = vsel %vm5500, %v6364, 0.0
        %v6797 = vsel %vm5501, %v6365, 0.0
        %v6798 = vsel %vm5502, %v6366, 0.0
        %v6799 = vsel %vm5503, %v6367, 0.0
        %v6800 = vsel %vm5504, %v6368, 0.0
        %v6801 = vsel %vm5505, %v6369, 0.0
        %v6802 = vsel %vm5506, %v6370, 0.0
        %v6803 = vsel %vm5507, %v6371, 0.0
        %v6804 = vsel %vm5508, %v6372, 0.0
        %v6805 = vsel %vm5509, %v6373, 0.0
        %v6806 = vsel %vm5510, %v6374, 0.0
        %v6807 = vsel %vm5511, %v6375, 0.0
        %v6808 = vsel %vm5512, %v6376, 0.0
        %v6809 = vsel %vm5513, %v6377, 0.0
        %v6810 = vsel %vm5514, %v6378, 0.0
        %v6811 = vsel %vm5515, %v6379, 0.0
        %v6812 = vsel %vm5516, %v6380, 0.0
        %v6813 = vsel %vm5517, %v6381, 0.0
        %v6814 = vsel %vm5518, %v6382, 0.0
        %v6815 = vsel %vm5519, %v6383, 0.0
        %v6816 = vsel %vm5520, %v6384, 0.0
        %v6817 = vsel %vm5521, %v6385, 0.0
        %v6818 = vsel %vm5522, %v6386, 0.0
        %v6819 = vsel %vm5523, %v6387, 0.0
        %v6820 = vsel %vm5524, %v6388, 0.0
        %v6821 = vsel %vm5525, %v6389, 0.0
        %v6822 = vsel %vm5526, %v6390, 0.0
        %v6823 = vsel %vm5527, %v6391, 0.0
        %v6824 = vsel %vm5528, %v6392, 0.0
        %v6825 = vsel %vm5529, %v6393, 0.0
        %v6826 = vsel %vm5530, %v6394, 0.0
        %v6827 = vsel %vm5531, %v6395, 0.0
        %v6828 = vsel %vm5532, %v6396, 0.0
        %v6829 = vsel %vm5533, %v6397, 0.0
        %v6830 = vsel %vm5534, %v6398, 0.0
        %v6831 = vsel %vm5535, %v6399, 0.0
        %v6832 = vsel %vm5536, %v6400, 0.0
        %v6833 = vsel %vm5537, %v6401, 0.0
        %v6834 = vsel %vm5538, %v6402, 0.0
        %v6835 = vsel %vm5539, %v6403, 0.0
        %v6836 = vsel %vm5540, %v6404, 0.0
        %v6837 = vsel %vm5541, %v6405, 0.0
        %v6838 = vsel %vm5542, %v6406, 0.0
        %v6839 = vsel %vm5543, %v6407, 0.0
        %v6840 = vsel %vm5544, %v6408, 0.0
        %v6841 = vsel %vm5545, %v6409, 0.0
        %v6842 = vsel %vm5546, %v6410, 0.0
        %v6843 = vsel %vm5547, %v6411, 0.0
        %v6844 = vsel %vm5548, %v6412, 0.0
        %v6845 = vsel %vm5549, %v6413, 0.0
        %v6846 = vsel %vm5550, %v6414, 0.0
        %v6847 = vsel %vm5551, %v6415, 0.0
        %v6848 = vsel %vm5552, %v6416, 0.0
        %v6849 = vsel %vm5553, %v6417, 0.0
        %v6850 = vsel %vm5554, %v6418, 0.0
        %v6851 = vsel %vm5555, %v6419, 0.0
        %v6852 = vsel %vm5556, %v6420, 0.0
        %v6853 = vsel %vm5557, %v6421, 0.0
        %v6854 = vsel %vm5558, %v6422, 0.0
        %v6855 = vsel %vm5559, %v6423, 0.0
        %v6856 = vsel %vm5560, %v6424, 0.0
        %v6857 = vsel %vm5561, %v6425, 0.0
        %v6858 = vsel %vm5562, %v6426, 0.0
        %v6859 = vsel %vm5563, %v6427, 0.0
        %v6860 = vsel %vm5564, %v6428, 0.0
        %v6861 = vsel %vm5565, %v6429, 0.0
        %v6862 = vsel %vm5566, %v6430, 0.0
        %v6863 = vsel %vm5567, %v6431, 0.0
        %v6864 = vsel %vm5568, %v6432, 0.0
        %v6865 = vsel %vm5569, %v6433, 0.0
        %v6866 = vsel %vm5570, %v6434, 0.0
        %v6867 = vsel %vm5571, %v6435, 0.0
        %v6868 = vsel %vm5572, %v6436, 0.0
        %v6869 = vsel %vm5573, %v6437, 0.0
        %v6870 = vsel %vm5574, %v6438, 0.0
        %v6871 = vsel %vm5575, %v6439, 0.0
        %v6872 = vsel %vm5576, %v6440, 0.0
        %v6873 = vsel %vm5577, %v6441, 0.0
        %v6874 = vsel %vm5578, %v6442, 0.0
        %v6875 = vsel %vm5579, %v6443, 0.0
        %v6876 = vsel %vm5580, %v6444, 0.0
        %v6877 = vsel %vm5581, %v6445, 0.0
        %v6878 = vsel %vm5582, %v6446, 0.0
        %v6879 = vsel %vm5583, %v6447, 0.0
        %v6880 = vsel %vm5584, %v6448, 0.0
        %v6881 = vsel %vm5585, %v6449, 0.0
        %v6882 = vsel %vm5586, %v6450, 0.0
        %v6883 = vsel %vm5587, %v6451, 0.0
        %v6884 = vsel %vm5588, %v6452, 0.0
        %v6885 = vsel %vm5589, %v6453, 0.0
        %v6886 = vsel %vm5590, %v6454, 0.0
        %v6887 = vsel %vm5591, %v6455, 0.0
        %v6888 = vsel %vm5592, %v6456, 0.0
        %v6889 = vsel %vm5593, %v6457, 0.0
        %v6890 = vsel %vm5594, %v6458, 0.0
        %v6891 = vsel %vm5595, %v6459, 0.0
        %v6892 = vsel %vm5596, %v6460, 0.0
        %v6893 = vsel %vm5597, %v6461, 0.0
        %v6894 = vsel %vm5598, %v6462, 0.0
        %v6895 = vsel %vm5599, %v6463, 0.0
        %v6896 = vsel %vm5600, %v6464, 0.0
        %v6897 = vsel %vm5601, %v6465, 0.0
        %v6898 = vsel %vm5602, %v6466, 0.0
        %v6899 = vsel %vm5603, %v6467, 0.0
        %v6900 = vsel %vm5604, %v6468, 0.0
        %v6901 = vsel %vm5605, %v6469, 0.0
        %v6902 = vsel %vm5606, %v6470, 0.0
        %v6903 = vsel %vm5607, %v6471, 0.0
        %v6904 = vsel %vm5608, %v6472, 0.0
        %v6905 = vsel %vm5609, %v6473, 0.0
        %v6906 = vsel %vm5610, %v6474, 0.0
        %v6907 = vsel %vm5611, %v6475, 0.0
        %v6908 = vsel %vm5612, %v6476, 0.0
        %v6909 = vsel %vm5613, %v6477, 0.0
        %v6910 = vsel %vm5614, %v6478, 0.0
        %v6911 = vsel %vm5615, %v6479, 0.0
        %v6912 = vsel %vm5616, %v6480, 0.0
        %v6913 = vsel %vm5617, %v6481, 0.0
        %v6914 = vsel %vm5618, %v6482, 0.0
        %v6915 = vsel %vm5619, %v6483, 0.0
        %v6916 = vsel %vm5620, %v6484, 0.0
        %v6917 = vsel %vm5621, %v6485, 0.0
        %v6918 = vsel %vm5622, %v6486, 0.0
        %v6919 = vsel %vm5623, %v6487, 0.0
        %v6920 = vsel %vm5624, %v6488, 0.0
        %v6921 = vsel %vm5625, %v6489, 0.0
        %v6922 = vsel %vm5626, %v6490, 0.0
        %v6923 = vsel %vm5627, %v6491, 0.0
        %v6924 = vsel %vm5628, %v6492, 0.0
        %v6925 = vsel %vm5629, %v6493, 0.0
        %v6926 = vsel %vm5630, %v6494, 0.0
        %v6927 = vsel %vm5631, %v6495, 0.0
        %v6928 = vsel %vm5632, %v6496, 0.0
        %v6929 = vsel %vm5633, %v6497, 0.0
        %v6930 = vsel %vm5634, %v6498, 0.0
        %v6931 = vsel %vm5635, %v6499, 0.0
        %v6932 = vsel %vm5636, %v6500, 0.0
        %v6933 = vsel %vm5637, %v6501, 0.0
        %v6934 = vsel %vm5638, %v6502, 0.0
        %v6935 = vsel %vm5639, %v6503, 0.0
        %v6936 = vsel %vm5640, %v6504, 0.0
        %v6937 = vsel %vm5641, %v6505, 0.0
        %v6938 = vsel %vm5642, %v6506, 0.0
        %v6939 = vsel %vm5643, %v6507, 0.0
        %v6940 = vsel %vm5644, %v6508, 0.0
        %v6941 = vsel %vm5645, %v6509, 0.0
        %v6942 = vsel %vm5646, %v6510, 0.0
        %v6943 = vsel %vm5647, %v6511, 0.0
        %v6944 = vsel %vm5648, %v6512, 0.0
        %v6945 = vsel %vm5649, %v6513, 0.0
        %v6946 = vsel %vm5650, %v6514, 0.0
        %v6947 = vsel %vm5651, %v6515, 0.0
        %v6948 = vsel %vm5652, %v6516, 0.0
        %v6949 = vsel %vm5653, %v6517, 0.0
        %v6950 = vsel %vm5654, %v6518, 0.0
        %v6951 = vsel %vm5655, %v6519, 0.0
        %v6952 = vsel %vm5656, %v6520, 0.0
        %v6953 = vsel %vm5657, %v6521, 0.0
        %v6954 = vsel %vm5658, %v6522, 0.0
        %v6955 = vsel %vm5659, %v6523, 0.0
        %v6956 = vsel %vm5660, %v6524, 0.0
        %v6957 = vsel %vm5661, %v6525, 0.0
        %v6958 = vsel %vm5662, %v6526, 0.0
        %v6959 = vsel %vm5663, %v6527, 0.0
        %v6960 = vsel %vm5664, %v6528, 0.0
        %v6961 = vsel %vm5665, %v6529, 0.0
        %v6962 = vsel %vm5666, %v6530, 0.0
        %v6963 = vsel %vm5667, %v6531, 0.0
        %v6964 = vsel %vm5668, %v6532, 0.0
        %v6965 = vsel %vm5669, %v6533, 0.0
        %v6966 = vsel %vm5670, %v6534, 0.0
        %v6967 = vsel %vm5671, %v6535, 0.0
        %v6968 = vsel %vm5672, %v6536, 0.0
        %v6969 = vsel %vm5673, %v6537, 0.0
        %v6970 = vsel %vm5674, %v6538, 0.0
        %v6971 = vsel %vm5675, %v6539, 0.0
        %v6972 = vsel %vm5676, %v6540, 0.0
        %v6973 = vsel %vm5677, %v6541, 0.0
        %v6974 = vsel %vm5678, %v6542, 0.0
        %v6975 = vsel %vm5679, %v6543, 0.0
        %v6976 = vsel %vm5680, %v6544, 0.0
        %v6977 = vsel %vm5681, %v6545, 0.0
        %v6978 = vsel %vm5682, %v6546, 0.0
        %v6979 = vsel %vm5683, %v6547, 0.0
        %v6980 = vsel %vm5684, %v6548, 0.0
        %v6981 = vsel %vm5685, %v6549, 0.0
        %v6982 = vsel %vm5686, %v6550, 0.0
        %v6983 = vsel %vm5687, %v6551, 0.0
        %v6984 = vsel %vm5688, %v6552, 0.0
        %v6985 = vsel %vm5689, %v6553, 0.0
        %v6986 = vsel %vm5690, %v6554, 0.0
        %v6987 = vsel %vm5691, %v6555, 0.0
        %v6988 = vsel %vm5692, %v6556, 0.0
        %v6989 = vsel %vm5693, %v6557, 0.0
        %v6990 = vsel %vm5694, %v6558, 0.0
        %v6991 = vsel %vm5695, %v6559, 0.0
        %v6992 = vsel %vm5696, %v6560, 0.0
        %v6993 = vsel %vm5697, %v6561, 0.0
        %v6994 = vsel %vm5698, %v6562, 0.0
        %v6995 = vsel %vm5699, %v6563, 0.0
        %v6996 = vsel %vm5700, %v6564, 0.0
        %v6997 = vsel %vm5701, %v6565, 0.0
        %v6998 = vsel %vm5702, %v6566, 0.0
        %v6999 = vsel %vm5703, %v6567, 0.0
        %v7000 = vsel %vm5704, %v6568, 0.0
        %v7001 = vsel %vm5705, %v6569, 0.0
        %v7002 = vsel %vm5706, %v6570, 0.0
        %v7003 = vsel %vm5707, %v6571, 0.0
        %v7004 = vsel %vm5708, %v6572, 0.0
        %v7005 = vsel %vm5709, %v6573, 0.0
        %v7006 = vsel %vm5710, %v6574, 0.0
        %v7007 = vsel %vm5711, %v6575, 0.0
        %v7008 = vsel %vm5712, %v6576, 0.0
        %v7009 = vsel %vm5713, %v6577, 0.0
        %v7010 = vsel %vm5714, %v6578, 0.0
        %v7011 = vsel %vm5715, %v6579, 0.0
        %v7012 = vsel %vm5716, %v6580, 0.0
        %v7013 = vsel %vm5717, %v6581, 0.0
        %v7014 = vsel %vm5718, %v6582, 0.0
        %v7015 = vsel %vm5719, %v6583, 0.0
        %v7016 = vsel %vm5720, %v6584, 0.0
        %v7017 = vsel %vm5721, %v6585, 0.0
        %v7018 = vsel %vm5722, %v6586, 0.0
        %v7019 = vsel %vm5723, %v6587, 0.0
        %v7020 = vsel %vm5724, %v6588, 0.0
        %v7021 = vsel %vm5725, %v6589, 0.0
        %v7022 = vsel %vm5726, %v6590, 0.0
        %v7023 = vsel %vm5727, %v6591, 0.0
        %v7024 = vsel %vm5728, %v6592, 0.0
        %v7025 = vsel %vm5729, %v6593, 0.0
        %v7026 = vsel %vm5730, %v6594, 0.0
        %v7027 = vsel %vm5731, %v6595, 0.0
        %v7028 = vsel %vm5732, %v6596, 0.0
        %v7029 = vsel %vm5733, %v6597, 0.0
        %v7030 = vsel %vm5734, %v6598, 0.0
        %v7031 = vsel %vm5735, %v6599, 0.0
        %v7032 = vsel %vm5736, %v6600, 0.0
        %v7033 = vsel %vm5737, %v6601, 0.0
        %v7034 = vsel %vm5738, %v6602, 0.0
        %v7035 = vsel %vm5739, %v6603, 0.0
        %v7036 = vsel %vm5740, %v6604, 0.0
        %v7037 = vsel %vm5741, %v6605, 0.0
        %v7038 = vsel %vm5742, %v6606, 0.0
        %v7039 = vsel %vm5743, %v6607, 0.0
        %v7040 = vsel %vm5744, %v6608, 0.0
        %v7041 = vsel %vm5745, %v6609, 0.0
        %v7042 = vsel %vm5746, %v6610, 0.0
        %v7043 = vsel %vm5747, %v6611, 0.0
        %v7044 = vsel %vm5748, %v6612, 0.0
        %v7045 = vsel %vm5749, %v6613, 0.0
        %v7046 = vsel %vm5750, %v6614, 0.0
        %v7047 = vsel %vm5751, %v6615, 0.0
        %v7048 = vsel %vm5752, %v6616, 0.0
        %v7049 = vsel %vm5753, %v6617, 0.0
        %v7050 = vsel %vm5754, %v6618, 0.0
        %v7051 = vsel %vm5755, %v6619, 0.0
        %v7052 = vsel %vm5756, %v6620, 0.0
        %v7053 = vsel %vm5757, %v6621, 0.0
        %v7054 = vsel %vm5758, %v6622, 0.0
        %v7055 = vsel %vm5759, %v6623, 0.0
        %v7056 = vsel %vm5760, %v6624, 0.0
        %v7057 = vsel %vm5761, %v6625, 0.0
        %v7058 = vsel %vm5762, %v6626, 0.0
        %v7059 = vsel %vm5763, %v6627, 0.0
        %v7060 = vsel %vm5764, %v6628, 0.0
        %v7061 = vsel %vm5765, %v6629, 0.0
        %7062 = vst [vmem:[%s137] sm:$0xff] %v6630
        %7063 = vst [vmem:[%s137 + $0x8] sm:$0xff] %v6631
        %7064 = vst [vmem:[%s137 + $0x10] sm:$0xff] %v6632
        %7065 = vst [vmem:[%s137 + $0x18] sm:$0xff] %v6633
        %7066 = vst [vmem:[%s137 + $0x20] sm:$0xff] %v6634
        %7067 = vst [vmem:[%s137 + $0x28] sm:$0xff] %v6635
        %7068 = vst [vmem:[%s137 + $0x30] sm:$0xff] %v6636
        %7069 = vst [vmem:[%s137 + $0x38] sm:$0xff] %v6637
        %7070 = vst [vmem:[%s137 + $0x40] sm:$0xff] %v6638
        %7071 = vst [vmem:[%s137 + $0x48] sm:$0xff] %v6639
        %7072 = vst [vmem:[%s137 + $0x50] sm:$0xff] %v6640
        %7073 = vst [vmem:[%s137 + $0x58] sm:$0xff] %v6641
        %7074 = vst [vmem:[%s137 + $0x60] sm:$0xff] %v6642
        %7075 = vst [vmem:[%s137 + $0x68] sm:$0xff] %v6643
        %7076 = vst [vmem:[%s137 + $0x70] sm:$0xff] %v6644
        %7077 = vst [vmem:[%s137 + $0x78] sm:$0xff] %v6645
        %7078 = vst [vmem:[%s137 + $0x80] sm:$0xff] %v6646
        %7079 = vst [vmem:[%s137 + $0x88] sm:$0xff] %v6647
        %7080 = vst [vmem:[%s137 + $0x90] sm:$0xff] %v6648
        %7081 = vst [vmem:[%s137 + $0x98] sm:$0xff] %v6649
        %7082 = vst [vmem:[%s137 + $0xa0] sm:$0xff] %v6650
        %7083 = vst [vmem:[%s137 + $0xa8] sm:$0xff] %v6651
        %7084 = vst [vmem:[%s137 + $0xb0] sm:$0xff] %v6652
        %7085 = vst [vmem:[%s137 + $0xb8] sm:$0xff] %v6653
        %7086 = vst [vmem:[%s137 + $0xc0] sm:$0xff] %v6654
        %7087 = vst [vmem:[%s137 + $0xc8] sm:$0xff] %v6655
        %7088 = vst [vmem:[%s137 + $0xd0] sm:$0xff] %v6656
        %7089 = vst [vmem:[%s137 + $0xd8] sm:$0xff] %v6657
        %7090 = vst [vmem:[%s137 + $0xe0] sm:$0xff] %v6658
        %7091 = vst [vmem:[%s137 + $0xe8] sm:$0xff] %v6659
        %7092 = vst [vmem:[%s137 + $0xf0] sm:$0xff] %v6660
        %7093 = vst [vmem:[%s137 + $0xf8] sm:$0xff] %v6661
        %7094 = vst [vmem:[%s137 + $0x100] sm:$0xff] %v6662
        %7095 = vst [vmem:[%s137 + $0x108] sm:$0xff] %v6663
        %7096 = vst [vmem:[%s137 + $0x110] sm:$0xff] %v6664
        %7097 = vst [vmem:[%s137 + $0x118] sm:$0xff] %v6665
        %7098 = vst [vmem:[%s137 + $0x120] sm:$0xff] %v6666
        %7099 = vst [vmem:[%s137 + $0x128] sm:$0xff] %v6667
        %7100 = vst [vmem:[%s137 + $0x130] sm:$0xff] %v6668
        %7101 = vst [vmem:[%s137 + $0x138] sm:$0xff] %v6669
        %7102 = vst [vmem:[%s137 + $0x140] sm:$0xff] %v6670
        %7103 = vst [vmem:[%s137 + $0x148] sm:$0xff] %v6671
        %7104 = vst [vmem:[%s137 + $0x150] sm:$0xff] %v6672
        %7105 = vst [vmem:[%s137 + $0x158] sm:$0xff] %v6673
        %7106 = vst [vmem:[%s137 + $0x160] sm:$0xff] %v6674
        %7107 = vst [vmem:[%s137 + $0x168] sm:$0xff] %v6675
        %7108 = vst [vmem:[%s137 + $0x170] sm:$0xff] %v6676
        %7109 = vst [vmem:[%s137 + $0x178] sm:$0xff] %v6677
        %7110 = vst [vmem:[%s137 + $0x180] sm:$0xff] %v6678
        %7111 = vst [vmem:[%s137 + $0x188] sm:$0xff] %v6679
        %7112 = vst [vmem:[%s137 + $0x190] sm:$0xff] %v6680
        %7113 = vst [vmem:[%s137 + $0x198] sm:$0xff] %v6681
        %7114 = vst [vmem:[%s137 + $0x1a0] sm:$0xff] %v6682
        %7115 = vst [vmem:[%s137 + $0x1a8] sm:$0xff] %v6683
        %7116 = vst [vmem:[%s137 + $0x1b0] sm:$0xff] %v6684
        %7117 = vst [vmem:[%s137 + $0x1b8] sm:$0xff] %v6685
        %7118 = vst [vmem:[%s137 + $0x1c0] sm:$0xff] %v6686
        %7119 = vst [vmem:[%s137 + $0x1c8] sm:$0xff] %v6687
        %7120 = vst [vmem:[%s137 + $0x1d0] sm:$0xff] %v6688
        %7121 = vst [vmem:[%s137 + $0x1d8] sm:$0xff] %v6689
        %7122 = vst [vmem:[%s137 + $0x1e0] sm:$0xff] %v6690
        %7123 = vst [vmem:[%s137 + $0x1e8] sm:$0xff] %v6691
        %7124 = vst [vmem:[%s137 + $0x1f0] sm:$0xff] %v6692
        %7125 = vst [vmem:[%s137 + $0x1f8] sm:$0xff] %v6693
        %7126 = vst [vmem:[%s137 + $0x200] sm:$0xff] %v6694
        %7127 = vst [vmem:[%s137 + $0x208] sm:$0xff] %v6695
        %7128 = vst [vmem:[%s137 + $0x210] sm:$0xff] %v6696
        %7129 = vst [vmem:[%s137 + $0x218] sm:$0xff] %v6697
        %7130 = vst [vmem:[%s137 + $0x220] sm:$0xff] %v6698
        %7131 = vst [vmem:[%s137 + $0x228] sm:$0xff] %v6699
        %7132 = vst [vmem:[%s137 + $0x230] sm:$0xff] %v6700
        %7133 = vst [vmem:[%s137 + $0x238] sm:$0xff] %v6701
        %7134 = vst [vmem:[%s137 + $0x240] sm:$0xff] %v6702
        %7135 = vst [vmem:[%s137 + $0x248] sm:$0xff] %v6703
        %7136 = vst [vmem:[%s137 + $0x250] sm:$0xff] %v6704
        %7137 = vst [vmem:[%s137 + $0x258] sm:$0xff] %v6705
        %7138 = vst [vmem:[%s137 + $0x260] sm:$0xff] %v6706
        %7139 = vst [vmem:[%s137 + $0x268] sm:$0xff] %v6707
        %7140 = vst [vmem:[%s137 + $0x270] sm:$0xff] %v6708
        %7141 = vst [vmem:[%s137 + $0x278] sm:$0xff] %v6709
        %7142 = vst [vmem:[%s137 + $0x280] sm:$0xff] %v6710
        %7143 = vst [vmem:[%s137 + $0x288] sm:$0xff] %v6711
        %7144 = vst [vmem:[%s137 + $0x290] sm:$0xff] %v6712
        %7145 = vst [vmem:[%s137 + $0x298] sm:$0xff] %v6713
        %7146 = vst [vmem:[%s137 + $0x2a0] sm:$0xff] %v6714
        %7147 = vst [vmem:[%s137 + $0x2a8] sm:$0xff] %v6715
        %7148 = vst [vmem:[%s137 + $0x2b0] sm:$0xff] %v6716
        %7149 = vst [vmem:[%s137 + $0x2b8] sm:$0xff] %v6717
        %7150 = vst [vmem:[%s137 + $0x2c0] sm:$0xff] %v6718
        %7151 = vst [vmem:[%s137 + $0x2c8] sm:$0xff] %v6719
        %7152 = vst [vmem:[%s137 + $0x2d0] sm:$0xff] %v6720
        %7153 = vst [vmem:[%s137 + $0x2d8] sm:$0xff] %v6721
        %7154 = vst [vmem:[%s137 + $0x2e0] sm:$0xff] %v6722
        %7155 = vst [vmem:[%s137 + $0x2e8] sm:$0xff] %v6723
        %7156 = vst [vmem:[%s137 + $0x2f0] sm:$0xff] %v6724
        %7157 = vst [vmem:[%s137 + $0x2f8] sm:$0xff] %v6725
        %7158 = vst [vmem:[%s137 + $0x300] sm:$0xff] %v6726
        %7159 = vst [vmem:[%s137 + $0x308] sm:$0xff] %v6727
        %7160 = vst [vmem:[%s137 + $0x310] sm:$0xff] %v6728
        %7161 = vst [vmem:[%s137 + $0x318] sm:$0xff] %v6729
        %7162 = vst [vmem:[%s137 + $0x320] sm:$0xff] %v6730
        %7163 = vst [vmem:[%s137 + $0x328] sm:$0xff] %v6731
        %7164 = vst [vmem:[%s137 + $0x330] sm:$0xff] %v6732
        %7165 = vst [vmem:[%s137 + $0x338] sm:$0xff] %v6733
        %7166 = vst [vmem:[%s137 + $0x340] sm:$0xff] %v6734
        %7167 = vst [vmem:[%s137 + $0x348] sm:$0xff] %v6735
        %7168 = vst [vmem:[%s137 + $0x350] sm:$0xff] %v6736
        %7169 = vst [vmem:[%s137 + $0x358] sm:$0xff] %v6737
        %7170 = vst [vmem:[%s137 + $0x360] sm:$0xff] %v6738
        %7171 = vst [vmem:[%s137 + $0x368] sm:$0xff] %v6739
        %7172 = vst [vmem:[%s137 + $0x370] sm:$0xff] %v6740
        %7173 = vst [vmem:[%s137 + $0x378] sm:$0xff] %v6741
        %7174 = vst [vmem:[%s137 + $0x380] sm:$0xff] %v6742
        %7175 = vst [vmem:[%s137 + $0x388] sm:$0xff] %v6743
        %7176 = vst [vmem:[%s137 + $0x390] sm:$0xff] %v6744
        %7177 = vst [vmem:[%s137 + $0x398] sm:$0xff] %v6745
        %7178 = vst [vmem:[%s137 + $0x3a0] sm:$0xff] %v6746
        %7179 = vst [vmem:[%s137 + $0x3a8] sm:$0xff] %v6747
        %7180 = vst [vmem:[%s137 + $0x3b0] sm:$0xff] %v6748
        %7181 = vst [vmem:[%s137 + $0x3b8] sm:$0xff] %v6749
        %7182 = vst [vmem:[%s137 + $0x3c0] sm:$0xff] %v6750
        %7183 = vst [vmem:[%s137 + $0x3c8] sm:$0xff] %v6751
        %7184 = vst [vmem:[%s137 + $0x3d0] sm:$0xff] %v6752
        %7185 = vst [vmem:[%s137 + $0x3d8] sm:$0xff] %v6753
        %7186 = vst [vmem:[%s137 + $0x3e0] sm:$0xff] %v6754
        %7187 = vst [vmem:[%s137 + $0x3e8] sm:$0xff] %v6755
        %7188 = vst [vmem:[%s137 + $0x3f0] sm:$0xff] %v6756
        %7189 = vst [vmem:[%s137 + $0x3f8] sm:$0xff] %v6757
        %7190 = vst [vmem:[%s137 + $0x400] sm:$0xff] %v6758
        %7191 = vst [vmem:[%s137 + $0x408] sm:$0xff] %v6759
        %7192 = vst [vmem:[%s137 + $0x410] sm:$0xff] %v6760
        %7193 = vst [vmem:[%s137 + $0x418] sm:$0xff] %v6761
        %7194 = vst [vmem:[%s137 + $0x420] sm:$0xff] %v6762
        %7195 = vst [vmem:[%s137 + $0x428] sm:$0xff] %v6763
        %7196 = vst [vmem:[%s137 + $0x430] sm:$0xff] %v6764
        %7197 = vst [vmem:[%s137 + $0x438] sm:$0xff] %v6765
        %7198 = vst [vmem:[%s137 + $0x440] sm:$0xff] %v6766
        %7199 = vst [vmem:[%s137 + $0x448] sm:$0xff] %v6767
        %7200 = vst [vmem:[%s137 + $0x450] sm:$0xff] %v6768
        %7201 = vst [vmem:[%s137 + $0x458] sm:$0xff] %v6769
        %7202 = vst [vmem:[%s137 + $0x460] sm:$0xff] %v6770
        %7203 = vst [vmem:[%s137 + $0x468] sm:$0xff] %v6771
        %7204 = vst [vmem:[%s137 + $0x470] sm:$0xff] %v6772
        %7205 = vst [vmem:[%s137 + $0x478] sm:$0xff] %v6773
        %7206 = vst [vmem:[%s137 + $0x480] sm:$0xff] %v6774
        %7207 = vst [vmem:[%s137 + $0x488] sm:$0xff] %v6775
        %7208 = vst [vmem:[%s137 + $0x490] sm:$0xff] %v6776
        %7209 = vst [vmem:[%s137 + $0x498] sm:$0xff] %v6777
        %7210 = vst [vmem:[%s137 + $0x4a0] sm:$0xff] %v6778
        %7211 = vst [vmem:[%s137 + $0x4a8] sm:$0xff] %v6779
        %7212 = vst [vmem:[%s137 + $0x4b0] sm:$0xff] %v6780
        %7213 = vst [vmem:[%s137 + $0x4b8] sm:$0xff] %v6781
        %7214 = vst [vmem:[%s137 + $0x4c0] sm:$0xff] %v6782
        %7215 = vst [vmem:[%s137 + $0x4c8] sm:$0xff] %v6783
        %7216 = vst [vmem:[%s137 + $0x4d0] sm:$0xff] %v6784
        %7217 = vst [vmem:[%s137 + $0x4d8] sm:$0xff] %v6785
        %7218 = vst [vmem:[%s137 + $0x4e0] sm:$0xff] %v6786
        %7219 = vst [vmem:[%s137 + $0x4e8] sm:$0xff] %v6787
        %7220 = vst [vmem:[%s137 + $0x4f0] sm:$0xff] %v6788
        %7221 = vst [vmem:[%s137 + $0x4f8] sm:$0xff] %v6789
        %7222 = vst [vmem:[%s137 + $0x500] sm:$0xff] %v6790
        %7223 = vst [vmem:[%s137 + $0x508] sm:$0xff] %v6791
        %7224 = vst [vmem:[%s137 + $0x510] sm:$0xff] %v6792
        %7225 = vst [vmem:[%s137 + $0x518] sm:$0xff] %v6793
        %7226 = vst [vmem:[%s137 + $0x520] sm:$0xff] %v6794
        %7227 = vst [vmem:[%s137 + $0x528] sm:$0xff] %v6795
        %7228 = vst [vmem:[%s137 + $0x530] sm:$0xff] %v6796
        %7229 = vst [vmem:[%s137 + $0x538] sm:$0xff] %v6797
        %7230 = vst [vmem:[%s137 + $0x540] sm:$0xff] %v6798
        %7231 = vst [vmem:[%s137 + $0x548] sm:$0xff] %v6799
        %7232 = vst [vmem:[%s137 + $0x550] sm:$0xff] %v6800
        %7233 = vst [vmem:[%s137 + $0x558] sm:$0xff] %v6801
        %7234 = vst [vmem:[%s137 + $0x560] sm:$0xff] %v6802
        %7235 = vst [vmem:[%s137 + $0x568] sm:$0xff] %v6803
        %7236 = vst [vmem:[%s137 + $0x570] sm:$0xff] %v6804
        %7237 = vst [vmem:[%s137 + $0x578] sm:$0xff] %v6805
        %7238 = vst [vmem:[%s137 + $0x580] sm:$0xff] %v6806
        %7239 = vst [vmem:[%s137 + $0x588] sm:$0xff] %v6807
        %7240 = vst [vmem:[%s137 + $0x590] sm:$0xff] %v6808
        %7241 = vst [vmem:[%s137 + $0x598] sm:$0xff] %v6809
        %7242 = vst [vmem:[%s137 + $0x5a0] sm:$0xff] %v6810
        %7243 = vst [vmem:[%s137 + $0x5a8] sm:$0xff] %v6811
        %7244 = vst [vmem:[%s137 + $0x5b0] sm:$0xff] %v6812
        %7245 = vst [vmem:[%s137 + $0x5b8] sm:$0xff] %v6813
        %7246 = vst [vmem:[%s137 + $0x5c0] sm:$0xff] %v6814
        %7247 = vst [vmem:[%s137 + $0x5c8] sm:$0xff] %v6815
        %7248 = vst [vmem:[%s137 + $0x5d0] sm:$0xff] %v6816
        %7249 = vst [vmem:[%s137 + $0x5d8] sm:$0xff] %v6817
        %7250 = vst [vmem:[%s137 + $0x5e0] sm:$0xff] %v6818
        %7251 = vst [vmem:[%s137 + $0x5e8] sm:$0xff] %v6819
        %7252 = vst [vmem:[%s137 + $0x5f0] sm:$0xff] %v6820
        %7253 = vst [vmem:[%s137 + $0x5f8] sm:$0xff] %v6821
        %7254 = vst [vmem:[%s137 + $0x600] sm:$0xff] %v6822
        %7255 = vst [vmem:[%s137 + $0x608] sm:$0xff] %v6823
        %7256 = vst [vmem:[%s137 + $0x610] sm:$0xff] %v6824
        %7257 = vst [vmem:[%s137 + $0x618] sm:$0xff] %v6825
        %7258 = vst [vmem:[%s137 + $0x620] sm:$0xff] %v6826
        %7259 = vst [vmem:[%s137 + $0x628] sm:$0xff] %v6827
        %7260 = vst [vmem:[%s137 + $0x630] sm:$0xff] %v6828
        %7261 = vst [vmem:[%s137 + $0x638] sm:$0xff] %v6829
        %7262 = vst [vmem:[%s137 + $0x640] sm:$0xff] %v6830
        %7263 = vst [vmem:[%s137 + $0x648] sm:$0xff] %v6831
        %7264 = vst [vmem:[%s137 + $0x650] sm:$0xff] %v6832
        %7265 = vst [vmem:[%s137 + $0x658] sm:$0xff] %v6833
        %7266 = vst [vmem:[%s137 + $0x660] sm:$0xff] %v6834
        %7267 = vst [vmem:[%s137 + $0x668] sm:$0xff] %v6835
        %7268 = vst [vmem:[%s137 + $0x670] sm:$0xff] %v6836
        %7269 = vst [vmem:[%s137 + $0x678] sm:$0xff] %v6837
        %7270 = vst [vmem:[%s137 + $0x680] sm:$0xff] %v6838
        %7271 = vst [vmem:[%s137 + $0x688] sm:$0xff] %v6839
        %7272 = vst [vmem:[%s137 + $0x690] sm:$0xff] %v6840
        %7273 = vst [vmem:[%s137 + $0x698] sm:$0xff] %v6841
        %7274 = vst [vmem:[%s137 + $0x6a0] sm:$0xff] %v6842
        %7275 = vst [vmem:[%s137 + $0x6a8] sm:$0xff] %v6843
        %7276 = vst [vmem:[%s137 + $0x6b0] sm:$0xff] %v6844
        %7277 = vst [vmem:[%s137 + $0x6b8] sm:$0xff] %v6845
        %7278 = vst [vmem:[%s137 + $0x6c0] sm:$0xff] %v6846
        %7279 = vst [vmem:[%s137 + $0x6c8] sm:$0xff] %v6847
        %7280 = vst [vmem:[%s137 + $0x6d0] sm:$0xff] %v6848
        %7281 = vst [vmem:[%s137 + $0x6d8] sm:$0xff] %v6849
        %7282 = vst [vmem:[%s137 + $0x6e0] sm:$0xff] %v6850
        %7283 = vst [vmem:[%s137 + $0x6e8] sm:$0xff] %v6851
        %7284 = vst [vmem:[%s137 + $0x6f0] sm:$0xff] %v6852
        %7285 = vst [vmem:[%s137 + $0x6f8] sm:$0xff] %v6853
        %7286 = vst [vmem:[%s137 + $0x700] sm:$0xff] %v6854
        %7287 = vst [vmem:[%s137 + $0x708] sm:$0xff] %v6855
        %7288 = vst [vmem:[%s137 + $0x710] sm:$0xff] %v6856
        %7289 = vst [vmem:[%s137 + $0x718] sm:$0xff] %v6857
        %7290 = vst [vmem:[%s137 + $0x720] sm:$0xff] %v6858
        %7291 = vst [vmem:[%s137 + $0x728] sm:$0xff] %v6859
        %7292 = vst [vmem:[%s137 + $0x730] sm:$0xff] %v6860
        %7293 = vst [vmem:[%s137 + $0x738] sm:$0xff] %v6861
        %7294 = vst [vmem:[%s137 + $0x740] sm:$0xff] %v6862
        %7295 = vst [vmem:[%s137 + $0x748] sm:$0xff] %v6863
        %7296 = vst [vmem:[%s137 + $0x750] sm:$0xff] %v6864
        %7297 = vst [vmem:[%s137 + $0x758] sm:$0xff] %v6865
        %7298 = vst [vmem:[%s137 + $0x760] sm:$0xff] %v6866
        %7299 = vst [vmem:[%s137 + $0x768] sm:$0xff] %v6867
        %7300 = vst [vmem:[%s137 + $0x770] sm:$0xff] %v6868
        %7301 = vst [vmem:[%s137 + $0x778] sm:$0xff] %v6869
        %7302 = vst [vmem:[%s137 + $0x780] sm:$0xff] %v6870
        %7303 = vst [vmem:[%s137 + $0x788] sm:$0xff] %v6871
        %7304 = vst [vmem:[%s137 + $0x790] sm:$0xff] %v6872
        %7305 = vst [vmem:[%s137 + $0x798] sm:$0xff] %v6873
        %7306 = vst [vmem:[%s137 + $0x7a0] sm:$0xff] %v6874
        %7307 = vst [vmem:[%s137 + $0x7a8] sm:$0xff] %v6875
        %7308 = vst [vmem:[%s137 + $0x7b0] sm:$0xff] %v6876
        %7309 = vst [vmem:[%s137 + $0x7b8] sm:$0xff] %v6877
        %7310 = vst [vmem:[%s137 + $0x7c0] sm:$0xff] %v6878
        %7311 = vst [vmem:[%s137 + $0x7c8] sm:$0xff] %v6879
        %7312 = vst [vmem:[%s137 + $0x7d0] sm:$0xff] %v6880
        %7313 = vst [vmem:[%s137 + $0x7d8] sm:$0xff] %v6881
        %7314 = vst [vmem:[%s137 + $0x7e0] sm:$0xff] %v6882
        %7315 = vst [vmem:[%s137 + $0x7e8] sm:$0xff] %v6883
        %7316 = vst [vmem:[%s137 + $0x7f0] sm:$0xff] %v6884
        %7317 = vst [vmem:[%s137 + $0x7f8] sm:$0xff] %v6885
        %7318 = vst [vmem:[%s137 + $0x800] sm:$0xff] %v6886
        %7319 = vst [vmem:[%s137 + $0x808] sm:$0xff] %v6887
        %7320 = vst [vmem:[%s137 + $0x810] sm:$0xff] %v6888
        %7321 = vst [vmem:[%s137 + $0x818] sm:$0xff] %v6889
        %7322 = vst [vmem:[%s137 + $0x820] sm:$0xff] %v6890
        %7323 = vst [vmem:[%s137 + $0x828] sm:$0xff] %v6891
        %7324 = vst [vmem:[%s137 + $0x830] sm:$0xff] %v6892
        %7325 = vst [vmem:[%s137 + $0x838] sm:$0xff] %v6893
        %7326 = vst [vmem:[%s137 + $0x840] sm:$0xff] %v6894
        %7327 = vst [vmem:[%s137 + $0x848] sm:$0xff] %v6895
        %7328 = vst [vmem:[%s137 + $0x850] sm:$0xff] %v6896
        %7329 = vst [vmem:[%s137 + $0x858] sm:$0xff] %v6897
        %7330 = vst [vmem:[%s137 + $0x860] sm:$0xff] %v6898
        %7331 = vst [vmem:[%s137 + $0x868] sm:$0xff] %v6899
        %7332 = vst [vmem:[%s137 + $0x870] sm:$0xff] %v6900
        %7333 = vst [vmem:[%s137 + $0x878] sm:$0xff] %v6901
        %7334 = vst [vmem:[%s137 + $0x880] sm:$0xff] %v6902
        %7335 = vst [vmem:[%s137 + $0x888] sm:$0xff] %v6903
        %7336 = vst [vmem:[%s137 + $0x890] sm:$0xff] %v6904
        %7337 = vst [vmem:[%s137 + $0x898] sm:$0xff] %v6905
        %7338 = vst [vmem:[%s137 + $0x8a0] sm:$0xff] %v6906
        %7339 = vst [vmem:[%s137 + $0x8a8] sm:$0xff] %v6907
        %7340 = vst [vmem:[%s137 + $0x8b0] sm:$0xff] %v6908
        %7341 = vst [vmem:[%s137 + $0x8b8] sm:$0xff] %v6909
        %7342 = vst [vmem:[%s137 + $0x8c0] sm:$0xff] %v6910
        %7343 = vst [vmem:[%s137 + $0x8c8] sm:$0xff] %v6911
        %7344 = vst [vmem:[%s137 + $0x8d0] sm:$0xff] %v6912
        %7345 = vst [vmem:[%s137 + $0x8d8] sm:$0xff] %v6913
        %7346 = vst [vmem:[%s137 + $0x8e0] sm:$0xff] %v6914
        %7347 = vst [vmem:[%s137 + $0x8e8] sm:$0xff] %v6915
        %7348 = vst [vmem:[%s137 + $0x8f0] sm:$0xff] %v6916
        %7349 = vst [vmem:[%s137 + $0x8f8] sm:$0xff] %v6917
        %7350 = vst [vmem:[%s137 + $0x900] sm:$0xff] %v6918
        %7351 = vst [vmem:[%s137 + $0x908] sm:$0xff] %v6919
        %7352 = vst [vmem:[%s137 + $0x910] sm:$0xff] %v6920
        %7353 = vst [vmem:[%s137 + $0x918] sm:$0xff] %v6921
        %7354 = vst [vmem:[%s137 + $0x920] sm:$0xff] %v6922
        %7355 = vst [vmem:[%s137 + $0x928] sm:$0xff] %v6923
        %7356 = vst [vmem:[%s137 + $0x930] sm:$0xff] %v6924
        %7357 = vst [vmem:[%s137 + $0x938] sm:$0xff] %v6925
        %7358 = vst [vmem:[%s137 + $0x940] sm:$0xff] %v6926
        %7359 = vst [vmem:[%s137 + $0x948] sm:$0xff] %v6927
        %7360 = vst [vmem:[%s137 + $0x950] sm:$0xff] %v6928
        %7361 = vst [vmem:[%s137 + $0x958] sm:$0xff] %v6929
        %7362 = vst [vmem:[%s137 + $0x960] sm:$0xff] %v6930
        %7363 = vst [vmem:[%s137 + $0x968] sm:$0xff] %v6931
        %7364 = vst [vmem:[%s137 + $0x970] sm:$0xff] %v6932
        %7365 = vst [vmem:[%s137 + $0x978] sm:$0xff] %v6933
        %7366 = vst [vmem:[%s137 + $0x980] sm:$0xff] %v6934
        %7367 = vst [vmem:[%s137 + $0x988] sm:$0xff] %v6935
        %7368 = vst [vmem:[%s137 + $0x990] sm:$0xff] %v6936
        %7369 = vst [vmem:[%s137 + $0x998] sm:$0xff] %v6937
        %7370 = vst [vmem:[%s137 + $0x9a0] sm:$0xff] %v6938
        %7371 = vst [vmem:[%s137 + $0x9a8] sm:$0xff] %v6939
        %7372 = vst [vmem:[%s137 + $0x9b0] sm:$0xff] %v6940
        %7373 = vst [vmem:[%s137 + $0x9b8] sm:$0xff] %v6941
        %7374 = vst [vmem:[%s137 + $0x9c0] sm:$0xff] %v6942
        %7375 = vst [vmem:[%s137 + $0x9c8] sm:$0xff] %v6943
        %7376 = vst [vmem:[%s137 + $0x9d0] sm:$0xff] %v6944
        %7377 = vst [vmem:[%s137 + $0x9d8] sm:$0xff] %v6945
        %7378 = vst [vmem:[%s137 + $0x9e0] sm:$0xff] %v6946
        %7379 = vst [vmem:[%s137 + $0x9e8] sm:$0xff] %v6947
        %7380 = vst [vmem:[%s137 + $0x9f0] sm:$0xff] %v6948
        %7381 = vst [vmem:[%s137 + $0x9f8] sm:$0xff] %v6949
        %7382 = vst [vmem:[%s137 + $0xa00] sm:$0xff] %v6950
        %7383 = vst [vmem:[%s137 + $0xa08] sm:$0xff] %v6951
        %7384 = vst [vmem:[%s137 + $0xa10] sm:$0xff] %v6952
        %7385 = vst [vmem:[%s137 + $0xa18] sm:$0xff] %v6953
        %7386 = vst [vmem:[%s137 + $0xa20] sm:$0xff] %v6954
        %7387 = vst [vmem:[%s137 + $0xa28] sm:$0xff] %v6955
        %7388 = vst [vmem:[%s137 + $0xa30] sm:$0xff] %v6956
        %7389 = vst [vmem:[%s137 + $0xa38] sm:$0xff] %v6957
        %7390 = vst [vmem:[%s137 + $0xa40] sm:$0xff] %v6958
        %7391 = vst [vmem:[%s137 + $0xa48] sm:$0xff] %v6959
        %7392 = vst [vmem:[%s137 + $0xa50] sm:$0xff] %v6960
        %7393 = vst [vmem:[%s137 + $0xa58] sm:$0xff] %v6961
        %7394 = vst [vmem:[%s137 + $0xa60] sm:$0xff] %v6962
        %7395 = vst [vmem:[%s137 + $0xa68] sm:$0xff] %v6963
        %7396 = vst [vmem:[%s137 + $0xa70] sm:$0xff] %v6964
        %7397 = vst [vmem:[%s137 + $0xa78] sm:$0xff] %v6965
        %7398 = vst [vmem:[%s137 + $0xa80] sm:$0xff] %v6966
        %7399 = vst [vmem:[%s137 + $0xa88] sm:$0xff] %v6967
        %7400 = vst [vmem:[%s137 + $0xa90] sm:$0xff] %v6968
        %7401 = vst [vmem:[%s137 + $0xa98] sm:$0xff] %v6969
        %7402 = vst [vmem:[%s137 + $0xaa0] sm:$0xff] %v6970
        %7403 = vst [vmem:[%s137 + $0xaa8] sm:$0xff] %v6971
        %7404 = vst [vmem:[%s137 + $0xab0] sm:$0xff] %v6972
        %7405 = vst [vmem:[%s137 + $0xab8] sm:$0xff] %v6973
        %7406 = vst [vmem:[%s137 + $0xac0] sm:$0xff] %v6974
        %7407 = vst [vmem:[%s137 + $0xac8] sm:$0xff] %v6975
        %7408 = vst [vmem:[%s137 + $0xad0] sm:$0xff] %v6976
        %7409 = vst [vmem:[%s137 + $0xad8] sm:$0xff] %v6977
        %7410 = vst [vmem:[%s137 + $0xae0] sm:$0xff] %v6978
        %7411 = vst [vmem:[%s137 + $0xae8] sm:$0xff] %v6979
        %7412 = vst [vmem:[%s137 + $0xaf0] sm:$0xff] %v6980
        %7413 = vst [vmem:[%s137 + $0xaf8] sm:$0xff] %v6981
        %7414 = vst [vmem:[%s137 + $0xb00] sm:$0xff] %v6982
        %7415 = vst [vmem:[%s137 + $0xb08] sm:$0xff] %v6983
        %7416 = vst [vmem:[%s137 + $0xb10] sm:$0xff] %v6984
        %7417 = vst [vmem:[%s137 + $0xb18] sm:$0xff] %v6985
        %7418 = vst [vmem:[%s137 + $0xb20] sm:$0xff] %v6986
        %7419 = vst [vmem:[%s137 + $0xb28] sm:$0xff] %v6987
        %7420 = vst [vmem:[%s137 + $0xb30] sm:$0xff] %v6988
        %7421 = vst [vmem:[%s137 + $0xb38] sm:$0xff] %v6989
        %7422 = vst [vmem:[%s137 + $0xb40] sm:$0xff] %v6990
        %7423 = vst [vmem:[%s137 + $0xb48] sm:$0xff] %v6991
        %7424 = vst [vmem:[%s137 + $0xb50] sm:$0xff] %v6992
        %7425 = vst [vmem:[%s137 + $0xb58] sm:$0xff] %v6993
        %7426 = vst [vmem:[%s137 + $0xb60] sm:$0xff] %v6994
        %7427 = vst [vmem:[%s137 + $0xb68] sm:$0xff] %v6995
        %7428 = vst [vmem:[%s137 + $0xb70] sm:$0xff] %v6996
        %7429 = vst [vmem:[%s137 + $0xb78] sm:$0xff] %v6997
        %7430 = vst [vmem:[%s137 + $0xb80] sm:$0xff] %v6998
        %7431 = vst [vmem:[%s137 + $0xb88] sm:$0xff] %v6999
        %7432 = vst [vmem:[%s137 + $0xb90] sm:$0xff] %v7000
        %7433 = vst [vmem:[%s137 + $0xb98] sm:$0xff] %v7001
        %7434 = vst [vmem:[%s137 + $0xba0] sm:$0xff] %v7002
        %7435 = vst [vmem:[%s137 + $0xba8] sm:$0xff] %v7003
        %7436 = vst [vmem:[%s137 + $0xbb0] sm:$0xff] %v7004
        %7437 = vst [vmem:[%s137 + $0xbb8] sm:$0xff] %v7005
        %7438 = vst [vmem:[%s137 + $0xbc0] sm:$0xff] %v7006
        %7439 = vst [vmem:[%s137 + $0xbc8] sm:$0xff] %v7007
        %7440 = vst [vmem:[%s137 + $0xbd0] sm:$0xff] %v7008
        %7441 = vst [vmem:[%s137 + $0xbd8] sm:$0xff] %v7009
        %7442 = vst [vmem:[%s137 + $0xbe0] sm:$0xff] %v7010
        %7443 = vst [vmem:[%s137 + $0xbe8] sm:$0xff] %v7011
        %7444 = vst [vmem:[%s137 + $0xbf0] sm:$0xff] %v7012
        %7445 = vst [vmem:[%s137 + $0xbf8] sm:$0xff] %v7013
        %7446 = vst [vmem:[%s137 + $0xc00] sm:$0xff] %v7014
        %7447 = vst [vmem:[%s137 + $0xc08] sm:$0xff] %v7015
        %7448 = vst [vmem:[%s137 + $0xc10] sm:$0xff] %v7016
        %7449 = vst [vmem:[%s137 + $0xc18] sm:$0xff] %v7017
        %7450 = vst [vmem:[%s137 + $0xc20] sm:$0xff] %v7018
        %7451 = vst [vmem:[%s137 + $0xc28] sm:$0xff] %v7019
        %7452 = vst [vmem:[%s137 + $0xc30] sm:$0xff] %v7020
        %7453 = vst [vmem:[%s137 + $0xc38] sm:$0xff] %v7021
        %7454 = vst [vmem:[%s137 + $0xc40] sm:$0xff] %v7022
        %7455 = vst [vmem:[%s137 + $0xc48] sm:$0xff] %v7023
        %7456 = vst [vmem:[%s137 + $0xc50] sm:$0xff] %v7024
        %7457 = vst [vmem:[%s137 + $0xc58] sm:$0xff] %v7025
        %7458 = vst [vmem:[%s137 + $0xc60] sm:$0xff] %v7026
        %7459 = vst [vmem:[%s137 + $0xc68] sm:$0xff] %v7027
        %7460 = vst [vmem:[%s137 + $0xc70] sm:$0xff] %v7028
        %7461 = vst [vmem:[%s137 + $0xc78] sm:$0xff] %v7029
        %7462 = vst [vmem:[%s137 + $0xc80] sm:$0xff] %v7030
        %7463 = vst [vmem:[%s137 + $0xc88] sm:$0xff] %v7031
        %7464 = vst [vmem:[%s137 + $0xc90] sm:$0xff] %v7032
        %7465 = vst [vmem:[%s137 + $0xc98] sm:$0xff] %v7033
        %7466 = vst [vmem:[%s137 + $0xca0] sm:$0xff] %v7034
        %7467 = vst [vmem:[%s137 + $0xca8] sm:$0xff] %v7035
        %7468 = vst [vmem:[%s137 + $0xcb0] sm:$0xff] %v7036
        %7469 = vst [vmem:[%s137 + $0xcb8] sm:$0xff] %v7037
        %7470 = vst [vmem:[%s137 + $0xcc0] sm:$0xff] %v7038
        %7471 = vst [vmem:[%s137 + $0xcc8] sm:$0xff] %v7039
        %7472 = vst [vmem:[%s137 + $0xcd0] sm:$0xff] %v7040
        %7473 = vst [vmem:[%s137 + $0xcd8] sm:$0xff] %v7041
        %7474 = vst [vmem:[%s137 + $0xce0] sm:$0xff] %v7042
        %7475 = vst [vmem:[%s137 + $0xce8] sm:$0xff] %v7043
        %7476 = vst [vmem:[%s137 + $0xcf0] sm:$0xff] %v7044
        %7477 = vst [vmem:[%s137 + $0xcf8] sm:$0xff] %v7045
        %7478 = vst [vmem:[%s137 + $0xd00] sm:$0xff] %v7046
        %7479 = vst [vmem:[%s137 + $0xd08] sm:$0xff] %v7047
        %7480 = vst [vmem:[%s137 + $0xd10] sm:$0xff] %v7048
        %7481 = vst [vmem:[%s137 + $0xd18] sm:$0xff] %v7049
        %7482 = vst [vmem:[%s137 + $0xd20] sm:$0xff] %v7050
        %7483 = vst [vmem:[%s137 + $0xd28] sm:$0xff] %v7051
        %7484 = vst [vmem:[%s137 + $0xd30] sm:$0xff] %v7052
        %7485 = vst [vmem:[%s137 + $0xd38] sm:$0xff] %v7053
        %7486 = vst [vmem:[%s137 + $0xd40] sm:$0xff] %v7054
        %7487 = vst [vmem:[%s137 + $0xd48] sm:$0xff] %v7055
        %7488 = vst [vmem:[%s137 + $0xd50] sm:$0xff] %v7056
        %7489 = vst [vmem:[%s137 + $0xd58] sm:$0xff] %v7057
        %7490 = vst [vmem:[%s137 + $0xd60] sm:$0xff] %v7058
        %7491 = vst [vmem:[%s137 + $0xd68] sm:$0xff] %v7059
        %7492 = vst [vmem:[%s137 + $0xd70] sm:$0xff] %v7060
        %7493 = vst [vmem:[%s137 + $0xd78] sm:$0xff] %v7061
        %s7494 = sand.u32 %s54, 1
        %s7495 = scalar_lea.sflag [#allocation6], %s7494
        %s7496 = sand.u32 %s54, 1
        %s7497 = smul.addr %s7496, 3456
        %s7498 = scalar_lea.vmem [#allocation7], %s7497
        // Predicated region
        $region29: #{tpu_custom_call.1} parent=23 // pred_check
          %p7499 = pneg %p64
        $region30: #{tpu_custom_call.1} parent=23 // pred_check_branch
          %7501 = sbr.rel (%p7499) target = $region32
        $region31: #{tpu_custom_call.1} parent=23 // pred_region
          %s7502 = smul.u32 144, %s20
          %s7504 = ssub.s32 55296, 55296
          %7505 = vsyncadd %s7495, %s7504
          %s7506 = smul.addr %s7502, 3
          %s7507 = smul.addr %s7506, 128
          %s7508 = scalar_lea.hbm %s2, %s7507
          %s7509 = sshll.u32 %s7498, 4
          %s7510 = int_to_ptr.vmem [resolvable:$true] %s7509
          %7515 = dma.vmem_to_hbm [thread:$0]  %s7510, 55296, %s7508, %s7495, 384, 384, 24
        $region32: #{tpu_custom_call.1} parent=23 // pred_fallthru
          _
      $region24: #{tpu_custom_call.1} parent=5 // pred_fallthru
        _
      %p7516 = scmp.le.s32.totalorder 2, %s15
      // Predicated region
      $region33: #{tpu_custom_call.1} parent=5 // pred_check
        %p7517 = pneg %p7516
      $region34: #{tpu_custom_call.1} parent=5 // pred_check_branch
        %7519 = sbr.rel (%p7517) target = $region36
      $region35: #{tpu_custom_call.1} parent=5 // pred_region
        %s7520 = ssub.s32 %s15, 2
        // Predicated region
        $region37: #{tpu_custom_call.1} parent=35 // pred_check
          %p7521 = pneg %p70
        $region38: #{tpu_custom_call.1} parent=35 // pred_check_branch
          %7523 = sbr.rel (%p7521) target = $region40
        $region39: #{tpu_custom_call.1} parent=35 // pred_region
          %s7524 = sand.u32 %s55, 1
          %s7525 = scalar_lea.sflag [#allocation6], %s7524
          %s7526 = sand.u32 %s55, 1
          %s7527 = smul.addr %s7526, 3456
          %s7528 = scalar_lea.vmem [#allocation7], %s7527
          %7529 = dma.done %s7525, 55296
        $region40: #{tpu_custom_call.1} parent=35 // pred_fallthru
          _
      $region36: #{tpu_custom_call.1} parent=5 // pred_fallthru
        _
    $region6: #{tpu_custom_call.1} parent=1 // loop_footer
      %s19 = sadd.s32 1, %s15
    $region7: #{tpu_custom_call.1} parent=1 // loop_footer_branch
      %14 = sbr.rel target = $region3
    $region8: #{tpu_custom_call.1} parent=1 // loop_exit
      _
    %7530 = vsyncpa [#allocation5], 1
    %s7531 = scalar_lea.sflag [#allocation5], 1
    %7532 = vsyncpa %s7531, 1
    %7533 = vsyncpa [#allocation6], 1
    %s7534 = scalar_lea.sflag [#allocation6], 1
    %7535 = vsyncpa %s7534, 1

</llo_original>
